<compile_context>
chip_gen: v7x
topology: tpu7x:2x2x1
jax: 0.10.0
libtpu: 0.0.40
codegen_flags: <defaults>
</compile_context>

<pallas_src>
import functools

import jax
import jax.numpy as jnp
from jax.experimental import pallas as pl
from jax.experimental.pallas import tpu as pltpu

NEG_INF = -1e30          # finite "minus infinity" for additive masks (avoids NaN edges)
LN_EPS = 1e-5
KV_TILE = 128            # KV tile (keys/step). TODO(synk): ~256 on v7x / ~512 on v5e-v6e.
FFN_TILE = 512           # FFN token tile.     TODO(synk): ~256 on v7x (64 MiB VMEM).
VMEM_LIMIT_BYTES = 48 * 1024 * 1024   # explicit scoped-VMEM limit (headroom under v7x)
SINGLE_BUFFER_CONST_BLOCKS = False    # True on v7x: reclaim 2nd pipeline buffer of
                                      # grid-invariant weight/mask blocks


def _round_up(x, m):
    return (x + m - 1) // m * m


def _rep_spec(shape):
    """BlockSpec for a grid-invariant operand (weights / params / masks).

    Its block index never changes across the grid, so the second pipeline buffer is
    pure VMEM waste; on VMEM-tight parts enable SINGLE_BUFFER_CONST_BLOCKS.
    """
    if SINGLE_BUFFER_CONST_BLOCKS:
        return pl.BlockSpec(shape, lambda *_: (0,) * len(shape),
                            pipeline_mode=pl.Buffered(1))
    return pl.BlockSpec(shape, lambda *_: (0,) * len(shape))


# ----------------------------- Pallas kernels ------------------------------

def _mha_flash_kernel(xq_ref, xkv_ref, wq_ref, bq_ref, wkv_ref, bkv_ref,
                      wo_ref, bo_ref, amask_ref, kpm_ref, g_ref, beta_ref,
                      o_ref, q_sc, m_sc, l_sc, acc_sc, *, n_head, eps):
    """Fused MHA block for one (batch, KV-tile) grid point.

    QKV projection -> scaled masked attention with flash-style online softmax over the
    KV grid axis -> Wo -> residual -> LayerNorm.  Used for self- and cross-attention.
    """
    ki = pl.program_id(1)
    nk = pl.num_programs(1)
    _, L, E = xq_ref.shape
    TS = xkv_ref.shape[1]
    H = n_head
    Dh = E // H
    scale = 1.0 / float(Dh) ** 0.5

    @pl.when(ki == 0)
    def _():
        # project (and scale) Q once per batch element; init online-softmax state
        q = jnp.dot(xq_ref[0].astype(jnp.bfloat16), wq_ref[...],
                    preferred_element_type=jnp.float32) + bq_ref[...]
        q_sc[...] = q * scale
        m_sc[...] = jnp.full(m_sc.shape, -jnp.inf, m_sc.dtype)
        l_sc[...] = jnp.zeros(l_sc.shape, l_sc.dtype)
        acc_sc[...] = jnp.zeros(acc_sc.shape, acc_sc.dtype)

    # fused K|V projection for this KV tile: one (TS,E)@(E,2E) MXU matmul
    kv = jnp.dot(xkv_ref[0].astype(jnp.bfloat16), wkv_ref[...],
                 preferred_element_type=jnp.float32) + bkv_ref[...]
    k, v = kv[:, :E], kv[:, E:]

    # TODO(synk): Dh (=E/H) < 128 underfills the MXU contraction/lane width; for
    # production use head_dim 128, pack heads per matmul, or make heads a grid axis.
    qh = q_sc[...].reshape(L, H, Dh).astype(jnp.bfloat16)
    kh = k.reshape(TS, H, Dh).astype(jnp.bfloat16)
    vh = v.reshape(TS, H, Dh).astype(jnp.bfloat16)

    # per-head scores for this KV tile; additive masks broadcast in VMEM
    s = jnp.einsum('lhd,shd->hls', qh, kh, preferred_element_type=jnp.float32)
    s = s + amask_ref[...] + kpm_ref[...]                 # (H,L,TS)+(L,TS)+(1,1,TS)

    # online-softmax update
    m_prev = m_sc[...]
    m_new = jnp.maximum(m_prev, jnp.max(s, axis=-1, keepdims=True))   # (H,L,1), finite
    alpha = jnp.exp(m_prev - m_new)                        # first step: exp(-inf)=0
    p = jnp.exp(s - m_new)                                 # (H,L,TS)
    l_sc[...] = alpha * l_sc[...] + jnp.sum(p, axis=-1, keepdims=True)
    acc_sc[...] = alpha * acc_sc[...] + jnp.einsum(
        'hls,shd->hld', p.astype(jnp.bfloat16), vh,
        preferred_element_type=jnp.float32)
    m_sc[...] = m_new

    @pl.when(ki == nk - 1)
    def _():
        # normalize (EUP reciprocal), merge heads, Wo, fused residual + LayerNorm
        attn = acc_sc[...] * pl.reciprocal(l_sc[...], approx=True)    # (H,L,Dh)
        attn = jnp.transpose(attn, (1, 0, 2)).reshape(L, E)
        proj = jnp.dot(attn.astype(jnp.bfloat16), wo_ref[...],
                       preferred_element_type=jnp.float32) + bo_ref[...]
        h = xq_ref[0] + proj
        mu = jnp.mean(h, axis=-1, keepdims=True)
        var = jnp.mean((h - mu) ** 2, axis=-1, keepdims=True)
        y = (h - mu) * jax.lax.rsqrt(var + eps) * g_ref[...] + beta_ref[...]
        o_ref[...] = y.reshape(1, L, E)


def _ffn_block_kernel(x_ref, w1_ref, b1_ref, w2_ref, b2_ref, g_ref, beta_ref, o_ref,
                      *, eps):
    """Fused positionwise FFN: x@W1+b1 -> ReLU -> @W2+b2 -> residual -> LayerNorm."""
    x = x_ref[...]                                         # (TM, E) f32
    h = jnp.dot(x.astype(jnp.bfloat16), w1_ref[...],
                preferred_element_type=jnp.float32) + b1_ref[...]
    h = jnp.maximum(h, 0.0)
    f = jnp.dot(h.astype(jnp.bfloat16), w2_ref[...],
                preferred_element_type=jnp.float32) + b2_ref[...]
    r = x + f
    mu = jnp.mean(r, axis=-1, keepdims=True)
    var = jnp.mean((r - mu) ** 2, axis=-1, keepdims=True)
    o_ref[...] = (r - mu) * jax.lax.rsqrt(var + eps) * g_ref[...] + beta_ref[...]


# ----------------------------- Pallas wrappers ------------------------------

def pallas_fused_mha(xq, xkv, wqkv, bqkv, wo, bo, attn_mask, kpm_add,
                     ln_g, ln_b, n_head, *, eps=LN_EPS):
    """xq:(N,L,E) query/residual; xkv:(N,S,E) keys/values source (== xq for self-attn);
    attn_mask:(L,S) additive f32; kpm_add:(N,S) additive f32.  Returns (N,L,E) f32."""
    N, L, E = xq.shape
    S = xkv.shape[1]
    H = n_head
    Dh = E // H

    # KV tile: lane-aligned when S allows, otherwise the whole S in one tile.
    ts = KV_TILE if S % KV_TILE == 0 else S
    n_kv = S // ts

    # torch in_proj layout (E, 3E) split into Q and fused K|V halves, shipped in bf16
    # (MXU-native on all gens; also halves weight DMA / VMEM).
    # TODO(synk): int8 weights on v5e/v6e, fp8 on v7x for a further ~2x over bf16.
    wq = wqkv[:, :E].astype(jnp.bfloat16)
    wkv = wqkv[:, E:].astype(jnp.bfloat16)
    bq = bqkv[:E].reshape(1, E)
    bkv = bqkv[E:].reshape(1, 2 * E)

    in_specs = [
        pl.BlockSpec((1, L, E), lambda b, k: (b, 0, 0)),     # query / residual
        pl.BlockSpec((1, ts, E), lambda b, k: (b, k, 0)),    # K/V source tile
        _rep_spec((E, E)),                                   # Wq
        _rep_spec((1, E)),                                   # bq
        _rep_spec((E, 2 * E)),                               # Wkv
        _rep_spec((1, 2 * E)),                               # bkv
        _rep_spec((E, E)),                                   # Wo
        _rep_spec((1, E)),                                   # bo
        pl.BlockSpec((L, ts), lambda b, k: (0, k)),          # additive attn-mask tile
        pl.BlockSpec((1, 1, ts), lambda b, k: (b, 0, k)),    # additive key-pad tile
        _rep_spec((1, E)),                                   # LayerNorm gamma
        _rep_spec((1, E)),                                   # LayerNorm beta
    ]
    scratch = [
        pltpu.VMEM((L, E), jnp.float32),        # scaled Q (projected once per batch)
        pltpu.VMEM((H, L, 1), jnp.float32),     # running max m
        pltpu.VMEM((H, L, 1), jnp.float32),     # running denom l
        pltpu.VMEM((H, L, Dh), jnp.float32),    # output accumulator
    ]

    return pl.pallas_call(
        functools.partial(_mha_flash_kernel, n_head=n_head, eps=eps),
        out_shape=jax.ShapeDtypeStruct((N, L, E), jnp.float32),
        grid=(N, n_kv),
        in_specs=in_specs,
        out_specs=pl.BlockSpec((1, L, E), lambda b, k: (b, 0, 0)),
        scratch_shapes=scratch,
        compiler_params=pltpu.CompilerParams(
            # TODO(synk): add a parallel L-tile grid axis so v7x's 2 TensorCores stay
            # busy when N is small (decode).
            dimension_semantics=("parallel", "arbitrary"),
            vmem_limit_bytes=VMEM_LIMIT_BYTES),
    )(xq, xkv, wq, bq, wkv, bkv, wo.astype(jnp.bfloat16), bo.reshape(1, E),
      attn_mask.astype(jnp.float32), kpm_add.reshape(N, 1, S),
      ln_g.reshape(1, E), ln_b.reshape(1, E))


def pallas_fused_ffn(x, w1, b1, w2, b2, ln_g, ln_b, *, eps=LN_EPS):
    """x:(M,E) tokens, tiled over M with a parallel grid; M is zero-padded up to a
    tile multiple (padded rows are sliced off afterwards)."""
    M, E = x.shape
    DFF = w1.shape[1]
    tm = min(FFN_TILE, _round_up(M, 8))       # sublane-aligned token tile
    m_pad = _round_up(M, tm)
    xp = jnp.pad(x, ((0, m_pad - M), (0, 0))) if m_pad != M else x

    # TODO(synk): for very large DFF, add a K-tiled reduction grid axis over DFF with a
    # VMEM accumulator instead of replicating full W1/W2 blocks (v7x VMEM headroom).
    out = pl.pallas_call(
        functools.partial(_ffn_block_kernel, eps=eps),
        out_shape=jax.ShapeDtypeStruct((m_pad, E), jnp.float32),
        grid=(m_pad // tm,),
        in_specs=[pl.BlockSpec((tm, E), lambda i: (i, 0)),
                  _rep_spec((E, DFF)),
                  _rep_spec((1, DFF)),
                  _rep_spec((DFF, E)),
                  _rep_spec((1, E)),
                  _rep_spec((1, E)),
                  _rep_spec((1, E))],
        out_specs=pl.BlockSpec((tm, E), lambda i: (i, 0)),
        compiler_params=pltpu.CompilerParams(
            dimension_semantics=("parallel",),
            vmem_limit_bytes=VMEM_LIMIT_BYTES),
    )(xp, w1.astype(jnp.bfloat16), b1.reshape(1, DFF),
      w2.astype(jnp.bfloat16), b2.reshape(1, E),
      ln_g.reshape(1, E), ln_b.reshape(1, E))
    return out[:M] if m_pad != M else out


# ----------------------------- module forward ------------------------------

def decoder_layer_forward(tgt, memory, tgt_mask, tgt_kpm, mem_kpm, params, n_head):
    """tgt:(L,N,E), memory:(S,N,E), tgt_mask:(L,L) additive float,
    tgt_kpm:(N,L)/mem_kpm:(N,S) bool (True = padded).  Dropout = identity."""
    L, N, E = tgt.shape
    S = memory.shape[0]

    # TODO(synk): read the native (L,N,E) layout directly via (L,1,E) BlockSpecs to
    # drop these HBM transposes (saves 2-3 activation round trips per layer).
    x = jnp.transpose(tgt, (1, 0, 2))        # (N, L, E)
    mem = jnp.transpose(memory, (1, 0, 2))   # (N, S, E)

    tgt_kpm_add = jnp.where(tgt_kpm, NEG_INF, 0.0).astype(jnp.float32)   # (N, L)
    mem_kpm_add = jnp.where(mem_kpm, NEG_INF, 0.0).astype(jnp.float32)   # (N, S)
    no_mask = jnp.zeros((L, S), jnp.float32)

    p_sa, p_ca = params['self_attn'], params['cross_attn']

    # masked self-attention -> residual -> norm1 (fused, KV-tiled)
    x = pallas_fused_mha(x, x, p_sa['wqkv'], p_sa['bqkv'], p_sa['wo'], p_sa['bo'],
                         tgt_mask.astype(jnp.float32), tgt_kpm_add,
                         params['ln1_g'], params['ln1_b'], n_head)

    # cross-attention -> residual -> norm2 (fused, KV-tiled over memory)
    x = pallas_fused_mha(x, mem, p_ca['wqkv'], p_ca['bqkv'], p_ca['wo'], p_ca['bo'],
                         no_mask, mem_kpm_add,
                         params['ln2_g'], params['ln2_b'], n_head)

    # positionwise FFN -> residual -> norm3 (fused)
    x = pallas_fused_ffn(x.reshape(N * L, E),
                         params['ffn_w1'], params['ffn_b1'],
                         params['ffn_w2'], params['ffn_b2'],
                         params['ln3_g'], params['ln3_b']).reshape(N, L, E)

    # TODO(synk): keep d_model a multiple of 128 in production so the (.., E) output
    # stores stay lane-dense (E=32 here -> masked vst partial stores).
    return jnp.transpose(x, (1, 0, 2))       # back to (L, N, E)


# ----------------------------- pure-JAX reference ------------------------------

def _ref_mha(query, key, value, attn_mask, kpm, p, n_head):
    L, N, E = query.shape
    S = key.shape[0]
    H = n_head
    Dh = E // H
    w, b = p['wqkv'], p['bqkv']
    q = query.reshape(L * N, E) @ w[:, :E] + b[:E]
    k = key.reshape(S * N, E) @ w[:, E:2 * E] + b[E:2 * E]
    v = value.reshape(S * N, E) @ w[:, 2 * E:] + b[2 * E:]
    q = q.reshape(L, N, H, Dh).transpose(1, 2, 0, 3)
    k = k.reshape(S, N, H, Dh).transpose(1, 2, 0, 3)
    v = v.reshape(S, N, H, Dh).transpose(1, 2, 0, 3)
    s = jnp.einsum('nhld,nhsd->nhls', q, k) / jnp.sqrt(Dh)
    s = s + attn_mask[None, None] + jnp.where(kpm, NEG_INF, 0.0)[:, None, None, :]
    a = jax.nn.softmax(s, axis=-1)
    o = jnp.einsum('nhls,nhsd->nhld', a, v)
    o = o.transpose(2, 0, 1, 3).reshape(L * N, E)
    return (o @ p['wo'] + p['bo']).reshape(L, N, E)


def _ref_ln(x, g, b, eps=LN_EPS):
    mu = jnp.mean(x, axis=-1, keepdims=True)
    var = jnp.mean((x - mu) ** 2, axis=-1, keepdims=True)
    return (x - mu) * jax.lax.rsqrt(var + eps) * g + b


def reference_forward(tgt, memory, tgt_mask, tgt_kpm, mem_kpm, params, n_head):
    L, N, E = tgt.shape
    S = memory.shape[0]
    sa = _ref_mha(tgt, tgt, tgt, tgt_mask, tgt_kpm, params['self_attn'], n_head)
    x = _ref_ln(tgt + sa, params['ln1_g'], params['ln1_b'])
    ca = _ref_mha(x, memory, memory, jnp.zeros((L, S), jnp.float32), mem_kpm,
                  params['cross_attn'], n_head)
    x = _ref_ln(x + ca, params['ln2_g'], params['ln2_b'])
    h = jnp.maximum(x.reshape(L * N, E) @ params['ffn_w1'] + params['ffn_b1'], 0.0)
    ffn = (h @ params['ffn_w2'] + params['ffn_b2']).reshape(L, N, E)
    return _ref_ln(x + ffn, params['ln3_g'], params['ln3_b'])


# ----------------------------- driver ------------------------------

def _init_mha_params(key, E):
    ks = jax.random.split(key, 4)
    s = 0.05
    return {
        'wqkv': s * jax.random.normal(ks[0], (E, 3 * E), jnp.float32),
        'bqkv': 0.02 * jax.random.normal(ks[1], (3 * E,), jnp.float32),
        'wo': s * jax.random.normal(ks[2], (E, E), jnp.float32),
        'bo': 0.02 * jax.random.normal(ks[3], (E,), jnp.float32),
    }


if __name__ == "__main__":
    # d_model=32, n_head=4, d_ff=64.  Memory length 256 so cross-attention exercises
    # the multi-tile (2 x 128) online-softmax path; self-attention runs single-tile.
    L, S, N, E, H, DFF = 8, 256, 2, 32, 4, 64

    key = jax.random.PRNGKey(0)
    ks = jax.random.split(key, 12)

    params = {
        'self_attn': _init_mha_params(ks[0], E),
        'cross_attn': _init_mha_params(ks[1], E),
        'ffn_w1': 0.05 * jax.random.normal(ks[2], (E, DFF), jnp.float32),
        'ffn_b1': 0.02 * jax.random.normal(ks[3], (DFF,), jnp.float32),
        'ffn_w2': 0.05 * jax.random.normal(ks[4], (DFF, E), jnp.float32),
        'ffn_b2': 0.02 * jax.random.normal(ks[5], (E,), jnp.float32),
        'ln1_g': 1.0 + 0.1 * jax.random.normal(ks[6], (E,), jnp.float32),
        'ln1_b': 0.05 * jax.random.normal(ks[7], (E,), jnp.float32),
        'ln2_g': 1.0 + 0.1 * jax.random.normal(ks[8], (E,), jnp.float32),
        'ln2_b': 0.05 * jax.random.normal(ks[9], (E,), jnp.float32),
        'ln3_g': jnp.ones((E,), jnp.float32),
        'ln3_b': jnp.zeros((E,), jnp.float32),
    }

    tgt = jax.random.normal(ks[10], (L, N, E), jnp.float32)
    memory = jax.random.normal(ks[11], (S, N, E), jnp.float32)

    # causal attn_mask (float, additive) and key-padding masks (bool, True = padded;
    # at least one valid key kept per row)
    causal = jnp.triu(jnp.full((L, L), NEG_INF, jnp.float32), k=1)
    tgt_kpm = jnp.zeros((N, L), bool).at[1, L - 1].set(True)
    mem_kpm = (jnp.zeros((N, S), bool)
               .at[0, 200:].set(True)      # padding spills into the 2nd KV tile
               .at[1, :7].set(True))       # padding at the start of the 1st KV tile

    fwd = jax.jit(decoder_layer_forward, static_argnums=6)
    out = jax.block_until_ready(fwd(tgt, memory, causal, tgt_kpm, mem_kpm, params, H))

    ref = reference_forward(tgt, memory, causal, tgt_kpm, mem_kpm, params, H)
    assert out.shape == (L, N, E)
    err = float(jnp.max(jnp.abs(out - ref)))
    # tolerance covers bf16 MXU operands (f32 reference) + approx reciprocal softmax
    assert jnp.allclose(out, ref, atol=2e-2, rtol=2e-2), err

    print("KERNEL_OK")
</pallas_src>

<mosaic_0001>
module attributes {stable_mosaic.version = 11 : i64} {
  func.func @_mha_flash_kernel(%arg0: i32, %arg1: i32, %arg2: memref<1x8x32xf32, #tpu.memory_space<vmem>>, %arg3: memref<1x8x32xf32, #tpu.memory_space<vmem>>, %arg4: memref<32x32xbf16, #tpu.memory_space<vmem>>, %arg5: memref<1x32xf32, #tpu.memory_space<vmem>>, %arg6: memref<32x64xbf16, #tpu.memory_space<vmem>>, %arg7: memref<1x64xf32, #tpu.memory_space<vmem>>, %arg8: memref<32x32xbf16, #tpu.memory_space<vmem>>, %arg9: memref<1x32xf32, #tpu.memory_space<vmem>>, %arg10: memref<8x8xf32, #tpu.memory_space<vmem>>, %arg11: memref<1x1x8xf32, #tpu.memory_space<vmem>>, %arg12: memref<1x32xf32, #tpu.memory_space<vmem>>, %arg13: memref<1x32xf32, #tpu.memory_space<vmem>>, %arg14: memref<1x8x32xf32, #tpu.memory_space<vmem>>, %arg15: memref<8x32xf32, #tpu.memory_space<vmem>>, %arg16: memref<4x8x1xf32, #tpu.memory_space<vmem>>, %arg17: memref<4x8x1xf32, #tpu.memory_space<vmem>>, %arg18: memref<4x8x8xf32, #tpu.memory_space<vmem>>) attributes {dimension_semantics = [#tpu.dimension_semantics<parallel>, #tpu.dimension_semantics<arbitrary>], iteration_bounds = array<i64: 2, 1>, scalar_prefetch = 0 : i64, scratch_operands = 4 : i64, tpu.core_type = #tpu.core_type<tc>, window_params = [{transform_indices = @transform_0, window_bounds = array<i64: 1, 8, 32>}, {transform_indices = @transform_1, window_bounds = array<i64: 1, 8, 32>}, {pipeline_mode = #tpu.pipeline_mode<synchronous>, transform_indices = @transform_2, window_bounds = array<i64: 32, 32>}, {pipeline_mode = #tpu.pipeline_mode<synchronous>, transform_indices = @transform_3, window_bounds = array<i64: 1, 32>}, {pipeline_mode = #tpu.pipeline_mode<synchronous>, transform_indices = @transform_4, window_bounds = array<i64: 32, 64>}, {pipeline_mode = #tpu.pipeline_mode<synchronous>, transform_indices = @transform_5, window_bounds = array<i64: 1, 64>}, {pipeline_mode = #tpu.pipeline_mode<synchronous>, transform_indices = @transform_6, window_bounds = array<i64: 32, 32>}, {pipeline_mode = #tpu.pipeline_mode<synchronous>, transform_indices = @transform_7, window_bounds = array<i64: 1, 32>}, {transform_indices = @transform_8, window_bounds = array<i64: 8, 8>}, {transform_indices = @transform_9, window_bounds = array<i64: 1, 1, 8>}, {pipeline_mode = #tpu.pipeline_mode<synchronous>, transform_indices = @transform_10, window_bounds = array<i64: 1, 32>}, {pipeline_mode = #tpu.pipeline_mode<synchronous>, transform_indices = @transform_11, window_bounds = array<i64: 1, 32>}, {transform_indices = @transform_12, window_bounds = array<i64: 1, 8, 32>}]} {
    %c0_i32 = arith.constant 0 : i32
    %0 = arith.cmpi eq, %arg1, %c0_i32 : i32
    %1 = arith.extui %0 : i1 to i32
    %c0_i32_0 = arith.constant 0 : i32
    %2 = arith.cmpi ne, %1, %c0_i32_0 : i32
    scf.if %2 {
      %c0_38 = arith.constant 0 : index
      %c0_39 = arith.constant 0 : index
      %c0_40 = arith.constant 0 : index
      %54 = vector.load %arg2[%c0_38, %c0_39, %c0_40] : memref<1x8x32xf32, #tpu.memory_space<vmem>>, vector<1x8x32xf32>
      %55 = vector.shape_cast %54 : vector<1x8x32xf32> to vector<8x32xf32>
      %56 = arith.truncf %55 : vector<8x32xf32> to vector<8x32xbf16>
      %c0_41 = arith.constant 0 : index
      %c0_42 = arith.constant 0 : index
      %57 = vector.load %arg4[%c0_41, %c0_42] : memref<32x32xbf16, #tpu.memory_space<vmem>>, vector<32x32xbf16>
      %cst_43 = arith.constant dense<0.000000e+00> : vector<8x32xf32>
      %58 = tpu.matmul %56, %57, %cst_43 {dimension_numbers = #tpu.dot_dimension_numbers<[1], [0], [0], [1], [0, 0, 1, 1], [], []>} : vector<8x32xbf16>, vector<32x32xbf16>, vector<8x32xf32> -> vector<8x32xf32>
      %c0_44 = arith.constant 0 : index
      %c0_45 = arith.constant 0 : index
      %59 = vector.load %arg5[%c0_44, %c0_45] : memref<1x32xf32, #tpu.memory_space<vmem>>, vector<1x32xf32>
      %60 = vector.broadcast %59 : vector<1x32xf32> to vector<8x32xf32>
      %61 = arith.addf %58, %60 : vector<8x32xf32>
      %cst_46 = arith.constant 0.353553385 : f32
      %62 = vector.broadcast %cst_46 : f32 to vector<8x32xf32>
      %63 = arith.mulf %61, %62 : vector<8x32xf32>
      %c0_47 = arith.constant 0 : index
      %c0_48 = arith.constant 0 : index
      %64 = vector.load %arg15[%c0_47, %c0_48] : memref<8x32xf32, #tpu.memory_space<vmem>>, vector<8x32xf32>
      tpu.vector_store %arg15[%c0_47, %c0_48], %63 {strides = array<i32>} : memref<8x32xf32, #tpu.memory_space<vmem>>, vector<8x32xf32>,
      %cst_49 = arith.constant 0xFF800000 : f32
      %65 = vector.broadcast %cst_49 : f32 to vector<4x8x1xf32>
      %c0_50 = arith.constant 0 : index
      %c0_51 = arith.constant 0 : index
      %c0_52 = arith.constant 0 : index
      %66 = vector.load %arg16[%c0_50, %c0_51, %c0_52] : memref<4x8x1xf32, #tpu.memory_space<vmem>>, vector<4x8x1xf32>
      tpu.vector_store %arg16[%c0_50, %c0_51, %c0_52], %65 {strides = array<i32>} : memref<4x8x1xf32, #tpu.memory_space<vmem>>, vector<4x8x1xf32>,
      %cst_53 = arith.constant 0.000000e+00 : f32
      %67 = vector.broadcast %cst_53 : f32 to vector<4x8x1xf32>
      %c0_54 = arith.constant 0 : index
      %c0_55 = arith.constant 0 : index
      %c0_56 = arith.constant 0 : index
      %68 = vector.load %arg17[%c0_54, %c0_55, %c0_56] : memref<4x8x1xf32, #tpu.memory_space<vmem>>, vector<4x8x1xf32>
      tpu.vector_store %arg17[%c0_54, %c0_55, %c0_56], %67 {strides = array<i32>} : memref<4x8x1xf32, #tpu.memory_space<vmem>>, vector<4x8x1xf32>,
      %cst_57 = arith.constant 0.000000e+00 : f32
      %69 = vector.broadcast %cst_57 : f32 to vector<4x8x8xf32>
      %c0_58 = arith.constant 0 : index
      %c0_59 = arith.constant 0 : index
      %c0_60 = arith.constant 0 : index
      %70 = vector.load %arg18[%c0_58, %c0_59, %c0_60] : memref<4x8x8xf32, #tpu.memory_space<vmem>>, vector<4x8x8xf32>
      tpu.vector_store %arg18[%c0_58, %c0_59, %c0_60], %69 {strides = array<i32>} : memref<4x8x8xf32, #tpu.memory_space<vmem>>, vector<4x8x8xf32>,
    } else {
    }
    %c0 = arith.constant 0 : index
    %c0_1 = arith.constant 0 : index
    %c0_2 = arith.constant 0 : index
    %3 = vector.load %arg3[%c0, %c0_1, %c0_2] : memref<1x8x32xf32, #tpu.memory_space<vmem>>, vector<1x8x32xf32>
    %4 = vector.shape_cast %3 : vector<1x8x32xf32> to vector<8x32xf32>
    %5 = arith.truncf %4 : vector<8x32xf32> to vector<8x32xbf16>
    %c0_3 = arith.constant 0 : index
    %c0_4 = arith.constant 0 : index
    %6 = vector.load %arg6[%c0_3, %c0_4] : memref<32x64xbf16, #tpu.memory_space<vmem>>, vector<32x64xbf16>
    %cst = arith.constant dense<0.000000e+00> : vector<8x64xf32>
    %7 = tpu.matmul %5, %6, %cst {dimension_numbers = #tpu.dot_dimension_numbers<[1], [0], [0], [1], [0, 0, 1, 1], [], []>} : vector<8x32xbf16>, vector<32x64xbf16>, vector<8x64xf32> -> vector<8x64xf32>
    %c0_5 = arith.constant 0 : index
    %c0_6 = arith.constant 0 : index
    %8 = vector.load %arg7[%c0_5, %c0_6] : memref<1x64xf32, #tpu.memory_space<vmem>>, vector<1x64xf32>
    %9 = vector.broadcast %8 : vector<1x64xf32> to vector<8x64xf32>
    %10 = arith.addf %7, %9 : vector<8x64xf32>
    %11 = vector.extract_strided_slice %10 {offsets = [0, 0], sizes = [8, 32], strides = [1, 1]} : vector<8x64xf32> to vector<8x32xf32>
    %12 = vector.extract_strided_slice %10 {offsets = [0, 32], sizes = [8, 32], strides = [1, 1]} : vector<8x64xf32> to vector<8x32xf32>
    %c0_7 = arith.constant 0 : index
    %c0_8 = arith.constant 0 : index
    %13 = vector.load %arg15[%c0_7, %c0_8] : memref<8x32xf32, #tpu.memory_space<vmem>>, vector<8x32xf32>
    %14 = vector.shape_cast %13 : vector<8x32xf32> to vector<8x4x8xf32>
    %15 = arith.truncf %14 : vector<8x4x8xf32> to vector<8x4x8xbf16>
    %16 = vector.shape_cast %11 : vector<8x32xf32> to vector<8x4x8xf32>
    %17 = arith.truncf %16 : vector<8x4x8xf32> to vector<8x4x8xbf16>
    %18 = vector.shape_cast %12 : vector<8x32xf32> to vector<8x4x8xf32>
    %19 = arith.truncf %18 : vector<8x4x8xf32> to vector<8x4x8xbf16>
    "tpu.trace_start"() <{level = 10 : i32, message = "lhd,shd->hls"}> : () -> ()
    %cst_9 = arith.constant dense<0.000000e+00> : vector<4x8x8xf32>
    %20 = tpu.matmul %15, %17, %cst_9 {dimension_numbers = #tpu.dot_dimension_numbers<[2], [2], [0], [0], [0, 1, 0, 0, 1, 0], [1], [1]>} : vector<8x4x8xbf16>, vector<8x4x8xbf16>, vector<4x8x8xf32> -> vector<4x8x8xf32>
    "tpu.trace_stop"() : () -> ()
    %c0_10 = arith.constant 0 : index
    %c0_11 = arith.constant 0 : index
    %21 = vector.load %arg10[%c0_10, %c0_11] : memref<8x8xf32, #tpu.memory_space<vmem>>, vector<8x8xf32>
    %22 = vector.shape_cast %21 : vector<8x8xf32> to vector<1x8x8xf32>
    %23 = vector.broadcast %22 : vector<1x8x8xf32> to vector<4x8x8xf32>
    %24 = arith.addf %20, %23 : vector<4x8x8xf32>
    %c0_12 = arith.constant 0 : index
    %c0_13 = arith.constant 0 : index
    %c0_14 = arith.constant 0 : index
    %25 = vector.load %arg11[%c0_12, %c0_13, %c0_14] : memref<1x1x8xf32, #tpu.memory_space<vmem>>, vector<1x1x8xf32>
    %26 = vector.broadcast %25 : vector<1x1x8xf32> to vector<4x8x8xf32>
    %27 = arith.addf %24, %26 : vector<4x8x8xf32>
    %c0_15 = arith.constant 0 : index
    %c0_16 = arith.constant 0 : index
    %c0_17 = arith.constant 0 : index
    %28 = vector.load %arg16[%c0_15, %c0_16, %c0_17] : memref<4x8x1xf32, #tpu.memory_space<vmem>>, vector<4x8x1xf32>
    %cst_18 = arith.constant dense<0xFF800000> : vector<4x8xf32>
    %29 = vector.multi_reduction <maximumf>, %27, %cst_18 [2] : vector<4x8x8xf32> to vector<4x8xf32>
    %30 = vector.shape_cast %29 : vector<4x8xf32> to vector<4x8x1xf32>
    %31 = arith.maximumf %28, %30 : vector<4x8x1xf32>
    %32 = arith.subf %28, %31 : vector<4x8x1xf32>
    %33 = math.exp %32 : vector<4x8x1xf32>
    %34 = vector.broadcast %31 : vector<4x8x1xf32> to vector<4x8x8xf32>
    %35 = arith.subf %27, %34 : vector<4x8x8xf32>
    %36 = math.exp %35 : vector<4x8x8xf32>
    %c0_19 = arith.constant 0 : index
    %c0_20 = arith.constant 0 : index
    %c0_21 = arith.constant 0 : index
    %37 = vector.load %arg17[%c0_19, %c0_20, %c0_21] : memref<4x8x1xf32, #tpu.memory_space<vmem>>, vector<4x8x1xf32>
    %38 = arith.mulf %33, %37 : vector<4x8x1xf32>
    %cst_22 = arith.constant dense<0.000000e+00> : vector<4x8xf32>
    %39 = vector.multi_reduction <add>, %36, %cst_22 [2] : vector<4x8x8xf32> to vector<4x8xf32>
    %40 = vector.shape_cast %39 : vector<4x8xf32> to vector<4x8x1xf32>
    %41 = arith.addf %38, %40 : vector<4x8x1xf32>
    %c0_23 = arith.constant 0 : index
    %c0_24 = arith.constant 0 : index
    %c0_25 = arith.constant 0 : index
    %42 = vector.load %arg17[%c0_23, %c0_24, %c0_25] : memref<4x8x1xf32, #tpu.memory_space<vmem>>, vector<4x8x1xf32>
    tpu.vector_store %arg17[%c0_23, %c0_24, %c0_25], %41 {strides = array<i32>} : memref<4x8x1xf32, #tpu.memory_space<vmem>>, vector<4x8x1xf32>,
    %c0_26 = arith.constant 0 : index
    %c0_27 = arith.constant 0 : index
    %c0_28 = arith.constant 0 : index
    %43 = vector.load %arg18[%c0_26, %c0_27, %c0_28] : memref<4x8x8xf32, #tpu.memory_space<vmem>>, vector<4x8x8xf32>
    %44 = vector.broadcast %33 : vector<4x8x1xf32> to vector<4x8x8xf32>
    %45 = arith.mulf %44, %43 : vector<4x8x8xf32>
    %46 = arith.truncf %36 : vector<4x8x8xf32> to vector<4x8x8xbf16>
    "tpu.trace_start"() <{level = 10 : i32, message = "hls,shd->hld"}> : () -> ()
    %cst_29 = arith.constant dense<0.000000e+00> : vector<4x8x8xf32>
    %47 = tpu.matmul %46, %19, %cst_29 {dimension_numbers = #tpu.dot_dimension_numbers<[2], [0], [1], [2], [0, 0, 0, 1, 1, 2], [0], [1]>} : vector<4x8x8xbf16>, vector<8x4x8xbf16>, vector<4x8x8xf32> -> vector<4x8x8xf32>
    "tpu.trace_stop"() : () -> ()
    %48 = arith.addf %45, %47 : vector<4x8x8xf32>
    %c0_30 = arith.constant 0 : index
    %c0_31 = arith.constant 0 : index
    %c0_32 = arith.constant 0 : index
    %49 = vector.load %arg18[%c0_30, %c0_31, %c0_32] : memref<4x8x8xf32, #tpu.memory_space<vmem>>, vector<4x8x8xf32>
    tpu.vector_store %arg18[%c0_30, %c0_31, %c0_32], %48 {strides = array<i32>} : memref<4x8x8xf32, #tpu.memory_space<vmem>>, vector<4x8x8xf32>,
    %c0_33 = arith.constant 0 : index
    %c0_34 = arith.constant 0 : index
    %c0_35 = arith.constant 0 : index
    %50 = vector.load %arg16[%c0_33, %c0_34, %c0_35] : memref<4x8x1xf32, #tpu.memory_space<vmem>>, vector<4x8x1xf32>
    tpu.vector_store %arg16[%c0_33, %c0_34, %c0_35], %31 {strides = array<i32>} : memref<4x8x1xf32, #tpu.memory_space<vmem>>, vector<4x8x1xf32>,
    %c0_i32_36 = arith.constant 0 : i32
    %51 = arith.cmpi eq, %arg1, %c0_i32_36 : i32
    %52 = arith.extui %51 : i1 to i32
    %c0_i32_37 = arith.constant 0 : i32
    %53 = arith.cmpi ne, %52, %c0_i32_37 : i32
    scf.if %53 {
      %c0_38 = arith.constant 0 : index
      %c0_39 = arith.constant 0 : index
      %c0_40 = arith.constant 0 : index
      %54 = vector.load %arg18[%c0_38, %c0_39, %c0_40] : memref<4x8x8xf32, #tpu.memory_space<vmem>>, vector<4x8x8xf32>
      %c0_41 = arith.constant 0 : index
      %c0_42 = arith.constant 0 : index
      %c0_43 = arith.constant 0 : index
      %55 = vector.load %arg17[%c0_41, %c0_42, %c0_43] : memref<4x8x1xf32, #tpu.memory_space<vmem>>, vector<4x8x1xf32>
      %56 = tpu.reciprocal %55 {approx = true} : vector<4x8x1xf32> -> vector<4x8x1xf32>
      %57 = vector.broadcast %56 : vector<4x8x1xf32> to vector<4x8x8xf32>
      %58 = arith.mulf %54, %57 : vector<4x8x8xf32>
      %59 = tpu.transpose %58, [1, 0, 2] : vector<4x8x8xf32> -> vector<8x4x8xf32>
      %60 = vector.shape_cast %59 : vector<8x4x8xf32> to vector<8x32xf32>
      %61 = arith.truncf %60 : vector<8x32xf32> to vector<8x32xbf16>
      %c0_44 = arith.constant 0 : index
      %c0_45 = arith.constant 0 : index
      %62 = vector.load %arg8[%c0_44, %c0_45] : memref<32x32xbf16, #tpu.memory_space<vmem>>, vector<32x32xbf16>
      %cst_46 = arith.constant dense<0.000000e+00> : vector<8x32xf32>
      %63 = tpu.matmul %61, %62, %cst_46 {dimension_numbers = #tpu.dot_dimension_numbers<[1], [0], [0], [1], [0, 0, 1, 1], [], []>} : vector<8x32xbf16>, vector<32x32xbf16>, vector<8x32xf32> -> vector<8x32xf32>
      %c0_47 = arith.constant 0 : index
      %c0_48 = arith.constant 0 : index
      %64 = vector.load %arg9[%c0_47, %c0_48] : memref<1x32xf32, #tpu.memory_space<vmem>>, vector<1x32xf32>
      %65 = vector.broadcast %64 : vector<1x32xf32> to vector<8x32xf32>
      %66 = arith.addf %63, %65 : vector<8x32xf32>
      %c0_49 = arith.constant 0 : index
      %c0_50 = arith.constant 0 : index
      %c0_51 = arith.constant 0 : index
      %67 = vector.load %arg2[%c0_49, %c0_50, %c0_51] : memref<1x8x32xf32, #tpu.memory_space<vmem>>, vector<1x8x32xf32>
      %68 = vector.shape_cast %67 : vector<1x8x32xf32> to vector<8x32xf32>
      %69 = arith.addf %68, %66 : vector<8x32xf32>
      %cst_52 = arith.constant dense<0.000000e+00> : vector<8xf32>
      %70 = vector.multi_reduction <add>, %69, %cst_52 [1] : vector<8x32xf32> to vector<8xf32>
      %71 = vector.shape_cast %70 : vector<8xf32> to vector<8x1xf32>
      %cst_53 = arith.constant 3.200000e+01 : f32
      %72 = vector.broadcast %cst_53 : f32 to vector<8x1xf32>
      %73 = arith.divf %71, %72 : vector<8x1xf32>
      %74 = vector.broadcast %73 : vector<8x1xf32> to vector<8x32xf32>
      %75 = arith.subf %69, %74 : vector<8x32xf32>
      %76 = arith.mulf %75, %75 : vector<8x32xf32>
      %cst_54 = arith.constant dense<0.000000e+00> : vector<8xf32>
      %77 = vector.multi_reduction <add>, %76, %cst_54 [1] : vector<8x32xf32> to vector<8xf32>
      %78 = vector.shape_cast %77 : vector<8xf32> to vector<8x1xf32>
      %cst_55 = arith.constant 3.200000e+01 : f32
      %79 = vector.broadcast %cst_55 : f32 to vector<8x1xf32>
      %80 = arith.divf %78, %79 : vector<8x1xf32>
      %81 = vector.broadcast %73 : vector<8x1xf32> to vector<8x32xf32>
      %82 = arith.subf %69, %81 : vector<8x32xf32>
      %cst_56 = arith.constant 9.99999974E-6 : f32
      %83 = vector.broadcast %cst_56 : f32 to vector<8x1xf32>
      %84 = arith.addf %80, %83 : vector<8x1xf32>
      %85 = math.rsqrt %84 : vector<8x1xf32>
      %86 = vector.broadcast %85 : vector<8x1xf32> to vector<8x32xf32>
      %87 = arith.mulf %82, %86 : vector<8x32xf32>
      %c0_57 = arith.constant 0 : index
      %c0_58 = arith.constant 0 : index
      %88 = vector.load %arg12[%c0_57, %c0_58] : memref<1x32xf32, #tpu.memory_space<vmem>>, vector<1x32xf32>
      %89 = vector.broadcast %88 : vector<1x32xf32> to vector<8x32xf32>
      %90 = arith.mulf %87, %89 : vector<8x32xf32>
      %c0_59 = arith.constant 0 : index
      %c0_60 = arith.constant 0 : index
      %91 = vector.load %arg13[%c0_59, %c0_60] : memref<1x32xf32, #tpu.memory_space<vmem>>, vector<1x32xf32>
      %92 = vector.broadcast %91 : vector<1x32xf32> to vector<8x32xf32>
      %93 = arith.addf %90, %92 : vector<8x32xf32>
      %94 = vector.shape_cast %93 : vector<8x32xf32> to vector<1x8x32xf32>
      %c0_61 = arith.constant 0 : index
      %c0_62 = arith.constant 0 : index
      %c0_63 = arith.constant 0 : index
      %95 = vector.load %arg14[%c0_61, %c0_62, %c0_63] : memref<1x8x32xf32, #tpu.memory_space<vmem>>, vector<1x8x32xf32>
      tpu.vector_store %arg14[%c0_61, %c0_62, %c0_63], %94 {strides = array<i32>} : memref<1x8x32xf32, #tpu.memory_space<vmem>>, vector<1x8x32xf32>,
    } else {
    }
    return
  }
  func.func @transform_0(%arg0: i32, %arg1: i32) -> (i32, i32, i32) {
    %c0_i32 = arith.constant 0 : i32
    %c0_i32_0 = arith.constant 0 : i32
    %c0_i32_1 = arith.constant 0 : i32
    return %arg0, %c0_i32, %c0_i32_0 : i32, i32, i32
  }
  func.func @transform_1(%arg0: i32, %arg1: i32) -> (i32, i32, i32) {
    %c0_i32 = arith.constant 0 : i32
    %c0_i32_0 = arith.constant 0 : i32
    return %arg0, %arg1, %c0_i32 : i32, i32, i32
  }
  func.func @transform_2(%arg0: i32, %arg1: i32) -> (i32, i32) {
    %c0_i32 = arith.constant 0 : i32
    %c0_i32_0 = arith.constant 0 : i32
    %c0_i32_1 = arith.constant 0 : i32
    return %c0_i32, %c0_i32_0 : i32, i32
  }
  func.func @transform_3(%arg0: i32, %arg1: i32) -> (i32, i32) {
    %c0_i32 = arith.constant 0 : i32
    %c0_i32_0 = arith.constant 0 : i32
    %c0_i32_1 = arith.constant 0 : i32
    return %c0_i32, %c0_i32_0 : i32, i32
  }
  func.func @transform_4(%arg0: i32, %arg1: i32) -> (i32, i32) {
    %c0_i32 = arith.constant 0 : i32
    %c0_i32_0 = arith.constant 0 : i32
    %c0_i32_1 = arith.constant 0 : i32
    return %c0_i32, %c0_i32_0 : i32, i32
  }
  func.func @transform_5(%arg0: i32, %arg1: i32) -> (i32, i32) {
    %c0_i32 = arith.constant 0 : i32
    %c0_i32_0 = arith.constant 0 : i32
    %c0_i32_1 = arith.constant 0 : i32
    return %c0_i32, %c0_i32_0 : i32, i32
  }
  func.func @transform_6(%arg0: i32, %arg1: i32) -> (i32, i32) {
    %c0_i32 = arith.constant 0 : i32
    %c0_i32_0 = arith.constant 0 : i32
    %c0_i32_1 = arith.constant 0 : i32
    return %c0_i32, %c0_i32_0 : i32, i32
  }
  func.func @transform_7(%arg0: i32, %arg1: i32) -> (i32, i32) {
    %c0_i32 = arith.constant 0 : i32
    %c0_i32_0 = arith.constant 0 : i32
    %c0_i32_1 = arith.constant 0 : i32
    return %c0_i32, %c0_i32_0 : i32, i32
  }
  func.func @transform_8(%arg0: i32, %arg1: i32) -> (i32, i32) {
    %c0_i32 = arith.constant 0 : i32
    %c0_i32_0 = arith.constant 0 : i32
    return %c0_i32, %arg1 : i32, i32
  }
  func.func @transform_9(%arg0: i32, %arg1: i32) -> (i32, i32, i32) {
    %c0_i32 = arith.constant 0 : i32
    %c0_i32_0 = arith.constant 0 : i32
    return %arg0, %c0_i32, %arg1 : i32, i32, i32
  }
  func.func @transform_10(%arg0: i32, %arg1: i32) -> (i32, i32) {
    %c0_i32 = arith.constant 0 : i32
    %c0_i32_0 = arith.constant 0 : i32
    %c0_i32_1 = arith.constant 0 : i32
    return %c0_i32, %c0_i32_0 : i32, i32
  }
  func.func @transform_11(%arg0: i32, %arg1: i32) -> (i32, i32) {
    %c0_i32 = arith.constant 0 : i32
    %c0_i32_0 = arith.constant 0 : i32
    %c0_i32_1 = arith.constant 0 : i32
    return %c0_i32, %c0_i32_0 : i32, i32
  }
  func.func @transform_12(%arg0: i32, %arg1: i32) -> (i32, i32, i32) {
    %c0_i32 = arith.constant 0 : i32
    %c0_i32_0 = arith.constant 0 : i32
    %c0_i32_1 = arith.constant 0 : i32
    return %arg0, %c0_i32, %c0_i32_0 : i32, i32, i32
  }
}

module attributes {stable_mosaic.version = 11 : i64} {
  func.func @_mha_flash_kernel(%arg0: i32, %arg1: i32, %arg2: memref<1x8x32xf32, #tpu.memory_space<vmem>>, %arg3: memref<1x128x32xf32, #tpu.memory_space<vmem>>, %arg4: memref<32x32xbf16, #tpu.memory_space<vmem>>, %arg5: memref<1x32xf32, #tpu.memory_space<vmem>>, %arg6: memref<32x64xbf16, #tpu.memory_space<vmem>>, %arg7: memref<1x64xf32, #tpu.memory_space<vmem>>, %arg8: memref<32x32xbf16, #tpu.memory_space<vmem>>, %arg9: memref<1x32xf32, #tpu.memory_space<vmem>>, %arg10: memref<8x128xf32, #tpu.memory_space<vmem>>, %arg11: memref<1x1x128xf32, #tpu.memory_space<vmem>>, %arg12: memref<1x32xf32, #tpu.memory_space<vmem>>, %arg13: memref<1x32xf32, #tpu.memory_space<vmem>>, %arg14: memref<1x8x32xf32, #tpu.memory_space<vmem>>, %arg15: memref<8x32xf32, #tpu.memory_space<vmem>>, %arg16: memref<4x8x1xf32, #tpu.memory_space<vmem>>, %arg17: memref<4x8x1xf32, #tpu.memory_space<vmem>>, %arg18: memref<4x8x8xf32, #tpu.memory_space<vmem>>) attributes {dimension_semantics = [#tpu.dimension_semantics<parallel>, #tpu.dimension_semantics<arbitrary>], iteration_bounds = array<i64: 2, 2>, scalar_prefetch = 0 : i64, scratch_operands = 4 : i64, tpu.core_type = #tpu.core_type<tc>, window_params = [{transform_indices = @transform_0, window_bounds = array<i64: 1, 8, 32>}, {transform_indices = @transform_1, window_bounds = array<i64: 1, 128, 32>}, {pipeline_mode = #tpu.pipeline_mode<synchronous>, transform_indices = @transform_2, window_bounds = array<i64: 32, 32>}, {pipeline_mode = #tpu.pipeline_mode<synchronous>, transform_indices = @transform_3, window_bounds = array<i64: 1, 32>}, {pipeline_mode = #tpu.pipeline_mode<synchronous>, transform_indices = @transform_4, window_bounds = array<i64: 32, 64>}, {pipeline_mode = #tpu.pipeline_mode<synchronous>, transform_indices = @transform_5, window_bounds = array<i64: 1, 64>}, {pipeline_mode = #tpu.pipeline_mode<synchronous>, transform_indices = @transform_6, window_bounds = array<i64: 32, 32>}, {pipeline_mode = #tpu.pipeline_mode<synchronous>, transform_indices = @transform_7, window_bounds = array<i64: 1, 32>}, {transform_indices = @transform_8, window_bounds = array<i64: 8, 128>}, {transform_indices = @transform_9, window_bounds = array<i64: 1, 1, 128>}, {pipeline_mode = #tpu.pipeline_mode<synchronous>, transform_indices = @transform_10, window_bounds = array<i64: 1, 32>}, {pipeline_mode = #tpu.pipeline_mode<synchronous>, transform_indices = @transform_11, window_bounds = array<i64: 1, 32>}, {transform_indices = @transform_12, window_bounds = array<i64: 1, 8, 32>}]} {
    %c0_i32 = arith.constant 0 : i32
    %0 = arith.cmpi eq, %arg1, %c0_i32 : i32
    %1 = arith.extui %0 : i1 to i32
    %c0_i32_0 = arith.constant 0 : i32
    %2 = arith.cmpi ne, %1, %c0_i32_0 : i32
    scf.if %2 {
      %c0_37 = arith.constant 0 : index
      %c0_38 = arith.constant 0 : index
      %c0_39 = arith.constant 0 : index
      %54 = vector.load %arg2[%c0_37, %c0_38, %c0_39] : memref<1x8x32xf32, #tpu.memory_space<vmem>>, vector<1x8x32xf32>
      %55 = vector.shape_cast %54 : vector<1x8x32xf32> to vector<8x32xf32>
      %56 = arith.truncf %55 : vector<8x32xf32> to vector<8x32xbf16>
      %c0_40 = arith.constant 0 : index
      %c0_41 = arith.constant 0 : index
      %57 = vector.load %arg4[%c0_40, %c0_41] : memref<32x32xbf16, #tpu.memory_space<vmem>>, vector<32x32xbf16>
      %cst_42 = arith.constant dense<0.000000e+00> : vector<8x32xf32>
      %58 = tpu.matmul %56, %57, %cst_42 {dimension_numbers = #tpu.dot_dimension_numbers<[1], [0], [0], [1], [0, 0, 1, 1], [], []>} : vector<8x32xbf16>, vector<32x32xbf16>, vector<8x32xf32> -> vector<8x32xf32>
      %c0_43 = arith.constant 0 : index
      %c0_44 = arith.constant 0 : index
      %59 = vector.load %arg5[%c0_43, %c0_44] : memref<1x32xf32, #tpu.memory_space<vmem>>, vector<1x32xf32>
      %60 = vector.broadcast %59 : vector<1x32xf32> to vector<8x32xf32>
      %61 = arith.addf %58, %60 : vector<8x32xf32>
      %cst_45 = arith.constant 0.353553385 : f32
      %62 = vector.broadcast %cst_45 : f32 to vector<8x32xf32>
      %63 = arith.mulf %61, %62 : vector<8x32xf32>
      %c0_46 = arith.constant 0 : index
      %c0_47 = arith.constant 0 : index
      %64 = vector.load %arg15[%c0_46, %c0_47] : memref<8x32xf32, #tpu.memory_space<vmem>>, vector<8x32xf32>
      tpu.vector_store %arg15[%c0_46, %c0_47], %63 {strides = array<i32>} : memref<8x32xf32, #tpu.memory_space<vmem>>, vector<8x32xf32>,
      %cst_48 = arith.constant 0xFF800000 : f32
      %65 = vector.broadcast %cst_48 : f32 to vector<4x8x1xf32>
      %c0_49 = arith.constant 0 : index
      %c0_50 = arith.constant 0 : index
      %c0_51 = arith.constant 0 : index
      %66 = vector.load %arg16[%c0_49, %c0_50, %c0_51] : memref<4x8x1xf32, #tpu.memory_space<vmem>>, vector<4x8x1xf32>
      tpu.vector_store %arg16[%c0_49, %c0_50, %c0_51], %65 {strides = array<i32>} : memref<4x8x1xf32, #tpu.memory_space<vmem>>, vector<4x8x1xf32>,
      %cst_52 = arith.constant 0.000000e+00 : f32
      %67 = vector.broadcast %cst_52 : f32 to vector<4x8x1xf32>
      %c0_53 = arith.constant 0 : index
      %c0_54 = arith.constant 0 : index
      %c0_55 = arith.constant 0 : index
      %68 = vector.load %arg17[%c0_53, %c0_54, %c0_55] : memref<4x8x1xf32, #tpu.memory_space<vmem>>, vector<4x8x1xf32>
      tpu.vector_store %arg17[%c0_53, %c0_54, %c0_55], %67 {strides = array<i32>} : memref<4x8x1xf32, #tpu.memory_space<vmem>>, vector<4x8x1xf32>,
      %cst_56 = arith.constant 0.000000e+00 : f32
      %69 = vector.broadcast %cst_56 : f32 to vector<4x8x8xf32>
      %c0_57 = arith.constant 0 : index
      %c0_58 = arith.constant 0 : index
      %c0_59 = arith.constant 0 : index
      %70 = vector.load %arg18[%c0_57, %c0_58, %c0_59] : memref<4x8x8xf32, #tpu.memory_space<vmem>>, vector<4x8x8xf32>
      tpu.vector_store %arg18[%c0_57, %c0_58, %c0_59], %69 {strides = array<i32>} : memref<4x8x8xf32, #tpu.memory_space<vmem>>, vector<4x8x8xf32>,
    } else {
    }
    %c0 = arith.constant 0 : index
    %c0_1 = arith.constant 0 : index
    %c0_2 = arith.constant 0 : index
    %3 = vector.load %arg3[%c0, %c0_1, %c0_2] : memref<1x128x32xf32, #tpu.memory_space<vmem>>, vector<1x128x32xf32>
    %4 = vector.shape_cast %3 : vector<1x128x32xf32> to vector<128x32xf32>
    %5 = arith.truncf %4 : vector<128x32xf32> to vector<128x32xbf16>
    %c0_3 = arith.constant 0 : index
    %c0_4 = arith.constant 0 : index
    %6 = vector.load %arg6[%c0_3, %c0_4] : memref<32x64xbf16, #tpu.memory_space<vmem>>, vector<32x64xbf16>
    %cst = arith.constant dense<0.000000e+00> : vector<128x64xf32>
    %7 = tpu.matmul %5, %6, %cst {dimension_numbers = #tpu.dot_dimension_numbers<[1], [0], [0], [1], [0, 0, 1, 1], [], []>} : vector<128x32xbf16>, vector<32x64xbf16>, vector<128x64xf32> -> vector<128x64xf32>
    %c0_5 = arith.constant 0 : index
    %c0_6 = arith.constant 0 : index
    %8 = vector.load %arg7[%c0_5, %c0_6] : memref<1x64xf32, #tpu.memory_space<vmem>>, vector<1x64xf32>
    %9 = vector.broadcast %8 : vector<1x64xf32> to vector<128x64xf32>
    %10 = arith.addf %7, %9 : vector<128x64xf32>
    %11 = vector.extract_strided_slice %10 {offsets = [0, 0], sizes = [128, 32], strides = [1, 1]} : vector<128x64xf32> to vector<128x32xf32>
    %12 = vector.extract_strided_slice %10 {offsets = [0, 32], sizes = [128, 32], strides = [1, 1]} : vector<128x64xf32> to vector<128x32xf32>
    %c0_7 = arith.constant 0 : index
    %c0_8 = arith.constant 0 : index
    %13 = vector.load %arg15[%c0_7, %c0_8] : memref<8x32xf32, #tpu.memory_space<vmem>>, vector<8x32xf32>
    %14 = vector.shape_cast %13 : vector<8x32xf32> to vector<8x4x8xf32>
    %15 = arith.truncf %14 : vector<8x4x8xf32> to vector<8x4x8xbf16>
    %16 = vector.shape_cast %11 : vector<128x32xf32> to vector<128x4x8xf32>
    %17 = arith.truncf %16 : vector<128x4x8xf32> to vector<128x4x8xbf16>
    %18 = vector.shape_cast %12 : vector<128x32xf32> to vector<128x4x8xf32>
    %19 = arith.truncf %18 : vector<128x4x8xf32> to vector<128x4x8xbf16>
    "tpu.trace_start"() <{level = 10 : i32, message = "lhd,shd->hls"}> : () -> ()
    %cst_9 = arith.constant dense<0.000000e+00> : vector<4x8x128xf32>
    %20 = tpu.matmul %15, %17, %cst_9 {dimension_numbers = #tpu.dot_dimension_numbers<[2], [2], [0], [0], [0, 1, 0, 0, 1, 0], [1], [1]>} : vector<8x4x8xbf16>, vector<128x4x8xbf16>, vector<4x8x128xf32> -> vector<4x8x128xf32>
    "tpu.trace_stop"() : () -> ()
    %c0_10 = arith.constant 0 : index
    %c0_11 = arith.constant 0 : index
    %21 = vector.load %arg10[%c0_10, %c0_11] : memref<8x128xf32, #tpu.memory_space<vmem>>, vector<8x128xf32>
    %22 = vector.shape_cast %21 : vector<8x128xf32> to vector<1x8x128xf32>
    %23 = vector.broadcast %22 : vector<1x8x128xf32> to vector<4x8x128xf32>
    %24 = arith.addf %20, %23 : vector<4x8x128xf32>
    %c0_12 = arith.constant 0 : index
    %c0_13 = arith.constant 0 : index
    %c0_14 = arith.constant 0 : index
    %25 = vector.load %arg11[%c0_12, %c0_13, %c0_14] : memref<1x1x128xf32, #tpu.memory_space<vmem>>, vector<1x1x128xf32>
    %26 = vector.broadcast %25 : vector<1x1x128xf32> to vector<4x8x128xf32>
    %27 = arith.addf %24, %26 : vector<4x8x128xf32>
    %c0_15 = arith.constant 0 : index
    %c0_16 = arith.constant 0 : index
    %c0_17 = arith.constant 0 : index
    %28 = vector.load %arg16[%c0_15, %c0_16, %c0_17] : memref<4x8x1xf32, #tpu.memory_space<vmem>>, vector<4x8x1xf32>
    %cst_18 = arith.constant dense<0xFF800000> : vector<4x8xf32>
    %29 = vector.multi_reduction <maximumf>, %27, %cst_18 [2] : vector<4x8x128xf32> to vector<4x8xf32>
    %30 = vector.shape_cast %29 : vector<4x8xf32> to vector<4x8x1xf32>
    %31 = arith.maximumf %28, %30 : vector<4x8x1xf32>
    %32 = arith.subf %28, %31 : vector<4x8x1xf32>
    %33 = math.exp %32 : vector<4x8x1xf32>
    %34 = vector.broadcast %31 : vector<4x8x1xf32> to vector<4x8x128xf32>
    %35 = arith.subf %27, %34 : vector<4x8x128xf32>
    %36 = math.exp %35 : vector<4x8x128xf32>
    %c0_19 = arith.constant 0 : index
    %c0_20 = arith.constant 0 : index
    %c0_21 = arith.constant 0 : index
    %37 = vector.load %arg17[%c0_19, %c0_20, %c0_21] : memref<4x8x1xf32, #tpu.memory_space<vmem>>, vector<4x8x1xf32>
    %38 = arith.mulf %33, %37 : vector<4x8x1xf32>
    %cst_22 = arith.constant dense<0.000000e+00> : vector<4x8xf32>
    %39 = vector.multi_reduction <add>, %36, %cst_22 [2] : vector<4x8x128xf32> to vector<4x8xf32>
    %40 = vector.shape_cast %39 : vector<4x8xf32> to vector<4x8x1xf32>
    %41 = arith.addf %38, %40 : vector<4x8x1xf32>
    %c0_23 = arith.constant 0 : index
    %c0_24 = arith.constant 0 : index
    %c0_25 = arith.constant 0 : index
    %42 = vector.load %arg17[%c0_23, %c0_24, %c0_25] : memref<4x8x1xf32, #tpu.memory_space<vmem>>, vector<4x8x1xf32>
    tpu.vector_store %arg17[%c0_23, %c0_24, %c0_25], %41 {strides = array<i32>} : memref<4x8x1xf32, #tpu.memory_space<vmem>>, vector<4x8x1xf32>,
    %c0_26 = arith.constant 0 : index
    %c0_27 = arith.constant 0 : index
    %c0_28 = arith.constant 0 : index
    %43 = vector.load %arg18[%c0_26, %c0_27, %c0_28] : memref<4x8x8xf32, #tpu.memory_space<vmem>>, vector<4x8x8xf32>
    %44 = vector.broadcast %33 : vector<4x8x1xf32> to vector<4x8x8xf32>
    %45 = arith.mulf %44, %43 : vector<4x8x8xf32>
    %46 = arith.truncf %36 : vector<4x8x128xf32> to vector<4x8x128xbf16>
    "tpu.trace_start"() <{level = 10 : i32, message = "hls,shd->hld"}> : () -> ()
    %cst_29 = arith.constant dense<0.000000e+00> : vector<4x8x8xf32>
    %47 = tpu.matmul %46, %19, %cst_29 {dimension_numbers = #tpu.dot_dimension_numbers<[2], [0], [1], [2], [0, 0, 0, 1, 1, 2], [0], [1]>} : vector<4x8x128xbf16>, vector<128x4x8xbf16>, vector<4x8x8xf32> -> vector<4x8x8xf32>
    "tpu.trace_stop"() : () -> ()
    %48 = arith.addf %45, %47 : vector<4x8x8xf32>
    %c0_30 = arith.constant 0 : index
    %c0_31 = arith.constant 0 : index
    %c0_32 = arith.constant 0 : index
    %49 = vector.load %arg18[%c0_30, %c0_31, %c0_32] : memref<4x8x8xf32, #tpu.memory_space<vmem>>, vector<4x8x8xf32>
    tpu.vector_store %arg18[%c0_30, %c0_31, %c0_32], %48 {strides = array<i32>} : memref<4x8x8xf32, #tpu.memory_space<vmem>>, vector<4x8x8xf32>,
    %c0_33 = arith.constant 0 : index
    %c0_34 = arith.constant 0 : index
    %c0_35 = arith.constant 0 : index
    %50 = vector.load %arg16[%c0_33, %c0_34, %c0_35] : memref<4x8x1xf32, #tpu.memory_space<vmem>>, vector<4x8x1xf32>
    tpu.vector_store %arg16[%c0_33, %c0_34, %c0_35], %31 {strides = array<i32>} : memref<4x8x1xf32, #tpu.memory_space<vmem>>, vector<4x8x1xf32>,
    %c1_i32 = arith.constant 1 : i32
    %51 = arith.cmpi eq, %arg1, %c1_i32 : i32
    %52 = arith.extui %51 : i1 to i32
    %c0_i32_36 = arith.constant 0 : i32
    %53 = arith.cmpi ne, %52, %c0_i32_36 : i32
    scf.if %53 {
      %c0_37 = arith.constant 0 : index
      %c0_38 = arith.constant 0 : index
      %c0_39 = arith.constant 0 : index
      %54 = vector.load %arg18[%c0_37, %c0_38, %c0_39] : memref<4x8x8xf32, #tpu.memory_space<vmem>>, vector<4x8x8xf32>
      %c0_40 = arith.constant 0 : index
      %c0_41 = arith.constant 0 : index
      %c0_42 = arith.constant 0 : index
      %55 = vector.load %arg17[%c0_40, %c0_41, %c0_42] : memref<4x8x1xf32, #tpu.memory_space<vmem>>, vector<4x8x1xf32>
      %56 = tpu.reciprocal %55 {approx = true} : vector<4x8x1xf32> -> vector<4x8x1xf32>
      %57 = vector.broadcast %56 : vector<4x8x1xf32> to vector<4x8x8xf32>
      %58 = arith.mulf %54, %57 : vector<4x8x8xf32>
      %59 = tpu.transpose %58, [1, 0, 2] : vector<4x8x8xf32> -> vector<8x4x8xf32>
      %60 = vector.shape_cast %59 : vector<8x4x8xf32> to vector<8x32xf32>
      %61 = arith.truncf %60 : vector<8x32xf32> to vector<8x32xbf16>
      %c0_43 = arith.constant 0 : index
      %c0_44 = arith.constant 0 : index
      %62 = vector.load %arg8[%c0_43, %c0_44] : memref<32x32xbf16, #tpu.memory_space<vmem>>, vector<32x32xbf16>
      %cst_45 = arith.constant dense<0.000000e+00> : vector<8x32xf32>
      %63 = tpu.matmul %61, %62, %cst_45 {dimension_numbers = #tpu.dot_dimension_numbers<[1], [0], [0], [1], [0, 0, 1, 1], [], []>} : vector<8x32xbf16>, vector<32x32xbf16>, vector<8x32xf32> -> vector<8x32xf32>
      %c0_46 = arith.constant 0 : index
      %c0_47 = arith.constant 0 : index
      %64 = vector.load %arg9[%c0_46, %c0_47] : memref<1x32xf32, #tpu.memory_space<vmem>>, vector<1x32xf32>
      %65 = vector.broadcast %64 : vector<1x32xf32> to vector<8x32xf32>
      %66 = arith.addf %63, %65 : vector<8x32xf32>
      %c0_48 = arith.constant 0 : index
      %c0_49 = arith.constant 0 : index
      %c0_50 = arith.constant 0 : index
      %67 = vector.load %arg2[%c0_48, %c0_49, %c0_50] : memref<1x8x32xf32, #tpu.memory_space<vmem>>, vector<1x8x32xf32>
      %68 = vector.shape_cast %67 : vector<1x8x32xf32> to vector<8x32xf32>
      %69 = arith.addf %68, %66 : vector<8x32xf32>
      %cst_51 = arith.constant dense<0.000000e+00> : vector<8xf32>
      %70 = vector.multi_reduction <add>, %69, %cst_51 [1] : vector<8x32xf32> to vector<8xf32>
      %71 = vector.shape_cast %70 : vector<8xf32> to vector<8x1xf32>
      %cst_52 = arith.constant 3.200000e+01 : f32
      %72 = vector.broadcast %cst_52 : f32 to vector<8x1xf32>
      %73 = arith.divf %71, %72 : vector<8x1xf32>
      %74 = vector.broadcast %73 : vector<8x1xf32> to vector<8x32xf32>
      %75 = arith.subf %69, %74 : vector<8x32xf32>
      %76 = arith.mulf %75, %75 : vector<8x32xf32>
      %cst_53 = arith.constant dense<0.000000e+00> : vector<8xf32>
      %77 = vector.multi_reduction <add>, %76, %cst_53 [1] : vector<8x32xf32> to vector<8xf32>
      %78 = vector.shape_cast %77 : vector<8xf32> to vector<8x1xf32>
      %cst_54 = arith.constant 3.200000e+01 : f32
      %79 = vector.broadcast %cst_54 : f32 to vector<8x1xf32>
      %80 = arith.divf %78, %79 : vector<8x1xf32>
      %81 = vector.broadcast %73 : vector<8x1xf32> to vector<8x32xf32>
      %82 = arith.subf %69, %81 : vector<8x32xf32>
      %cst_55 = arith.constant 9.99999974E-6 : f32
      %83 = vector.broadcast %cst_55 : f32 to vector<8x1xf32>
      %84 = arith.addf %80, %83 : vector<8x1xf32>
      %85 = math.rsqrt %84 : vector<8x1xf32>
      %86 = vector.broadcast %85 : vector<8x1xf32> to vector<8x32xf32>
      %87 = arith.mulf %82, %86 : vector<8x32xf32>
      %c0_56 = arith.constant 0 : index
      %c0_57 = arith.constant 0 : index
      %88 = vector.load %arg12[%c0_56, %c0_57] : memref<1x32xf32, #tpu.memory_space<vmem>>, vector<1x32xf32>
      %89 = vector.broadcast %88 : vector<1x32xf32> to vector<8x32xf32>
      %90 = arith.mulf %87, %89 : vector<8x32xf32>
      %c0_58 = arith.constant 0 : index
      %c0_59 = arith.constant 0 : index
      %91 = vector.load %arg13[%c0_58, %c0_59] : memref<1x32xf32, #tpu.memory_space<vmem>>, vector<1x32xf32>
      %92 = vector.broadcast %91 : vector<1x32xf32> to vector<8x32xf32>
      %93 = arith.addf %90, %92 : vector<8x32xf32>
      %94 = vector.shape_cast %93 : vector<8x32xf32> to vector<1x8x32xf32>
      %c0_60 = arith.constant 0 : index
      %c0_61 = arith.constant 0 : index
      %c0_62 = arith.constant 0 : index
      %95 = vector.load %arg14[%c0_60, %c0_61, %c0_62] : memref<1x8x32xf32, #tpu.memory_space<vmem>>, vector<1x8x32xf32>
      tpu.vector_store %arg14[%c0_60, %c0_61, %c0_62], %94 {strides = array<i32>} : memref<1x8x32xf32, #tpu.memory_space<vmem>>, vector<1x8x32xf32>,
    } else {
    }
    return
  }
  func.func @transform_0(%arg0: i32, %arg1: i32) -> (i32, i32, i32) {
    %c0_i32 = arith.constant 0 : i32
    %c0_i32_0 = arith.constant 0 : i32
    %c0_i32_1 = arith.constant 0 : i32
    return %arg0, %c0_i32, %c0_i32_0 : i32, i32, i32
  }
  func.func @transform_1(%arg0: i32, %arg1: i32) -> (i32, i32, i32) {
    %c0_i32 = arith.constant 0 : i32
    %c0_i32_0 = arith.constant 0 : i32
    return %arg0, %arg1, %c0_i32 : i32, i32, i32
  }
  func.func @transform_2(%arg0: i32, %arg1: i32) -> (i32, i32) {
    %c0_i32 = arith.constant 0 : i32
    %c0_i32_0 = arith.constant 0 : i32
    %c0_i32_1 = arith.constant 0 : i32
    return %c0_i32, %c0_i32_0 : i32, i32
  }
  func.func @transform_3(%arg0: i32, %arg1: i32) -> (i32, i32) {
    %c0_i32 = arith.constant 0 : i32
    %c0_i32_0 = arith.constant 0 : i32
    %c0_i32_1 = arith.constant 0 : i32
    return %c0_i32, %c0_i32_0 : i32, i32
  }
  func.func @transform_4(%arg0: i32, %arg1: i32) -> (i32, i32) {
    %c0_i32 = arith.constant 0 : i32
    %c0_i32_0 = arith.constant 0 : i32
    %c0_i32_1 = arith.constant 0 : i32
    return %c0_i32, %c0_i32_0 : i32, i32
  }
  func.func @transform_5(%arg0: i32, %arg1: i32) -> (i32, i32) {
    %c0_i32 = arith.constant 0 : i32
    %c0_i32_0 = arith.constant 0 : i32
    %c0_i32_1 = arith.constant 0 : i32
    return %c0_i32, %c0_i32_0 : i32, i32
  }
  func.func @transform_6(%arg0: i32, %arg1: i32) -> (i32, i32) {
    %c0_i32 = arith.constant 0 : i32
    %c0_i32_0 = arith.constant 0 : i32
    %c0_i32_1 = arith.constant 0 : i32
    return %c0_i32, %c0_i32_0 : i32, i32
  }
  func.func @transform_7(%arg0: i32, %arg1: i32) -> (i32, i32) {
    %c0_i32 = arith.constant 0 : i32
    %c0_i32_0 = arith.constant 0 : i32
    %c0_i32_1 = arith.constant 0 : i32
    return %c0_i32, %c0_i32_0 : i32, i32
  }
  func.func @transform_8(%arg0: i32, %arg1: i32) -> (i32, i32) {
    %c0_i32 = arith.constant 0 : i32
    %c0_i32_0 = arith.constant 0 : i32
    return %c0_i32, %arg1 : i32, i32
  }
  func.func @transform_9(%arg0: i32, %arg1: i32) -> (i32, i32, i32) {
    %c0_i32 = arith.constant 0 : i32
    %c0_i32_0 = arith.constant 0 : i32
    return %arg0, %c0_i32, %arg1 : i32, i32, i32
  }
  func.func @transform_10(%arg0: i32, %arg1: i32) -> (i32, i32) {
    %c0_i32 = arith.constant 0 : i32
    %c0_i32_0 = arith.constant 0 : i32
    %c0_i32_1 = arith.constant 0 : i32
    return %c0_i32, %c0_i32_0 : i32, i32
  }
  func.func @transform_11(%arg0: i32, %arg1: i32) -> (i32, i32) {
    %c0_i32 = arith.constant 0 : i32
    %c0_i32_0 = arith.constant 0 : i32
    %c0_i32_1 = arith.constant 0 : i32
    return %c0_i32, %c0_i32_0 : i32, i32
  }
  func.func @transform_12(%arg0: i32, %arg1: i32) -> (i32, i32, i32) {
    %c0_i32 = arith.constant 0 : i32
    %c0_i32_0 = arith.constant 0 : i32
    %c0_i32_1 = arith.constant 0 : i32
    return %arg0, %c0_i32, %c0_i32_0 : i32, i32, i32
  }
}

module attributes {stable_mosaic.version = 11 : i64} {
  func.func @_ffn_block_kernel(%arg0: i32, %arg1: memref<16x32xf32, #tpu.memory_space<vmem>>, %arg2: memref<32x64xbf16, #tpu.memory_space<vmem>>, %arg3: memref<1x64xf32, #tpu.memory_space<vmem>>, %arg4: memref<64x32xbf16, #tpu.memory_space<vmem>>, %arg5: memref<1x32xf32, #tpu.memory_space<vmem>>, %arg6: memref<1x32xf32, #tpu.memory_space<vmem>>, %arg7: memref<1x32xf32, #tpu.memory_space<vmem>>, %arg8: memref<16x32xf32, #tpu.memory_space<vmem>>) attributes {dimension_semantics = [#tpu.dimension_semantics<parallel>], iteration_bounds = array<i64: 1>, scalar_prefetch = 0 : i64, scratch_operands = 0 : i64, tpu.core_type = #tpu.core_type<tc>, window_params = [{transform_indices = @transform_0, window_bounds = array<i64: 16, 32>}, {pipeline_mode = #tpu.pipeline_mode<synchronous>, transform_indices = @transform_1, window_bounds = array<i64: 32, 64>}, {pipeline_mode = #tpu.pipeline_mode<synchronous>, transform_indices = @transform_2, window_bounds = array<i64: 1, 64>}, {pipeline_mode = #tpu.pipeline_mode<synchronous>, transform_indices = @transform_3, window_bounds = array<i64: 64, 32>}, {pipeline_mode = #tpu.pipeline_mode<synchronous>, transform_indices = @transform_4, window_bounds = array<i64: 1, 32>}, {pipeline_mode = #tpu.pipeline_mode<synchronous>, transform_indices = @transform_5, window_bounds = array<i64: 1, 32>}, {pipeline_mode = #tpu.pipeline_mode<synchronous>, transform_indices = @transform_6, window_bounds = array<i64: 1, 32>}, {transform_indices = @transform_7, window_bounds = array<i64: 16, 32>}]} {
    %c0 = arith.constant 0 : index
    %c0_0 = arith.constant 0 : index
    %0 = vector.load %arg1[%c0, %c0_0] : memref<16x32xf32, #tpu.memory_space<vmem>>, vector<16x32xf32>
    %1 = arith.truncf %0 : vector<16x32xf32> to vector<16x32xbf16>
    %c0_1 = arith.constant 0 : index
    %c0_2 = arith.constant 0 : index
    %2 = vector.load %arg2[%c0_1, %c0_2] : memref<32x64xbf16, #tpu.memory_space<vmem>>, vector<32x64xbf16>
    %cst = arith.constant dense<0.000000e+00> : vector<16x64xf32>
    %3 = tpu.matmul %1, %2, %cst {dimension_numbers = #tpu.dot_dimension_numbers<[1], [0], [0], [1], [0, 0, 1, 1], [], []>} : vector<16x32xbf16>, vector<32x64xbf16>, vector<16x64xf32> -> vector<16x64xf32>
    %c0_3 = arith.constant 0 : index
    %c0_4 = arith.constant 0 : index
    %4 = vector.load %arg3[%c0_3, %c0_4] : memref<1x64xf32, #tpu.memory_space<vmem>>, vector<1x64xf32>
    %5 = vector.broadcast %4 : vector<1x64xf32> to vector<16x64xf32>
    %6 = arith.addf %3, %5 : vector<16x64xf32>
    %cst_5 = arith.constant 0.000000e+00 : f32
    %7 = vector.broadcast %cst_5 : f32 to vector<16x64xf32>
    %8 = arith.maximumf %6, %7 : vector<16x64xf32>
    %9 = arith.truncf %8 : vector<16x64xf32> to vector<16x64xbf16>
    %c0_6 = arith.constant 0 : index
    %c0_7 = arith.constant 0 : index
    %10 = vector.load %arg4[%c0_6, %c0_7] : memref<64x32xbf16, #tpu.memory_space<vmem>>, vector<64x32xbf16>
    %cst_8 = arith.constant dense<0.000000e+00> : vector<16x32xf32>
    %11 = tpu.matmul %9, %10, %cst_8 {dimension_numbers = #tpu.dot_dimension_numbers<[1], [0], [0], [1], [0, 0, 1, 1], [], []>} : vector<16x64xbf16>, vector<64x32xbf16>, vector<16x32xf32> -> vector<16x32xf32>
    %c0_9 = arith.constant 0 : index
    %c0_10 = arith.constant 0 : index
    %12 = vector.load %arg5[%c0_9, %c0_10] : memref<1x32xf32, #tpu.memory_space<vmem>>, vector<1x32xf32>
    %13 = vector.broadcast %12 : vector<1x32xf32> to vector<16x32xf32>
    %14 = arith.addf %11, %13 : vector<16x32xf32>
    %15 = arith.addf %0, %14 : vector<16x32xf32>
    %cst_11 = arith.constant dense<0.000000e+00> : vector<16xf32>
    %16 = vector.multi_reduction <add>, %15, %cst_11 [1] : vector<16x32xf32> to vector<16xf32>
    %17 = vector.shape_cast %16 : vector<16xf32> to vector<16x1xf32>
    %cst_12 = arith.constant 3.200000e+01 : f32
    %18 = vector.broadcast %cst_12 : f32 to vector<16x1xf32>
    %19 = arith.divf %17, %18 : vector<16x1xf32>
    %20 = vector.broadcast %19 : vector<16x1xf32> to vector<16x32xf32>
    %21 = arith.subf %15, %20 : vector<16x32xf32>
    %22 = arith.mulf %21, %21 : vector<16x32xf32>
    %cst_13 = arith.constant dense<0.000000e+00> : vector<16xf32>
    %23 = vector.multi_reduction <add>, %22, %cst_13 [1] : vector<16x32xf32> to vector<16xf32>
    %24 = vector.shape_cast %23 : vector<16xf32> to vector<16x1xf32>
    %cst_14 = arith.constant 3.200000e+01 : f32
    %25 = vector.broadcast %cst_14 : f32 to vector<16x1xf32>
    %26 = arith.divf %24, %25 : vector<16x1xf32>
    %27 = vector.broadcast %19 : vector<16x1xf32> to vector<16x32xf32>
    %28 = arith.subf %15, %27 : vector<16x32xf32>
    %cst_15 = arith.constant 9.99999974E-6 : f32
    %29 = vector.broadcast %cst_15 : f32 to vector<16x1xf32>
    %30 = arith.addf %26, %29 : vector<16x1xf32>
    %31 = math.rsqrt %30 : vector<16x1xf32>
    %32 = vector.broadcast %31 : vector<16x1xf32> to vector<16x32xf32>
    %33 = arith.mulf %28, %32 : vector<16x32xf32>
    %c0_16 = arith.constant 0 : index
    %c0_17 = arith.constant 0 : index
    %34 = vector.load %arg6[%c0_16, %c0_17] : memref<1x32xf32, #tpu.memory_space<vmem>>, vector<1x32xf32>
    %35 = vector.broadcast %34 : vector<1x32xf32> to vector<16x32xf32>
    %36 = arith.mulf %33, %35 : vector<16x32xf32>
    %c0_18 = arith.constant 0 : index
    %c0_19 = arith.constant 0 : index
    %37 = vector.load %arg7[%c0_18, %c0_19] : memref<1x32xf32, #tpu.memory_space<vmem>>, vector<1x32xf32>
    %38 = vector.broadcast %37 : vector<1x32xf32> to vector<16x32xf32>
    %39 = arith.addf %36, %38 : vector<16x32xf32>
    %c0_20 = arith.constant 0 : index
    %c0_21 = arith.constant 0 : index
    %40 = vector.load %arg8[%c0_20, %c0_21] : memref<16x32xf32, #tpu.memory_space<vmem>>, vector<16x32xf32>
    tpu.vector_store %arg8[%c0_20, %c0_21], %39 {strides = array<i32>} : memref<16x32xf32, #tpu.memory_space<vmem>>, vector<16x32xf32>,
    return
  }
  func.func @transform_0(%arg0: i32) -> (i32, i32) {
    %c0_i32 = arith.constant 0 : i32
    %c0_i32_0 = arith.constant 0 : i32
    return %arg0, %c0_i32 : i32, i32
  }
  func.func @transform_1(%arg0: i32) -> (i32, i32) {
    %c0_i32 = arith.constant 0 : i32
    %c0_i32_0 = arith.constant 0 : i32
    %c0_i32_1 = arith.constant 0 : i32
    return %c0_i32, %c0_i32_0 : i32, i32
  }
  func.func @transform_2(%arg0: i32) -> (i32, i32) {
    %c0_i32 = arith.constant 0 : i32
    %c0_i32_0 = arith.constant 0 : i32
    %c0_i32_1 = arith.constant 0 : i32
    return %c0_i32, %c0_i32_0 : i32, i32
  }
  func.func @transform_3(%arg0: i32) -> (i32, i32) {
    %c0_i32 = arith.constant 0 : i32
    %c0_i32_0 = arith.constant 0 : i32
    %c0_i32_1 = arith.constant 0 : i32
    return %c0_i32, %c0_i32_0 : i32, i32
  }
  func.func @transform_4(%arg0: i32) -> (i32, i32) {
    %c0_i32 = arith.constant 0 : i32
    %c0_i32_0 = arith.constant 0 : i32
    %c0_i32_1 = arith.constant 0 : i32
    return %c0_i32, %c0_i32_0 : i32, i32
  }
  func.func @transform_5(%arg0: i32) -> (i32, i32) {
    %c0_i32 = arith.constant 0 : i32
    %c0_i32_0 = arith.constant 0 : i32
    %c0_i32_1 = arith.constant 0 : i32
    return %c0_i32, %c0_i32_0 : i32, i32
  }
  func.func @transform_6(%arg0: i32) -> (i32, i32) {
    %c0_i32 = arith.constant 0 : i32
    %c0_i32_0 = arith.constant 0 : i32
    %c0_i32_1 = arith.constant 0 : i32
    return %c0_i32, %c0_i32_0 : i32, i32
  }
  func.func @transform_7(%arg0: i32) -> (i32, i32) {
    %c0_i32 = arith.constant 0 : i32
    %c0_i32_0 = arith.constant 0 : i32
    return %arg0, %c0_i32 : i32, i32
  }
}

</mosaic_0001>

<llo_original>
// kernel: decoder_layer_forward.5
$region0: #{decoder_layer_forward.5}
  #allocation0 [shape = 'u32[]', space=smem, size = 0x4, offset = 0x4, fixed_abs, tag = 'smem constant byte address 0x4 - core index']
  #allocation1 [shape = 'u32[144,128]{1,0:T(1,128)}', space=vmem, size = 0x12000, scoped, tag = 'internal scratch']
  %s0 = inlined_call_operand.vmem [shape: f32[16,32], index: 0, kind: input, shape index: {}]
  %s1 = inlined_call_operand.vmem [shape: bf16[32,64], index: 1, kind: input, shape index: {}]
  %s2 = inlined_call_operand.vmem [shape: f32[1,64], index: 2, kind: input, shape index: {}]
  %s3 = inlined_call_operand.vmem [shape: bf16[64,32], index: 3, kind: input, shape index: {}]
  %s4 = inlined_call_operand.vmem [shape: f32[1,32], index: 4, kind: input, shape index: {}]
  %s5 = inlined_call_operand.vmem [shape: f32[1,32], index: 5, kind: input, shape index: {}]
  %s6 = inlined_call_operand.vmem [shape: f32[1,32], index: 6, kind: input, shape index: {}]
  %s7 = inlined_call_operand.vmem [shape: f32[16,32], index: 7, kind: output, shape index: {}]
  %s8 = sld [smem:[#allocation0]]
  $region38: #{decoder_layer_forward.5} parent=0
    _
  %s10 = ssub.s32 1, %s8
  %s11 = scalar_select 0, %s10, %s8
  // Predicated region
  $region2: #{decoder_layer_forward.5} parent=0 // pred_check
    _
  $region3: #{decoder_layer_forward.5} parent=0 // pred_check_branch
    %13 = sbr.rel (0) target = $region5
  $region4: #{decoder_layer_forward.5} parent=0 // pred_region
    _
  $region5: #{decoder_layer_forward.5} parent=0 // pred_fallthru
    _
  // Predicated region
  $region6: #{decoder_layer_forward.5} parent=0 // pred_check
    _
  $region7: #{decoder_layer_forward.5} parent=0 // pred_check_branch
    %15 = sbr.rel (0) target = $region9
  $region8: #{decoder_layer_forward.5} parent=0 // pred_region
    _
  $region9: #{decoder_layer_forward.5} parent=0 // pred_fallthru
    _
  // Predicated region
  $region10: #{decoder_layer_forward.5} parent=0 // pred_check
    _
  $region11: #{decoder_layer_forward.5} parent=0 // pred_check_branch
    %17 = sbr.rel (0) target = $region13
  $region12: #{decoder_layer_forward.5} parent=0 // pred_region
    _
  $region13: #{decoder_layer_forward.5} parent=0 // pred_fallthru
    _
  // Predicated region
  $region14: #{decoder_layer_forward.5} parent=0 // pred_check
    _
  $region15: #{decoder_layer_forward.5} parent=0 // pred_check_branch
    %19 = sbr.rel (0) target = $region17
  $region16: #{decoder_layer_forward.5} parent=0 // pred_region
    _
  $region17: #{decoder_layer_forward.5} parent=0 // pred_fallthru
    _
  // Predicated region
  $region18: #{decoder_layer_forward.5} parent=0 // pred_check
    _
  $region19: #{decoder_layer_forward.5} parent=0 // pred_check_branch
    %21 = sbr.rel (0) target = $region21
  $region20: #{decoder_layer_forward.5} parent=0 // pred_region
    _
  $region21: #{decoder_layer_forward.5} parent=0 // pred_fallthru
    _
  // Predicated region
  $region22: #{decoder_layer_forward.5} parent=0 // pred_check
    _
  $region23: #{decoder_layer_forward.5} parent=0 // pred_check_branch
    %23 = sbr.rel (0) target = $region25
  $region24: #{decoder_layer_forward.5} parent=0 // pred_region
    _
  $region25: #{decoder_layer_forward.5} parent=0 // pred_fallthru
    _
  // Predicated region
  $region26: #{decoder_layer_forward.5} parent=0 // pred_check
    _
  $region27: #{decoder_layer_forward.5} parent=0 // pred_check_branch
    %25 = sbr.rel (0) target = $region29
  $region28: #{decoder_layer_forward.5} parent=0 // pred_region
    _
  $region29: #{decoder_layer_forward.5} parent=0 // pred_fallthru
    _
  %v27 = vld [vmem:[%s0] sm:$0xff]
  %v28 = vld [vmem:[%s0 + $0x8] sm:$0xff]
  %v29 = vpack.c.bf16 %v28, %v27
  %v30 = vld [vmem:[%s1] sm:$0xf]
  %v31 = vld [vmem:[%s1 + $0x4] sm:$0xf]
  %v32 = vld [vmem:[%s1 + $0x8] sm:$0xf]
  %v33 = vld [vmem:[%s1 + $0xc] sm:$0xf]
  %v34 = vld [vmem:[%s2] sm:$0x1]
  %v36 = vlaneseq
  %v37 = vshrl.u32 %v36, 7
  %v38 = vsub.s32 0, %v37
  %v39 = vrot.slane %v34, %v38
  %v45 = vunpack.c.l.b16 %v30
  %v46 = vunpack.c.l.b16 %v31
  %v47 = vunpack.c.l.b16 %v32
  %v48 = vunpack.c.l.b16 %v33
  %v49 = vpack.c.b16 %v46, %v45
  %v50 = vpack.c.b16 %v48, %v47
  %vm53 = vcmask 261120
  %v55 = vsel %vm53, %v29, 0
  %57 = vmatprep.subr.bf16.mxu0 0
  %58 = vmatpush1.bf16.msra.mxu0 %v49
  %59 = vmatprep.subr.bf16.mxu0 0
  %60 = vmatpush1.bf16.msra.mxu0 %v50
  %61 = vmatprep.subr.bf16.mxu0 0
  %62 = vmatpush1.bf16.msra.mxu0 0
  %63 = vmatprep.subr.bf16.mxu0 0
  %64 = vmatpush1.bf16.msra.mxu0 0
  %65 = vmatprep.subr.bf16.mxu0 0
  %66 = vmatpush1.bf16.msra.mxu0 0
  %67 = vmatprep.subr.bf16.mxu0 0
  %68 = vmatpush1.bf16.msra.mxu0 0
  %69 = vmatprep.subr.bf16.mxu0 0
  %70 = vmatpush1.bf16.msra.mxu0 0
  %71 = vmatprep.subr.bf16.mxu0 0
  %72 = vmatpush1.bf16.msra.mxu0 0
  %73 = vmatprep.subr.bf16.mxu0 0
  %74 = vmatpush1.bf16.msra.mxu0 0
  %75 = vmatprep.subr.bf16.mxu0 0
  %76 = vmatpush1.bf16.msra.mxu0 0
  %77 = vmatprep.subr.bf16.mxu0 0
  %78 = vmatpush1.bf16.msra.mxu0 0
  %79 = vmatprep.subr.bf16.mxu0 0
  %80 = vmatpush1.bf16.msra.mxu0 0
  %81 = vmatprep.subr.bf16.mxu0 0
  %82 = vmatpush1.bf16.msra.mxu0 0
  %83 = vmatprep.subr.bf16.mxu0 0
  %84 = vmatpush1.bf16.msra.mxu0 0
  %85 = vmatprep.subr.bf16.mxu0 0
  %86 = vmatpush1.bf16.msra.mxu0 0
  %87 = vmatprep.subr.bf16.mxu0 0
  %88 = vmatpush1.bf16.msra.mxu0 0
  %89 = vmatprep.mubr.bf16.mxu0 0
  %90 = vmatmul.mubr.bf16.gmra.mrb[0].mxu0 %v55
  %v91 = vpop.f32.mrb[0].mxu0
  %v92 = vadd.f32 %v39, %v91
  %v93 = vpop.f32.mrb[0].mxu0
  %v94 = vpop.f32.mrb[0].mxu0
  %v95 = vadd.f32 %v39, %v94
  %v96 = vpop.f32.mrb[0].mxu0
  %97 = vdwg.mxu0
  %v98 = vmax.f32 %v92, 0.0
  %v99 = vmax.f32 %v95, 0.0
  %v100 = vpack.c.bf16 %v99, %v98
  %v101 = vld [vmem:[%s3] sm:$0xf]
  %v102 = vld [vmem:[%s3 + $0x4] sm:$0xf]
  %v103 = vld [vmem:[%s3 + $0x8] sm:$0xf]
  %v104 = vld [vmem:[%s3 + $0xc] sm:$0xf]
  %v105 = vld [vmem:[%s3 + $0x10] sm:$0xf]
  %v106 = vld [vmem:[%s3 + $0x14] sm:$0xf]
  %v107 = vld [vmem:[%s3 + $0x18] sm:$0xf]
  %v108 = vld [vmem:[%s3 + $0x1c] sm:$0xf]
  %v109 = vld [vmem:[%s4] sm:$0x1]
  %v111 = vlaneseq
  %v112 = vshrl.u32 %v111, 7
  %v113 = vsub.s32 0, %v112
  %v114 = vrot.slane %v109, %v113
  %v124 = vunpack.c.l.b16 %v101
  %v125 = vunpack.c.l.b16 %v102
  %v126 = vunpack.c.l.b16 %v103
  %v127 = vunpack.c.l.b16 %v104
  %v128 = vunpack.c.l.b16 %v105
  %v129 = vunpack.c.l.b16 %v106
  %v130 = vunpack.c.l.b16 %v107
  %v131 = vunpack.c.l.b16 %v108
  %v132 = vpack.c.b16 %v125, %v124
  %v133 = vpack.c.b16 %v127, %v126
  %v134 = vpack.c.b16 %v129, %v128
  %v135 = vpack.c.b16 %v131, %v130
  %vm140 = vcmask 523264
  %v142 = vsel %vm140, %v100, 0
  %144 = vmatprep.subr.bf16.mxu0 0
  %145 = vmatpush1.bf16.msra.mxu0 %v132
  %146 = vmatprep.subr.bf16.mxu0 0
  %147 = vmatpush1.bf16.msra.mxu0 %v133
  %148 = vmatprep.subr.bf16.mxu0 0
  %149 = vmatpush1.bf16.msra.mxu0 %v134
  %150 = vmatprep.subr.bf16.mxu0 0
  %151 = vmatpush1.bf16.msra.mxu0 %v135
  %152 = vmatprep.subr.bf16.mxu0 0
  %153 = vmatpush1.bf16.msra.mxu0 0
  %154 = vmatprep.subr.bf16.mxu0 0
  %155 = vmatpush1.bf16.msra.mxu0 0
  %156 = vmatprep.subr.bf16.mxu0 0
  %157 = vmatpush1.bf16.msra.mxu0 0
  %158 = vmatprep.subr.bf16.mxu0 0
  %159 = vmatpush1.bf16.msra.mxu0 0
  %160 = vmatprep.subr.bf16.mxu0 0
  %161 = vmatpush1.bf16.msra.mxu0 0
  %162 = vmatprep.subr.bf16.mxu0 0
  %163 = vmatpush1.bf16.msra.mxu0 0
  %164 = vmatprep.subr.bf16.mxu0 0
  %165 = vmatpush1.bf16.msra.mxu0 0
  %166 = vmatprep.subr.bf16.mxu0 0
  %167 = vmatpush1.bf16.msra.mxu0 0
  %168 = vmatprep.subr.bf16.mxu0 0
  %169 = vmatpush1.bf16.msra.mxu0 0
  %170 = vmatprep.subr.bf16.mxu0 0
  %171 = vmatpush1.bf16.msra.mxu0 0
  %172 = vmatprep.subr.bf16.mxu0 0
  %173 = vmatpush1.bf16.msra.mxu0 0
  %174 = vmatprep.subr.bf16.mxu0 0
  %175 = vmatpush1.bf16.msra.mxu0 0
  %176 = vmatprep.mubr.bf16.mxu0 0
  %177 = vmatmul.mubr.bf16.gmra.mrb[0].mxu0 %v142
  %v178 = vpop.f32.mrb[0].mxu0
  %v179 = vadd.f32 %v114, %v178
  %v180 = vpop.f32.mrb[0].mxu0
  %v181 = vpop.f32.mrb[0].mxu0
  %v182 = vadd.f32 %v114, %v181
  %v183 = vpop.f32.mrb[0].mxu0
  %184 = vdwg.mxu0
  %v185 = vadd.f32 %v27, %v179
  %v186 = vadd.f32 %v28, %v182
  %v187 = vsel %vm53, %v185, 0.0
  %188 = vadd.xlane.f32.xlu0 %v187
  %v189 = vpop.xlane.xlu0 %188
  %v190 = vsel %vm53, %v186, 0.0
  %191 = vadd.xlane.f32.xlu0 %v190
  %v192 = vpop.xlane.xlu0 %191
  %v193 = vrcp.pop 32.0
  %v194 = vmul.f32 %v189, %v193
  %v195 = vmul.f32 %v192, %v193
  %v196 = vsub.f32 %v185, %v194
  %v197 = vsub.f32 %v186, %v195
  %v198 = vmul.f32 %v196, %v196
  %v199 = vmul.f32 %v197, %v197
  %v200 = vsel %vm53, %v198, 0.0
  %201 = vadd.xlane.f32.xlu0 %v200
  %v202 = vpop.xlane.xlu0 %201
  %v203 = vsel %vm53, %v199, 0.0
  %204 = vadd.xlane.f32.xlu0 %v203
  %v205 = vpop.xlane.xlu0 %204
  %v206 = vmul.f32 %v202, %v193
  %v207 = vmul.f32 %v205, %v193
  %v208 = vadd.f32 %v206, 1e-05
  %v209 = vadd.f32 %v207, 1e-05
  %v210 = vrsqrt.pop %v208
  %v211 = vrsqrt.pop %v209
  %v212 = vmul.f32 %v196, %v210
  %v213 = vmul.f32 %v197, %v211
  %v214 = vld [vmem:[%s5] sm:$0x1]
  %v216 = vlaneseq
  %v217 = vshrl.u32 %v216, 7
  %v218 = vsub.s32 0, %v217
  %v219 = vrot.slane %v214, %v218
  %v221 = vmul.f32 %v212, %v219
  %v222 = vmul.f32 %v213, %v219
  %v223 = vld [vmem:[%s6] sm:$0x1]
  %v225 = vlaneseq
  %v226 = vshrl.u32 %v225, 7
  %v227 = vsub.s32 0, %v226
  %v228 = vrot.slane %v223, %v227
  %v230 = vadd.f32 %v221, %v228
  %v231 = vadd.f32 %v222, %v228
  %232 = vst.msk [vmem:[%s7] sm:$0xff] %vm53, %v230
  %233 = vst.msk [vmem:[%s7 + $0x8] sm:$0xff] %vm53, %v231
  // Predicated region
  $region30: #{decoder_layer_forward.5} parent=0 // pred_check
    _
  $region31: #{decoder_layer_forward.5} parent=0 // pred_check_branch
    %235 = sbr.rel (0) target = $region33
  $region32: #{decoder_layer_forward.5} parent=0 // pred_region
    _
  $region33: #{decoder_layer_forward.5} parent=0 // pred_fallthru
    _
  // Predicated region
  $region34: #{decoder_layer_forward.5} parent=0 // pred_check
    _
  $region35: #{decoder_layer_forward.5} parent=0 // pred_check_branch
    %237 = sbr.rel (0) target = $region37
  $region36: #{decoder_layer_forward.5} parent=0 // pred_region
    _
  $region37: #{decoder_layer_forward.5} parent=0 // pred_fallthru
    _

// kernel: decoder_layer_forward.3
$region0: #{decoder_layer_forward.3}
  #allocation0 [shape = 'u32[]', space=smem, size = 0x4, offset = 0x4, fixed_abs, tag = 'smem constant byte address 0x4 - core index']
  #allocation1 [shape = 'u32[144,128]{1,0:T(1,128)}', space=vmem, size = 0x12000, scoped, tag = 'internal scratch']
  #allocation2 [shape = 'f32[8,32]{1,0:T(8,128)}', space=vmem, size = 0x1000, scoped, tag = 'scratch operand']
  #allocation3 [shape = 'f32[4,8,1]{2,1,0:T(8,128)}', space=vmem, size = 0x4000, scoped, tag = 'scratch operand']
  #allocation4 [shape = 'f32[4,8,1]{2,1,0:T(8,128)}', space=vmem, size = 0x4000, scoped, tag = 'scratch operand']
  #allocation5 [shape = 'f32[4,8,8]{2,1,0:T(8,128)}', space=vmem, size = 0x4000, scoped, tag = 'scratch operand']
  %s0 = inlined_call_operand.vmem [shape: f32[2,8,32], index: 0, kind: input, shape index: {}, may-alias: {0,1}]
  %s1 = inlined_call_operand.vmem [shape: f32[2,8,32], index: 1, kind: input, shape index: {}, may-alias: {0,1}]
  %s2 = inlined_call_operand.vmem [shape: bf16[32,32], index: 2, kind: input, shape index: {}]
  %s3 = inlined_call_operand.vmem [shape: f32[1,32], index: 3, kind: input, shape index: {}]
  %s4 = inlined_call_operand.vmem [shape: bf16[32,64], index: 4, kind: input, shape index: {}]
  %s5 = inlined_call_operand.vmem [shape: f32[1,64], index: 5, kind: input, shape index: {}]
  %s6 = inlined_call_operand.vmem [shape: bf16[32,32], index: 6, kind: input, shape index: {}]
  %s7 = inlined_call_operand.vmem [shape: f32[1,32], index: 7, kind: input, shape index: {}]
  %s8 = inlined_call_operand.vmem [shape: f32[8,8], index: 8, kind: input, shape index: {}]
  %s9 = inlined_call_operand.vmem [shape: f32[2,1,8], index: 9, kind: input, shape index: {}]
  %s10 = inlined_call_operand.vmem [shape: f32[1,32], index: 10, kind: input, shape index: {}]
  %s11 = inlined_call_operand.vmem [shape: f32[1,32], index: 11, kind: input, shape index: {}]
  %s12 = inlined_call_operand.vmem [shape: f32[2,8,32], index: 12, kind: output, shape index: {}]
  %s13 = sld [smem:[#allocation0]]
  $region89: #{decoder_layer_forward.3} parent=0
    _
  %s15 = ssub.s32 1, %s13
  %s16 = scalar_select 0, %s15, %s13
  loop: start=0, step=1, limit=4
  $region2: #{decoder_layer_forward.3} parent=0 // loop_pre_header
    _
  $region3: #{decoder_layer_forward.3} parent=0 // loop_header
    %s18 = sphi 0, %s22
    %p19 = scmp.ge.s32.totalorder %s18, 4
    %s25 = sphi 0, %s37
    %s26 = sphi 0, %s33
    %s27 = sphi 0, %s25
    %s28 = sphi 0, %s26
    %s29 = sphi 0, %s27
    %s30 = sphi 0, %s28
    %s40 = sphi 0, %s42
    %s43 = sphi 0, %s40
    %s44 = sphi 0, %s43
    %s60 = sphi 0, %s44
    %s68 = sphi 0, %s70
    %s71 = sphi 0, %s68
    %s72 = sphi 0, %s71
    %s88 = sphi 0, %s72
    %s92 = sphi 0, %s92
    %s94 = sphi 0, %s92
    %s95 = sphi 0, %s94
    %s109 = sphi 0, %s95
    %s113 = sphi 0, %s113
    %s115 = sphi 0, %s113
    %s116 = sphi 0, %s115
    %s130 = sphi 0, %s116
    %s134 = sphi 0, %s134
    %s136 = sphi 0, %s134
    %s137 = sphi 0, %s136
    %s151 = sphi 0, %s137
    %s155 = sphi 0, %s155
    %s157 = sphi 0, %s155
    %s158 = sphi 0, %s157
    %s172 = sphi 0, %s158
    %s176 = sphi 0, %s176
    %s178 = sphi 0, %s176
    %s179 = sphi 0, %s178
    %s193 = sphi 0, %s179
    %s197 = sphi 0, %s197
    %s199 = sphi 0, %s197
    %s200 = sphi 0, %s199
    %s214 = sphi 0, %s200
    %s220 = sphi 0, %s222
    %s223 = sphi 0, %s220
    %s224 = sphi 0, %s223
    %s240 = sphi 0, %s224
    %s248 = sphi 0, %s250
    %s251 = sphi 0, %s248
    %s252 = sphi 0, %s251
    %s268 = sphi 0, %s252
    %s272 = sphi 0, %s272
    %s274 = sphi 0, %s272
    %s275 = sphi 0, %s274
    %s289 = sphi 0, %s275
    %s293 = sphi 0, %s293
    %s295 = sphi 0, %s293
    %s296 = sphi 0, %s295
    %s310 = sphi 0, %s296
    %s316 = sphi 0, %s318
    %s319 = sphi 0, %s316
    %s320 = sphi 0, %s319
    %s336 = sphi 0, %s320
  $region4: #{decoder_layer_forward.3} parent=0 // loop_header_branch
    %21 = sbr.rel (%p19) target = $region8
  $region5: #{decoder_layer_forward.3} parent=0 // loop_body
    %s23 = ssub.s32 %s18, 1
    %s24 = ssub.s32 %s18, 2
    %s31 = sadd.s32 1, %s26
    %p32 = scmp.ge.s32.totalorder %s31, 1
    %s33 = scalar_select %p32, 0, %s31
    %s34 = sadd.s32 1, %s25
    %s35 = scalar_select %p32, %s34, %s25
    %p36 = scmp.ge.s32.totalorder %s35, 2
    %s37 = scalar_select %p36, 0, %s35
    %s38 = ssub.s32 %s25, %s37
    %p39 = scmp.eq.s32.totalorder %s38, 0
    %s41 = sadd.s32 %s40, 1
    %s42 = scalar_select %p39, %s40, %s41
    %p45 = pneg %p39
    %p46 = scmp.eq.s32.totalorder %s18, 1
    %p47 = por %p45, %p46
    %p48 = scmp.ne.s32.totalorder %s40, %s43
    %p49 = scmp.eq.s32.totalorder %s18, 0
    %p50 = por %p48, %p49
    %p51 = scmp.ne.s32.totalorder %s40, %s43
    %p52 = scmp.eq.s32.totalorder %s23, 1
    %p53 = por %p51, %p52
    %p54 = scmp.ne.s32.totalorder %s43, %s44
    %p55 = scmp.eq.s32.totalorder %s23, 0
    %p56 = por %p54, %p55
    %p57 = scmp.ne.s32.totalorder %s43, %s44
    %p58 = scmp.eq.s32.totalorder %s24, 1
    %p59 = por %p57, %p58
    %p61 = scmp.ne.s32.totalorder %s44, %s60
    %p62 = scmp.eq.s32.totalorder %s24, 0
    %p63 = por %p61, %p62
    %s64 = ssub.s32 %s25, %s37
    %s65 = ssub.s32 %s26, %s33
    %s66 = sor.u32 %s64, %s65
    %p67 = scmp.eq.s32.totalorder %s66, 0
    %s69 = sadd.s32 %s68, 1
    %s70 = scalar_select %p67, %s68, %s69
    %p73 = pneg %p67
    %p74 = scmp.eq.s32.totalorder %s18, 1
    %p75 = por %p73, %p74
    %p76 = scmp.ne.s32.totalorder %s68, %s71
    %p77 = scmp.eq.s32.totalorder %s18, 0
    %p78 = por %p76, %p77
    %p79 = scmp.ne.s32.totalorder %s68, %s71
    %p80 = scmp.eq.s32.totalorder %s23, 1
    %p81 = por %p79, %p80
    %p82 = scmp.ne.s32.totalorder %s71, %s72
    %p83 = scmp.eq.s32.totalorder %s23, 0
    %p84 = por %p82, %p83
    %p85 = scmp.ne.s32.totalorder %s71, %s72
    %p86 = scmp.eq.s32.totalorder %s24, 1
    %p87 = por %p85, %p86
    %p89 = scmp.ne.s32.totalorder %s72, %s88
    %p90 = scmp.eq.s32.totalorder %s24, 0
    %p91 = por %p89, %p90
    %s93 = sadd.s32 %s92, 1
    %p96 = scmp.eq.s32.totalorder %s18, 1
    %p97 = scmp.ne.s32.totalorder %s92, %s94
    %p98 = scmp.eq.s32.totalorder %s18, 0
    %p99 = por %p97, %p98
    %p100 = scmp.ne.s32.totalorder %s92, %s94
    %p101 = scmp.eq.s32.totalorder %s23, 1
    %p102 = por %p100, %p101
    %p103 = scmp.ne.s32.totalorder %s94, %s95
    %p104 = scmp.eq.s32.totalorder %s23, 0
    %p105 = por %p103, %p104
    %p106 = scmp.ne.s32.totalorder %s94, %s95
    %p107 = scmp.eq.s32.totalorder %s24, 1
    %p108 = por %p106, %p107
    %p110 = scmp.ne.s32.totalorder %s95, %s109
    %p111 = scmp.eq.s32.totalorder %s24, 0
    %p112 = por %p110, %p111
    %s114 = sadd.s32 %s113, 1
    %p117 = scmp.eq.s32.totalorder %s18, 1
    %p118 = scmp.ne.s32.totalorder %s113, %s115
    %p119 = scmp.eq.s32.totalorder %s18, 0
    %p120 = por %p118, %p119
    %p121 = scmp.ne.s32.totalorder %s113, %s115
    %p122 = scmp.eq.s32.totalorder %s23, 1
    %p123 = por %p121, %p122
    %p124 = scmp.ne.s32.totalorder %s115, %s116
    %p125 = scmp.eq.s32.totalorder %s23, 0
    %p126 = por %p124, %p125
    %p127 = scmp.ne.s32.totalorder %s115, %s116
    %p128 = scmp.eq.s32.totalorder %s24, 1
    %p129 = por %p127, %p128
    %p131 = scmp.ne.s32.totalorder %s116, %s130
    %p132 = scmp.eq.s32.totalorder %s24, 0
    %p133 = por %p131, %p132
    %s135 = sadd.s32 %s134, 1
    %p138 = scmp.eq.s32.totalorder %s18, 1
    %p139 = scmp.ne.s32.totalorder %s134, %s136
    %p140 = scmp.eq.s32.totalorder %s18, 0
    %p141 = por %p139, %p140
    %p142 = scmp.ne.s32.totalorder %s134, %s136
    %p143 = scmp.eq.s32.totalorder %s23, 1
    %p144 = por %p142, %p143
    %p145 = scmp.ne.s32.totalorder %s136, %s137
    %p146 = scmp.eq.s32.totalorder %s23, 0
    %p147 = por %p145, %p146
    %p148 = scmp.ne.s32.totalorder %s136, %s137
    %p149 = scmp.eq.s32.totalorder %s24, 1
    %p150 = por %p148, %p149
    %p152 = scmp.ne.s32.totalorder %s137, %s151
    %p153 = scmp.eq.s32.totalorder %s24, 0
    %p154 = por %p152, %p153
    %s156 = sadd.s32 %s155, 1
    %p159 = scmp.eq.s32.totalorder %s18, 1
    %p160 = scmp.ne.s32.totalorder %s155, %s157
    %p161 = scmp.eq.s32.totalorder %s18, 0
    %p162 = por %p160, %p161
    %p163 = scmp.ne.s32.totalorder %s155, %s157
    %p164 = scmp.eq.s32.totalorder %s23, 1
    %p165 = por %p163, %p164
    %p166 = scmp.ne.s32.totalorder %s157, %s158
    %p167 = scmp.eq.s32.totalorder %s23, 0
    %p168 = por %p166, %p167
    %p169 = scmp.ne.s32.totalorder %s157, %s158
    %p170 = scmp.eq.s32.totalorder %s24, 1
    %p171 = por %p169, %p170
    %p173 = scmp.ne.s32.totalorder %s158, %s172
    %p174 = scmp.eq.s32.totalorder %s24, 0
    %p175 = por %p173, %p174
    %s177 = sadd.s32 %s176, 1
    %p180 = scmp.eq.s32.totalorder %s18, 1
    %p181 = scmp.ne.s32.totalorder %s176, %s178
    %p182 = scmp.eq.s32.totalorder %s18, 0
    %p183 = por %p181, %p182
    %p184 = scmp.ne.s32.totalorder %s176, %s178
    %p185 = scmp.eq.s32.totalorder %s23, 1
    %p186 = por %p184, %p185
    %p187 = scmp.ne.s32.totalorder %s178, %s179
    %p188 = scmp.eq.s32.totalorder %s23, 0
    %p189 = por %p187, %p188
    %p190 = scmp.ne.s32.totalorder %s178, %s179
    %p191 = scmp.eq.s32.totalorder %s24, 1
    %p192 = por %p190, %p191
    %p194 = scmp.ne.s32.totalorder %s179, %s193
    %p195 = scmp.eq.s32.totalorder %s24, 0
    %p196 = por %p194, %p195
    %s198 = sadd.s32 %s197, 1
    %p201 = scmp.eq.s32.totalorder %s18, 1
    %p202 = scmp.ne.s32.totalorder %s197, %s199
    %p203 = scmp.eq.s32.totalorder %s18, 0
    %p204 = por %p202, %p203
    %p205 = scmp.ne.s32.totalorder %s197, %s199
    %p206 = scmp.eq.s32.totalorder %s23, 1
    %p207 = por %p205, %p206
    %p208 = scmp.ne.s32.totalorder %s199, %s200
    %p209 = scmp.eq.s32.totalorder %s23, 0
    %p210 = por %p208, %p209
    %p211 = scmp.ne.s32.totalorder %s199, %s200
    %p212 = scmp.eq.s32.totalorder %s24, 1
    %p213 = por %p211, %p212
    %p215 = scmp.ne.s32.totalorder %s200, %s214
    %p216 = scmp.eq.s32.totalorder %s24, 0
    %p217 = por %p215, %p216
    %s218 = ssub.s32 %s26, %s33
    %p219 = scmp.eq.s32.totalorder %s218, 0
    %s221 = sadd.s32 %s220, 1
    %s222 = scalar_select %p219, %s220, %s221
    %p225 = pneg %p219
    %p226 = scmp.eq.s32.totalorder %s18, 1
    %p227 = por %p225, %p226
    %p228 = scmp.ne.s32.totalorder %s220, %s223
    %p229 = scmp.eq.s32.totalorder %s18, 0
    %p230 = por %p228, %p229
    %p231 = scmp.ne.s32.totalorder %s220, %s223
    %p232 = scmp.eq.s32.totalorder %s23, 1
    %p233 = por %p231, %p232
    %p234 = scmp.ne.s32.totalorder %s223, %s224
    %p235 = scmp.eq.s32.totalorder %s23, 0
    %p236 = por %p234, %p235
    %p237 = scmp.ne.s32.totalorder %s223, %s224
    %p238 = scmp.eq.s32.totalorder %s24, 1
    %p239 = por %p237, %p238
    %p241 = scmp.ne.s32.totalorder %s224, %s240
    %p242 = scmp.eq.s32.totalorder %s24, 0
    %p243 = por %p241, %p242
    %s244 = ssub.s32 %s25, %s37
    %s245 = ssub.s32 %s26, %s33
    %s246 = sor.u32 %s244, %s245
    %p247 = scmp.eq.s32.totalorder %s246, 0
    %s249 = sadd.s32 %s248, 1
    %s250 = scalar_select %p247, %s248, %s249
    %p253 = pneg %p247
    %p254 = scmp.eq.s32.totalorder %s18, 1
    %p255 = por %p253, %p254
    %p256 = scmp.ne.s32.totalorder %s248, %s251
    %p257 = scmp.eq.s32.totalorder %s18, 0
    %p258 = por %p256, %p257
    %p259 = scmp.ne.s32.totalorder %s248, %s251
    %p260 = scmp.eq.s32.totalorder %s23, 1
    %p261 = por %p259, %p260
    %p262 = scmp.ne.s32.totalorder %s251, %s252
    %p263 = scmp.eq.s32.totalorder %s23, 0
    %p264 = por %p262, %p263
    %p265 = scmp.ne.s32.totalorder %s251, %s252
    %p266 = scmp.eq.s32.totalorder %s24, 1
    %p267 = por %p265, %p266
    %p269 = scmp.ne.s32.totalorder %s252, %s268
    %p270 = scmp.eq.s32.totalorder %s24, 0
    %p271 = por %p269, %p270
    %s273 = sadd.s32 %s272, 1
    %p276 = scmp.eq.s32.totalorder %s18, 1
    %p277 = scmp.ne.s32.totalorder %s272, %s274
    %p278 = scmp.eq.s32.totalorder %s18, 0
    %p279 = por %p277, %p278
    %p280 = scmp.ne.s32.totalorder %s272, %s274
    %p281 = scmp.eq.s32.totalorder %s23, 1
    %p282 = por %p280, %p281
    %p283 = scmp.ne.s32.totalorder %s274, %s275
    %p284 = scmp.eq.s32.totalorder %s23, 0
    %p285 = por %p283, %p284
    %p286 = scmp.ne.s32.totalorder %s274, %s275
    %p287 = scmp.eq.s32.totalorder %s24, 1
    %p288 = por %p286, %p287
    %p290 = scmp.ne.s32.totalorder %s275, %s289
    %p291 = scmp.eq.s32.totalorder %s24, 0
    %p292 = por %p290, %p291
    %s294 = sadd.s32 %s293, 1
    %p297 = scmp.eq.s32.totalorder %s18, 1
    %p298 = scmp.ne.s32.totalorder %s293, %s295
    %p299 = scmp.eq.s32.totalorder %s18, 0
    %p300 = por %p298, %p299
    %p301 = scmp.ne.s32.totalorder %s293, %s295
    %p302 = scmp.eq.s32.totalorder %s23, 1
    %p303 = por %p301, %p302
    %p304 = scmp.ne.s32.totalorder %s295, %s296
    %p305 = scmp.eq.s32.totalorder %s23, 0
    %p306 = por %p304, %p305
    %p307 = scmp.ne.s32.totalorder %s295, %s296
    %p308 = scmp.eq.s32.totalorder %s24, 1
    %p309 = por %p307, %p308
    %p311 = scmp.ne.s32.totalorder %s296, %s310
    %p312 = scmp.eq.s32.totalorder %s24, 0
    %p313 = por %p311, %p312
    %s314 = ssub.s32 %s25, %s37
    %p315 = scmp.eq.s32.totalorder %s314, 0
    %s317 = sadd.s32 %s316, 1
    %s318 = scalar_select %p315, %s316, %s317
    %p321 = pneg %p315
    %p322 = scmp.eq.s32.totalorder %s18, 1
    %p323 = por %p321, %p322
    %p324 = scmp.ne.s32.totalorder %s316, %s319
    %p325 = scmp.eq.s32.totalorder %s18, 0
    %p326 = por %p324, %p325
    %p327 = scmp.ne.s32.totalorder %s316, %s319
    %p328 = scmp.eq.s32.totalorder %s23, 1
    %p329 = por %p327, %p328
    %p330 = scmp.ne.s32.totalorder %s319, %s320
    %p331 = scmp.eq.s32.totalorder %s23, 0
    %p332 = por %p330, %p331
    %p333 = scmp.ne.s32.totalorder %s319, %s320
    %p334 = scmp.eq.s32.totalorder %s24, 1
    %p335 = por %p333, %p334
    %p337 = scmp.ne.s32.totalorder %s320, %s336
    %p338 = scmp.eq.s32.totalorder %s24, 0
    %p339 = por %p337, %p338
    %p340 = scmp.le.s32.totalorder 1, %s18
    %p341 = scmp.lt.s32.totalorder %s18, 3
    %p342 = pnand %p340, %p341
    %p343 = pneg %p342
    // Predicated region
    $region9: #{decoder_layer_forward.3} parent=5 // pred_check
      _
    $region10: #{decoder_layer_forward.3} parent=5 // pred_check_branch
      %345 = sbr.rel (%p342) target = $region12
    $region11: #{decoder_layer_forward.3} parent=5 // pred_region
      %s346 = ssub.s32 %s18, 1
      // Predicated region
      $region13: #{decoder_layer_forward.3} parent=11 // pred_check
        %p347 = pneg %p105
      $region14: #{decoder_layer_forward.3} parent=11 // pred_check_branch
        %349 = sbr.rel (%p347) target = $region16
      $region15: #{decoder_layer_forward.3} parent=11 // pred_region
        _
      $region16: #{decoder_layer_forward.3} parent=11 // pred_fallthru
        _
      // Predicated region
      $region17: #{decoder_layer_forward.3} parent=11 // pred_check
        %p350 = pneg %p126
      $region18: #{decoder_layer_forward.3} parent=11 // pred_check_branch
        %352 = sbr.rel (%p350) target = $region20
      $region19: #{decoder_layer_forward.3} parent=11 // pred_region
        _
      $region20: #{decoder_layer_forward.3} parent=11 // pred_fallthru
        _
      // Predicated region
      $region21: #{decoder_layer_forward.3} parent=11 // pred_check
        %p353 = pneg %p147
      $region22: #{decoder_layer_forward.3} parent=11 // pred_check_branch
        %355 = sbr.rel (%p353) target = $region24
      $region23: #{decoder_layer_forward.3} parent=11 // pred_region
        _
      $region24: #{decoder_layer_forward.3} parent=11 // pred_fallthru
        _
      // Predicated region
      $region25: #{decoder_layer_forward.3} parent=11 // pred_check
        %p356 = pneg %p168
      $region26: #{decoder_layer_forward.3} parent=11 // pred_check_branch
        %358 = sbr.rel (%p356) target = $region28
      $region27: #{decoder_layer_forward.3} parent=11 // pred_region
        _
      $region28: #{decoder_layer_forward.3} parent=11 // pred_fallthru
        _
      // Predicated region
      $region29: #{decoder_layer_forward.3} parent=11 // pred_check
        %p359 = pneg %p189
      $region30: #{decoder_layer_forward.3} parent=11 // pred_check_branch
        %361 = sbr.rel (%p359) target = $region32
      $region31: #{decoder_layer_forward.3} parent=11 // pred_region
        _
      $region32: #{decoder_layer_forward.3} parent=11 // pred_fallthru
        _
      // Predicated region
      $region33: #{decoder_layer_forward.3} parent=11 // pred_check
        %p362 = pneg %p210
      $region34: #{decoder_layer_forward.3} parent=11 // pred_check_branch
        %364 = sbr.rel (%p362) target = $region36
      $region35: #{decoder_layer_forward.3} parent=11 // pred_region
        _
      $region36: #{decoder_layer_forward.3} parent=11 // pred_fallthru
        _
      // Predicated region
      $region37: #{decoder_layer_forward.3} parent=11 // pred_check
        %p365 = pneg %p236
      $region38: #{decoder_layer_forward.3} parent=11 // pred_check_branch
        %367 = sbr.rel (%p365) target = $region40
      $region39: #{decoder_layer_forward.3} parent=11 // pred_region
        %p368 = scmp.lt.s32.totalorder %s28, 0
        %s369 = scalar_select %p368, %s28, 0
        %s370 = smul.addr %s369, 8
        %s371 = scalar_lea.vmem %s8, %s370
      $region40: #{decoder_layer_forward.3} parent=11 // pred_fallthru
        _
      // Predicated region
      $region41: #{decoder_layer_forward.3} parent=11 // pred_check
        %p372 = pneg %p285
      $region42: #{decoder_layer_forward.3} parent=11 // pred_check_branch
        %374 = sbr.rel (%p372) target = $region44
      $region43: #{decoder_layer_forward.3} parent=11 // pred_region
        _
      $region44: #{decoder_layer_forward.3} parent=11 // pred_fallthru
        _
      // Predicated region
      $region45: #{decoder_layer_forward.3} parent=11 // pred_check
        %p375 = pneg %p306
      $region46: #{decoder_layer_forward.3} parent=11 // pred_check_branch
        %377 = sbr.rel (%p375) target = $region48
      $region47: #{decoder_layer_forward.3} parent=11 // pred_region
        _
      $region48: #{decoder_layer_forward.3} parent=11 // pred_fallthru
        _
    $region12: #{decoder_layer_forward.3} parent=5 // pred_fallthru
      _
    %p378 = scmp.lt.s32.totalorder %s18, 2
    // Predicated region
    $region49: #{decoder_layer_forward.3} parent=5 // pred_check
      %p379 = pneg %p378
    $region50: #{decoder_layer_forward.3} parent=5 // pred_check_branch
      %381 = sbr.rel (%p379) target = $region52
    $region51: #{decoder_layer_forward.3} parent=5 // pred_region
      // Predicated region
      $region53: #{decoder_layer_forward.3} parent=51 // pred_check
        %p382 = pneg %p50
      $region54: #{decoder_layer_forward.3} parent=51 // pred_check_branch
        %384 = sbr.rel (%p382) target = $region56
      $region55: #{decoder_layer_forward.3} parent=51 // pred_region
        %p385 = scmp.lt.s32.totalorder %s25, 1
        %s386 = scalar_select %p385, %s25, 1
        %s387 = smul.addr %s386, 8
        %s388 = scalar_lea.vmem %s0, %s387
      $region56: #{decoder_layer_forward.3} parent=51 // pred_fallthru
        _
      // Predicated region
      $region57: #{decoder_layer_forward.3} parent=51 // pred_check
        %p389 = pneg %p78
      $region58: #{decoder_layer_forward.3} parent=51 // pred_check_branch
        %391 = sbr.rel (%p389) target = $region60
      $region59: #{decoder_layer_forward.3} parent=51 // pred_region
        %p392 = scmp.lt.s32.totalorder %s25, 1
        %s393 = scalar_select %p392, %s25, 1
        %p394 = scmp.lt.s32.totalorder %s26, 0
        %s395 = scalar_select %p394, %s26, 0
        %s396 = sadd.s32 %s395, %s393
        %s397 = smul.addr %s396, 8
        %s398 = scalar_lea.vmem %s1, %s397
      $region60: #{decoder_layer_forward.3} parent=51 // pred_fallthru
        _
      // Predicated region
      $region61: #{decoder_layer_forward.3} parent=51 // pred_check
        %p399 = pneg %p258
      $region62: #{decoder_layer_forward.3} parent=51 // pred_check_branch
        %401 = sbr.rel (%p399) target = $region64
      $region63: #{decoder_layer_forward.3} parent=51 // pred_region
        %p402 = scmp.lt.s32.totalorder %s25, 1
        %s403 = scalar_select %p402, %s25, 1
        %p404 = scmp.lt.s32.totalorder %s26, 0
        %s405 = scalar_select %p404, %s26, 0
        %s406 = sadd.s32 %s405, %s403
        %s407 = scalar_lea.vmem %s9, %s406
      $region64: #{decoder_layer_forward.3} parent=51 // pred_fallthru
        _
    $region52: #{decoder_layer_forward.3} parent=5 // pred_fallthru
      _
    %p408 = scmp.le.s32.totalorder 1, %s18
    %p409 = scmp.lt.s32.totalorder %s18, 3
    %p410 = pnand %p408, %p409
    %p411 = pneg %p410
    // Predicated region
    $region65: #{decoder_layer_forward.3} parent=5 // pred_check
      _
    $region66: #{decoder_layer_forward.3} parent=5 // pred_check_branch
      %413 = sbr.rel (%p410) target = $region68
    $region67: #{decoder_layer_forward.3} parent=5 // pred_region
      %s414 = ssub.s32 %s18, 1
      %p415 = scmp.lt.s32.totalorder %s27, 1
      %s416 = scalar_select %p415, %s27, 1
      %s417 = smul.addr %s416, 8
      %s418 = scalar_lea.vmem %s0, %s417
      %p419 = pneg %p56
      %p420 = pneg %p53
      %p421 = scmp.lt.s32.totalorder %s27, 1
      %s422 = scalar_select %p421, %s27, 1
      %p423 = scmp.lt.s32.totalorder %s28, 0
      %s424 = scalar_select %p423, %s28, 0
      %s425 = sadd.s32 %s424, %s422
      %s426 = smul.addr %s425, 8
      %s427 = scalar_lea.vmem %s1, %s426
      %p428 = pneg %p84
      %p429 = pneg %p81
      %p430 = pneg %p105
      %p431 = pneg %p102
      %p432 = pneg %p126
      %p433 = pneg %p123
      %p434 = pneg %p147
      %p435 = pneg %p144
      %p436 = pneg %p168
      %p437 = pneg %p165
      %p438 = pneg %p189
      %p439 = pneg %p186
      %p440 = pneg %p210
      %p441 = pneg %p207
      %p442 = scmp.lt.s32.totalorder %s28, 0
      %s443 = scalar_select %p442, %s28, 0
      %s444 = smul.addr %s443, 8
      %s445 = scalar_lea.vmem %s8, %s444
      %p446 = pneg %p236
      %p447 = pneg %p233
      %p448 = scmp.lt.s32.totalorder %s27, 1
      %s449 = scalar_select %p448, %s27, 1
      %p450 = scmp.lt.s32.totalorder %s28, 0
      %s451 = scalar_select %p450, %s28, 0
      %s452 = sadd.s32 %s451, %s449
      %s453 = scalar_lea.vmem %s9, %s452
      %p454 = pneg %p264
      %p455 = pneg %p261
      %p456 = pneg %p285
      %p457 = pneg %p282
      %p458 = pneg %p306
      %p459 = pneg %p303
      %p460 = pneg %p332
      %p461 = pneg %p329
      %p462 = scmp.lt.s32.totalorder %s27, 1
      %s463 = scalar_select %p462, %s27, 1
      %s464 = smul.addr %s463, 8
      %s465 = scalar_lea.vmem %s12, %s464
      %p466 = scmp.lt.s32.totalorder %s27, 1
      %s467 = scalar_select %p466, %s27, 1
      %s468 = smul.addr %s467, 8
      %s469 = scalar_lea.vmem %s0, %s468
      %p470 = scmp.lt.s32.totalorder %s27, 1
      %s471 = scalar_select %p470, %s27, 1
      %p472 = scmp.lt.s32.totalorder %s28, 0
      %s473 = scalar_select %p472, %s28, 0
      %s474 = sadd.s32 %s473, %s471
      %s475 = smul.addr %s474, 8
      %s476 = scalar_lea.vmem %s1, %s475
      %p477 = scmp.lt.s32.totalorder %s28, 0
      %s478 = scalar_select %p477, %s28, 0
      %s479 = smul.addr %s478, 8
      %s480 = scalar_lea.vmem %s8, %s479
      %p481 = scmp.lt.s32.totalorder %s27, 1
      %s482 = scalar_select %p481, %s27, 1
      %p483 = scmp.lt.s32.totalorder %s28, 0
      %s484 = scalar_select %p483, %s28, 0
      %s485 = sadd.s32 %s484, %s482
      %s486 = scalar_lea.vmem %s9, %s485
      %p487 = scmp.lt.s32.totalorder %s27, 1
      %s488 = scalar_select %p487, %s27, 1
      %s489 = smul.addr %s488, 8
      %s490 = scalar_lea.vmem %s12, %s489
      %p492 = scmp.eq.s32.totalorder %s28, 0
      // Predicated region
      $region69: #{decoder_layer_forward.3} parent=67 // pred_check
        %p493 = pneg %p492
      $region70: #{decoder_layer_forward.3} parent=67 // pred_check_branch
        %495 = sbr.rel (%p493) target = $region72
      $region71: #{decoder_layer_forward.3} parent=67 // pred_region
        %v496 = vld [vmem:[%s469] sm:$0xff]
        %v497 = vpack.c.bf16 %v496, %v496
        %v498 = vld [vmem:[%s2] sm:$0xf]
        %v499 = vld [vmem:[%s2 + $0x4] sm:$0xf]
        %v500 = vld [vmem:[%s2 + $0x8] sm:$0xf]
        %v501 = vld [vmem:[%s2 + $0xc] sm:$0xf]
        %v502 = vld [vmem:[%s3] sm:$0x1]
        %v504 = vlaneseq
        %v505 = vshrl.u32 %v504, 7
        %v506 = vsub.s32 0, %v505
        %v507 = vrot.slane %v502, %v506
        %v513 = vunpack.c.l.b16 %v498
        %v514 = vunpack.c.l.b16 %v499
        %v515 = vunpack.c.l.b16 %v500
        %v516 = vunpack.c.l.b16 %v501
        %v517 = vpack.c.b16 %v514, %v513
        %v518 = vpack.c.b16 %v516, %v515
        %vm521 = vcmask 261120
        %v523 = vsel %vm521, %v497, 0
        %525 = vmatprep.subr.bf16.mxu0 0
        %526 = vmatpush1.bf16.msra.mxu0 %v517
        %527 = vmatprep.subr.bf16.mxu0 0
        %528 = vmatpush1.bf16.msra.mxu0 %v518
        %529 = vmatprep.subr.bf16.mxu0 0
        %530 = vmatpush1.bf16.msra.mxu0 0
        %531 = vmatprep.subr.bf16.mxu0 0
        %532 = vmatpush1.bf16.msra.mxu0 0
        %533 = vmatprep.subr.bf16.mxu0 0
        %534 = vmatpush1.bf16.msra.mxu0 0
        %535 = vmatprep.subr.bf16.mxu0 0
        %536 = vmatpush1.bf16.msra.mxu0 0
        %537 = vmatprep.subr.bf16.mxu0 0
        %538 = vmatpush1.bf16.msra.mxu0 0
        %539 = vmatprep.subr.bf16.mxu0 0
        %540 = vmatpush1.bf16.msra.mxu0 0
        %541 = vmatprep.subr.bf16.mxu0 0
        %542 = vmatpush1.bf16.msra.mxu0 0
        %543 = vmatprep.subr.bf16.mxu0 0
        %544 = vmatpush1.bf16.msra.mxu0 0
        %545 = vmatprep.subr.bf16.mxu0 0
        %546 = vmatpush1.bf16.msra.mxu0 0
        %547 = vmatprep.subr.bf16.mxu0 0
        %548 = vmatpush1.bf16.msra.mxu0 0
        %549 = vmatprep.subr.bf16.mxu0 0
        %550 = vmatpush1.bf16.msra.mxu0 0
        %551 = vmatprep.subr.bf16.mxu0 0
        %552 = vmatpush1.bf16.msra.mxu0 0
        %553 = vmatprep.subr.bf16.mxu0 0
        %554 = vmatpush1.bf16.msra.mxu0 0
        %555 = vmatprep.subr.bf16.mxu0 0
        %556 = vmatpush1.bf16.msra.mxu0 0
        %557 = vmatprep.mubr.bf16.mxu0 0
        %558 = vmatmul.mubr.bf16.gmra.mrb[0].mxu0 %v523
        %v559 = vpop.f32.mrb[0].mxu0
        %v560 = vadd.f32 %v507, %v559
        %v561 = vpop.f32.mrb[0].mxu0
        %v562 = vpop.f32.mrb[0].mxu0
        %v563 = vpop.f32.mrb[0].mxu0
        %564 = vdwg.mxu0
        %v565 = vmul.f32 %v560, 0.35355338
        %566 = vst.msk [vmem:[#allocation2] sm:$0xff] %vm521, %v565
        %vm567 = vcmask 7168
        %568 = vst.msk [vmem:[#allocation3] sm:$0xff] %vm567, -inf
        %569 = vst.msk [vmem:[#allocation3 + $0x8] sm:$0xff] %vm567, -inf
        %570 = vst.msk [vmem:[#allocation3 + $0x10] sm:$0xff] %vm567, -inf
        %571 = vst.msk [vmem:[#allocation3 + $0x18] sm:$0xff] %vm567, -inf
        %572 = vst.msk [vmem:[#allocation4] sm:$0xff] %vm567, 0.0
        %573 = vst.msk [vmem:[#allocation4 + $0x8] sm:$0xff] %vm567, 0.0
        %574 = vst.msk [vmem:[#allocation4 + $0x10] sm:$0xff] %vm567, 0.0
        %575 = vst.msk [vmem:[#allocation4 + $0x18] sm:$0xff] %vm567, 0.0
        %vm576 = vcmask 64512
        %577 = vst.msk [vmem:[#allocation5] sm:$0xff] %vm576, 0.0
        %578 = vst.msk [vmem:[#allocation5 + $0x8] sm:$0xff] %vm576, 0.0
        %579 = vst.msk [vmem:[#allocation5 + $0x10] sm:$0xff] %vm576, 0.0
        %580 = vst.msk [vmem:[#allocation5 + $0x18] sm:$0xff] %vm576, 0.0
      $region72: #{decoder_layer_forward.3} parent=67 // pred_fallthru
        _
      %v581 = vld [vmem:[%s476] sm:$0xff]
      %v582 = vpack.c.bf16 %v581, %v581
      %v583 = vld [vmem:[%s4] sm:$0xf]
      %v584 = vld [vmem:[%s4 + $0x4] sm:$0xf]
      %v585 = vld [vmem:[%s4 + $0x8] sm:$0xf]
      %v586 = vld [vmem:[%s4 + $0xc] sm:$0xf]
      %v587 = vld [vmem:[%s5] sm:$0x1]
      %v589 = vlaneseq
      %v590 = vshrl.u32 %v589, 7
      %v591 = vsub.s32 0, %v590
      %v592 = vrot.slane %v587, %v591
      %v598 = vunpack.c.l.b16 %v583
      %v599 = vunpack.c.l.b16 %v584
      %v600 = vunpack.c.l.b16 %v585
      %v601 = vunpack.c.l.b16 %v586
      %v602 = vpack.c.b16 %v599, %v598
      %v603 = vpack.c.b16 %v601, %v600
      %vm606 = vcmask 261120
      %v608 = vsel %vm606, %v582, 0
      %610 = vmatprep.subr.bf16.mxu0 0
      %611 = vmatpush1.bf16.msra.mxu0 %v602
      %612 = vmatprep.subr.bf16.mxu0 0
      %613 = vmatpush1.bf16.msra.mxu0 %v603
      %614 = vmatprep.subr.bf16.mxu0 0
      %615 = vmatpush1.bf16.msra.mxu0 0
      %616 = vmatprep.subr.bf16.mxu0 0
      %617 = vmatpush1.bf16.msra.mxu0 0
      %618 = vmatprep.subr.bf16.mxu0 0
      %619 = vmatpush1.bf16.msra.mxu0 0
      %620 = vmatprep.subr.bf16.mxu0 0
      %621 = vmatpush1.bf16.msra.mxu0 0
      %622 = vmatprep.subr.bf16.mxu0 0
      %623 = vmatpush1.bf16.msra.mxu0 0
      %624 = vmatprep.subr.bf16.mxu0 0
      %625 = vmatpush1.bf16.msra.mxu0 0
      %626 = vmatprep.subr.bf16.mxu0 0
      %627 = vmatpush1.bf16.msra.mxu0 0
      %628 = vmatprep.subr.bf16.mxu0 0
      %629 = vmatpush1.bf16.msra.mxu0 0
      %630 = vmatprep.subr.bf16.mxu0 0
      %631 = vmatpush1.bf16.msra.mxu0 0
      %632 = vmatprep.subr.bf16.mxu0 0
      %633 = vmatpush1.bf16.msra.mxu0 0
      %634 = vmatprep.subr.bf16.mxu0 0
      %635 = vmatpush1.bf16.msra.mxu0 0
      %636 = vmatprep.subr.bf16.mxu0 0
      %637 = vmatpush1.bf16.msra.mxu0 0
      %638 = vmatprep.subr.bf16.mxu0 0
      %639 = vmatpush1.bf16.msra.mxu0 0
      %640 = vmatprep.subr.bf16.mxu0 0
      %641 = vmatpush1.bf16.msra.mxu0 0
      %642 = vmatprep.mubr.bf16.mxu0 0
      %643 = vmatmul.mubr.bf16.gmra.mrb[0].mxu0 %v608
      %v644 = vpop.f32.mrb[0].mxu0
      %v645 = vadd.f32 %v592, %v644
      %v646 = vpop.f32.mrb[0].mxu0
      %v647 = vpop.f32.mrb[0].mxu0
      %v648 = vpop.f32.mrb[0].mxu0
      %649 = vdwg.mxu0
      %v650 = vld [vmem:[#allocation2] sm:$0xff]
      %652 = vrot.lane.b32.xlu0 %v650, 120
      %v653 = vpop.permute.xlu0 %652
      %655 = vrot.lane.b32.xlu0 %v650, 112
      %v656 = vpop.permute.xlu0 %655
      %658 = vrot.lane.b32.xlu0 %v650, 104
      %v659 = vpop.permute.xlu0 %658
      %v661 = vcombine.low %v650, %v656
      %v662 = vcombine.high %v650, %v656
      %v664 = vunpack.c.l.s4 1983009808
      %v665 = vunpack.c.0.s8 %v664
      %v666 = vlaneseq
      %v667 = vshrl.u32 %v666, 7
      %v668 = vsub.s32 %v665, %v667
      %v669 = vrot.slane %v661, %v668
      %v671 = vunpack.c.l.s4 1983009808
      %v672 = vunpack.c.0.s8 %v671
      %v673 = vlaneseq
      %v674 = vshrl.u32 %v673, 7
      %v675 = vsub.s32 %v672, %v674
      %v676 = vrot.slane %v662, %v675
      %v677 = vcombine.low %v653, %v659
      %v678 = vcombine.high %v653, %v659
      %v680 = vunpack.c.l.s4 1983009808
      %v681 = vunpack.c.0.s8 %v680
      %v682 = vlaneseq
      %v683 = vshrl.u32 %v682, 7
      %v684 = vsub.s32 %v681, %v683
      %v685 = vrot.slane %v677, %v684
      %v687 = vunpack.c.l.s4 1983009808
      %v688 = vunpack.c.0.s8 %v687
      %v689 = vlaneseq
      %v690 = vshrl.u32 %v689, 7
      %v691 = vsub.s32 %v688, %v690
      %v692 = vrot.slane %v678, %v691
      %v693 = vcombine.low %v669, %v685
      %v694 = vcombine.high %v669, %v685
      %v696 = vunpack.c.l.s4 1934713408
      %v697 = vunpack.c.0.s8 %v696
      %v698 = vlaneseq
      %v699 = vshrl.u32 %v698, 7
      %v700 = vsub.s32 %v697, %v699
      %v701 = vrot.slane %v693, %v700
      %v703 = vunpack.c.l.s4 1934713408
      %v704 = vunpack.c.0.s8 %v703
      %v705 = vlaneseq
      %v706 = vshrl.u32 %v705, 7
      %v707 = vsub.s32 %v704, %v706
      %v708 = vrot.slane %v694, %v707
      %v709 = vcombine.low %v676, %v692
      %v710 = vcombine.high %v676, %v692
      %v712 = vunpack.c.l.s4 1934713408
      %v713 = vunpack.c.0.s8 %v712
      %v714 = vlaneseq
      %v715 = vshrl.u32 %v714, 7
      %v716 = vsub.s32 %v713, %v715
      %v717 = vrot.slane %v709, %v716
      %v719 = vunpack.c.l.s4 1934713408
      %v720 = vunpack.c.0.s8 %v719
      %v721 = vlaneseq
      %v722 = vshrl.u32 %v721, 7
      %v723 = vsub.s32 %v720, %v722
      %v724 = vrot.slane %v710, %v723
      %v725 = vcombine.high %v701, 0.0
      %v726 = vcombine.high %v708, 0.0
      %v727 = vcombine.high %v717, 0.0
      %v728 = vcombine.high %v724, 0.0
      %v729 = vpack.c.bf16 %v701, %v701
      %v730 = vpack.c.bf16 %v725, %v725
      %v731 = vpack.c.bf16 %v708, %v708
      %v732 = vpack.c.bf16 %v726, %v726
      %v733 = vpack.c.bf16 %v717, %v717
      %v734 = vpack.c.bf16 %v727, %v727
      %v735 = vpack.c.bf16 %v724, %v724
      %v736 = vpack.c.bf16 %v728, %v728
      %738 = vrot.lane.b32.xlu0 %v645, 120
      %v739 = vpop.permute.xlu0 %738
      %741 = vrot.lane.b32.xlu0 %v645, 112
      %v742 = vpop.permute.xlu0 %741
      %744 = vrot.lane.b32.xlu0 %v645, 104
      %v745 = vpop.permute.xlu0 %744
      %v747 = vcombine.low %v645, %v742
      %v748 = vcombine.high %v645, %v742
      %v750 = vunpack.c.l.s4 1983009808
      %v751 = vunpack.c.0.s8 %v750
      %v752 = vlaneseq
      %v753 = vshrl.u32 %v752, 7
      %v754 = vsub.s32 %v751, %v753
      %v755 = vrot.slane %v747, %v754
      %v757 = vunpack.c.l.s4 1983009808
      %v758 = vunpack.c.0.s8 %v757
      %v759 = vlaneseq
      %v760 = vshrl.u32 %v759, 7
      %v761 = vsub.s32 %v758, %v760
      %v762 = vrot.slane %v748, %v761
      %v763 = vcombine.low %v739, %v745
      %v764 = vcombine.high %v739, %v745
      %v766 = vunpack.c.l.s4 1983009808
      %v767 = vunpack.c.0.s8 %v766
      %v768 = vlaneseq
      %v769 = vshrl.u32 %v768, 7
      %v770 = vsub.s32 %v767, %v769
      %v771 = vrot.slane %v763, %v770
      %v773 = vunpack.c.l.s4 1983009808
      %v774 = vunpack.c.0.s8 %v773
      %v775 = vlaneseq
      %v776 = vshrl.u32 %v775, 7
      %v777 = vsub.s32 %v774, %v776
      %v778 = vrot.slane %v764, %v777
      %v779 = vcombine.low %v755, %v771
      %v780 = vcombine.high %v755, %v771
      %v782 = vunpack.c.l.s4 1934713408
      %v783 = vunpack.c.0.s8 %v782
      %v784 = vlaneseq
      %v785 = vshrl.u32 %v784, 7
      %v786 = vsub.s32 %v783, %v785
      %v787 = vrot.slane %v779, %v786
      %v789 = vunpack.c.l.s4 1934713408
      %v790 = vunpack.c.0.s8 %v789
      %v791 = vlaneseq
      %v792 = vshrl.u32 %v791, 7
      %v793 = vsub.s32 %v790, %v792
      %v794 = vrot.slane %v780, %v793
      %v795 = vcombine.low %v762, %v778
      %v796 = vcombine.high %v762, %v778
      %v798 = vunpack.c.l.s4 1934713408
      %v799 = vunpack.c.0.s8 %v798
      %v800 = vlaneseq
      %v801 = vshrl.u32 %v800, 7
      %v802 = vsub.s32 %v799, %v801
      %v803 = vrot.slane %v795, %v802
      %v805 = vunpack.c.l.s4 1934713408
      %v806 = vunpack.c.0.s8 %v805
      %v807 = vlaneseq
      %v808 = vshrl.u32 %v807, 7
      %v809 = vsub.s32 %v806, %v808
      %v810 = vrot.slane %v796, %v809
      %v811 = vcombine.high %v787, 0.0
      %v812 = vcombine.high %v794, 0.0
      %v813 = vcombine.high %v803, 0.0
      %v814 = vcombine.high %v810, 0.0
      %v815 = vpack.c.bf16 %v787, %v787
      %v816 = vpack.c.bf16 %v811, %v811
      %v817 = vpack.c.bf16 %v794, %v794
      %v818 = vpack.c.bf16 %v812, %v812
      %v819 = vpack.c.bf16 %v803, %v803
      %v820 = vpack.c.bf16 %v813, %v813
      %v821 = vpack.c.bf16 %v810, %v810
      %v822 = vpack.c.bf16 %v814, %v814
      %823 = vrot.lane.b32.xlu0 %v645, 96
      %v824 = vpop.permute.xlu0 %823
      %825 = vrot.lane.b32.xlu0 %v739, 96
      %v826 = vpop.permute.xlu0 %825
      %827 = vrot.lane.b32.xlu0 %v742, 96
      %v828 = vpop.permute.xlu0 %827
      %829 = vrot.lane.b32.xlu0 %v745, 96
      %v830 = vpop.permute.xlu0 %829
      %v835 = vcombine.low %v824, %v828
      %v836 = vcombine.high %v824, %v828
      %v838 = vunpack.c.l.s4 1983009808
      %v839 = vunpack.c.0.s8 %v838
      %v840 = vlaneseq
      %v841 = vshrl.u32 %v840, 7
      %v842 = vsub.s32 %v839, %v841
      %v843 = vrot.slane %v835, %v842
      %v845 = vunpack.c.l.s4 1983009808
      %v846 = vunpack.c.0.s8 %v845
      %v847 = vlaneseq
      %v848 = vshrl.u32 %v847, 7
      %v849 = vsub.s32 %v846, %v848
      %v850 = vrot.slane %v836, %v849
      %v851 = vcombine.low %v826, %v830
      %v852 = vcombine.high %v826, %v830
      %v854 = vunpack.c.l.s4 1983009808
      %v855 = vunpack.c.0.s8 %v854
      %v856 = vlaneseq
      %v857 = vshrl.u32 %v856, 7
      %v858 = vsub.s32 %v855, %v857
      %v859 = vrot.slane %v851, %v858
      %v861 = vunpack.c.l.s4 1983009808
      %v862 = vunpack.c.0.s8 %v861
      %v863 = vlaneseq
      %v864 = vshrl.u32 %v863, 7
      %v865 = vsub.s32 %v862, %v864
      %v866 = vrot.slane %v852, %v865
      %v867 = vcombine.low %v843, %v859
      %v868 = vcombine.high %v843, %v859
      %v870 = vunpack.c.l.s4 1934713408
      %v871 = vunpack.c.0.s8 %v870
      %v872 = vlaneseq
      %v873 = vshrl.u32 %v872, 7
      %v874 = vsub.s32 %v871, %v873
      %v875 = vrot.slane %v867, %v874
      %v877 = vunpack.c.l.s4 1934713408
      %v878 = vunpack.c.0.s8 %v877
      %v879 = vlaneseq
      %v880 = vshrl.u32 %v879, 7
      %v881 = vsub.s32 %v878, %v880
      %v882 = vrot.slane %v868, %v881
      %v883 = vcombine.low %v850, %v866
      %v884 = vcombine.high %v850, %v866
      %v886 = vunpack.c.l.s4 1934713408
      %v887 = vunpack.c.0.s8 %v886
      %v888 = vlaneseq
      %v889 = vshrl.u32 %v888, 7
      %v890 = vsub.s32 %v887, %v889
      %v891 = vrot.slane %v883, %v890
      %v893 = vunpack.c.l.s4 1934713408
      %v894 = vunpack.c.0.s8 %v893
      %v895 = vlaneseq
      %v896 = vshrl.u32 %v895, 7
      %v897 = vsub.s32 %v894, %v896
      %v898 = vrot.slane %v884, %v897
      %v899 = vcombine.high %v875, 0.0
      %v900 = vcombine.high %v882, 0.0
      %v901 = vcombine.high %v891, 0.0
      %v902 = vcombine.high %v898, 0.0
      %v903 = vpack.c.bf16 %v875, %v875
      %v904 = vpack.c.bf16 %v899, %v899
      %v905 = vpack.c.bf16 %v882, %v882
      %v906 = vpack.c.bf16 %v900, %v900
      %v907 = vpack.c.bf16 %v891, %v891
      %v908 = vpack.c.bf16 %v901, %v901
      %v909 = vpack.c.bf16 %v898, %v898
      %v910 = vpack.c.bf16 %v902, %v902
      %v911 = vld [vmem:[%s480] sm:$0xff]
      %v912 = vcombine.low %v729, %v733
      %v914 = vunpack.c.l.s4 1983009808
      %v915 = vunpack.c.0.s8 %v914
      %v916 = vlaneseq
      %v917 = vshrl.u32 %v916, 7
      %v918 = vsub.s32 %v915, %v917
      %v919 = vrot.slane %v912, %v918
      %v920 = vcombine.low %v731, %v735
      %v922 = vunpack.c.l.s4 1983009808
      %v923 = vunpack.c.0.s8 %v922
      %v924 = vlaneseq
      %v925 = vshrl.u32 %v924, 7
      %v926 = vsub.s32 %v923, %v925
      %v927 = vrot.slane %v920, %v926
      %v928 = vcombine.low %v919, %v927
      %v930 = vunpack.c.l.s4 1934713408
      %v931 = vunpack.c.0.s8 %v930
      %v932 = vlaneseq
      %v933 = vshrl.u32 %v932, 7
      %v934 = vsub.s32 %v931, %v933
      %v935 = vrot.slane %v928, %v934
      %v936 = vcombine.high %v935, 0
      %v937 = vcombine.low %v730, %v734
      %v939 = vunpack.c.l.s4 1983009808
      %v940 = vunpack.c.0.s8 %v939
      %v941 = vlaneseq
      %v942 = vshrl.u32 %v941, 7
      %v943 = vsub.s32 %v940, %v942
      %v944 = vrot.slane %v937, %v943
      %v945 = vcombine.low %v732, %v736
      %v947 = vunpack.c.l.s4 1983009808
      %v948 = vunpack.c.0.s8 %v947
      %v949 = vlaneseq
      %v950 = vshrl.u32 %v949, 7
      %v951 = vsub.s32 %v948, %v950
      %v952 = vrot.slane %v945, %v951
      %v953 = vcombine.low %v944, %v952
      %v955 = vunpack.c.l.s4 1934713408
      %v956 = vunpack.c.0.s8 %v955
      %v957 = vlaneseq
      %v958 = vshrl.u32 %v957, 7
      %v959 = vsub.s32 %v956, %v958
      %v960 = vrot.slane %v953, %v959
      %v961 = vcombine.high %v960, 0
      %v964 = vpack.i.b16 %v960, %v935
      %v965 = vshrl.u32 %v935, 16
      %v966 = vshrl.u32 %v960, 16
      %v967 = vpack.i.b16 %v966, %v965
      %v970 = vpack.i.b16 %v961, %v936
      %v971 = vshrl.u32 %v936, 16
      %v972 = vshrl.u32 %v961, 16
      %v973 = vpack.i.b16 %v972, %v971
      %974 = vxpose.xlu0.c.b16.start [1/8] %v815, 128
      %975 = vxpose.xlu0.c.b16.cont [2/8] 0, 128
      %976 = vxpose.xlu0.c.b16.cont [3/8] 0, 128
      %977 = vxpose.xlu0.c.b16.cont [4/8] 0, 128
      %978 = vxpose.xlu0.c.b16.cont [5/8] 0, 128
      %979 = vxpose.xlu0.c.b16.cont [6/8] 0, 128
      %980 = vxpose.xlu0.c.b16.cont [7/8] 0, 128
      %981 = vxpose.xlu0.c.b16.end [8/8] 0, 128
      %v982 = vpop.trf.xlu0
      %v983 = vpop.trf.xlu0
      %v984 = vpop.trf.xlu0
      %v985 = vpop.trf.xlu0
      %v986 = vpop.trf.xlu0
      %v987 = vpop.trf.xlu0
      %v988 = vpop.trf.xlu0
      %v989 = vpop.trf.xlu0
      %990 = vxpose.xlu0.c.b16.start [1/8] %v816, 128
      %991 = vxpose.xlu0.c.b16.cont [2/8] 0, 128
      %992 = vxpose.xlu0.c.b16.cont [3/8] 0, 128
      %993 = vxpose.xlu0.c.b16.cont [4/8] 0, 128
      %994 = vxpose.xlu0.c.b16.cont [5/8] 0, 128
      %995 = vxpose.xlu0.c.b16.cont [6/8] 0, 128
      %996 = vxpose.xlu0.c.b16.cont [7/8] 0, 128
      %997 = vxpose.xlu0.c.b16.end [8/8] 0, 128
      %v998 = vpop.trf.xlu0
      %v999 = vpop.trf.xlu0
      %v1000 = vpop.trf.xlu0
      %v1001 = vpop.trf.xlu0
      %v1002 = vpop.trf.xlu0
      %v1003 = vpop.trf.xlu0
      %v1004 = vpop.trf.xlu0
      %v1005 = vpop.trf.xlu0
      %1006 = vxpose.xlu0.c.b16.start [1/8] %v817, 128
      %1007 = vxpose.xlu0.c.b16.cont [2/8] 0, 128
      %1008 = vxpose.xlu0.c.b16.cont [3/8] 0, 128
      %1009 = vxpose.xlu0.c.b16.cont [4/8] 0, 128
      %1010 = vxpose.xlu0.c.b16.cont [5/8] 0, 128
      %1011 = vxpose.xlu0.c.b16.cont [6/8] 0, 128
      %1012 = vxpose.xlu0.c.b16.cont [7/8] 0, 128
      %1013 = vxpose.xlu0.c.b16.end [8/8] 0, 128
      %v1014 = vpop.trf.xlu0
      %v1015 = vpop.trf.xlu0
      %v1016 = vpop.trf.xlu0
      %v1017 = vpop.trf.xlu0
      %v1018 = vpop.trf.xlu0
      %v1019 = vpop.trf.xlu0
      %v1020 = vpop.trf.xlu0
      %v1021 = vpop.trf.xlu0
      %1022 = vxpose.xlu0.c.b16.start [1/8] %v818, 128
      %1023 = vxpose.xlu0.c.b16.cont [2/8] 0, 128
      %1024 = vxpose.xlu0.c.b16.cont [3/8] 0, 128
      %1025 = vxpose.xlu0.c.b16.cont [4/8] 0, 128
      %1026 = vxpose.xlu0.c.b16.cont [5/8] 0, 128
      %1027 = vxpose.xlu0.c.b16.cont [6/8] 0, 128
      %1028 = vxpose.xlu0.c.b16.cont [7/8] 0, 128
      %1029 = vxpose.xlu0.c.b16.end [8/8] 0, 128
      %v1030 = vpop.trf.xlu0
      %v1031 = vpop.trf.xlu0
      %v1032 = vpop.trf.xlu0
      %v1033 = vpop.trf.xlu0
      %v1034 = vpop.trf.xlu0
      %v1035 = vpop.trf.xlu0
      %v1036 = vpop.trf.xlu0
      %v1037 = vpop.trf.xlu0
      %1038 = vxpose.xlu0.c.b16.start [1/8] %v819, 128
      %1039 = vxpose.xlu0.c.b16.cont [2/8] 0, 128
      %1040 = vxpose.xlu0.c.b16.cont [3/8] 0, 128
      %1041 = vxpose.xlu0.c.b16.cont [4/8] 0, 128
      %1042 = vxpose.xlu0.c.b16.cont [5/8] 0, 128
      %1043 = vxpose.xlu0.c.b16.cont [6/8] 0, 128
      %1044 = vxpose.xlu0.c.b16.cont [7/8] 0, 128
      %1045 = vxpose.xlu0.c.b16.end [8/8] 0, 128
      %v1046 = vpop.trf.xlu0
      %v1047 = vpop.trf.xlu0
      %v1048 = vpop.trf.xlu0
      %v1049 = vpop.trf.xlu0
      %v1050 = vpop.trf.xlu0
      %v1051 = vpop.trf.xlu0
      %v1052 = vpop.trf.xlu0
      %v1053 = vpop.trf.xlu0
      %1054 = vxpose.xlu0.c.b16.start [1/8] %v820, 128
      %1055 = vxpose.xlu0.c.b16.cont [2/8] 0, 128
      %1056 = vxpose.xlu0.c.b16.cont [3/8] 0, 128
      %1057 = vxpose.xlu0.c.b16.cont [4/8] 0, 128
      %1058 = vxpose.xlu0.c.b16.cont [5/8] 0, 128
      %1059 = vxpose.xlu0.c.b16.cont [6/8] 0, 128
      %1060 = vxpose.xlu0.c.b16.cont [7/8] 0, 128
      %1061 = vxpose.xlu0.c.b16.end [8/8] 0, 128
      %v1062 = vpop.trf.xlu0
      %v1063 = vpop.trf.xlu0
      %v1064 = vpop.trf.xlu0
      %v1065 = vpop.trf.xlu0
      %v1066 = vpop.trf.xlu0
      %v1067 = vpop.trf.xlu0
      %v1068 = vpop.trf.xlu0
      %v1069 = vpop.trf.xlu0
      %1070 = vxpose.xlu0.c.b16.start [1/8] %v821, 128
      %1071 = vxpose.xlu0.c.b16.cont [2/8] 0, 128
      %1072 = vxpose.xlu0.c.b16.cont [3/8] 0, 128
      %1073 = vxpose.xlu0.c.b16.cont [4/8] 0, 128
      %1074 = vxpose.xlu0.c.b16.cont [5/8] 0, 128
      %1075 = vxpose.xlu0.c.b16.cont [6/8] 0, 128
      %1076 = vxpose.xlu0.c.b16.cont [7/8] 0, 128
      %1077 = vxpose.xlu0.c.b16.end [8/8] 0, 128
      %v1078 = vpop.trf.xlu0
      %v1079 = vpop.trf.xlu0
      %v1080 = vpop.trf.xlu0
      %v1081 = vpop.trf.xlu0
      %v1082 = vpop.trf.xlu0
      %v1083 = vpop.trf.xlu0
      %v1084 = vpop.trf.xlu0
      %v1085 = vpop.trf.xlu0
      %1086 = vxpose.xlu0.c.b16.start [1/8] %v822, 128
      %1087 = vxpose.xlu0.c.b16.cont [2/8] 0, 128
      %1088 = vxpose.xlu0.c.b16.cont [3/8] 0, 128
      %1089 = vxpose.xlu0.c.b16.cont [4/8] 0, 128
      %1090 = vxpose.xlu0.c.b16.cont [5/8] 0, 128
      %1091 = vxpose.xlu0.c.b16.cont [6/8] 0, 128
      %1092 = vxpose.xlu0.c.b16.cont [7/8] 0, 128
      %1093 = vxpose.xlu0.c.b16.end [8/8] 0, 128
      %v1094 = vpop.trf.xlu0
      %v1095 = vpop.trf.xlu0
      %v1096 = vpop.trf.xlu0
      %v1097 = vpop.trf.xlu0
      %v1098 = vpop.trf.xlu0
      %v1099 = vpop.trf.xlu0
      %v1100 = vpop.trf.xlu0
      %v1101 = vpop.trf.xlu0
      %v1102 = vcombine.low %v982, %v1046
      %v1104 = vunpack.c.l.s4 1983009808
      %v1105 = vunpack.c.0.s8 %v1104
      %v1106 = vlaneseq
      %v1107 = vshrl.u32 %v1106, 7
      %v1108 = vsub.s32 %v1105, %v1107
      %v1109 = vrot.slane %v1102, %v1108
      %v1110 = vcombine.low %v1014, %v1078
      %v1112 = vunpack.c.l.s4 1983009808
      %v1113 = vunpack.c.0.s8 %v1112
      %v1114 = vlaneseq
      %v1115 = vshrl.u32 %v1114, 7
      %v1116 = vsub.s32 %v1113, %v1115
      %v1117 = vrot.slane %v1110, %v1116
      %v1118 = vcombine.low %v1109, %v1117
      %v1119 = vcombine.high %v1109, %v1117
      %v1121 = vunpack.c.l.s4 1934713408
      %v1122 = vunpack.c.0.s8 %v1121
      %v1123 = vlaneseq
      %v1124 = vshrl.u32 %v1123, 7
      %v1125 = vsub.s32 %v1122, %v1124
      %v1126 = vrot.slane %v1118, %v1125
      %v1128 = vunpack.c.l.s4 1934713408
      %v1129 = vunpack.c.0.s8 %v1128
      %v1130 = vlaneseq
      %v1131 = vshrl.u32 %v1130, 7
      %v1132 = vsub.s32 %v1129, %v1131
      %v1133 = vrot.slane %v1119, %v1132
      %v1134 = vcombine.high %v1126, 0
      %v1135 = vcombine.high %v1133, 0
      %v1136 = vcombine.low %v998, %v1062
      %v1138 = vunpack.c.l.s4 1983009808
      %v1139 = vunpack.c.0.s8 %v1138
      %v1140 = vlaneseq
      %v1141 = vshrl.u32 %v1140, 7
      %v1142 = vsub.s32 %v1139, %v1141
      %v1143 = vrot.slane %v1136, %v1142
      %v1144 = vcombine.low %v1030, %v1094
      %v1146 = vunpack.c.l.s4 1983009808
      %v1147 = vunpack.c.0.s8 %v1146
      %v1148 = vlaneseq
      %v1149 = vshrl.u32 %v1148, 7
      %v1150 = vsub.s32 %v1147, %v1149
      %v1151 = vrot.slane %v1144, %v1150
      %v1152 = vcombine.low %v1143, %v1151
      %v1153 = vcombine.high %v1143, %v1151
      %v1155 = vunpack.c.l.s4 1934713408
      %v1156 = vunpack.c.0.s8 %v1155
      %v1157 = vlaneseq
      %v1158 = vshrl.u32 %v1157, 7
      %v1159 = vsub.s32 %v1156, %v1158
      %v1160 = vrot.slane %v1152, %v1159
      %v1162 = vunpack.c.l.s4 1934713408
      %v1163 = vunpack.c.0.s8 %v1162
      %v1164 = vlaneseq
      %v1165 = vshrl.u32 %v1164, 7
      %v1166 = vsub.s32 %v1163, %v1165
      %v1167 = vrot.slane %v1153, %v1166
      %v1168 = vcombine.high %v1160, 0
      %v1169 = vcombine.high %v1167, 0
      %v1172 = vpack.i.b16 %v1160, %v1126
      %v1174 = vshrl.u32 %v1126, 16
      %v1175 = vshrl.u32 %v1160, 16
      %v1176 = vpack.i.b16 %v1175, %v1174
      %v1180 = vpack.i.b16 %v1168, %v1134
      %v1182 = vshrl.u32 %v1134, 16
      %v1183 = vshrl.u32 %v1168, 16
      %v1184 = vpack.i.b16 %v1183, %v1182
      %v1188 = vpack.i.b16 %v1167, %v1133
      %v1190 = vshrl.u32 %v1133, 16
      %v1191 = vshrl.u32 %v1167, 16
      %v1192 = vpack.i.b16 %v1191, %v1190
      %v1196 = vpack.i.b16 %v1169, %v1135
      %v1198 = vshrl.u32 %v1135, 16
      %v1199 = vshrl.u32 %v1169, 16
      %v1200 = vpack.i.b16 %v1199, %v1198
      %1202 = vxpose.xlu0.c.b16.start [1/8] %v1172, 128
      %1203 = vxpose.xlu0.c.b16.cont [2/8] 0, 128
      %1204 = vxpose.xlu0.c.b16.cont [3/8] 0, 128
      %1205 = vxpose.xlu0.c.b16.cont [4/8] 0, 128
      %1206 = vxpose.xlu0.c.b16.cont [5/8] 0, 128
      %1207 = vxpose.xlu0.c.b16.cont [6/8] 0, 128
      %1208 = vxpose.xlu0.c.b16.cont [7/8] 0, 128
      %1209 = vxpose.xlu0.c.b16.end [8/8] 0, 128
      %v1210 = vpop.trf.xlu0
      %v1211 = vpop.trf.xlu0
      %v1212 = vpop.trf.xlu0
      %v1213 = vpop.trf.xlu0
      %v1214 = vpop.trf.xlu0
      %v1215 = vpop.trf.xlu0
      %v1216 = vpop.trf.xlu0
      %v1217 = vpop.trf.xlu0
      %1218 = vxpose.xlu0.c.b16.start [1/8] %v1176, 128
      %1219 = vxpose.xlu0.c.b16.cont [2/8] 0, 128
      %1220 = vxpose.xlu0.c.b16.cont [3/8] 0, 128
      %1221 = vxpose.xlu0.c.b16.cont [4/8] 0, 128
      %1222 = vxpose.xlu0.c.b16.cont [5/8] 0, 128
      %1223 = vxpose.xlu0.c.b16.cont [6/8] 0, 128
      %1224 = vxpose.xlu0.c.b16.cont [7/8] 0, 128
      %1225 = vxpose.xlu0.c.b16.end [8/8] 0, 128
      %v1226 = vpop.trf.xlu0
      %v1227 = vpop.trf.xlu0
      %v1228 = vpop.trf.xlu0
      %v1229 = vpop.trf.xlu0
      %v1230 = vpop.trf.xlu0
      %v1231 = vpop.trf.xlu0
      %v1232 = vpop.trf.xlu0
      %v1233 = vpop.trf.xlu0
      %1234 = vxpose.xlu0.c.b16.start [1/8] %v1180, 128
      %1235 = vxpose.xlu0.c.b16.cont [2/8] 0, 128
      %1236 = vxpose.xlu0.c.b16.cont [3/8] 0, 128
      %1237 = vxpose.xlu0.c.b16.cont [4/8] 0, 128
      %1238 = vxpose.xlu0.c.b16.cont [5/8] 0, 128
      %1239 = vxpose.xlu0.c.b16.cont [6/8] 0, 128
      %1240 = vxpose.xlu0.c.b16.cont [7/8] 0, 128
      %1241 = vxpose.xlu0.c.b16.end [8/8] 0, 128
      %v1242 = vpop.trf.xlu0
      %v1243 = vpop.trf.xlu0
      %v1244 = vpop.trf.xlu0
      %v1245 = vpop.trf.xlu0
      %v1246 = vpop.trf.xlu0
      %v1247 = vpop.trf.xlu0
      %v1248 = vpop.trf.xlu0
      %v1249 = vpop.trf.xlu0
      %1250 = vxpose.xlu0.c.b16.start [1/8] %v1184, 128
      %1251 = vxpose.xlu0.c.b16.cont [2/8] 0, 128
      %1252 = vxpose.xlu0.c.b16.cont [3/8] 0, 128
      %1253 = vxpose.xlu0.c.b16.cont [4/8] 0, 128
      %1254 = vxpose.xlu0.c.b16.cont [5/8] 0, 128
      %1255 = vxpose.xlu0.c.b16.cont [6/8] 0, 128
      %1256 = vxpose.xlu0.c.b16.cont [7/8] 0, 128
      %1257 = vxpose.xlu0.c.b16.end [8/8] 0, 128
      %v1258 = vpop.trf.xlu0
      %v1259 = vpop.trf.xlu0
      %v1260 = vpop.trf.xlu0
      %v1261 = vpop.trf.xlu0
      %v1262 = vpop.trf.xlu0
      %v1263 = vpop.trf.xlu0
      %v1264 = vpop.trf.xlu0
      %v1265 = vpop.trf.xlu0
      %1266 = vxpose.xlu0.c.b16.start [1/8] %v1188, 128
      %1267 = vxpose.xlu0.c.b16.cont [2/8] 0, 128
      %1268 = vxpose.xlu0.c.b16.cont [3/8] 0, 128
      %1269 = vxpose.xlu0.c.b16.cont [4/8] 0, 128
      %1270 = vxpose.xlu0.c.b16.cont [5/8] 0, 128
      %1271 = vxpose.xlu0.c.b16.cont [6/8] 0, 128
      %1272 = vxpose.xlu0.c.b16.cont [7/8] 0, 128
      %1273 = vxpose.xlu0.c.b16.end [8/8] 0, 128
      %v1274 = vpop.trf.xlu0
      %v1275 = vpop.trf.xlu0
      %v1276 = vpop.trf.xlu0
      %v1277 = vpop.trf.xlu0
      %v1278 = vpop.trf.xlu0
      %v1279 = vpop.trf.xlu0
      %v1280 = vpop.trf.xlu0
      %v1281 = vpop.trf.xlu0
      %1282 = vxpose.xlu0.c.b16.start [1/8] %v1192, 128
      %1283 = vxpose.xlu0.c.b16.cont [2/8] 0, 128
      %1284 = vxpose.xlu0.c.b16.cont [3/8] 0, 128
      %1285 = vxpose.xlu0.c.b16.cont [4/8] 0, 128
      %1286 = vxpose.xlu0.c.b16.cont [5/8] 0, 128
      %1287 = vxpose.xlu0.c.b16.cont [6/8] 0, 128
      %1288 = vxpose.xlu0.c.b16.cont [7/8] 0, 128
      %1289 = vxpose.xlu0.c.b16.end [8/8] 0, 128
      %v1290 = vpop.trf.xlu0
      %v1291 = vpop.trf.xlu0
      %v1292 = vpop.trf.xlu0
      %v1293 = vpop.trf.xlu0
      %v1294 = vpop.trf.xlu0
      %v1295 = vpop.trf.xlu0
      %v1296 = vpop.trf.xlu0
      %v1297 = vpop.trf.xlu0
      %1298 = vxpose.xlu0.c.b16.start [1/8] %v1196, 128
      %1299 = vxpose.xlu0.c.b16.cont [2/8] 0, 128
      %1300 = vxpose.xlu0.c.b16.cont [3/8] 0, 128
      %1301 = vxpose.xlu0.c.b16.cont [4/8] 0, 128
      %1302 = vxpose.xlu0.c.b16.cont [5/8] 0, 128
      %1303 = vxpose.xlu0.c.b16.cont [6/8] 0, 128
      %1304 = vxpose.xlu0.c.b16.cont [7/8] 0, 128
      %1305 = vxpose.xlu0.c.b16.end [8/8] 0, 128
      %v1306 = vpop.trf.xlu0
      %v1307 = vpop.trf.xlu0
      %v1308 = vpop.trf.xlu0
      %v1309 = vpop.trf.xlu0
      %v1310 = vpop.trf.xlu0
      %v1311 = vpop.trf.xlu0
      %v1312 = vpop.trf.xlu0
      %v1313 = vpop.trf.xlu0
      %1314 = vxpose.xlu0.c.b16.start [1/8] %v1200, 128
      %1315 = vxpose.xlu0.c.b16.cont [2/8] 0, 128
      %1316 = vxpose.xlu0.c.b16.cont [3/8] 0, 128
      %1317 = vxpose.xlu0.c.b16.cont [4/8] 0, 128
      %1318 = vxpose.xlu0.c.b16.cont [5/8] 0, 128
      %1319 = vxpose.xlu0.c.b16.cont [6/8] 0, 128
      %1320 = vxpose.xlu0.c.b16.cont [7/8] 0, 128
      %1321 = vxpose.xlu0.c.b16.end [8/8] 0, 128
      %v1322 = vpop.trf.xlu0
      %v1323 = vpop.trf.xlu0
      %v1324 = vpop.trf.xlu0
      %v1325 = vpop.trf.xlu0
      %v1326 = vpop.trf.xlu0
      %v1327 = vpop.trf.xlu0
      %v1328 = vpop.trf.xlu0
      %v1329 = vpop.trf.xlu0
      %v1330 = vcombine.low %v1210, %v1274
      %v1332 = vunpack.c.l.s4 1983009808
      %v1333 = vunpack.c.0.s8 %v1332
      %v1334 = vlaneseq
      %v1335 = vshrl.u32 %v1334, 7
      %v1336 = vsub.s32 %v1333, %v1335
      %v1337 = vrot.slane %v1330, %v1336
      %v1338 = vcombine.low %v1242, %v1306
      %v1340 = vunpack.c.l.s4 1983009808
      %v1341 = vunpack.c.0.s8 %v1340
      %v1342 = vlaneseq
      %v1343 = vshrl.u32 %v1342, 7
      %v1344 = vsub.s32 %v1341, %v1343
      %v1345 = vrot.slane %v1338, %v1344
      %v1346 = vcombine.low %v1337, %v1345
      %v1348 = vunpack.c.l.s4 1934713408
      %v1349 = vunpack.c.0.s8 %v1348
      %v1350 = vlaneseq
      %v1351 = vshrl.u32 %v1350, 7
      %v1352 = vsub.s32 %v1349, %v1351
      %v1353 = vrot.slane %v1346, %v1352
      %v1354 = vcombine.high %v1353, 0
      %v1355 = vcombine.low %v1226, %v1290
      %v1357 = vunpack.c.l.s4 1983009808
      %v1358 = vunpack.c.0.s8 %v1357
      %v1359 = vlaneseq
      %v1360 = vshrl.u32 %v1359, 7
      %v1361 = vsub.s32 %v1358, %v1360
      %v1362 = vrot.slane %v1355, %v1361
      %v1363 = vcombine.low %v1258, %v1322
      %v1365 = vunpack.c.l.s4 1983009808
      %v1366 = vunpack.c.0.s8 %v1365
      %v1367 = vlaneseq
      %v1368 = vshrl.u32 %v1367, 7
      %v1369 = vsub.s32 %v1366, %v1368
      %v1370 = vrot.slane %v1363, %v1369
      %v1371 = vcombine.low %v1362, %v1370
      %v1373 = vunpack.c.l.s4 1934713408
      %v1374 = vunpack.c.0.s8 %v1373
      %v1375 = vlaneseq
      %v1376 = vshrl.u32 %v1375, 7
      %v1377 = vsub.s32 %v1374, %v1376
      %v1378 = vrot.slane %v1371, %v1377
      %v1379 = vcombine.high %v1378, 0
      %v1382 = vpack.i.b16 %v1378, %v1353
      %v1383 = vshrl.u32 %v1353, 16
      %v1384 = vshrl.u32 %v1378, 16
      %v1385 = vpack.i.b16 %v1384, %v1383
      %v1388 = vpack.i.b16 %v1379, %v1354
      %v1389 = vshrl.u32 %v1354, 16
      %v1390 = vshrl.u32 %v1379, 16
      %v1391 = vpack.i.b16 %v1390, %v1389
      %vm1392 = vcmask 64512
      %v1394 = vsel %vm1392, %v964, 0
      %vm1396 = vcmask 1043456
      %v1398 = vsel %vm1396, %v1382, 0
      %1400 = vmatprep.subr.bf16.mxu0 0
      %1401 = vmatpush1.bf16.msra.mxu0 %v1398
      %1402 = vmatprep.subr.bf16.mxu0 0
      %1403 = vmatpush1.bf16.msra.mxu0 0
      %1404 = vmatprep.subr.bf16.mxu0 0
      %1405 = vmatpush1.bf16.msra.mxu0 0
      %1406 = vmatprep.subr.bf16.mxu0 0
      %1407 = vmatpush1.bf16.msra.mxu0 0
      %1408 = vmatprep.subr.bf16.mxu0 0
      %1409 = vmatpush1.bf16.msra.mxu0 0
      %1410 = vmatprep.subr.bf16.mxu0 0
      %1411 = vmatpush1.bf16.msra.mxu0 0
      %1412 = vmatprep.subr.bf16.mxu0 0
      %1413 = vmatpush1.bf16.msra.mxu0 0
      %1414 = vmatprep.subr.bf16.mxu0 0
      %1415 = vmatpush1.bf16.msra.mxu0 0
      %1416 = vmatprep.subr.bf16.mxu0 0
      %1417 = vmatpush1.bf16.msra.mxu0 0
      %1418 = vmatprep.subr.bf16.mxu0 0
      %1419 = vmatpush1.bf16.msra.mxu0 0
      %1420 = vmatprep.subr.bf16.mxu0 0
      %1421 = vmatpush1.bf16.msra.mxu0 0
      %1422 = vmatprep.subr.bf16.mxu0 0
      %1423 = vmatpush1.bf16.msra.mxu0 0
      %1424 = vmatprep.subr.bf16.mxu0 0
      %1425 = vmatpush1.bf16.msra.mxu0 0
      %1426 = vmatprep.subr.bf16.mxu0 0
      %1427 = vmatpush1.bf16.msra.mxu0 0
      %1428 = vmatprep.subr.bf16.mxu0 0
      %1429 = vmatpush1.bf16.msra.mxu0 0
      %1430 = vmatprep.subr.bf16.mxu0 0
      %1431 = vmatpush1.bf16.msra.mxu0 0
      %1432 = vmatprep.mubr.bf16.mxu0 0
      %1433 = vmatmul.mubr.bf16.gmra.mrb[0].mxu0 %v1394
      %v1434 = vpop.f32.mrb[0].mxu0
      %v1435 = vadd.f32 %v911, %v1434
      %v1436 = vpop.f32.mrb[0].mxu0
      %v1437 = vpop.f32.mrb[0].mxu0
      %v1438 = vpop.f32.mrb[0].mxu0
      %1439 = vdwg.mxu0
      %v1441 = vsel %vm1392, %v967, 0
      %v1444 = vsel %vm1396, %v1385, 0
      %1446 = vmatprep.subr.bf16.mxu0 0
      %1447 = vmatpush1.bf16.msra.mxu0 %v1444
      %1448 = vmatprep.subr.bf16.mxu0 0
      %1449 = vmatpush1.bf16.msra.mxu0 0
      %1450 = vmatprep.subr.bf16.mxu0 0
      %1451 = vmatpush1.bf16.msra.mxu0 0
      %1452 = vmatprep.subr.bf16.mxu0 0
      %1453 = vmatpush1.bf16.msra.mxu0 0
      %1454 = vmatprep.subr.bf16.mxu0 0
      %1455 = vmatpush1.bf16.msra.mxu0 0
      %1456 = vmatprep.subr.bf16.mxu0 0
      %1457 = vmatpush1.bf16.msra.mxu0 0
      %1458 = vmatprep.subr.bf16.mxu0 0
      %1459 = vmatpush1.bf16.msra.mxu0 0
      %1460 = vmatprep.subr.bf16.mxu0 0
      %1461 = vmatpush1.bf16.msra.mxu0 0
      %1462 = vmatprep.subr.bf16.mxu0 0
      %1463 = vmatpush1.bf16.msra.mxu0 0
      %1464 = vmatprep.subr.bf16.mxu0 0
      %1465 = vmatpush1.bf16.msra.mxu0 0
      %1466 = vmatprep.subr.bf16.mxu0 0
      %1467 = vmatpush1.bf16.msra.mxu0 0
      %1468 = vmatprep.subr.bf16.mxu0 0
      %1469 = vmatpush1.bf16.msra.mxu0 0
      %1470 = vmatprep.subr.bf16.mxu0 0
      %1471 = vmatpush1.bf16.msra.mxu0 0
      %1472 = vmatprep.subr.bf16.mxu0 0
      %1473 = vmatpush1.bf16.msra.mxu0 0
      %1474 = vmatprep.subr.bf16.mxu0 0
      %1475 = vmatpush1.bf16.msra.mxu0 0
      %1476 = vmatprep.subr.bf16.mxu0 0
      %1477 = vmatpush1.bf16.msra.mxu0 0
      %1478 = vmatprep.mubr.bf16.mxu0 0
      %1479 = vmatmul.mubr.bf16.gmra.mrb[0].mxu0 %v1441
      %v1480 = vpop.f32.mrb[0].mxu0
      %v1481 = vadd.f32 %v911, %v1480
      %v1482 = vpop.f32.mrb[0].mxu0
      %v1483 = vpop.f32.mrb[0].mxu0
      %v1484 = vpop.f32.mrb[0].mxu0
      %1485 = vdwg.mxu0
      %v1487 = vsel %vm1392, %v970, 0
      %v1490 = vsel %vm1396, %v1388, 0
      %1492 = vmatprep.subr.bf16.mxu0 0
      %1493 = vmatpush1.bf16.msra.mxu0 %v1490
      %1494 = vmatprep.subr.bf16.mxu0 0
      %1495 = vmatpush1.bf16.msra.mxu0 0
      %1496 = vmatprep.subr.bf16.mxu0 0
      %1497 = vmatpush1.bf16.msra.mxu0 0
      %1498 = vmatprep.subr.bf16.mxu0 0
      %1499 = vmatpush1.bf16.msra.mxu0 0
      %1500 = vmatprep.subr.bf16.mxu0 0
      %1501 = vmatpush1.bf16.msra.mxu0 0
      %1502 = vmatprep.subr.bf16.mxu0 0
      %1503 = vmatpush1.bf16.msra.mxu0 0
      %1504 = vmatprep.subr.bf16.mxu0 0
      %1505 = vmatpush1.bf16.msra.mxu0 0
      %1506 = vmatprep.subr.bf16.mxu0 0
      %1507 = vmatpush1.bf16.msra.mxu0 0
      %1508 = vmatprep.subr.bf16.mxu0 0
      %1509 = vmatpush1.bf16.msra.mxu0 0
      %1510 = vmatprep.subr.bf16.mxu0 0
      %1511 = vmatpush1.bf16.msra.mxu0 0
      %1512 = vmatprep.subr.bf16.mxu0 0
      %1513 = vmatpush1.bf16.msra.mxu0 0
      %1514 = vmatprep.subr.bf16.mxu0 0
      %1515 = vmatpush1.bf16.msra.mxu0 0
      %1516 = vmatprep.subr.bf16.mxu0 0
      %1517 = vmatpush1.bf16.msra.mxu0 0
      %1518 = vmatprep.subr.bf16.mxu0 0
      %1519 = vmatpush1.bf16.msra.mxu0 0
      %1520 = vmatprep.subr.bf16.mxu0 0
      %1521 = vmatpush1.bf16.msra.mxu0 0
      %1522 = vmatprep.subr.bf16.mxu0 0
      %1523 = vmatpush1.bf16.msra.mxu0 0
      %1524 = vmatprep.mubr.bf16.mxu0 0
      %1525 = vmatmul.mubr.bf16.gmra.mrb[0].mxu0 %v1487
      %v1526 = vpop.f32.mrb[0].mxu0
      %v1527 = vadd.f32 %v911, %v1526
      %v1528 = vpop.f32.mrb[0].mxu0
      %v1529 = vpop.f32.mrb[0].mxu0
      %v1530 = vpop.f32.mrb[0].mxu0
      %1531 = vdwg.mxu0
      %v1533 = vsel %vm1392, %v973, 0
      %v1536 = vsel %vm1396, %v1391, 0
      %1538 = vmatprep.subr.bf16.mxu0 0
      %1539 = vmatpush1.bf16.msra.mxu0 %v1536
      %1540 = vmatprep.subr.bf16.mxu0 0
      %1541 = vmatpush1.bf16.msra.mxu0 0
      %1542 = vmatprep.subr.bf16.mxu0 0
      %1543 = vmatpush1.bf16.msra.mxu0 0
      %1544 = vmatprep.subr.bf16.mxu0 0
      %1545 = vmatpush1.bf16.msra.mxu0 0
      %1546 = vmatprep.subr.bf16.mxu0 0
      %1547 = vmatpush1.bf16.msra.mxu0 0
      %1548 = vmatprep.subr.bf16.mxu0 0
      %1549 = vmatpush1.bf16.msra.mxu0 0
      %1550 = vmatprep.subr.bf16.mxu0 0
      %1551 = vmatpush1.bf16.msra.mxu0 0
      %1552 = vmatprep.subr.bf16.mxu0 0
      %1553 = vmatpush1.bf16.msra.mxu0 0
      %1554 = vmatprep.subr.bf16.mxu0 0
      %1555 = vmatpush1.bf16.msra.mxu0 0
      %1556 = vmatprep.subr.bf16.mxu0 0
      %1557 = vmatpush1.bf16.msra.mxu0 0
      %1558 = vmatprep.subr.bf16.mxu0 0
      %1559 = vmatpush1.bf16.msra.mxu0 0
      %1560 = vmatprep.subr.bf16.mxu0 0
      %1561 = vmatpush1.bf16.msra.mxu0 0
      %1562 = vmatprep.subr.bf16.mxu0 0
      %1563 = vmatpush1.bf16.msra.mxu0 0
      %1564 = vmatprep.subr.bf16.mxu0 0
      %1565 = vmatpush1.bf16.msra.mxu0 0
      %1566 = vmatprep.subr.bf16.mxu0 0
      %1567 = vmatpush1.bf16.msra.mxu0 0
      %1568 = vmatprep.subr.bf16.mxu0 0
      %1569 = vmatpush1.bf16.msra.mxu0 0
      %1570 = vmatprep.mubr.bf16.mxu0 0
      %1571 = vmatmul.mubr.bf16.gmra.mrb[0].mxu0 %v1533
      %v1572 = vpop.f32.mrb[0].mxu0
      %v1573 = vadd.f32 %v911, %v1572
      %v1574 = vpop.f32.mrb[0].mxu0
      %v1575 = vpop.f32.mrb[0].mxu0
      %v1576 = vpop.f32.mrb[0].mxu0
      %1577 = vdwg.mxu0
      %v1578 = vld [vmem:[%s486] sm:$0x1]
      %v1580 = vlaneseq
      %v1581 = vshrl.u32 %v1580, 7
      %v1582 = vsub.s32 0, %v1581
      %v1583 = vrot.slane %v1578, %v1582
      %v1585 = vadd.f32 %v1435, %v1583
      %v1586 = vadd.f32 %v1481, %v1583
      %v1587 = vadd.f32 %v1527, %v1583
      %v1588 = vadd.f32 %v1573, %v1583
      %v1589 = vld [vmem:[#allocation3] sm:$0xff]
      %v1590 = vld [vmem:[#allocation3 + $0x8] sm:$0xff]
      %v1591 = vld [vmem:[#allocation3 + $0x10] sm:$0xff]
      %v1592 = vld [vmem:[#allocation3 + $0x18] sm:$0xff]
      %v1593 = vsel %vm1392, %v1585, -inf
      %1594 = vmax.xlane.f32.xlu0 %v1593
      %v1595 = vpop.xlane.xlu0 %1594
      %v1596 = vsel %vm1392, %v1586, -inf
      %1597 = vmax.xlane.f32.xlu0 %v1596
      %v1598 = vpop.xlane.xlu0 %1597
      %v1599 = vsel %vm1392, %v1587, -inf
      %1600 = vmax.xlane.f32.xlu0 %v1599
      %v1601 = vpop.xlane.xlu0 %1600
      %v1602 = vsel %vm1392, %v1588, -inf
      %1603 = vmax.xlane.f32.xlu0 %v1602
      %v1604 = vpop.xlane.xlu0 %1603
      %v1605 = vmax.f32 %v1589, %v1595
      %v1606 = vmax.f32 %v1590, %v1598
      %v1607 = vmax.f32 %v1591, %v1601
      %v1608 = vmax.f32 %v1592, %v1604
      %v1609 = vsub.f32 %v1589, %v1605
      %v1610 = vsub.f32 %v1590, %v1606
      %v1611 = vsub.f32 %v1591, %v1607
      %v1612 = vsub.f32 %v1592, %v1608
      %v1613 = vmul.f32 %v1609, 1.442695
      %v1614 = vpow.pop %v1613
      %v1615 = vmul.f32 %v1610, 1.442695
      %v1616 = vpow.pop %v1615
      %v1617 = vmul.f32 %v1611, 1.442695
      %v1618 = vpow.pop %v1617
      %v1619 = vmul.f32 %v1612, 1.442695
      %v1620 = vpow.pop %v1619
      %1622 = vset.pattern.permute.xlu0 0
      %1623 = vperm.xlu0 %1622, %v1605
      %v1624 = vpop.permute.xlu0 %1623
      %1627 = vset.pattern.permute.xlu0 0
      %1628 = vperm.xlu0 %1627, %v1606
      %v1629 = vpop.permute.xlu0 %1628
      %1632 = vset.pattern.permute.xlu0 0
      %1633 = vperm.xlu0 %1632, %v1607
      %v1634 = vpop.permute.xlu0 %1633
      %1637 = vset.pattern.permute.xlu0 0
      %1638 = vperm.xlu0 %1637, %v1608
      %v1639 = vpop.permute.xlu0 %1638
      %v1641 = vsub.f32 %v1585, %v1624
      %v1642 = vsub.f32 %v1586, %v1629
      %v1643 = vsub.f32 %v1587, %v1634
      %v1644 = vsub.f32 %v1588, %v1639
      %v1645 = vmul.f32 %v1641, 1.442695
      %v1646 = vpow.pop %v1645
      %v1647 = vmul.f32 %v1642, 1.442695
      %v1648 = vpow.pop %v1647
      %v1649 = vmul.f32 %v1643, 1.442695
      %v1650 = vpow.pop %v1649
      %v1651 = vmul.f32 %v1644, 1.442695
      %v1652 = vpow.pop %v1651
      %v1653 = vld [vmem:[#allocation4] sm:$0xff]
      %v1654 = vld [vmem:[#allocation4 + $0x8] sm:$0xff]
      %v1655 = vld [vmem:[#allocation4 + $0x10] sm:$0xff]
      %v1656 = vld [vmem:[#allocation4 + $0x18] sm:$0xff]
      %v1657 = vmul.f32 %v1614, %v1653
      %v1658 = vmul.f32 %v1616, %v1654
      %v1659 = vmul.f32 %v1618, %v1655
      %v1660 = vmul.f32 %v1620, %v1656
      %v1661 = vsel %vm1392, %v1646, 0.0
      %1662 = vadd.xlane.f32.xlu0 %v1661
      %v1663 = vpop.xlane.xlu0 %1662
      %v1664 = vsel %vm1392, %v1648, 0.0
      %1665 = vadd.xlane.f32.xlu0 %v1664
      %v1666 = vpop.xlane.xlu0 %1665
      %v1667 = vsel %vm1392, %v1650, 0.0
      %1668 = vadd.xlane.f32.xlu0 %v1667
      %v1669 = vpop.xlane.xlu0 %1668
      %v1670 = vsel %vm1392, %v1652, 0.0
      %1671 = vadd.xlane.f32.xlu0 %v1670
      %v1672 = vpop.xlane.xlu0 %1671
      %v1673 = vadd.f32 %v1657, %v1663
      %v1674 = vadd.f32 %v1658, %v1666
      %v1675 = vadd.f32 %v1659, %v1669
      %v1676 = vadd.f32 %v1660, %v1672
      %vm1677 = vcmask 7168
      %1678 = vst.msk [vmem:[#allocation4] sm:$0xff] %vm1677, %v1673
      %1679 = vst.msk [vmem:[#allocation4 + $0x8] sm:$0xff] %vm1677, %v1674
      %1680 = vst.msk [vmem:[#allocation4 + $0x10] sm:$0xff] %vm1677, %v1675
      %1681 = vst.msk [vmem:[#allocation4 + $0x18] sm:$0xff] %vm1677, %v1676
      %v1682 = vld [vmem:[#allocation5] sm:$0xff]
      %v1683 = vld [vmem:[#allocation5 + $0x8] sm:$0xff]
      %v1684 = vld [vmem:[#allocation5 + $0x10] sm:$0xff]
      %v1685 = vld [vmem:[#allocation5 + $0x18] sm:$0xff]
      %1687 = vset.pattern.permute.xlu0 0
      %1688 = vperm.xlu0 %1687, %v1614
      %v1689 = vpop.permute.xlu0 %1688
      %1692 = vset.pattern.permute.xlu0 0
      %1693 = vperm.xlu0 %1692, %v1616
      %v1694 = vpop.permute.xlu0 %1693
      %1697 = vset.pattern.permute.xlu0 0
      %1698 = vperm.xlu0 %1697, %v1618
      %v1699 = vpop.permute.xlu0 %1698
      %1702 = vset.pattern.permute.xlu0 0
      %1703 = vperm.xlu0 %1702, %v1620
      %v1704 = vpop.permute.xlu0 %1703
      %v1706 = vmul.f32 %v1689, %v1682
      %v1707 = vmul.f32 %v1694, %v1683
      %v1708 = vmul.f32 %v1699, %v1684
      %v1709 = vmul.f32 %v1704, %v1685
      %v1710 = vpack.c.bf16 %v1646, %v1646
      %v1711 = vpack.c.bf16 %v1648, %v1648
      %v1712 = vpack.c.bf16 %v1650, %v1650
      %v1713 = vpack.c.bf16 %v1652, %v1652
      %v1714 = vcombine.low %v903, %v907
      %v1716 = vunpack.c.l.s4 1983009808
      %v1717 = vunpack.c.0.s8 %v1716
      %v1718 = vlaneseq
      %v1719 = vshrl.u32 %v1718, 7
      %v1720 = vsub.s32 %v1717, %v1719
      %v1721 = vrot.slane %v1714, %v1720
      %v1722 = vcombine.low %v905, %v909
      %v1724 = vunpack.c.l.s4 1983009808
      %v1725 = vunpack.c.0.s8 %v1724
      %v1726 = vlaneseq
      %v1727 = vshrl.u32 %v1726, 7
      %v1728 = vsub.s32 %v1725, %v1727
      %v1729 = vrot.slane %v1722, %v1728
      %v1730 = vcombine.low %v1721, %v1729
      %v1732 = vunpack.c.l.s4 1934713408
      %v1733 = vunpack.c.0.s8 %v1732
      %v1734 = vlaneseq
      %v1735 = vshrl.u32 %v1734, 7
      %v1736 = vsub.s32 %v1733, %v1735
      %v1737 = vrot.slane %v1730, %v1736
      %v1738 = vcombine.high %v1737, 0
      %v1739 = vcombine.low %v904, %v908
      %v1741 = vunpack.c.l.s4 1983009808
      %v1742 = vunpack.c.0.s8 %v1741
      %v1743 = vlaneseq
      %v1744 = vshrl.u32 %v1743, 7
      %v1745 = vsub.s32 %v1742, %v1744
      %v1746 = vrot.slane %v1739, %v1745
      %v1747 = vcombine.low %v906, %v910
      %v1749 = vunpack.c.l.s4 1983009808
      %v1750 = vunpack.c.0.s8 %v1749
      %v1751 = vlaneseq
      %v1752 = vshrl.u32 %v1751, 7
      %v1753 = vsub.s32 %v1750, %v1752
      %v1754 = vrot.slane %v1747, %v1753
      %v1755 = vcombine.low %v1746, %v1754
      %v1757 = vunpack.c.l.s4 1934713408
      %v1758 = vunpack.c.0.s8 %v1757
      %v1759 = vlaneseq
      %v1760 = vshrl.u32 %v1759, 7
      %v1761 = vsub.s32 %v1758, %v1760
      %v1762 = vrot.slane %v1755, %v1761
      %v1763 = vcombine.high %v1762, 0
      %v1766 = vpack.i.b16 %v1762, %v1737
      %v1767 = vshrl.u32 %v1737, 16
      %v1768 = vshrl.u32 %v1762, 16
      %v1769 = vpack.i.b16 %v1768, %v1767
      %v1772 = vpack.i.b16 %v1763, %v1738
      %v1773 = vshrl.u32 %v1738, 16
      %v1774 = vshrl.u32 %v1763, 16
      %v1775 = vpack.i.b16 %v1774, %v1773
      %v1777 = vsel %vm1392, %v1710, 0
      %v1780 = vsel %vm1396, %v1766, 0
      %1782 = vmatprep.subr.bf16.mxu0 0
      %1783 = vmatpush1.bf16.msra.mxu0 %v1780
      %1784 = vmatprep.subr.bf16.mxu0 0
      %1785 = vmatpush1.bf16.msra.mxu0 0
      %1786 = vmatprep.subr.bf16.mxu0 0
      %1787 = vmatpush1.bf16.msra.mxu0 0
      %1788 = vmatprep.subr.bf16.mxu0 0
      %1789 = vmatpush1.bf16.msra.mxu0 0
      %1790 = vmatprep.subr.bf16.mxu0 0
      %1791 = vmatpush1.bf16.msra.mxu0 0
      %1792 = vmatprep.subr.bf16.mxu0 0
      %1793 = vmatpush1.bf16.msra.mxu0 0
      %1794 = vmatprep.subr.bf16.mxu0 0
      %1795 = vmatpush1.bf16.msra.mxu0 0
      %1796 = vmatprep.subr.bf16.mxu0 0
      %1797 = vmatpush1.bf16.msra.mxu0 0
      %1798 = vmatprep.subr.bf16.mxu0 0
      %1799 = vmatpush1.bf16.msra.mxu0 0
      %1800 = vmatprep.subr.bf16.mxu0 0
      %1801 = vmatpush1.bf16.msra.mxu0 0
      %1802 = vmatprep.subr.bf16.mxu0 0
      %1803 = vmatpush1.bf16.msra.mxu0 0
      %1804 = vmatprep.subr.bf16.mxu0 0
      %1805 = vmatpush1.bf16.msra.mxu0 0
      %1806 = vmatprep.subr.bf16.mxu0 0
      %1807 = vmatpush1.bf16.msra.mxu0 0
      %1808 = vmatprep.subr.bf16.mxu0 0
      %1809 = vmatpush1.bf16.msra.mxu0 0
      %1810 = vmatprep.subr.bf16.mxu0 0
      %1811 = vmatpush1.bf16.msra.mxu0 0
      %1812 = vmatprep.subr.bf16.mxu0 0
      %1813 = vmatpush1.bf16.msra.mxu0 0
      %1814 = vmatprep.mubr.bf16.mxu0 0
      %1815 = vmatmul.mubr.bf16.gmra.mrb[0].mxu0 %v1777
      %v1816 = vpop.f32.mrb[0].mxu0
      %v1817 = vadd.f32 0.0, %v1816
      %v1818 = vpop.f32.mrb[0].mxu0
      %v1819 = vpop.f32.mrb[0].mxu0
      %v1820 = vpop.f32.mrb[0].mxu0
      %1821 = vdwg.mxu0
      %v1823 = vsel %vm1392, %v1711, 0
      %v1826 = vsel %vm1396, %v1769, 0
      %1828 = vmatprep.subr.bf16.mxu0 0
      %1829 = vmatpush1.bf16.msra.mxu0 %v1826
      %1830 = vmatprep.subr.bf16.mxu0 0
      %1831 = vmatpush1.bf16.msra.mxu0 0
      %1832 = vmatprep.subr.bf16.mxu0 0
      %1833 = vmatpush1.bf16.msra.mxu0 0
      %1834 = vmatprep.subr.bf16.mxu0 0
      %1835 = vmatpush1.bf16.msra.mxu0 0
      %1836 = vmatprep.subr.bf16.mxu0 0
      %1837 = vmatpush1.bf16.msra.mxu0 0
      %1838 = vmatprep.subr.bf16.mxu0 0
      %1839 = vmatpush1.bf16.msra.mxu0 0
      %1840 = vmatprep.subr.bf16.mxu0 0
      %1841 = vmatpush1.bf16.msra.mxu0 0
      %1842 = vmatprep.subr.bf16.mxu0 0
      %1843 = vmatpush1.bf16.msra.mxu0 0
      %1844 = vmatprep.subr.bf16.mxu0 0
      %1845 = vmatpush1.bf16.msra.mxu0 0
      %1846 = vmatprep.subr.bf16.mxu0 0
      %1847 = vmatpush1.bf16.msra.mxu0 0
      %1848 = vmatprep.subr.bf16.mxu0 0
      %1849 = vmatpush1.bf16.msra.mxu0 0
      %1850 = vmatprep.subr.bf16.mxu0 0
      %1851 = vmatpush1.bf16.msra.mxu0 0
      %1852 = vmatprep.subr.bf16.mxu0 0
      %1853 = vmatpush1.bf16.msra.mxu0 0
      %1854 = vmatprep.subr.bf16.mxu0 0
      %1855 = vmatpush1.bf16.msra.mxu0 0
      %1856 = vmatprep.subr.bf16.mxu0 0
      %1857 = vmatpush1.bf16.msra.mxu0 0
      %1858 = vmatprep.subr.bf16.mxu0 0
      %1859 = vmatpush1.bf16.msra.mxu0 0
      %1860 = vmatprep.mubr.bf16.mxu0 0
      %1861 = vmatmul.mubr.bf16.gmra.mrb[0].mxu0 %v1823
      %v1862 = vpop.f32.mrb[0].mxu0
      %v1863 = vadd.f32 0.0, %v1862
      %v1864 = vpop.f32.mrb[0].mxu0
      %v1865 = vpop.f32.mrb[0].mxu0
      %v1866 = vpop.f32.mrb[0].mxu0
      %1867 = vdwg.mxu0
      %v1869 = vsel %vm1392, %v1712, 0
      %v1872 = vsel %vm1396, %v1772, 0
      %1874 = vmatprep.subr.bf16.mxu0 0
      %1875 = vmatpush1.bf16.msra.mxu0 %v1872
      %1876 = vmatprep.subr.bf16.mxu0 0
      %1877 = vmatpush1.bf16.msra.mxu0 0
      %1878 = vmatprep.subr.bf16.mxu0 0
      %1879 = vmatpush1.bf16.msra.mxu0 0
      %1880 = vmatprep.subr.bf16.mxu0 0
      %1881 = vmatpush1.bf16.msra.mxu0 0
      %1882 = vmatprep.subr.bf16.mxu0 0
      %1883 = vmatpush1.bf16.msra.mxu0 0
      %1884 = vmatprep.subr.bf16.mxu0 0
      %1885 = vmatpush1.bf16.msra.mxu0 0
      %1886 = vmatprep.subr.bf16.mxu0 0
      %1887 = vmatpush1.bf16.msra.mxu0 0
      %1888 = vmatprep.subr.bf16.mxu0 0
      %1889 = vmatpush1.bf16.msra.mxu0 0
      %1890 = vmatprep.subr.bf16.mxu0 0
      %1891 = vmatpush1.bf16.msra.mxu0 0
      %1892 = vmatprep.subr.bf16.mxu0 0
      %1893 = vmatpush1.bf16.msra.mxu0 0
      %1894 = vmatprep.subr.bf16.mxu0 0
      %1895 = vmatpush1.bf16.msra.mxu0 0
      %1896 = vmatprep.subr.bf16.mxu0 0
      %1897 = vmatpush1.bf16.msra.mxu0 0
      %1898 = vmatprep.subr.bf16.mxu0 0
      %1899 = vmatpush1.bf16.msra.mxu0 0
      %1900 = vmatprep.subr.bf16.mxu0 0
      %1901 = vmatpush1.bf16.msra.mxu0 0
      %1902 = vmatprep.subr.bf16.mxu0 0
      %1903 = vmatpush1.bf16.msra.mxu0 0
      %1904 = vmatprep.subr.bf16.mxu0 0
      %1905 = vmatpush1.bf16.msra.mxu0 0
      %1906 = vmatprep.mubr.bf16.mxu0 0
      %1907 = vmatmul.mubr.bf16.gmra.mrb[0].mxu0 %v1869
      %v1908 = vpop.f32.mrb[0].mxu0
      %v1909 = vadd.f32 0.0, %v1908
      %v1910 = vpop.f32.mrb[0].mxu0
      %v1911 = vpop.f32.mrb[0].mxu0
      %v1912 = vpop.f32.mrb[0].mxu0
      %1913 = vdwg.mxu0
      %v1915 = vsel %vm1392, %v1713, 0
      %v1918 = vsel %vm1396, %v1775, 0
      %1920 = vmatprep.subr.bf16.mxu0 0
      %1921 = vmatpush1.bf16.msra.mxu0 %v1918
      %1922 = vmatprep.subr.bf16.mxu0 0
      %1923 = vmatpush1.bf16.msra.mxu0 0
      %1924 = vmatprep.subr.bf16.mxu0 0
      %1925 = vmatpush1.bf16.msra.mxu0 0
      %1926 = vmatprep.subr.bf16.mxu0 0
      %1927 = vmatpush1.bf16.msra.mxu0 0
      %1928 = vmatprep.subr.bf16.mxu0 0
      %1929 = vmatpush1.bf16.msra.mxu0 0
      %1930 = vmatprep.subr.bf16.mxu0 0
      %1931 = vmatpush1.bf16.msra.mxu0 0
      %1932 = vmatprep.subr.bf16.mxu0 0
      %1933 = vmatpush1.bf16.msra.mxu0 0
      %1934 = vmatprep.subr.bf16.mxu0 0
      %1935 = vmatpush1.bf16.msra.mxu0 0
      %1936 = vmatprep.subr.bf16.mxu0 0
      %1937 = vmatpush1.bf16.msra.mxu0 0
      %1938 = vmatprep.subr.bf16.mxu0 0
      %1939 = vmatpush1.bf16.msra.mxu0 0
      %1940 = vmatprep.subr.bf16.mxu0 0
      %1941 = vmatpush1.bf16.msra.mxu0 0
      %1942 = vmatprep.subr.bf16.mxu0 0
      %1943 = vmatpush1.bf16.msra.mxu0 0
      %1944 = vmatprep.subr.bf16.mxu0 0
      %1945 = vmatpush1.bf16.msra.mxu0 0
      %1946 = vmatprep.subr.bf16.mxu0 0
      %1947 = vmatpush1.bf16.msra.mxu0 0
      %1948 = vmatprep.subr.bf16.mxu0 0
      %1949 = vmatpush1.bf16.msra.mxu0 0
      %1950 = vmatprep.subr.bf16.mxu0 0
      %1951 = vmatpush1.bf16.msra.mxu0 0
      %1952 = vmatprep.mubr.bf16.mxu0 0
      %1953 = vmatmul.mubr.bf16.gmra.mrb[0].mxu0 %v1915
      %v1954 = vpop.f32.mrb[0].mxu0
      %v1955 = vadd.f32 0.0, %v1954
      %v1956 = vpop.f32.mrb[0].mxu0
      %v1957 = vpop.f32.mrb[0].mxu0
      %v1958 = vpop.f32.mrb[0].mxu0
      %1959 = vdwg.mxu0
      %v1960 = vadd.f32 %v1706, %v1817
      %v1961 = vadd.f32 %v1707, %v1863
      %v1962 = vadd.f32 %v1708, %v1909
      %v1963 = vadd.f32 %v1709, %v1955
      %1964 = vst.msk [vmem:[#allocation5] sm:$0xff] %vm1392, %v1960
      %1965 = vst.msk [vmem:[#allocation5 + $0x8] sm:$0xff] %vm1392, %v1961
      %1966 = vst.msk [vmem:[#allocation5 + $0x10] sm:$0xff] %vm1392, %v1962
      %1967 = vst.msk [vmem:[#allocation5 + $0x18] sm:$0xff] %vm1392, %v1963
      %1968 = vst.msk [vmem:[#allocation3] sm:$0xff] %vm1677, %v1605
      %1969 = vst.msk [vmem:[#allocation3 + $0x8] sm:$0xff] %vm1677, %v1606
      %1970 = vst.msk [vmem:[#allocation3 + $0x10] sm:$0xff] %vm1677, %v1607
      %1971 = vst.msk [vmem:[#allocation3 + $0x18] sm:$0xff] %vm1677, %v1608
      // Predicated region
      $region73: #{decoder_layer_forward.3} parent=67 // pred_check
        %p1972 = pneg %p492
      $region74: #{decoder_layer_forward.3} parent=67 // pred_check_branch
        %1974 = sbr.rel (%p1972) target = $region76
      $region75: #{decoder_layer_forward.3} parent=67 // pred_region
        %v1975 = vld [vmem:[#allocation5] sm:$0xff]
        %v1976 = vld [vmem:[#allocation5 + $0x8] sm:$0xff]
        %v1977 = vld [vmem:[#allocation5 + $0x10] sm:$0xff]
        %v1978 = vld [vmem:[#allocation5 + $0x18] sm:$0xff]
        %v1979 = vld [vmem:[#allocation4] sm:$0xff]
        %v1980 = vld [vmem:[#allocation4 + $0x8] sm:$0xff]
        %v1981 = vld [vmem:[#allocation4 + $0x10] sm:$0xff]
        %v1982 = vld [vmem:[#allocation4 + $0x18] sm:$0xff]
        %v1983 = vrcp.pop %v1979
        %v1984 = vrcp.pop %v1980
        %v1985 = vrcp.pop %v1981
        %v1986 = vrcp.pop %v1982
        %1988 = vset.pattern.permute.xlu0 0
        %1989 = vperm.xlu0 %1988, %v1983
        %v1990 = vpop.permute.xlu0 %1989
        %1993 = vset.pattern.permute.xlu0 0
        %1994 = vperm.xlu0 %1993, %v1984
        %v1995 = vpop.permute.xlu0 %1994
        %1998 = vset.pattern.permute.xlu0 0
        %1999 = vperm.xlu0 %1998, %v1985
        %v2000 = vpop.permute.xlu0 %1999
        %2003 = vset.pattern.permute.xlu0 0
        %2004 = vperm.xlu0 %2003, %v1986
        %v2005 = vpop.permute.xlu0 %2004
        %v2007 = vmul.f32 %v1975, %v1990
        %v2008 = vmul.f32 %v1976, %v1995
        %v2009 = vmul.f32 %v1977, %v2000
        %v2010 = vmul.f32 %v1978, %v2005
        %v2011 = vcombine.low %v2007, %v2009
        %v2012 = vcombine.high %v2007, %v2009
        %v2014 = vunpack.c.l.s4 1983009808
        %v2015 = vunpack.c.0.s8 %v2014
        %v2016 = vlaneseq
        %v2017 = vshrl.u32 %v2016, 7
        %v2018 = vsub.s32 %v2015, %v2017
        %v2019 = vrot.slane %v2011, %v2018
        %v2021 = vunpack.c.l.s4 1983009808
        %v2022 = vunpack.c.0.s8 %v2021
        %v2023 = vlaneseq
        %v2024 = vshrl.u32 %v2023, 7
        %v2025 = vsub.s32 %v2022, %v2024
        %v2026 = vrot.slane %v2012, %v2025
        %v2027 = vcombine.low %v2008, %v2010
        %v2028 = vcombine.high %v2008, %v2010
        %v2030 = vunpack.c.l.s4 1983009808
        %v2031 = vunpack.c.0.s8 %v2030
        %v2032 = vlaneseq
        %v2033 = vshrl.u32 %v2032, 7
        %v2034 = vsub.s32 %v2031, %v2033
        %v2035 = vrot.slane %v2027, %v2034
        %v2037 = vunpack.c.l.s4 1983009808
        %v2038 = vunpack.c.0.s8 %v2037
        %v2039 = vlaneseq
        %v2040 = vshrl.u32 %v2039, 7
        %v2041 = vsub.s32 %v2038, %v2040
        %v2042 = vrot.slane %v2028, %v2041
        %v2043 = vcombine.low %v2019, %v2035
        %v2044 = vcombine.high %v2019, %v2035
        %v2046 = vunpack.c.l.s4 1934713408
        %v2047 = vunpack.c.0.s8 %v2046
        %v2048 = vlaneseq
        %v2049 = vshrl.u32 %v2048, 7
        %v2050 = vsub.s32 %v2047, %v2049
        %v2051 = vrot.slane %v2043, %v2050
        %v2053 = vunpack.c.l.s4 1934713408
        %v2054 = vunpack.c.0.s8 %v2053
        %v2055 = vlaneseq
        %v2056 = vshrl.u32 %v2055, 7
        %v2057 = vsub.s32 %v2054, %v2056
        %v2058 = vrot.slane %v2044, %v2057
        %v2059 = vcombine.low %v2026, %v2042
        %v2060 = vcombine.high %v2026, %v2042
        %v2062 = vunpack.c.l.s4 1934713408
        %v2063 = vunpack.c.0.s8 %v2062
        %v2064 = vlaneseq
        %v2065 = vshrl.u32 %v2064, 7
        %v2066 = vsub.s32 %v2063, %v2065
        %v2067 = vrot.slane %v2059, %v2066
        %v2069 = vunpack.c.l.s4 1934713408
        %v2070 = vunpack.c.0.s8 %v2069
        %v2071 = vlaneseq
        %v2072 = vshrl.u32 %v2071, 7
        %v2073 = vsub.s32 %v2070, %v2072
        %v2074 = vrot.slane %v2060, %v2073
        %v2075 = vcombine.high %v2051, 0.0
        %v2076 = vcombine.high %v2058, 0.0
        %v2077 = vcombine.high %v2067, 0.0
        %v2078 = vcombine.high %v2074, 0.0
        %v2079 = vcombine.low %v2051, %v2058
        %v2081 = vunpack.c.l.s4 1983009808
        %v2082 = vunpack.c.0.s8 %v2081
        %v2083 = vlaneseq
        %v2084 = vshrl.u32 %v2083, 7
        %v2085 = vsub.s32 %v2082, %v2084
        %v2086 = vrot.slane %v2079, %v2085
        %v2087 = vcombine.low %v2075, %v2076
        %v2089 = vunpack.c.l.s4 1983009808
        %v2090 = vunpack.c.0.s8 %v2089
        %v2091 = vlaneseq
        %v2092 = vshrl.u32 %v2091, 7
        %v2093 = vsub.s32 %v2090, %v2092
        %v2094 = vrot.slane %v2087, %v2093
        %v2095 = vcombine.low %v2067, %v2074
        %v2097 = vunpack.c.l.s4 1983009808
        %v2098 = vunpack.c.0.s8 %v2097
        %v2099 = vlaneseq
        %v2100 = vshrl.u32 %v2099, 7
        %v2101 = vsub.s32 %v2098, %v2100
        %v2102 = vrot.slane %v2095, %v2101
        %v2103 = vcombine.low %v2077, %v2078
        %v2105 = vunpack.c.l.s4 1983009808
        %v2106 = vunpack.c.0.s8 %v2105
        %v2107 = vlaneseq
        %v2108 = vshrl.u32 %v2107, 7
        %v2109 = vsub.s32 %v2106, %v2108
        %v2110 = vrot.slane %v2103, %v2109
        %v2111 = vcombine.low %v2086, %v2094
        %v2112 = vcombine.high %v2086, %v2094
        %v2114 = vunpack.c.l.s4 1934713408
        %v2115 = vunpack.c.0.s8 %v2114
        %v2116 = vlaneseq
        %v2117 = vshrl.u32 %v2116, 7
        %v2118 = vsub.s32 %v2115, %v2117
        %v2119 = vrot.slane %v2111, %v2118
        %v2121 = vunpack.c.l.s4 1934713408
        %v2122 = vunpack.c.0.s8 %v2121
        %v2123 = vlaneseq
        %v2124 = vshrl.u32 %v2123, 7
        %v2125 = vsub.s32 %v2122, %v2124
        %v2126 = vrot.slane %v2112, %v2125
        %v2127 = vcombine.low %v2102, %v2110
        %v2128 = vcombine.high %v2102, %v2110
        %v2130 = vunpack.c.l.s4 1934713408
        %v2131 = vunpack.c.0.s8 %v2130
        %v2132 = vlaneseq
        %v2133 = vshrl.u32 %v2132, 7
        %v2134 = vsub.s32 %v2131, %v2133
        %v2135 = vrot.slane %v2127, %v2134
        %v2137 = vunpack.c.l.s4 1934713408
        %v2138 = vunpack.c.0.s8 %v2137
        %v2139 = vlaneseq
        %v2140 = vshrl.u32 %v2139, 7
        %v2141 = vsub.s32 %v2138, %v2140
        %v2142 = vrot.slane %v2128, %v2141
        %v2143 = vcombine.low %v2119, %v2135
        %v2144 = vcombine.high %v2119, %v2135
        %v2145 = vcombine.low %v2126, %v2142
        %v2146 = vcombine.high %v2126, %v2142
        %2148 = vrot.lane.b32.xlu0 %v2144, 8
        %v2149 = vpop.permute.xlu0 %2148
        %2152 = vrot.lane.b32.xlu0 %v2145, 16
        %v2153 = vpop.permute.xlu0 %2152
        %2156 = vrot.lane.b32.xlu0 %v2146, 24
        %v2157 = vpop.permute.xlu0 %2156
        %v2159 = vsel %vm1392, %v2143, %v2149
        %vm2160 = vcmask 130048
        %v2161 = vsel %vm2160, %v2159, %v2153
        %vm2162 = vcmask 195584
        %v2163 = vsel %vm2162, %v2161, %v2157
        %v2164 = vpack.c.bf16 %v2163, %v2163
        %v2165 = vld [vmem:[%s6] sm:$0xf]
        %v2166 = vld [vmem:[%s6 + $0x4] sm:$0xf]
        %v2167 = vld [vmem:[%s6 + $0x8] sm:$0xf]
        %v2168 = vld [vmem:[%s6 + $0xc] sm:$0xf]
        %v2169 = vld [vmem:[%s7] sm:$0x1]
        %v2171 = vlaneseq
        %v2172 = vshrl.u32 %v2171, 7
        %v2173 = vsub.s32 0, %v2172
        %v2174 = vrot.slane %v2169, %v2173
        %v2180 = vunpack.c.l.b16 %v2165
        %v2181 = vunpack.c.l.b16 %v2166
        %v2182 = vunpack.c.l.b16 %v2167
        %v2183 = vunpack.c.l.b16 %v2168
        %v2184 = vpack.c.b16 %v2181, %v2180
        %v2185 = vpack.c.b16 %v2183, %v2182
        %v2189 = vsel %vm606, %v2164, 0
        %2191 = vmatprep.subr.bf16.mxu0 0
        %2192 = vmatpush1.bf16.msra.mxu0 %v2184
        %2193 = vmatprep.subr.bf16.mxu0 0
        %2194 = vmatpush1.bf16.msra.mxu0 %v2185
        %2195 = vmatprep.subr.bf16.mxu0 0
        %2196 = vmatpush1.bf16.msra.mxu0 0
        %2197 = vmatprep.subr.bf16.mxu0 0
        %2198 = vmatpush1.bf16.msra.mxu0 0
        %2199 = vmatprep.subr.bf16.mxu0 0
        %2200 = vmatpush1.bf16.msra.mxu0 0
        %2201 = vmatprep.subr.bf16.mxu0 0
        %2202 = vmatpush1.bf16.msra.mxu0 0
        %2203 = vmatprep.subr.bf16.mxu0 0
        %2204 = vmatpush1.bf16.msra.mxu0 0
        %2205 = vmatprep.subr.bf16.mxu0 0
        %2206 = vmatpush1.bf16.msra.mxu0 0
        %2207 = vmatprep.subr.bf16.mxu0 0
        %2208 = vmatpush1.bf16.msra.mxu0 0
        %2209 = vmatprep.subr.bf16.mxu0 0
        %2210 = vmatpush1.bf16.msra.mxu0 0
        %2211 = vmatprep.subr.bf16.mxu0 0
        %2212 = vmatpush1.bf16.msra.mxu0 0
        %2213 = vmatprep.subr.bf16.mxu0 0
        %2214 = vmatpush1.bf16.msra.mxu0 0
        %2215 = vmatprep.subr.bf16.mxu0 0
        %2216 = vmatpush1.bf16.msra.mxu0 0
        %2217 = vmatprep.subr.bf16.mxu0 0
        %2218 = vmatpush1.bf16.msra.mxu0 0
        %2219 = vmatprep.subr.bf16.mxu0 0
        %2220 = vmatpush1.bf16.msra.mxu0 0
        %2221 = vmatprep.subr.bf16.mxu0 0
        %2222 = vmatpush1.bf16.msra.mxu0 0
        %2223 = vmatprep.mubr.bf16.mxu0 0
        %2224 = vmatmul.mubr.bf16.gmra.mrb[0].mxu0 %v2189
        %v2225 = vpop.f32.mrb[0].mxu0
        %v2226 = vadd.f32 %v2174, %v2225
        %v2227 = vpop.f32.mrb[0].mxu0
        %v2228 = vpop.f32.mrb[0].mxu0
        %v2229 = vpop.f32.mrb[0].mxu0
        %2230 = vdwg.mxu0
        %v2231 = vld [vmem:[%s469] sm:$0xff]
        %v2232 = vadd.f32 %v2231, %v2226
        %v2233 = vsel %vm606, %v2232, 0.0
        %2234 = vadd.xlane.f32.xlu0 %v2233
        %v2235 = vpop.xlane.xlu0 %2234
        %v2236 = vrcp.pop 32.0
        %v2237 = vmul.f32 %v2235, %v2236
        %v2238 = vsub.f32 %v2232, %v2237
        %v2239 = vmul.f32 %v2238, %v2238
        %v2240 = vsel %vm606, %v2239, 0.0
        %2241 = vadd.xlane.f32.xlu0 %v2240
        %v2242 = vpop.xlane.xlu0 %2241
        %v2243 = vmul.f32 %v2242, %v2236
        %v2244 = vadd.f32 %v2243, 1e-05
        %v2245 = vrsqrt.pop %v2244
        %v2246 = vmul.f32 %v2238, %v2245
        %v2247 = vld [vmem:[%s10] sm:$0x1]
        %v2249 = vlaneseq
        %v2250 = vshrl.u32 %v2249, 7
        %v2251 = vsub.s32 0, %v2250
        %v2252 = vrot.slane %v2247, %v2251
        %v2254 = vmul.f32 %v2246, %v2252
        %v2255 = vld [vmem:[%s11] sm:$0x1]
        %v2257 = vlaneseq
        %v2258 = vshrl.u32 %v2257, 7
        %v2259 = vsub.s32 0, %v2258
        %v2260 = vrot.slane %v2255, %v2259
        %v2262 = vadd.f32 %v2254, %v2260
        %2263 = vst.msk [vmem:[%s490] sm:$0xff] %vm606, %v2262
      $region76: #{decoder_layer_forward.3} parent=67 // pred_fallthru
        _
      %p2264 = scmp.lt.s32.totalorder %s27, 1
      %s2265 = scalar_select %p2264, %s27, 1
      %s2266 = smul.addr %s2265, 8
      %s2267 = scalar_lea.vmem %s12, %s2266
      // Predicated region
      $region77: #{decoder_layer_forward.3} parent=67 // pred_check
        %p2268 = pneg %p329
      $region78: #{decoder_layer_forward.3} parent=67 // pred_check_branch
        %2270 = sbr.rel (%p2268) target = $region80
      $region79: #{decoder_layer_forward.3} parent=67 // pred_region
        _
      $region80: #{decoder_layer_forward.3} parent=67 // pred_fallthru
        _
    $region68: #{decoder_layer_forward.3} parent=5 // pred_fallthru
      _
    %p2271 = scmp.le.s32.totalorder 2, %s18
    // Predicated region
    $region81: #{decoder_layer_forward.3} parent=5 // pred_check
      %p2272 = pneg %p2271
    $region82: #{decoder_layer_forward.3} parent=5 // pred_check_branch
      %2274 = sbr.rel (%p2272) target = $region84
    $region83: #{decoder_layer_forward.3} parent=5 // pred_region
      %s2275 = ssub.s32 %s18, 2
      // Predicated region
      $region85: #{decoder_layer_forward.3} parent=83 // pred_check
        %p2276 = pneg %p335
      $region86: #{decoder_layer_forward.3} parent=83 // pred_check_branch
        %2278 = sbr.rel (%p2276) target = $region88
      $region87: #{decoder_layer_forward.3} parent=83 // pred_region
        %p2279 = scmp.lt.s32.totalorder %s29, 1
        %s2280 = scalar_select %p2279, %s29, 1
        %s2281 = smul.addr %s2280, 8
        %s2282 = scalar_lea.vmem %s12, %s2281
      $region88: #{decoder_layer_forward.3} parent=83 // pred_fallthru
        _
    $region84: #{decoder_layer_forward.3} parent=5 // pred_fallthru
      _
  $region6: #{decoder_layer_forward.3} parent=0 // loop_footer
    %s22 = sadd.s32 1, %s18
  $region7: #{decoder_layer_forward.3} parent=0 // loop_footer_branch
    %17 = sbr.rel target = $region3
  $region8: #{decoder_layer_forward.3} parent=0 // loop_exit
    _

// kernel: decoder_layer_forward.4
$region0: #{decoder_layer_forward.4}
  #allocation0 [shape = 'u32[]', space=smem, size = 0x4, offset = 0x4, fixed_abs, tag = 'smem constant byte address 0x4 - core index']
  #allocation1 [shape = 'u32[144,128]{1,0:T(1,128)}', space=vmem, size = 0x12000, scoped, tag = 'internal scratch']
  #allocation2 [shape = 'f32[8,32]{1,0:T(8,128)}', space=vmem, size = 0x1000, scoped, tag = 'scratch operand']
  #allocation3 [shape = 'f32[4,8,1]{2,1,0:T(8,128)}', space=vmem, size = 0x4000, scoped, tag = 'scratch operand']
  #allocation4 [shape = 'f32[4,8,1]{2,1,0:T(8,128)}', space=vmem, size = 0x4000, scoped, tag = 'scratch operand']
  #allocation5 [shape = 'f32[4,8,8]{2,1,0:T(8,128)}', space=vmem, size = 0x4000, scoped, tag = 'scratch operand']
  %s0 = inlined_call_operand.vmem [shape: f32[2,8,32], index: 0, kind: input, shape index: {}]
  %s1 = inlined_call_operand.vmem [shape: f32[2,256,32], index: 1, kind: input, shape index: {}]
  %s2 = inlined_call_operand.vmem [shape: bf16[32,32], index: 2, kind: input, shape index: {}]
  %s3 = inlined_call_operand.vmem [shape: f32[1,32], index: 3, kind: input, shape index: {}]
  %s4 = inlined_call_operand.vmem [shape: bf16[32,64], index: 4, kind: input, shape index: {}]
  %s5 = inlined_call_operand.vmem [shape: f32[1,64], index: 5, kind: input, shape index: {}]
  %s6 = inlined_call_operand.vmem [shape: bf16[32,32], index: 6, kind: input, shape index: {}]
  %s7 = inlined_call_operand.vmem [shape: f32[1,32], index: 7, kind: input, shape index: {}]
  %s8 = inlined_call_operand.vmem [shape: f32[8,256], index: 8, kind: input, shape index: {}]
  %s9 = inlined_call_operand.vmem [shape: f32[2,1,256], index: 9, kind: input, shape index: {}]
  %s10 = inlined_call_operand.vmem [shape: f32[1,32], index: 10, kind: input, shape index: {}]
  %s11 = inlined_call_operand.vmem [shape: f32[1,32], index: 11, kind: input, shape index: {}]
  %s12 = inlined_call_operand.vmem [shape: f32[2,8,32], index: 12, kind: output, shape index: {}]
  %s13 = sld [smem:[#allocation0]]
  $region89: #{decoder_layer_forward.4} parent=0
    _
  %s15 = ssub.s32 1, %s13
  %s16 = scalar_select 0, %s15, %s13
  loop: start=0, step=1, limit=6
  $region2: #{decoder_layer_forward.4} parent=0 // loop_pre_header
    _
  $region3: #{decoder_layer_forward.4} parent=0 // loop_header
    %s18 = sphi 0, %s22
    %p19 = scmp.ge.s32.totalorder %s18, 6
    %s25 = sphi 0, %s37
    %s26 = sphi 0, %s33
    %s27 = sphi 0, %s25
    %s28 = sphi 0, %s26
    %s29 = sphi 0, %s27
    %s30 = sphi 0, %s28
    %s40 = sphi 0, %s42
    %s43 = sphi 0, %s40
    %s44 = sphi 0, %s43
    %s60 = sphi 0, %s44
    %s68 = sphi 0, %s70
    %s71 = sphi 0, %s68
    %s72 = sphi 0, %s71
    %s88 = sphi 0, %s72
    %s92 = sphi 0, %s92
    %s94 = sphi 0, %s92
    %s95 = sphi 0, %s94
    %s109 = sphi 0, %s95
    %s113 = sphi 0, %s113
    %s115 = sphi 0, %s113
    %s116 = sphi 0, %s115
    %s130 = sphi 0, %s116
    %s134 = sphi 0, %s134
    %s136 = sphi 0, %s134
    %s137 = sphi 0, %s136
    %s151 = sphi 0, %s137
    %s155 = sphi 0, %s155
    %s157 = sphi 0, %s155
    %s158 = sphi 0, %s157
    %s172 = sphi 0, %s158
    %s176 = sphi 0, %s176
    %s178 = sphi 0, %s176
    %s179 = sphi 0, %s178
    %s193 = sphi 0, %s179
    %s197 = sphi 0, %s197
    %s199 = sphi 0, %s197
    %s200 = sphi 0, %s199
    %s214 = sphi 0, %s200
    %s220 = sphi 0, %s222
    %s223 = sphi 0, %s220
    %s224 = sphi 0, %s223
    %s240 = sphi 0, %s224
    %s248 = sphi 0, %s250
    %s251 = sphi 0, %s248
    %s252 = sphi 0, %s251
    %s268 = sphi 0, %s252
    %s272 = sphi 0, %s272
    %s274 = sphi 0, %s272
    %s275 = sphi 0, %s274
    %s289 = sphi 0, %s275
    %s293 = sphi 0, %s293
    %s295 = sphi 0, %s293
    %s296 = sphi 0, %s295
    %s310 = sphi 0, %s296
    %s316 = sphi 0, %s318
    %s319 = sphi 0, %s316
    %s320 = sphi 0, %s319
    %s336 = sphi 0, %s320
  $region4: #{decoder_layer_forward.4} parent=0 // loop_header_branch
    %21 = sbr.rel (%p19) target = $region8
  $region5: #{decoder_layer_forward.4} parent=0 // loop_body
    %s23 = ssub.s32 %s18, 1
    %s24 = ssub.s32 %s18, 2
    %s31 = sadd.s32 1, %s26
    %p32 = scmp.ge.s32.totalorder %s31, 2
    %s33 = scalar_select %p32, 0, %s31
    %s34 = sadd.s32 1, %s25
    %s35 = scalar_select %p32, %s34, %s25
    %p36 = scmp.ge.s32.totalorder %s35, 2
    %s37 = scalar_select %p36, 0, %s35
    %s38 = ssub.s32 %s25, %s37
    %p39 = scmp.eq.s32.totalorder %s38, 0
    %s41 = sadd.s32 %s40, 1
    %s42 = scalar_select %p39, %s40, %s41
    %p45 = pneg %p39
    %p46 = scmp.eq.s32.totalorder %s18, 3
    %p47 = por %p45, %p46
    %p48 = scmp.ne.s32.totalorder %s40, %s43
    %p49 = scmp.eq.s32.totalorder %s18, 0
    %p50 = por %p48, %p49
    %p51 = scmp.ne.s32.totalorder %s40, %s43
    %p52 = scmp.eq.s32.totalorder %s23, 3
    %p53 = por %p51, %p52
    %p54 = scmp.ne.s32.totalorder %s43, %s44
    %p55 = scmp.eq.s32.totalorder %s23, 0
    %p56 = por %p54, %p55
    %p57 = scmp.ne.s32.totalorder %s43, %s44
    %p58 = scmp.eq.s32.totalorder %s24, 3
    %p59 = por %p57, %p58
    %p61 = scmp.ne.s32.totalorder %s44, %s60
    %p62 = scmp.eq.s32.totalorder %s24, 0
    %p63 = por %p61, %p62
    %s64 = ssub.s32 %s25, %s37
    %s65 = ssub.s32 %s26, %s33
    %s66 = sor.u32 %s64, %s65
    %p67 = scmp.eq.s32.totalorder %s66, 0
    %s69 = sadd.s32 %s68, 1
    %s70 = scalar_select %p67, %s68, %s69
    %p73 = pneg %p67
    %p74 = scmp.eq.s32.totalorder %s18, 3
    %p75 = por %p73, %p74
    %p76 = scmp.ne.s32.totalorder %s68, %s71
    %p77 = scmp.eq.s32.totalorder %s18, 0
    %p78 = por %p76, %p77
    %p79 = scmp.ne.s32.totalorder %s68, %s71
    %p80 = scmp.eq.s32.totalorder %s23, 3
    %p81 = por %p79, %p80
    %p82 = scmp.ne.s32.totalorder %s71, %s72
    %p83 = scmp.eq.s32.totalorder %s23, 0
    %p84 = por %p82, %p83
    %p85 = scmp.ne.s32.totalorder %s71, %s72
    %p86 = scmp.eq.s32.totalorder %s24, 3
    %p87 = por %p85, %p86
    %p89 = scmp.ne.s32.totalorder %s72, %s88
    %p90 = scmp.eq.s32.totalorder %s24, 0
    %p91 = por %p89, %p90
    %s93 = sadd.s32 %s92, 1
    %p96 = scmp.eq.s32.totalorder %s18, 3
    %p97 = scmp.ne.s32.totalorder %s92, %s94
    %p98 = scmp.eq.s32.totalorder %s18, 0
    %p99 = por %p97, %p98
    %p100 = scmp.ne.s32.totalorder %s92, %s94
    %p101 = scmp.eq.s32.totalorder %s23, 3
    %p102 = por %p100, %p101
    %p103 = scmp.ne.s32.totalorder %s94, %s95
    %p104 = scmp.eq.s32.totalorder %s23, 0
    %p105 = por %p103, %p104
    %p106 = scmp.ne.s32.totalorder %s94, %s95
    %p107 = scmp.eq.s32.totalorder %s24, 3
    %p108 = por %p106, %p107
    %p110 = scmp.ne.s32.totalorder %s95, %s109
    %p111 = scmp.eq.s32.totalorder %s24, 0
    %p112 = por %p110, %p111
    %s114 = sadd.s32 %s113, 1
    %p117 = scmp.eq.s32.totalorder %s18, 3
    %p118 = scmp.ne.s32.totalorder %s113, %s115
    %p119 = scmp.eq.s32.totalorder %s18, 0
    %p120 = por %p118, %p119
    %p121 = scmp.ne.s32.totalorder %s113, %s115
    %p122 = scmp.eq.s32.totalorder %s23, 3
    %p123 = por %p121, %p122
    %p124 = scmp.ne.s32.totalorder %s115, %s116
    %p125 = scmp.eq.s32.totalorder %s23, 0
    %p126 = por %p124, %p125
    %p127 = scmp.ne.s32.totalorder %s115, %s116
    %p128 = scmp.eq.s32.totalorder %s24, 3
    %p129 = por %p127, %p128
    %p131 = scmp.ne.s32.totalorder %s116, %s130
    %p132 = scmp.eq.s32.totalorder %s24, 0
    %p133 = por %p131, %p132
    %s135 = sadd.s32 %s134, 1
    %p138 = scmp.eq.s32.totalorder %s18, 3
    %p139 = scmp.ne.s32.totalorder %s134, %s136
    %p140 = scmp.eq.s32.totalorder %s18, 0
    %p141 = por %p139, %p140
    %p142 = scmp.ne.s32.totalorder %s134, %s136
    %p143 = scmp.eq.s32.totalorder %s23, 3
    %p144 = por %p142, %p143
    %p145 = scmp.ne.s32.totalorder %s136, %s137
    %p146 = scmp.eq.s32.totalorder %s23, 0
    %p147 = por %p145, %p146
    %p148 = scmp.ne.s32.totalorder %s136, %s137
    %p149 = scmp.eq.s32.totalorder %s24, 3
    %p150 = por %p148, %p149
    %p152 = scmp.ne.s32.totalorder %s137, %s151
    %p153 = scmp.eq.s32.totalorder %s24, 0
    %p154 = por %p152, %p153
    %s156 = sadd.s32 %s155, 1
    %p159 = scmp.eq.s32.totalorder %s18, 3
    %p160 = scmp.ne.s32.totalorder %s155, %s157
    %p161 = scmp.eq.s32.totalorder %s18, 0
    %p162 = por %p160, %p161
    %p163 = scmp.ne.s32.totalorder %s155, %s157
    %p164 = scmp.eq.s32.totalorder %s23, 3
    %p165 = por %p163, %p164
    %p166 = scmp.ne.s32.totalorder %s157, %s158
    %p167 = scmp.eq.s32.totalorder %s23, 0
    %p168 = por %p166, %p167
    %p169 = scmp.ne.s32.totalorder %s157, %s158
    %p170 = scmp.eq.s32.totalorder %s24, 3
    %p171 = por %p169, %p170
    %p173 = scmp.ne.s32.totalorder %s158, %s172
    %p174 = scmp.eq.s32.totalorder %s24, 0
    %p175 = por %p173, %p174
    %s177 = sadd.s32 %s176, 1
    %p180 = scmp.eq.s32.totalorder %s18, 3
    %p181 = scmp.ne.s32.totalorder %s176, %s178
    %p182 = scmp.eq.s32.totalorder %s18, 0
    %p183 = por %p181, %p182
    %p184 = scmp.ne.s32.totalorder %s176, %s178
    %p185 = scmp.eq.s32.totalorder %s23, 3
    %p186 = por %p184, %p185
    %p187 = scmp.ne.s32.totalorder %s178, %s179
    %p188 = scmp.eq.s32.totalorder %s23, 0
    %p189 = por %p187, %p188
    %p190 = scmp.ne.s32.totalorder %s178, %s179
    %p191 = scmp.eq.s32.totalorder %s24, 3
    %p192 = por %p190, %p191
    %p194 = scmp.ne.s32.totalorder %s179, %s193
    %p195 = scmp.eq.s32.totalorder %s24, 0
    %p196 = por %p194, %p195
    %s198 = sadd.s32 %s197, 1
    %p201 = scmp.eq.s32.totalorder %s18, 3
    %p202 = scmp.ne.s32.totalorder %s197, %s199
    %p203 = scmp.eq.s32.totalorder %s18, 0
    %p204 = por %p202, %p203
    %p205 = scmp.ne.s32.totalorder %s197, %s199
    %p206 = scmp.eq.s32.totalorder %s23, 3
    %p207 = por %p205, %p206
    %p208 = scmp.ne.s32.totalorder %s199, %s200
    %p209 = scmp.eq.s32.totalorder %s23, 0
    %p210 = por %p208, %p209
    %p211 = scmp.ne.s32.totalorder %s199, %s200
    %p212 = scmp.eq.s32.totalorder %s24, 3
    %p213 = por %p211, %p212
    %p215 = scmp.ne.s32.totalorder %s200, %s214
    %p216 = scmp.eq.s32.totalorder %s24, 0
    %p217 = por %p215, %p216
    %s218 = ssub.s32 %s26, %s33
    %p219 = scmp.eq.s32.totalorder %s218, 0
    %s221 = sadd.s32 %s220, 1
    %s222 = scalar_select %p219, %s220, %s221
    %p225 = pneg %p219
    %p226 = scmp.eq.s32.totalorder %s18, 3
    %p227 = por %p225, %p226
    %p228 = scmp.ne.s32.totalorder %s220, %s223
    %p229 = scmp.eq.s32.totalorder %s18, 0
    %p230 = por %p228, %p229
    %p231 = scmp.ne.s32.totalorder %s220, %s223
    %p232 = scmp.eq.s32.totalorder %s23, 3
    %p233 = por %p231, %p232
    %p234 = scmp.ne.s32.totalorder %s223, %s224
    %p235 = scmp.eq.s32.totalorder %s23, 0
    %p236 = por %p234, %p235
    %p237 = scmp.ne.s32.totalorder %s223, %s224
    %p238 = scmp.eq.s32.totalorder %s24, 3
    %p239 = por %p237, %p238
    %p241 = scmp.ne.s32.totalorder %s224, %s240
    %p242 = scmp.eq.s32.totalorder %s24, 0
    %p243 = por %p241, %p242
    %s244 = ssub.s32 %s25, %s37
    %s245 = ssub.s32 %s26, %s33
    %s246 = sor.u32 %s244, %s245
    %p247 = scmp.eq.s32.totalorder %s246, 0
    %s249 = sadd.s32 %s248, 1
    %s250 = scalar_select %p247, %s248, %s249
    %p253 = pneg %p247
    %p254 = scmp.eq.s32.totalorder %s18, 3
    %p255 = por %p253, %p254
    %p256 = scmp.ne.s32.totalorder %s248, %s251
    %p257 = scmp.eq.s32.totalorder %s18, 0
    %p258 = por %p256, %p257
    %p259 = scmp.ne.s32.totalorder %s248, %s251
    %p260 = scmp.eq.s32.totalorder %s23, 3
    %p261 = por %p259, %p260
    %p262 = scmp.ne.s32.totalorder %s251, %s252
    %p263 = scmp.eq.s32.totalorder %s23, 0
    %p264 = por %p262, %p263
    %p265 = scmp.ne.s32.totalorder %s251, %s252
    %p266 = scmp.eq.s32.totalorder %s24, 3
    %p267 = por %p265, %p266
    %p269 = scmp.ne.s32.totalorder %s252, %s268
    %p270 = scmp.eq.s32.totalorder %s24, 0
    %p271 = por %p269, %p270
    %s273 = sadd.s32 %s272, 1
    %p276 = scmp.eq.s32.totalorder %s18, 3
    %p277 = scmp.ne.s32.totalorder %s272, %s274
    %p278 = scmp.eq.s32.totalorder %s18, 0
    %p279 = por %p277, %p278
    %p280 = scmp.ne.s32.totalorder %s272, %s274
    %p281 = scmp.eq.s32.totalorder %s23, 3
    %p282 = por %p280, %p281
    %p283 = scmp.ne.s32.totalorder %s274, %s275
    %p284 = scmp.eq.s32.totalorder %s23, 0
    %p285 = por %p283, %p284
    %p286 = scmp.ne.s32.totalorder %s274, %s275
    %p287 = scmp.eq.s32.totalorder %s24, 3
    %p288 = por %p286, %p287
    %p290 = scmp.ne.s32.totalorder %s275, %s289
    %p291 = scmp.eq.s32.totalorder %s24, 0
    %p292 = por %p290, %p291
    %s294 = sadd.s32 %s293, 1
    %p297 = scmp.eq.s32.totalorder %s18, 3
    %p298 = scmp.ne.s32.totalorder %s293, %s295
    %p299 = scmp.eq.s32.totalorder %s18, 0
    %p300 = por %p298, %p299
    %p301 = scmp.ne.s32.totalorder %s293, %s295
    %p302 = scmp.eq.s32.totalorder %s23, 3
    %p303 = por %p301, %p302
    %p304 = scmp.ne.s32.totalorder %s295, %s296
    %p305 = scmp.eq.s32.totalorder %s23, 0
    %p306 = por %p304, %p305
    %p307 = scmp.ne.s32.totalorder %s295, %s296
    %p308 = scmp.eq.s32.totalorder %s24, 3
    %p309 = por %p307, %p308
    %p311 = scmp.ne.s32.totalorder %s296, %s310
    %p312 = scmp.eq.s32.totalorder %s24, 0
    %p313 = por %p311, %p312
    %s314 = ssub.s32 %s25, %s37
    %p315 = scmp.eq.s32.totalorder %s314, 0
    %s317 = sadd.s32 %s316, 1
    %s318 = scalar_select %p315, %s316, %s317
    %p321 = pneg %p315
    %p322 = scmp.eq.s32.totalorder %s18, 3
    %p323 = por %p321, %p322
    %p324 = scmp.ne.s32.totalorder %s316, %s319
    %p325 = scmp.eq.s32.totalorder %s18, 0
    %p326 = por %p324, %p325
    %p327 = scmp.ne.s32.totalorder %s316, %s319
    %p328 = scmp.eq.s32.totalorder %s23, 3
    %p329 = por %p327, %p328
    %p330 = scmp.ne.s32.totalorder %s319, %s320
    %p331 = scmp.eq.s32.totalorder %s23, 0
    %p332 = por %p330, %p331
    %p333 = scmp.ne.s32.totalorder %s319, %s320
    %p334 = scmp.eq.s32.totalorder %s24, 3
    %p335 = por %p333, %p334
    %p337 = scmp.ne.s32.totalorder %s320, %s336
    %p338 = scmp.eq.s32.totalorder %s24, 0
    %p339 = por %p337, %p338
    %p340 = scmp.le.s32.totalorder 1, %s18
    %p341 = scmp.lt.s32.totalorder %s18, 5
    %p342 = pnand %p340, %p341
    %p343 = pneg %p342
    // Predicated region
    $region9: #{decoder_layer_forward.4} parent=5 // pred_check
      _
    $region10: #{decoder_layer_forward.4} parent=5 // pred_check_branch
      %345 = sbr.rel (%p342) target = $region12
    $region11: #{decoder_layer_forward.4} parent=5 // pred_region
      %s346 = ssub.s32 %s18, 1
      // Predicated region
      $region13: #{decoder_layer_forward.4} parent=11 // pred_check
        %p347 = pneg %p105
      $region14: #{decoder_layer_forward.4} parent=11 // pred_check_branch
        %349 = sbr.rel (%p347) target = $region16
      $region15: #{decoder_layer_forward.4} parent=11 // pred_region
        _
      $region16: #{decoder_layer_forward.4} parent=11 // pred_fallthru
        _
      // Predicated region
      $region17: #{decoder_layer_forward.4} parent=11 // pred_check
        %p350 = pneg %p126
      $region18: #{decoder_layer_forward.4} parent=11 // pred_check_branch
        %352 = sbr.rel (%p350) target = $region20
      $region19: #{decoder_layer_forward.4} parent=11 // pred_region
        _
      $region20: #{decoder_layer_forward.4} parent=11 // pred_fallthru
        _
      // Predicated region
      $region21: #{decoder_layer_forward.4} parent=11 // pred_check
        %p353 = pneg %p147
      $region22: #{decoder_layer_forward.4} parent=11 // pred_check_branch
        %355 = sbr.rel (%p353) target = $region24
      $region23: #{decoder_layer_forward.4} parent=11 // pred_region
        _
      $region24: #{decoder_layer_forward.4} parent=11 // pred_fallthru
        _
      // Predicated region
      $region25: #{decoder_layer_forward.4} parent=11 // pred_check
        %p356 = pneg %p168
      $region26: #{decoder_layer_forward.4} parent=11 // pred_check_branch
        %358 = sbr.rel (%p356) target = $region28
      $region27: #{decoder_layer_forward.4} parent=11 // pred_region
        _
      $region28: #{decoder_layer_forward.4} parent=11 // pred_fallthru
        _
      // Predicated region
      $region29: #{decoder_layer_forward.4} parent=11 // pred_check
        %p359 = pneg %p189
      $region30: #{decoder_layer_forward.4} parent=11 // pred_check_branch
        %361 = sbr.rel (%p359) target = $region32
      $region31: #{decoder_layer_forward.4} parent=11 // pred_region
        _
      $region32: #{decoder_layer_forward.4} parent=11 // pred_fallthru
        _
      // Predicated region
      $region33: #{decoder_layer_forward.4} parent=11 // pred_check
        %p362 = pneg %p210
      $region34: #{decoder_layer_forward.4} parent=11 // pred_check_branch
        %364 = sbr.rel (%p362) target = $region36
      $region35: #{decoder_layer_forward.4} parent=11 // pred_region
        _
      $region36: #{decoder_layer_forward.4} parent=11 // pred_fallthru
        _
      // Predicated region
      $region37: #{decoder_layer_forward.4} parent=11 // pred_check
        %p365 = pneg %p285
      $region38: #{decoder_layer_forward.4} parent=11 // pred_check_branch
        %367 = sbr.rel (%p365) target = $region40
      $region39: #{decoder_layer_forward.4} parent=11 // pred_region
        _
      $region40: #{decoder_layer_forward.4} parent=11 // pred_fallthru
        _
      // Predicated region
      $region41: #{decoder_layer_forward.4} parent=11 // pred_check
        %p368 = pneg %p306
      $region42: #{decoder_layer_forward.4} parent=11 // pred_check_branch
        %370 = sbr.rel (%p368) target = $region44
      $region43: #{decoder_layer_forward.4} parent=11 // pred_region
        _
      $region44: #{decoder_layer_forward.4} parent=11 // pred_fallthru
        _
    $region12: #{decoder_layer_forward.4} parent=5 // pred_fallthru
      _
    %p371 = scmp.lt.s32.totalorder %s18, 4
    // Predicated region
    $region45: #{decoder_layer_forward.4} parent=5 // pred_check
      %p372 = pneg %p371
    $region46: #{decoder_layer_forward.4} parent=5 // pred_check_branch
      %374 = sbr.rel (%p372) target = $region48
    $region47: #{decoder_layer_forward.4} parent=5 // pred_region
      // Predicated region
      $region49: #{decoder_layer_forward.4} parent=47 // pred_check
        %p375 = pneg %p50
      $region50: #{decoder_layer_forward.4} parent=47 // pred_check_branch
        %377 = sbr.rel (%p375) target = $region52
      $region51: #{decoder_layer_forward.4} parent=47 // pred_region
        %p378 = scmp.lt.s32.totalorder %s25, 1
        %s379 = scalar_select %p378, %s25, 1
        %s380 = smul.addr %s379, 8
        %s381 = scalar_lea.vmem %s0, %s380
      $region52: #{decoder_layer_forward.4} parent=47 // pred_fallthru
        _
      // Predicated region
      $region53: #{decoder_layer_forward.4} parent=47 // pred_check
        %p382 = pneg %p78
      $region54: #{decoder_layer_forward.4} parent=47 // pred_check_branch
        %384 = sbr.rel (%p382) target = $region56
      $region55: #{decoder_layer_forward.4} parent=47 // pred_region
        %s385 = smul.u32 16, %s26
        %p386 = scmp.lt.s32.totalorder %s25, 1
        %s387 = scalar_select %p386, %s25, 1
        %p388 = scmp.lt.s32.totalorder %s385, 31
        %s389 = scalar_select %p388, %s385, 31
        %s390 = smul.addr %s387, 32
        %s391 = sadd.s32 %s389, %s390
        %s392 = smul.addr %s391, 8
        %s393 = scalar_lea.vmem %s1, %s392
        %s394 = smul.u32 16, %s26
      $region56: #{decoder_layer_forward.4} parent=47 // pred_fallthru
        _
      // Predicated region
      $region57: #{decoder_layer_forward.4} parent=47 // pred_check
        %p395 = pneg %p230
      $region58: #{decoder_layer_forward.4} parent=47 // pred_check_branch
        %397 = sbr.rel (%p395) target = $region60
      $region59: #{decoder_layer_forward.4} parent=47 // pred_region
        %p398 = scmp.lt.s32.totalorder %s26, 1
        %s399 = scalar_select %p398, %s26, 1
        %s400 = smul.addr %s399, 8
        %s401 = scalar_lea.vmem %s8, %s400
      $region60: #{decoder_layer_forward.4} parent=47 // pred_fallthru
        _
      // Predicated region
      $region61: #{decoder_layer_forward.4} parent=47 // pred_check
        %p402 = pneg %p258
      $region62: #{decoder_layer_forward.4} parent=47 // pred_check_branch
        %404 = sbr.rel (%p402) target = $region64
      $region63: #{decoder_layer_forward.4} parent=47 // pred_region
        %p405 = scmp.lt.s32.totalorder %s25, 1
        %s406 = scalar_select %p405, %s25, 1
        %p407 = scmp.lt.s32.totalorder %s26, 1
        %s408 = scalar_select %p407, %s26, 1
        %s409 = smul.addr %s406, 2
        %s410 = sadd.s32 %s408, %s409
        %s411 = scalar_lea.vmem %s9, %s410
      $region64: #{decoder_layer_forward.4} parent=47 // pred_fallthru
        _
    $region48: #{decoder_layer_forward.4} parent=5 // pred_fallthru
      _
    %p412 = scmp.le.s32.totalorder 1, %s18
    %p413 = scmp.lt.s32.totalorder %s18, 5
    %p414 = pnand %p412, %p413
    %p415 = pneg %p414
    // Predicated region
    $region65: #{decoder_layer_forward.4} parent=5 // pred_check
      _
    $region66: #{decoder_layer_forward.4} parent=5 // pred_check_branch
      %417 = sbr.rel (%p414) target = $region68
    $region67: #{decoder_layer_forward.4} parent=5 // pred_region
      %s418 = ssub.s32 %s18, 1
      %p419 = scmp.lt.s32.totalorder %s27, 1
      %s420 = scalar_select %p419, %s27, 1
      %s421 = smul.addr %s420, 8
      %s422 = scalar_lea.vmem %s0, %s421
      %p423 = pneg %p56
      %p424 = pneg %p53
      %s425 = smul.u32 16, %s28
      %p426 = scmp.lt.s32.totalorder %s27, 1
      %s427 = scalar_select %p426, %s27, 1
      %p428 = scmp.lt.s32.totalorder %s425, 31
      %s429 = scalar_select %p428, %s425, 31
      %s430 = smul.addr %s427, 32
      %s431 = sadd.s32 %s429, %s430
      %s432 = smul.addr %s431, 8
      %s433 = scalar_lea.vmem %s1, %s432
      %p434 = pneg %p84
      %p435 = pneg %p81
      %p436 = pneg %p105
      %p437 = pneg %p102
      %p438 = pneg %p126
      %p439 = pneg %p123
      %p440 = pneg %p147
      %p441 = pneg %p144
      %p442 = pneg %p168
      %p443 = pneg %p165
      %p444 = pneg %p189
      %p445 = pneg %p186
      %p446 = pneg %p210
      %p447 = pneg %p207
      %p448 = scmp.lt.s32.totalorder %s28, 1
      %s449 = scalar_select %p448, %s28, 1
      %s450 = smul.addr %s449, 8
      %s451 = scalar_lea.vmem %s8, %s450
      %p452 = pneg %p236
      %p453 = pneg %p233
      %p454 = scmp.lt.s32.totalorder %s27, 1
      %s455 = scalar_select %p454, %s27, 1
      %p456 = scmp.lt.s32.totalorder %s28, 1
      %s457 = scalar_select %p456, %s28, 1
      %s458 = smul.addr %s455, 2
      %s459 = sadd.s32 %s457, %s458
      %s460 = scalar_lea.vmem %s9, %s459
      %p461 = pneg %p264
      %p462 = pneg %p261
      %p463 = pneg %p285
      %p464 = pneg %p282
      %p465 = pneg %p306
      %p466 = pneg %p303
      %p467 = pneg %p332
      %p468 = pneg %p329
      %p469 = scmp.lt.s32.totalorder %s27, 1
      %s470 = scalar_select %p469, %s27, 1
      %s471 = smul.addr %s470, 8
      %s472 = scalar_lea.vmem %s12, %s471
      %p473 = scmp.lt.s32.totalorder %s27, 1
      %s474 = scalar_select %p473, %s27, 1
      %s475 = smul.addr %s474, 8
      %s476 = scalar_lea.vmem %s0, %s475
      %s477 = smul.u32 16, %s28
      %p478 = scmp.lt.s32.totalorder %s27, 1
      %s479 = scalar_select %p478, %s27, 1
      %p480 = scmp.lt.s32.totalorder %s477, 31
      %s481 = scalar_select %p480, %s477, 31
      %s482 = smul.addr %s479, 32
      %s483 = sadd.s32 %s481, %s482
      %s484 = smul.addr %s483, 8
      %s485 = scalar_lea.vmem %s1, %s484
      %s486 = smul.u32 16, %s28
      %p487 = scmp.lt.s32.totalorder %s28, 1
      %s488 = scalar_select %p487, %s28, 1
      %s489 = smul.addr %s488, 8
      %s490 = scalar_lea.vmem %s8, %s489
      %p491 = scmp.lt.s32.totalorder %s27, 1
      %s492 = scalar_select %p491, %s27, 1
      %p493 = scmp.lt.s32.totalorder %s28, 1
      %s494 = scalar_select %p493, %s28, 1
      %s495 = smul.addr %s492, 2
      %s496 = sadd.s32 %s494, %s495
      %s497 = scalar_lea.vmem %s9, %s496
      %p498 = scmp.lt.s32.totalorder %s27, 1
      %s499 = scalar_select %p498, %s27, 1
      %s500 = smul.addr %s499, 8
      %s501 = scalar_lea.vmem %s12, %s500
      %p503 = scmp.eq.s32.totalorder %s28, 0
      // Predicated region
      $region69: #{decoder_layer_forward.4} parent=67 // pred_check
        %p504 = pneg %p503
      $region70: #{decoder_layer_forward.4} parent=67 // pred_check_branch
        %506 = sbr.rel (%p504) target = $region72
      $region71: #{decoder_layer_forward.4} parent=67 // pred_region
        %v507 = vld [vmem:[%s476] sm:$0xff]
        %v508 = vpack.c.bf16 %v507, %v507
        %v509 = vld [vmem:[%s2] sm:$0xf]
        %v510 = vld [vmem:[%s2 + $0x4] sm:$0xf]
        %v511 = vld [vmem:[%s2 + $0x8] sm:$0xf]
        %v512 = vld [vmem:[%s2 + $0xc] sm:$0xf]
        %v513 = vld [vmem:[%s3] sm:$0x1]
        %v515 = vlaneseq
        %v516 = vshrl.u32 %v515, 7
        %v517 = vsub.s32 0, %v516
        %v518 = vrot.slane %v513, %v517
        %v524 = vunpack.c.l.b16 %v509
        %v525 = vunpack.c.l.b16 %v510
        %v526 = vunpack.c.l.b16 %v511
        %v527 = vunpack.c.l.b16 %v512
        %v528 = vpack.c.b16 %v525, %v524
        %v529 = vpack.c.b16 %v527, %v526
        %vm532 = vcmask 261120
        %v534 = vsel %vm532, %v508, 0
        %536 = vmatprep.subr.bf16.mxu0 0
        %537 = vmatpush1.bf16.msra.mxu0 %v528
        %538 = vmatprep.subr.bf16.mxu0 0
        %539 = vmatpush1.bf16.msra.mxu0 %v529
        %540 = vmatprep.subr.bf16.mxu0 0
        %541 = vmatpush1.bf16.msra.mxu0 0
        %542 = vmatprep.subr.bf16.mxu0 0
        %543 = vmatpush1.bf16.msra.mxu0 0
        %544 = vmatprep.subr.bf16.mxu0 0
        %545 = vmatpush1.bf16.msra.mxu0 0
        %546 = vmatprep.subr.bf16.mxu0 0
        %547 = vmatpush1.bf16.msra.mxu0 0
        %548 = vmatprep.subr.bf16.mxu0 0
        %549 = vmatpush1.bf16.msra.mxu0 0
        %550 = vmatprep.subr.bf16.mxu0 0
        %551 = vmatpush1.bf16.msra.mxu0 0
        %552 = vmatprep.subr.bf16.mxu0 0
        %553 = vmatpush1.bf16.msra.mxu0 0
        %554 = vmatprep.subr.bf16.mxu0 0
        %555 = vmatpush1.bf16.msra.mxu0 0
        %556 = vmatprep.subr.bf16.mxu0 0
        %557 = vmatpush1.bf16.msra.mxu0 0
        %558 = vmatprep.subr.bf16.mxu0 0
        %559 = vmatpush1.bf16.msra.mxu0 0
        %560 = vmatprep.subr.bf16.mxu0 0
        %561 = vmatpush1.bf16.msra.mxu0 0
        %562 = vmatprep.subr.bf16.mxu0 0
        %563 = vmatpush1.bf16.msra.mxu0 0
        %564 = vmatprep.subr.bf16.mxu0 0
        %565 = vmatpush1.bf16.msra.mxu0 0
        %566 = vmatprep.subr.bf16.mxu0 0
        %567 = vmatpush1.bf16.msra.mxu0 0
        %568 = vmatprep.mubr.bf16.mxu0 0
        %569 = vmatmul.mubr.bf16.gmra.mrb[0].mxu0 %v534
        %v570 = vpop.f32.mrb[0].mxu0
        %v571 = vadd.f32 %v518, %v570
        %v572 = vpop.f32.mrb[0].mxu0
        %v573 = vpop.f32.mrb[0].mxu0
        %v574 = vpop.f32.mrb[0].mxu0
        %575 = vdwg.mxu0
        %v576 = vmul.f32 %v571, 0.35355338
        %577 = vst.msk [vmem:[#allocation2] sm:$0xff] %vm532, %v576
        %vm578 = vcmask 7168
        %579 = vst.msk [vmem:[#allocation3] sm:$0xff] %vm578, -inf
        %580 = vst.msk [vmem:[#allocation3 + $0x8] sm:$0xff] %vm578, -inf
        %581 = vst.msk [vmem:[#allocation3 + $0x10] sm:$0xff] %vm578, -inf
        %582 = vst.msk [vmem:[#allocation3 + $0x18] sm:$0xff] %vm578, -inf
        %583 = vst.msk [vmem:[#allocation4] sm:$0xff] %vm578, 0.0
        %584 = vst.msk [vmem:[#allocation4 + $0x8] sm:$0xff] %vm578, 0.0
        %585 = vst.msk [vmem:[#allocation4 + $0x10] sm:$0xff] %vm578, 0.0
        %586 = vst.msk [vmem:[#allocation4 + $0x18] sm:$0xff] %vm578, 0.0
        %vm587 = vcmask 64512
        %588 = vst.msk [vmem:[#allocation5] sm:$0xff] %vm587, 0.0
        %589 = vst.msk [vmem:[#allocation5 + $0x8] sm:$0xff] %vm587, 0.0
        %590 = vst.msk [vmem:[#allocation5 + $0x10] sm:$0xff] %vm587, 0.0
        %591 = vst.msk [vmem:[#allocation5 + $0x18] sm:$0xff] %vm587, 0.0
      $region72: #{decoder_layer_forward.4} parent=67 // pred_fallthru
        _
      %v592 = vld [vmem:[%s485] sm:$0xff]
      %v593 = vld [vmem:[%s485 + $0x8] sm:$0xff]
      %v594 = vld [vmem:[%s485 + $0x10] sm:$0xff]
      %v595 = vld [vmem:[%s485 + $0x18] sm:$0xff]
      %v596 = vld [vmem:[%s485 + $0x20] sm:$0xff]
      %v597 = vld [vmem:[%s485 + $0x28] sm:$0xff]
      %v598 = vld [vmem:[%s485 + $0x30] sm:$0xff]
      %v599 = vld [vmem:[%s485 + $0x38] sm:$0xff]
      %v600 = vld [vmem:[%s485 + $0x40] sm:$0xff]
      %v601 = vld [vmem:[%s485 + $0x48] sm:$0xff]
      %v602 = vld [vmem:[%s485 + $0x50] sm:$0xff]
      %v603 = vld [vmem:[%s485 + $0x58] sm:$0xff]
      %v604 = vld [vmem:[%s485 + $0x60] sm:$0xff]
      %v605 = vld [vmem:[%s485 + $0x68] sm:$0xff]
      %v606 = vld [vmem:[%s485 + $0x70] sm:$0xff]
      %v607 = vld [vmem:[%s485 + $0x78] sm:$0xff]
      %v608 = vpack.c.bf16 %v593, %v592
      %v609 = vpack.c.bf16 %v595, %v594
      %v610 = vpack.c.bf16 %v597, %v596
      %v611 = vpack.c.bf16 %v599, %v598
      %v612 = vpack.c.bf16 %v601, %v600
      %v613 = vpack.c.bf16 %v603, %v602
      %v614 = vpack.c.bf16 %v605, %v604
      %v615 = vpack.c.bf16 %v607, %v606
      %v616 = vld [vmem:[%s4] sm:$0xf]
      %v617 = vld [vmem:[%s4 + $0x4] sm:$0xf]
      %v618 = vld [vmem:[%s4 + $0x8] sm:$0xf]
      %v619 = vld [vmem:[%s4 + $0xc] sm:$0xf]
      %v620 = vld [vmem:[%s5] sm:$0x1]
      %v622 = vlaneseq
      %v623 = vshrl.u32 %v622, 7
      %v624 = vsub.s32 0, %v623
      %v625 = vrot.slane %v620, %v624
      %v631 = vunpack.c.l.b16 %v616
      %v632 = vunpack.c.l.b16 %v617
      %v633 = vunpack.c.l.b16 %v618
      %v634 = vunpack.c.l.b16 %v619
      %v635 = vpack.c.b16 %v632, %v631
      %v636 = vpack.c.b16 %v634, %v633
      %vm639 = vcmask 261120
      %v641 = vsel %vm639, %v608, 0
      %v644 = vsel %vm639, %v609, 0
      %v647 = vsel %vm639, %v610, 0
      %v650 = vsel %vm639, %v611, 0
      %v653 = vsel %vm639, %v612, 0
      %v656 = vsel %vm639, %v613, 0
      %v659 = vsel %vm639, %v614, 0
      %v662 = vsel %vm639, %v615, 0
      %664 = vmatprep.subr.bf16.mxu0 0
      %665 = vmatpush1.bf16.msra.mxu0 %v635
      %666 = vmatprep.subr.bf16.mxu0 0
      %667 = vmatpush1.bf16.msra.mxu0 %v636
      %668 = vmatprep.subr.bf16.mxu0 0
      %669 = vmatpush1.bf16.msra.mxu0 0
      %670 = vmatprep.subr.bf16.mxu0 0
      %671 = vmatpush1.bf16.msra.mxu0 0
      %672 = vmatprep.subr.bf16.mxu0 0
      %673 = vmatpush1.bf16.msra.mxu0 0
      %674 = vmatprep.subr.bf16.mxu0 0
      %675 = vmatpush1.bf16.msra.mxu0 0
      %676 = vmatprep.subr.bf16.mxu0 0
      %677 = vmatpush1.bf16.msra.mxu0 0
      %678 = vmatprep.subr.bf16.mxu0 0
      %679 = vmatpush1.bf16.msra.mxu0 0
      %680 = vmatprep.subr.bf16.mxu0 0
      %681 = vmatpush1.bf16.msra.mxu0 0
      %682 = vmatprep.subr.bf16.mxu0 0
      %683 = vmatpush1.bf16.msra.mxu0 0
      %684 = vmatprep.subr.bf16.mxu0 0
      %685 = vmatpush1.bf16.msra.mxu0 0
      %686 = vmatprep.subr.bf16.mxu0 0
      %687 = vmatpush1.bf16.msra.mxu0 0
      %688 = vmatprep.subr.bf16.mxu0 0
      %689 = vmatpush1.bf16.msra.mxu0 0
      %690 = vmatprep.subr.bf16.mxu0 0
      %691 = vmatpush1.bf16.msra.mxu0 0
      %692 = vmatprep.subr.bf16.mxu0 0
      %693 = vmatpush1.bf16.msra.mxu0 0
      %694 = vmatprep.subr.bf16.mxu0 0
      %695 = vmatpush1.bf16.msra.mxu0 0
      %696 = vmatprep.mubr.bf16.mxu0 0
      %697 = vmatmul.mubr.bf16.gmra.mrb[0].mxu0 %v641
      %v698 = vpop.f32.mrb[0].mxu0
      %v699 = vadd.f32 %v625, %v698
      %v700 = vpop.f32.mrb[0].mxu0
      %v701 = vpop.f32.mrb[0].mxu0
      %v702 = vadd.f32 %v625, %v701
      %v703 = vpop.f32.mrb[0].mxu0
      %704 = vmatprep.mubr.bf16.mxu0 0
      %705 = vmatmul.mubr.bf16.gmra.mrb[0].mxu0 %v644
      %v706 = vpop.f32.mrb[0].mxu0
      %v707 = vadd.f32 %v625, %v706
      %v708 = vpop.f32.mrb[0].mxu0
      %v709 = vpop.f32.mrb[0].mxu0
      %v710 = vadd.f32 %v625, %v709
      %v711 = vpop.f32.mrb[0].mxu0
      %712 = vmatprep.mubr.bf16.mxu0 0
      %713 = vmatmul.mubr.bf16.gmra.mrb[0].mxu0 %v647
      %v714 = vpop.f32.mrb[0].mxu0
      %v715 = vadd.f32 %v625, %v714
      %v716 = vpop.f32.mrb[0].mxu0
      %v717 = vpop.f32.mrb[0].mxu0
      %v718 = vadd.f32 %v625, %v717
      %v719 = vpop.f32.mrb[0].mxu0
      %720 = vmatprep.mubr.bf16.mxu0 0
      %721 = vmatmul.mubr.bf16.gmra.mrb[0].mxu0 %v650
      %v722 = vpop.f32.mrb[0].mxu0
      %v723 = vadd.f32 %v625, %v722
      %v724 = vpop.f32.mrb[0].mxu0
      %v725 = vpop.f32.mrb[0].mxu0
      %v726 = vadd.f32 %v625, %v725
      %v727 = vpop.f32.mrb[0].mxu0
      %728 = vmatprep.mubr.bf16.mxu0 0
      %729 = vmatmul.mubr.bf16.gmra.mrb[0].mxu0 %v653
      %v730 = vpop.f32.mrb[0].mxu0
      %v731 = vadd.f32 %v625, %v730
      %v732 = vpop.f32.mrb[0].mxu0
      %v733 = vpop.f32.mrb[0].mxu0
      %v734 = vadd.f32 %v625, %v733
      %v735 = vpop.f32.mrb[0].mxu0
      %736 = vmatprep.mubr.bf16.mxu0 0
      %737 = vmatmul.mubr.bf16.gmra.mrb[0].mxu0 %v656
      %v738 = vpop.f32.mrb[0].mxu0
      %v739 = vadd.f32 %v625, %v738
      %v740 = vpop.f32.mrb[0].mxu0
      %v741 = vpop.f32.mrb[0].mxu0
      %v742 = vadd.f32 %v625, %v741
      %v743 = vpop.f32.mrb[0].mxu0
      %744 = vmatprep.mubr.bf16.mxu0 0
      %745 = vmatmul.mubr.bf16.gmra.mrb[0].mxu0 %v659
      %v746 = vpop.f32.mrb[0].mxu0
      %v747 = vadd.f32 %v625, %v746
      %v748 = vpop.f32.mrb[0].mxu0
      %v749 = vpop.f32.mrb[0].mxu0
      %v750 = vadd.f32 %v625, %v749
      %v751 = vpop.f32.mrb[0].mxu0
      %752 = vmatprep.mubr.bf16.mxu0 0
      %753 = vmatmul.mubr.bf16.gmra.mrb[0].mxu0 %v662
      %v754 = vpop.f32.mrb[0].mxu0
      %v755 = vadd.f32 %v625, %v754
      %v756 = vpop.f32.mrb[0].mxu0
      %v757 = vpop.f32.mrb[0].mxu0
      %v758 = vadd.f32 %v625, %v757
      %v759 = vpop.f32.mrb[0].mxu0
      %760 = vdwg.mxu0
      %v761 = vld [vmem:[#allocation2] sm:$0xff]
      %763 = vrot.lane.b32.xlu0 %v761, 120
      %v764 = vpop.permute.xlu0 %763
      %766 = vrot.lane.b32.xlu0 %v761, 112
      %v767 = vpop.permute.xlu0 %766
      %769 = vrot.lane.b32.xlu0 %v761, 104
      %v770 = vpop.permute.xlu0 %769
      %v772 = vcombine.low %v761, %v767
      %v773 = vcombine.high %v761, %v767
      %v775 = vunpack.c.l.s4 1983009808
      %v776 = vunpack.c.0.s8 %v775
      %v777 = vlaneseq
      %v778 = vshrl.u32 %v777, 7
      %v779 = vsub.s32 %v776, %v778
      %v780 = vrot.slane %v772, %v779
      %v782 = vunpack.c.l.s4 1983009808
      %v783 = vunpack.c.0.s8 %v782
      %v784 = vlaneseq
      %v785 = vshrl.u32 %v784, 7
      %v786 = vsub.s32 %v783, %v785
      %v787 = vrot.slane %v773, %v786
      %v788 = vcombine.low %v764, %v770
      %v789 = vcombine.high %v764, %v770
      %v791 = vunpack.c.l.s4 1983009808
      %v792 = vunpack.c.0.s8 %v791
      %v793 = vlaneseq
      %v794 = vshrl.u32 %v793, 7
      %v795 = vsub.s32 %v792, %v794
      %v796 = vrot.slane %v788, %v795
      %v798 = vunpack.c.l.s4 1983009808
      %v799 = vunpack.c.0.s8 %v798
      %v800 = vlaneseq
      %v801 = vshrl.u32 %v800, 7
      %v802 = vsub.s32 %v799, %v801
      %v803 = vrot.slane %v789, %v802
      %v804 = vcombine.low %v780, %v796
      %v805 = vcombine.high %v780, %v796
      %v807 = vunpack.c.l.s4 1934713408
      %v808 = vunpack.c.0.s8 %v807
      %v809 = vlaneseq
      %v810 = vshrl.u32 %v809, 7
      %v811 = vsub.s32 %v808, %v810
      %v812 = vrot.slane %v804, %v811
      %v814 = vunpack.c.l.s4 1934713408
      %v815 = vunpack.c.0.s8 %v814
      %v816 = vlaneseq
      %v817 = vshrl.u32 %v816, 7
      %v818 = vsub.s32 %v815, %v817
      %v819 = vrot.slane %v805, %v818
      %v820 = vcombine.low %v787, %v803
      %v821 = vcombine.high %v787, %v803
      %v823 = vunpack.c.l.s4 1934713408
      %v824 = vunpack.c.0.s8 %v823
      %v825 = vlaneseq
      %v826 = vshrl.u32 %v825, 7
      %v827 = vsub.s32 %v824, %v826
      %v828 = vrot.slane %v820, %v827
      %v830 = vunpack.c.l.s4 1934713408
      %v831 = vunpack.c.0.s8 %v830
      %v832 = vlaneseq
      %v833 = vshrl.u32 %v832, 7
      %v834 = vsub.s32 %v831, %v833
      %v835 = vrot.slane %v821, %v834
      %v836 = vcombine.high %v812, 0.0
      %v837 = vcombine.high %v819, 0.0
      %v838 = vcombine.high %v828, 0.0
      %v839 = vcombine.high %v835, 0.0
      %v840 = vpack.c.bf16 %v812, %v812
      %v841 = vpack.c.bf16 %v836, %v836
      %v842 = vpack.c.bf16 %v819, %v819
      %v843 = vpack.c.bf16 %v837, %v837
      %v844 = vpack.c.bf16 %v828, %v828
      %v845 = vpack.c.bf16 %v838, %v838
      %v846 = vpack.c.bf16 %v835, %v835
      %v847 = vpack.c.bf16 %v839, %v839
      %864 = vrot.lane.b32.xlu0 %v699, 120
      %v865 = vpop.permute.xlu0 %864
      %866 = vrot.lane.b32.xlu0 %v702, 120
      %v867 = vpop.permute.xlu0 %866
      %868 = vrot.lane.b32.xlu0 %v707, 120
      %v869 = vpop.permute.xlu0 %868
      %870 = vrot.lane.b32.xlu0 %v710, 120
      %v871 = vpop.permute.xlu0 %870
      %872 = vrot.lane.b32.xlu0 %v715, 120
      %v873 = vpop.permute.xlu0 %872
      %874 = vrot.lane.b32.xlu0 %v718, 120
      %v875 = vpop.permute.xlu0 %874
      %876 = vrot.lane.b32.xlu0 %v723, 120
      %v877 = vpop.permute.xlu0 %876
      %878 = vrot.lane.b32.xlu0 %v726, 120
      %v879 = vpop.permute.xlu0 %878
      %880 = vrot.lane.b32.xlu0 %v731, 120
      %v881 = vpop.permute.xlu0 %880
      %882 = vrot.lane.b32.xlu0 %v734, 120
      %v883 = vpop.permute.xlu0 %882
      %884 = vrot.lane.b32.xlu0 %v739, 120
      %v885 = vpop.permute.xlu0 %884
      %886 = vrot.lane.b32.xlu0 %v742, 120
      %v887 = vpop.permute.xlu0 %886
      %888 = vrot.lane.b32.xlu0 %v747, 120
      %v889 = vpop.permute.xlu0 %888
      %890 = vrot.lane.b32.xlu0 %v750, 120
      %v891 = vpop.permute.xlu0 %890
      %892 = vrot.lane.b32.xlu0 %v755, 120
      %v893 = vpop.permute.xlu0 %892
      %894 = vrot.lane.b32.xlu0 %v758, 120
      %v895 = vpop.permute.xlu0 %894
      %912 = vrot.lane.b32.xlu0 %v699, 112
      %v913 = vpop.permute.xlu0 %912
      %914 = vrot.lane.b32.xlu0 %v702, 112
      %v915 = vpop.permute.xlu0 %914
      %916 = vrot.lane.b32.xlu0 %v707, 112
      %v917 = vpop.permute.xlu0 %916
      %918 = vrot.lane.b32.xlu0 %v710, 112
      %v919 = vpop.permute.xlu0 %918
      %920 = vrot.lane.b32.xlu0 %v715, 112
      %v921 = vpop.permute.xlu0 %920
      %922 = vrot.lane.b32.xlu0 %v718, 112
      %v923 = vpop.permute.xlu0 %922
      %924 = vrot.lane.b32.xlu0 %v723, 112
      %v925 = vpop.permute.xlu0 %924
      %926 = vrot.lane.b32.xlu0 %v726, 112
      %v927 = vpop.permute.xlu0 %926
      %928 = vrot.lane.b32.xlu0 %v731, 112
      %v929 = vpop.permute.xlu0 %928
      %930 = vrot.lane.b32.xlu0 %v734, 112
      %v931 = vpop.permute.xlu0 %930
      %932 = vrot.lane.b32.xlu0 %v739, 112
      %v933 = vpop.permute.xlu0 %932
      %934 = vrot.lane.b32.xlu0 %v742, 112
      %v935 = vpop.permute.xlu0 %934
      %936 = vrot.lane.b32.xlu0 %v747, 112
      %v937 = vpop.permute.xlu0 %936
      %938 = vrot.lane.b32.xlu0 %v750, 112
      %v939 = vpop.permute.xlu0 %938
      %940 = vrot.lane.b32.xlu0 %v755, 112
      %v941 = vpop.permute.xlu0 %940
      %942 = vrot.lane.b32.xlu0 %v758, 112
      %v943 = vpop.permute.xlu0 %942
      %960 = vrot.lane.b32.xlu0 %v699, 104
      %v961 = vpop.permute.xlu0 %960
      %962 = vrot.lane.b32.xlu0 %v702, 104
      %v963 = vpop.permute.xlu0 %962
      %964 = vrot.lane.b32.xlu0 %v707, 104
      %v965 = vpop.permute.xlu0 %964
      %966 = vrot.lane.b32.xlu0 %v710, 104
      %v967 = vpop.permute.xlu0 %966
      %968 = vrot.lane.b32.xlu0 %v715, 104
      %v969 = vpop.permute.xlu0 %968
      %970 = vrot.lane.b32.xlu0 %v718, 104
      %v971 = vpop.permute.xlu0 %970
      %972 = vrot.lane.b32.xlu0 %v723, 104
      %v973 = vpop.permute.xlu0 %972
      %974 = vrot.lane.b32.xlu0 %v726, 104
      %v975 = vpop.permute.xlu0 %974
      %976 = vrot.lane.b32.xlu0 %v731, 104
      %v977 = vpop.permute.xlu0 %976
      %978 = vrot.lane.b32.xlu0 %v734, 104
      %v979 = vpop.permute.xlu0 %978
      %980 = vrot.lane.b32.xlu0 %v739, 104
      %v981 = vpop.permute.xlu0 %980
      %982 = vrot.lane.b32.xlu0 %v742, 104
      %v983 = vpop.permute.xlu0 %982
      %984 = vrot.lane.b32.xlu0 %v747, 104
      %v985 = vpop.permute.xlu0 %984
      %986 = vrot.lane.b32.xlu0 %v750, 104
      %v987 = vpop.permute.xlu0 %986
      %988 = vrot.lane.b32.xlu0 %v755, 104
      %v989 = vpop.permute.xlu0 %988
      %990 = vrot.lane.b32.xlu0 %v758, 104
      %v991 = vpop.permute.xlu0 %990
      %v1008 = vcombine.low %v699, %v913
      %v1009 = vcombine.high %v699, %v913
      %v1011 = vunpack.c.l.s4 1983009808
      %v1012 = vunpack.c.0.s8 %v1011
      %v1013 = vlaneseq
      %v1014 = vshrl.u32 %v1013, 7
      %v1015 = vsub.s32 %v1012, %v1014
      %v1016 = vrot.slane %v1008, %v1015
      %v1018 = vunpack.c.l.s4 1983009808
      %v1019 = vunpack.c.0.s8 %v1018
      %v1020 = vlaneseq
      %v1021 = vshrl.u32 %v1020, 7
      %v1022 = vsub.s32 %v1019, %v1021
      %v1023 = vrot.slane %v1009, %v1022
      %v1024 = vcombine.low %v865, %v961
      %v1025 = vcombine.high %v865, %v961
      %v1027 = vunpack.c.l.s4 1983009808
      %v1028 = vunpack.c.0.s8 %v1027
      %v1029 = vlaneseq
      %v1030 = vshrl.u32 %v1029, 7
      %v1031 = vsub.s32 %v1028, %v1030
      %v1032 = vrot.slane %v1024, %v1031
      %v1034 = vunpack.c.l.s4 1983009808
      %v1035 = vunpack.c.0.s8 %v1034
      %v1036 = vlaneseq
      %v1037 = vshrl.u32 %v1036, 7
      %v1038 = vsub.s32 %v1035, %v1037
      %v1039 = vrot.slane %v1025, %v1038
      %v1040 = vcombine.low %v1016, %v1032
      %v1041 = vcombine.high %v1016, %v1032
      %v1043 = vunpack.c.l.s4 1934713408
      %v1044 = vunpack.c.0.s8 %v1043
      %v1045 = vlaneseq
      %v1046 = vshrl.u32 %v1045, 7
      %v1047 = vsub.s32 %v1044, %v1046
      %v1048 = vrot.slane %v1040, %v1047
      %v1050 = vunpack.c.l.s4 1934713408
      %v1051 = vunpack.c.0.s8 %v1050
      %v1052 = vlaneseq
      %v1053 = vshrl.u32 %v1052, 7
      %v1054 = vsub.s32 %v1051, %v1053
      %v1055 = vrot.slane %v1041, %v1054
      %v1056 = vcombine.low %v1023, %v1039
      %v1057 = vcombine.high %v1023, %v1039
      %v1059 = vunpack.c.l.s4 1934713408
      %v1060 = vunpack.c.0.s8 %v1059
      %v1061 = vlaneseq
      %v1062 = vshrl.u32 %v1061, 7
      %v1063 = vsub.s32 %v1060, %v1062
      %v1064 = vrot.slane %v1056, %v1063
      %v1066 = vunpack.c.l.s4 1934713408
      %v1067 = vunpack.c.0.s8 %v1066
      %v1068 = vlaneseq
      %v1069 = vshrl.u32 %v1068, 7
      %v1070 = vsub.s32 %v1067, %v1069
      %v1071 = vrot.slane %v1057, %v1070
      %v1072 = vcombine.high %v1048, 0.0
      %v1073 = vcombine.high %v1055, 0.0
      %v1074 = vcombine.high %v1064, 0.0
      %v1075 = vcombine.high %v1071, 0.0
      %v1076 = vcombine.low %v702, %v915
      %v1077 = vcombine.high %v702, %v915
      %v1079 = vunpack.c.l.s4 1983009808
      %v1080 = vunpack.c.0.s8 %v1079
      %v1081 = vlaneseq
      %v1082 = vshrl.u32 %v1081, 7
      %v1083 = vsub.s32 %v1080, %v1082
      %v1084 = vrot.slane %v1076, %v1083
      %v1086 = vunpack.c.l.s4 1983009808
      %v1087 = vunpack.c.0.s8 %v1086
      %v1088 = vlaneseq
      %v1089 = vshrl.u32 %v1088, 7
      %v1090 = vsub.s32 %v1087, %v1089
      %v1091 = vrot.slane %v1077, %v1090
      %v1092 = vcombine.low %v867, %v963
      %v1093 = vcombine.high %v867, %v963
      %v1095 = vunpack.c.l.s4 1983009808
      %v1096 = vunpack.c.0.s8 %v1095
      %v1097 = vlaneseq
      %v1098 = vshrl.u32 %v1097, 7
      %v1099 = vsub.s32 %v1096, %v1098
      %v1100 = vrot.slane %v1092, %v1099
      %v1102 = vunpack.c.l.s4 1983009808
      %v1103 = vunpack.c.0.s8 %v1102
      %v1104 = vlaneseq
      %v1105 = vshrl.u32 %v1104, 7
      %v1106 = vsub.s32 %v1103, %v1105
      %v1107 = vrot.slane %v1093, %v1106
      %v1108 = vcombine.low %v1084, %v1100
      %v1109 = vcombine.high %v1084, %v1100
      %v1111 = vunpack.c.l.s4 1934713408
      %v1112 = vunpack.c.0.s8 %v1111
      %v1113 = vlaneseq
      %v1114 = vshrl.u32 %v1113, 7
      %v1115 = vsub.s32 %v1112, %v1114
      %v1116 = vrot.slane %v1108, %v1115
      %v1118 = vunpack.c.l.s4 1934713408
      %v1119 = vunpack.c.0.s8 %v1118
      %v1120 = vlaneseq
      %v1121 = vshrl.u32 %v1120, 7
      %v1122 = vsub.s32 %v1119, %v1121
      %v1123 = vrot.slane %v1109, %v1122
      %v1124 = vcombine.low %v1091, %v1107
      %v1125 = vcombine.high %v1091, %v1107
      %v1127 = vunpack.c.l.s4 1934713408
      %v1128 = vunpack.c.0.s8 %v1127
      %v1129 = vlaneseq
      %v1130 = vshrl.u32 %v1129, 7
      %v1131 = vsub.s32 %v1128, %v1130
      %v1132 = vrot.slane %v1124, %v1131
      %v1134 = vunpack.c.l.s4 1934713408
      %v1135 = vunpack.c.0.s8 %v1134
      %v1136 = vlaneseq
      %v1137 = vshrl.u32 %v1136, 7
      %v1138 = vsub.s32 %v1135, %v1137
      %v1139 = vrot.slane %v1125, %v1138
      %v1140 = vcombine.high %v1116, 0.0
      %v1141 = vcombine.high %v1123, 0.0
      %v1142 = vcombine.high %v1132, 0.0
      %v1143 = vcombine.high %v1139, 0.0
      %v1144 = vcombine.low %v707, %v917
      %v1145 = vcombine.high %v707, %v917
      %v1147 = vunpack.c.l.s4 1983009808
      %v1148 = vunpack.c.0.s8 %v1147
      %v1149 = vlaneseq
      %v1150 = vshrl.u32 %v1149, 7
      %v1151 = vsub.s32 %v1148, %v1150
      %v1152 = vrot.slane %v1144, %v1151
      %v1154 = vunpack.c.l.s4 1983009808
      %v1155 = vunpack.c.0.s8 %v1154
      %v1156 = vlaneseq
      %v1157 = vshrl.u32 %v1156, 7
      %v1158 = vsub.s32 %v1155, %v1157
      %v1159 = vrot.slane %v1145, %v1158
      %v1160 = vcombine.low %v869, %v965
      %v1161 = vcombine.high %v869, %v965
      %v1163 = vunpack.c.l.s4 1983009808
      %v1164 = vunpack.c.0.s8 %v1163
      %v1165 = vlaneseq
      %v1166 = vshrl.u32 %v1165, 7
      %v1167 = vsub.s32 %v1164, %v1166
      %v1168 = vrot.slane %v1160, %v1167
      %v1170 = vunpack.c.l.s4 1983009808
      %v1171 = vunpack.c.0.s8 %v1170
      %v1172 = vlaneseq
      %v1173 = vshrl.u32 %v1172, 7
      %v1174 = vsub.s32 %v1171, %v1173
      %v1175 = vrot.slane %v1161, %v1174
      %v1176 = vcombine.low %v1152, %v1168
      %v1177 = vcombine.high %v1152, %v1168
      %v1179 = vunpack.c.l.s4 1934713408
      %v1180 = vunpack.c.0.s8 %v1179
      %v1181 = vlaneseq
      %v1182 = vshrl.u32 %v1181, 7
      %v1183 = vsub.s32 %v1180, %v1182
      %v1184 = vrot.slane %v1176, %v1183
      %v1186 = vunpack.c.l.s4 1934713408
      %v1187 = vunpack.c.0.s8 %v1186
      %v1188 = vlaneseq
      %v1189 = vshrl.u32 %v1188, 7
      %v1190 = vsub.s32 %v1187, %v1189
      %v1191 = vrot.slane %v1177, %v1190
      %v1192 = vcombine.low %v1159, %v1175
      %v1193 = vcombine.high %v1159, %v1175
      %v1195 = vunpack.c.l.s4 1934713408
      %v1196 = vunpack.c.0.s8 %v1195
      %v1197 = vlaneseq
      %v1198 = vshrl.u32 %v1197, 7
      %v1199 = vsub.s32 %v1196, %v1198
      %v1200 = vrot.slane %v1192, %v1199
      %v1202 = vunpack.c.l.s4 1934713408
      %v1203 = vunpack.c.0.s8 %v1202
      %v1204 = vlaneseq
      %v1205 = vshrl.u32 %v1204, 7
      %v1206 = vsub.s32 %v1203, %v1205
      %v1207 = vrot.slane %v1193, %v1206
      %v1208 = vcombine.high %v1184, 0.0
      %v1209 = vcombine.high %v1191, 0.0
      %v1210 = vcombine.high %v1200, 0.0
      %v1211 = vcombine.high %v1207, 0.0
      %v1212 = vcombine.low %v710, %v919
      %v1213 = vcombine.high %v710, %v919
      %v1215 = vunpack.c.l.s4 1983009808
      %v1216 = vunpack.c.0.s8 %v1215
      %v1217 = vlaneseq
      %v1218 = vshrl.u32 %v1217, 7
      %v1219 = vsub.s32 %v1216, %v1218
      %v1220 = vrot.slane %v1212, %v1219
      %v1222 = vunpack.c.l.s4 1983009808
      %v1223 = vunpack.c.0.s8 %v1222
      %v1224 = vlaneseq
      %v1225 = vshrl.u32 %v1224, 7
      %v1226 = vsub.s32 %v1223, %v1225
      %v1227 = vrot.slane %v1213, %v1226
      %v1228 = vcombine.low %v871, %v967
      %v1229 = vcombine.high %v871, %v967
      %v1231 = vunpack.c.l.s4 1983009808
      %v1232 = vunpack.c.0.s8 %v1231
      %v1233 = vlaneseq
      %v1234 = vshrl.u32 %v1233, 7
      %v1235 = vsub.s32 %v1232, %v1234
      %v1236 = vrot.slane %v1228, %v1235
      %v1238 = vunpack.c.l.s4 1983009808
      %v1239 = vunpack.c.0.s8 %v1238
      %v1240 = vlaneseq
      %v1241 = vshrl.u32 %v1240, 7
      %v1242 = vsub.s32 %v1239, %v1241
      %v1243 = vrot.slane %v1229, %v1242
      %v1244 = vcombine.low %v1220, %v1236
      %v1245 = vcombine.high %v1220, %v1236
      %v1247 = vunpack.c.l.s4 1934713408
      %v1248 = vunpack.c.0.s8 %v1247
      %v1249 = vlaneseq
      %v1250 = vshrl.u32 %v1249, 7
      %v1251 = vsub.s32 %v1248, %v1250
      %v1252 = vrot.slane %v1244, %v1251
      %v1254 = vunpack.c.l.s4 1934713408
      %v1255 = vunpack.c.0.s8 %v1254
      %v1256 = vlaneseq
      %v1257 = vshrl.u32 %v1256, 7
      %v1258 = vsub.s32 %v1255, %v1257
      %v1259 = vrot.slane %v1245, %v1258
      %v1260 = vcombine.low %v1227, %v1243
      %v1261 = vcombine.high %v1227, %v1243
      %v1263 = vunpack.c.l.s4 1934713408
      %v1264 = vunpack.c.0.s8 %v1263
      %v1265 = vlaneseq
      %v1266 = vshrl.u32 %v1265, 7
      %v1267 = vsub.s32 %v1264, %v1266
      %v1268 = vrot.slane %v1260, %v1267
      %v1270 = vunpack.c.l.s4 1934713408
      %v1271 = vunpack.c.0.s8 %v1270
      %v1272 = vlaneseq
      %v1273 = vshrl.u32 %v1272, 7
      %v1274 = vsub.s32 %v1271, %v1273
      %v1275 = vrot.slane %v1261, %v1274
      %v1276 = vcombine.high %v1252, 0.0
      %v1277 = vcombine.high %v1259, 0.0
      %v1278 = vcombine.high %v1268, 0.0
      %v1279 = vcombine.high %v1275, 0.0
      %v1280 = vcombine.low %v715, %v921
      %v1281 = vcombine.high %v715, %v921
      %v1283 = vunpack.c.l.s4 1983009808
      %v1284 = vunpack.c.0.s8 %v1283
      %v1285 = vlaneseq
      %v1286 = vshrl.u32 %v1285, 7
      %v1287 = vsub.s32 %v1284, %v1286
      %v1288 = vrot.slane %v1280, %v1287
      %v1290 = vunpack.c.l.s4 1983009808
      %v1291 = vunpack.c.0.s8 %v1290
      %v1292 = vlaneseq
      %v1293 = vshrl.u32 %v1292, 7
      %v1294 = vsub.s32 %v1291, %v1293
      %v1295 = vrot.slane %v1281, %v1294
      %v1296 = vcombine.low %v873, %v969
      %v1297 = vcombine.high %v873, %v969
      %v1299 = vunpack.c.l.s4 1983009808
      %v1300 = vunpack.c.0.s8 %v1299
      %v1301 = vlaneseq
      %v1302 = vshrl.u32 %v1301, 7
      %v1303 = vsub.s32 %v1300, %v1302
      %v1304 = vrot.slane %v1296, %v1303
      %v1306 = vunpack.c.l.s4 1983009808
      %v1307 = vunpack.c.0.s8 %v1306
      %v1308 = vlaneseq
      %v1309 = vshrl.u32 %v1308, 7
      %v1310 = vsub.s32 %v1307, %v1309
      %v1311 = vrot.slane %v1297, %v1310
      %v1312 = vcombine.low %v1288, %v1304
      %v1313 = vcombine.high %v1288, %v1304
      %v1315 = vunpack.c.l.s4 1934713408
      %v1316 = vunpack.c.0.s8 %v1315
      %v1317 = vlaneseq
      %v1318 = vshrl.u32 %v1317, 7
      %v1319 = vsub.s32 %v1316, %v1318
      %v1320 = vrot.slane %v1312, %v1319
      %v1322 = vunpack.c.l.s4 1934713408
      %v1323 = vunpack.c.0.s8 %v1322
      %v1324 = vlaneseq
      %v1325 = vshrl.u32 %v1324, 7
      %v1326 = vsub.s32 %v1323, %v1325
      %v1327 = vrot.slane %v1313, %v1326
      %v1328 = vcombine.low %v1295, %v1311
      %v1329 = vcombine.high %v1295, %v1311
      %v1331 = vunpack.c.l.s4 1934713408
      %v1332 = vunpack.c.0.s8 %v1331
      %v1333 = vlaneseq
      %v1334 = vshrl.u32 %v1333, 7
      %v1335 = vsub.s32 %v1332, %v1334
      %v1336 = vrot.slane %v1328, %v1335
      %v1338 = vunpack.c.l.s4 1934713408
      %v1339 = vunpack.c.0.s8 %v1338
      %v1340 = vlaneseq
      %v1341 = vshrl.u32 %v1340, 7
      %v1342 = vsub.s32 %v1339, %v1341
      %v1343 = vrot.slane %v1329, %v1342
      %v1344 = vcombine.high %v1320, 0.0
      %v1345 = vcombine.high %v1327, 0.0
      %v1346 = vcombine.high %v1336, 0.0
      %v1347 = vcombine.high %v1343, 0.0
      %v1348 = vcombine.low %v718, %v923
      %v1349 = vcombine.high %v718, %v923
      %v1351 = vunpack.c.l.s4 1983009808
      %v1352 = vunpack.c.0.s8 %v1351
      %v1353 = vlaneseq
      %v1354 = vshrl.u32 %v1353, 7
      %v1355 = vsub.s32 %v1352, %v1354
      %v1356 = vrot.slane %v1348, %v1355
      %v1358 = vunpack.c.l.s4 1983009808
      %v1359 = vunpack.c.0.s8 %v1358
      %v1360 = vlaneseq
      %v1361 = vshrl.u32 %v1360, 7
      %v1362 = vsub.s32 %v1359, %v1361
      %v1363 = vrot.slane %v1349, %v1362
      %v1364 = vcombine.low %v875, %v971
      %v1365 = vcombine.high %v875, %v971
      %v1367 = vunpack.c.l.s4 1983009808
      %v1368 = vunpack.c.0.s8 %v1367
      %v1369 = vlaneseq
      %v1370 = vshrl.u32 %v1369, 7
      %v1371 = vsub.s32 %v1368, %v1370
      %v1372 = vrot.slane %v1364, %v1371
      %v1374 = vunpack.c.l.s4 1983009808
      %v1375 = vunpack.c.0.s8 %v1374
      %v1376 = vlaneseq
      %v1377 = vshrl.u32 %v1376, 7
      %v1378 = vsub.s32 %v1375, %v1377
      %v1379 = vrot.slane %v1365, %v1378
      %v1380 = vcombine.low %v1356, %v1372
      %v1381 = vcombine.high %v1356, %v1372
      %v1383 = vunpack.c.l.s4 1934713408
      %v1384 = vunpack.c.0.s8 %v1383
      %v1385 = vlaneseq
      %v1386 = vshrl.u32 %v1385, 7
      %v1387 = vsub.s32 %v1384, %v1386
      %v1388 = vrot.slane %v1380, %v1387
      %v1390 = vunpack.c.l.s4 1934713408
      %v1391 = vunpack.c.0.s8 %v1390
      %v1392 = vlaneseq
      %v1393 = vshrl.u32 %v1392, 7
      %v1394 = vsub.s32 %v1391, %v1393
      %v1395 = vrot.slane %v1381, %v1394
      %v1396 = vcombine.low %v1363, %v1379
      %v1397 = vcombine.high %v1363, %v1379
      %v1399 = vunpack.c.l.s4 1934713408
      %v1400 = vunpack.c.0.s8 %v1399
      %v1401 = vlaneseq
      %v1402 = vshrl.u32 %v1401, 7
      %v1403 = vsub.s32 %v1400, %v1402
      %v1404 = vrot.slane %v1396, %v1403
      %v1406 = vunpack.c.l.s4 1934713408
      %v1407 = vunpack.c.0.s8 %v1406
      %v1408 = vlaneseq
      %v1409 = vshrl.u32 %v1408, 7
      %v1410 = vsub.s32 %v1407, %v1409
      %v1411 = vrot.slane %v1397, %v1410
      %v1412 = vcombine.high %v1388, 0.0
      %v1413 = vcombine.high %v1395, 0.0
      %v1414 = vcombine.high %v1404, 0.0
      %v1415 = vcombine.high %v1411, 0.0
      %v1416 = vcombine.low %v723, %v925
      %v1417 = vcombine.high %v723, %v925
      %v1419 = vunpack.c.l.s4 1983009808
      %v1420 = vunpack.c.0.s8 %v1419
      %v1421 = vlaneseq
      %v1422 = vshrl.u32 %v1421, 7
      %v1423 = vsub.s32 %v1420, %v1422
      %v1424 = vrot.slane %v1416, %v1423
      %v1426 = vunpack.c.l.s4 1983009808
      %v1427 = vunpack.c.0.s8 %v1426
      %v1428 = vlaneseq
      %v1429 = vshrl.u32 %v1428, 7
      %v1430 = vsub.s32 %v1427, %v1429
      %v1431 = vrot.slane %v1417, %v1430
      %v1432 = vcombine.low %v877, %v973
      %v1433 = vcombine.high %v877, %v973
      %v1435 = vunpack.c.l.s4 1983009808
      %v1436 = vunpack.c.0.s8 %v1435
      %v1437 = vlaneseq
      %v1438 = vshrl.u32 %v1437, 7
      %v1439 = vsub.s32 %v1436, %v1438
      %v1440 = vrot.slane %v1432, %v1439
      %v1442 = vunpack.c.l.s4 1983009808
      %v1443 = vunpack.c.0.s8 %v1442
      %v1444 = vlaneseq
      %v1445 = vshrl.u32 %v1444, 7
      %v1446 = vsub.s32 %v1443, %v1445
      %v1447 = vrot.slane %v1433, %v1446
      %v1448 = vcombine.low %v1424, %v1440
      %v1449 = vcombine.high %v1424, %v1440
      %v1451 = vunpack.c.l.s4 1934713408
      %v1452 = vunpack.c.0.s8 %v1451
      %v1453 = vlaneseq
      %v1454 = vshrl.u32 %v1453, 7
      %v1455 = vsub.s32 %v1452, %v1454
      %v1456 = vrot.slane %v1448, %v1455
      %v1458 = vunpack.c.l.s4 1934713408
      %v1459 = vunpack.c.0.s8 %v1458
      %v1460 = vlaneseq
      %v1461 = vshrl.u32 %v1460, 7
      %v1462 = vsub.s32 %v1459, %v1461
      %v1463 = vrot.slane %v1449, %v1462
      %v1464 = vcombine.low %v1431, %v1447
      %v1465 = vcombine.high %v1431, %v1447
      %v1467 = vunpack.c.l.s4 1934713408
      %v1468 = vunpack.c.0.s8 %v1467
      %v1469 = vlaneseq
      %v1470 = vshrl.u32 %v1469, 7
      %v1471 = vsub.s32 %v1468, %v1470
      %v1472 = vrot.slane %v1464, %v1471
      %v1474 = vunpack.c.l.s4 1934713408
      %v1475 = vunpack.c.0.s8 %v1474
      %v1476 = vlaneseq
      %v1477 = vshrl.u32 %v1476, 7
      %v1478 = vsub.s32 %v1475, %v1477
      %v1479 = vrot.slane %v1465, %v1478
      %v1480 = vcombine.high %v1456, 0.0
      %v1481 = vcombine.high %v1463, 0.0
      %v1482 = vcombine.high %v1472, 0.0
      %v1483 = vcombine.high %v1479, 0.0
      %v1484 = vcombine.low %v726, %v927
      %v1485 = vcombine.high %v726, %v927
      %v1487 = vunpack.c.l.s4 1983009808
      %v1488 = vunpack.c.0.s8 %v1487
      %v1489 = vlaneseq
      %v1490 = vshrl.u32 %v1489, 7
      %v1491 = vsub.s32 %v1488, %v1490
      %v1492 = vrot.slane %v1484, %v1491
      %v1494 = vunpack.c.l.s4 1983009808
      %v1495 = vunpack.c.0.s8 %v1494
      %v1496 = vlaneseq
      %v1497 = vshrl.u32 %v1496, 7
      %v1498 = vsub.s32 %v1495, %v1497
      %v1499 = vrot.slane %v1485, %v1498
      %v1500 = vcombine.low %v879, %v975
      %v1501 = vcombine.high %v879, %v975
      %v1503 = vunpack.c.l.s4 1983009808
      %v1504 = vunpack.c.0.s8 %v1503
      %v1505 = vlaneseq
      %v1506 = vshrl.u32 %v1505, 7
      %v1507 = vsub.s32 %v1504, %v1506
      %v1508 = vrot.slane %v1500, %v1507
      %v1510 = vunpack.c.l.s4 1983009808
      %v1511 = vunpack.c.0.s8 %v1510
      %v1512 = vlaneseq
      %v1513 = vshrl.u32 %v1512, 7
      %v1514 = vsub.s32 %v1511, %v1513
      %v1515 = vrot.slane %v1501, %v1514
      %v1516 = vcombine.low %v1492, %v1508
      %v1517 = vcombine.high %v1492, %v1508
      %v1519 = vunpack.c.l.s4 1934713408
      %v1520 = vunpack.c.0.s8 %v1519
      %v1521 = vlaneseq
      %v1522 = vshrl.u32 %v1521, 7
      %v1523 = vsub.s32 %v1520, %v1522
      %v1524 = vrot.slane %v1516, %v1523
      %v1526 = vunpack.c.l.s4 1934713408
      %v1527 = vunpack.c.0.s8 %v1526
      %v1528 = vlaneseq
      %v1529 = vshrl.u32 %v1528, 7
      %v1530 = vsub.s32 %v1527, %v1529
      %v1531 = vrot.slane %v1517, %v1530
      %v1532 = vcombine.low %v1499, %v1515
      %v1533 = vcombine.high %v1499, %v1515
      %v1535 = vunpack.c.l.s4 1934713408
      %v1536 = vunpack.c.0.s8 %v1535
      %v1537 = vlaneseq
      %v1538 = vshrl.u32 %v1537, 7
      %v1539 = vsub.s32 %v1536, %v1538
      %v1540 = vrot.slane %v1532, %v1539
      %v1542 = vunpack.c.l.s4 1934713408
      %v1543 = vunpack.c.0.s8 %v1542
      %v1544 = vlaneseq
      %v1545 = vshrl.u32 %v1544, 7
      %v1546 = vsub.s32 %v1543, %v1545
      %v1547 = vrot.slane %v1533, %v1546
      %v1548 = vcombine.high %v1524, 0.0
      %v1549 = vcombine.high %v1531, 0.0
      %v1550 = vcombine.high %v1540, 0.0
      %v1551 = vcombine.high %v1547, 0.0
      %v1552 = vcombine.low %v731, %v929
      %v1553 = vcombine.high %v731, %v929
      %v1555 = vunpack.c.l.s4 1983009808
      %v1556 = vunpack.c.0.s8 %v1555
      %v1557 = vlaneseq
      %v1558 = vshrl.u32 %v1557, 7
      %v1559 = vsub.s32 %v1556, %v1558
      %v1560 = vrot.slane %v1552, %v1559
      %v1562 = vunpack.c.l.s4 1983009808
      %v1563 = vunpack.c.0.s8 %v1562
      %v1564 = vlaneseq
      %v1565 = vshrl.u32 %v1564, 7
      %v1566 = vsub.s32 %v1563, %v1565
      %v1567 = vrot.slane %v1553, %v1566
      %v1568 = vcombine.low %v881, %v977
      %v1569 = vcombine.high %v881, %v977
      %v1571 = vunpack.c.l.s4 1983009808
      %v1572 = vunpack.c.0.s8 %v1571
      %v1573 = vlaneseq
      %v1574 = vshrl.u32 %v1573, 7
      %v1575 = vsub.s32 %v1572, %v1574
      %v1576 = vrot.slane %v1568, %v1575
      %v1578 = vunpack.c.l.s4 1983009808
      %v1579 = vunpack.c.0.s8 %v1578
      %v1580 = vlaneseq
      %v1581 = vshrl.u32 %v1580, 7
      %v1582 = vsub.s32 %v1579, %v1581
      %v1583 = vrot.slane %v1569, %v1582
      %v1584 = vcombine.low %v1560, %v1576
      %v1585 = vcombine.high %v1560, %v1576
      %v1587 = vunpack.c.l.s4 1934713408
      %v1588 = vunpack.c.0.s8 %v1587
      %v1589 = vlaneseq
      %v1590 = vshrl.u32 %v1589, 7
      %v1591 = vsub.s32 %v1588, %v1590
      %v1592 = vrot.slane %v1584, %v1591
      %v1594 = vunpack.c.l.s4 1934713408
      %v1595 = vunpack.c.0.s8 %v1594
      %v1596 = vlaneseq
      %v1597 = vshrl.u32 %v1596, 7
      %v1598 = vsub.s32 %v1595, %v1597
      %v1599 = vrot.slane %v1585, %v1598
      %v1600 = vcombine.low %v1567, %v1583
      %v1601 = vcombine.high %v1567, %v1583
      %v1603 = vunpack.c.l.s4 1934713408
      %v1604 = vunpack.c.0.s8 %v1603
      %v1605 = vlaneseq
      %v1606 = vshrl.u32 %v1605, 7
      %v1607 = vsub.s32 %v1604, %v1606
      %v1608 = vrot.slane %v1600, %v1607
      %v1610 = vunpack.c.l.s4 1934713408
      %v1611 = vunpack.c.0.s8 %v1610
      %v1612 = vlaneseq
      %v1613 = vshrl.u32 %v1612, 7
      %v1614 = vsub.s32 %v1611, %v1613
      %v1615 = vrot.slane %v1601, %v1614
      %v1616 = vcombine.high %v1592, 0.0
      %v1617 = vcombine.high %v1599, 0.0
      %v1618 = vcombine.high %v1608, 0.0
      %v1619 = vcombine.high %v1615, 0.0
      %v1620 = vcombine.low %v734, %v931
      %v1621 = vcombine.high %v734, %v931
      %v1623 = vunpack.c.l.s4 1983009808
      %v1624 = vunpack.c.0.s8 %v1623
      %v1625 = vlaneseq
      %v1626 = vshrl.u32 %v1625, 7
      %v1627 = vsub.s32 %v1624, %v1626
      %v1628 = vrot.slane %v1620, %v1627
      %v1630 = vunpack.c.l.s4 1983009808
      %v1631 = vunpack.c.0.s8 %v1630
      %v1632 = vlaneseq
      %v1633 = vshrl.u32 %v1632, 7
      %v1634 = vsub.s32 %v1631, %v1633
      %v1635 = vrot.slane %v1621, %v1634
      %v1636 = vcombine.low %v883, %v979
      %v1637 = vcombine.high %v883, %v979
      %v1639 = vunpack.c.l.s4 1983009808
      %v1640 = vunpack.c.0.s8 %v1639
      %v1641 = vlaneseq
      %v1642 = vshrl.u32 %v1641, 7
      %v1643 = vsub.s32 %v1640, %v1642
      %v1644 = vrot.slane %v1636, %v1643
      %v1646 = vunpack.c.l.s4 1983009808
      %v1647 = vunpack.c.0.s8 %v1646
      %v1648 = vlaneseq
      %v1649 = vshrl.u32 %v1648, 7
      %v1650 = vsub.s32 %v1647, %v1649
      %v1651 = vrot.slane %v1637, %v1650
      %v1652 = vcombine.low %v1628, %v1644
      %v1653 = vcombine.high %v1628, %v1644
      %v1655 = vunpack.c.l.s4 1934713408
      %v1656 = vunpack.c.0.s8 %v1655
      %v1657 = vlaneseq
      %v1658 = vshrl.u32 %v1657, 7
      %v1659 = vsub.s32 %v1656, %v1658
      %v1660 = vrot.slane %v1652, %v1659
      %v1662 = vunpack.c.l.s4 1934713408
      %v1663 = vunpack.c.0.s8 %v1662
      %v1664 = vlaneseq
      %v1665 = vshrl.u32 %v1664, 7
      %v1666 = vsub.s32 %v1663, %v1665
      %v1667 = vrot.slane %v1653, %v1666
      %v1668 = vcombine.low %v1635, %v1651
      %v1669 = vcombine.high %v1635, %v1651
      %v1671 = vunpack.c.l.s4 1934713408
      %v1672 = vunpack.c.0.s8 %v1671
      %v1673 = vlaneseq
      %v1674 = vshrl.u32 %v1673, 7
      %v1675 = vsub.s32 %v1672, %v1674
      %v1676 = vrot.slane %v1668, %v1675
      %v1678 = vunpack.c.l.s4 1934713408
      %v1679 = vunpack.c.0.s8 %v1678
      %v1680 = vlaneseq
      %v1681 = vshrl.u32 %v1680, 7
      %v1682 = vsub.s32 %v1679, %v1681
      %v1683 = vrot.slane %v1669, %v1682
      %v1684 = vcombine.high %v1660, 0.0
      %v1685 = vcombine.high %v1667, 0.0
      %v1686 = vcombine.high %v1676, 0.0
      %v1687 = vcombine.high %v1683, 0.0
      %v1688 = vcombine.low %v739, %v933
      %v1689 = vcombine.high %v739, %v933
      %v1691 = vunpack.c.l.s4 1983009808
      %v1692 = vunpack.c.0.s8 %v1691
      %v1693 = vlaneseq
      %v1694 = vshrl.u32 %v1693, 7
      %v1695 = vsub.s32 %v1692, %v1694
      %v1696 = vrot.slane %v1688, %v1695
      %v1698 = vunpack.c.l.s4 1983009808
      %v1699 = vunpack.c.0.s8 %v1698
      %v1700 = vlaneseq
      %v1701 = vshrl.u32 %v1700, 7
      %v1702 = vsub.s32 %v1699, %v1701
      %v1703 = vrot.slane %v1689, %v1702
      %v1704 = vcombine.low %v885, %v981
      %v1705 = vcombine.high %v885, %v981
      %v1707 = vunpack.c.l.s4 1983009808
      %v1708 = vunpack.c.0.s8 %v1707
      %v1709 = vlaneseq
      %v1710 = vshrl.u32 %v1709, 7
      %v1711 = vsub.s32 %v1708, %v1710
      %v1712 = vrot.slane %v1704, %v1711
      %v1714 = vunpack.c.l.s4 1983009808
      %v1715 = vunpack.c.0.s8 %v1714
      %v1716 = vlaneseq
      %v1717 = vshrl.u32 %v1716, 7
      %v1718 = vsub.s32 %v1715, %v1717
      %v1719 = vrot.slane %v1705, %v1718
      %v1720 = vcombine.low %v1696, %v1712
      %v1721 = vcombine.high %v1696, %v1712
      %v1723 = vunpack.c.l.s4 1934713408
      %v1724 = vunpack.c.0.s8 %v1723
      %v1725 = vlaneseq
      %v1726 = vshrl.u32 %v1725, 7
      %v1727 = vsub.s32 %v1724, %v1726
      %v1728 = vrot.slane %v1720, %v1727
      %v1730 = vunpack.c.l.s4 1934713408
      %v1731 = vunpack.c.0.s8 %v1730
      %v1732 = vlaneseq
      %v1733 = vshrl.u32 %v1732, 7
      %v1734 = vsub.s32 %v1731, %v1733
      %v1735 = vrot.slane %v1721, %v1734
      %v1736 = vcombine.low %v1703, %v1719
      %v1737 = vcombine.high %v1703, %v1719
      %v1739 = vunpack.c.l.s4 1934713408
      %v1740 = vunpack.c.0.s8 %v1739
      %v1741 = vlaneseq
      %v1742 = vshrl.u32 %v1741, 7
      %v1743 = vsub.s32 %v1740, %v1742
      %v1744 = vrot.slane %v1736, %v1743
      %v1746 = vunpack.c.l.s4 1934713408
      %v1747 = vunpack.c.0.s8 %v1746
      %v1748 = vlaneseq
      %v1749 = vshrl.u32 %v1748, 7
      %v1750 = vsub.s32 %v1747, %v1749
      %v1751 = vrot.slane %v1737, %v1750
      %v1752 = vcombine.high %v1728, 0.0
      %v1753 = vcombine.high %v1735, 0.0
      %v1754 = vcombine.high %v1744, 0.0
      %v1755 = vcombine.high %v1751, 0.0
      %v1756 = vcombine.low %v742, %v935
      %v1757 = vcombine.high %v742, %v935
      %v1759 = vunpack.c.l.s4 1983009808
      %v1760 = vunpack.c.0.s8 %v1759
      %v1761 = vlaneseq
      %v1762 = vshrl.u32 %v1761, 7
      %v1763 = vsub.s32 %v1760, %v1762
      %v1764 = vrot.slane %v1756, %v1763
      %v1766 = vunpack.c.l.s4 1983009808
      %v1767 = vunpack.c.0.s8 %v1766
      %v1768 = vlaneseq
      %v1769 = vshrl.u32 %v1768, 7
      %v1770 = vsub.s32 %v1767, %v1769
      %v1771 = vrot.slane %v1757, %v1770
      %v1772 = vcombine.low %v887, %v983
      %v1773 = vcombine.high %v887, %v983
      %v1775 = vunpack.c.l.s4 1983009808
      %v1776 = vunpack.c.0.s8 %v1775
      %v1777 = vlaneseq
      %v1778 = vshrl.u32 %v1777, 7
      %v1779 = vsub.s32 %v1776, %v1778
      %v1780 = vrot.slane %v1772, %v1779
      %v1782 = vunpack.c.l.s4 1983009808
      %v1783 = vunpack.c.0.s8 %v1782
      %v1784 = vlaneseq
      %v1785 = vshrl.u32 %v1784, 7
      %v1786 = vsub.s32 %v1783, %v1785
      %v1787 = vrot.slane %v1773, %v1786
      %v1788 = vcombine.low %v1764, %v1780
      %v1789 = vcombine.high %v1764, %v1780
      %v1791 = vunpack.c.l.s4 1934713408
      %v1792 = vunpack.c.0.s8 %v1791
      %v1793 = vlaneseq
      %v1794 = vshrl.u32 %v1793, 7
      %v1795 = vsub.s32 %v1792, %v1794
      %v1796 = vrot.slane %v1788, %v1795
      %v1798 = vunpack.c.l.s4 1934713408
      %v1799 = vunpack.c.0.s8 %v1798
      %v1800 = vlaneseq
      %v1801 = vshrl.u32 %v1800, 7
      %v1802 = vsub.s32 %v1799, %v1801
      %v1803 = vrot.slane %v1789, %v1802
      %v1804 = vcombine.low %v1771, %v1787
      %v1805 = vcombine.high %v1771, %v1787
      %v1807 = vunpack.c.l.s4 1934713408
      %v1808 = vunpack.c.0.s8 %v1807
      %v1809 = vlaneseq
      %v1810 = vshrl.u32 %v1809, 7
      %v1811 = vsub.s32 %v1808, %v1810
      %v1812 = vrot.slane %v1804, %v1811
      %v1814 = vunpack.c.l.s4 1934713408
      %v1815 = vunpack.c.0.s8 %v1814
      %v1816 = vlaneseq
      %v1817 = vshrl.u32 %v1816, 7
      %v1818 = vsub.s32 %v1815, %v1817
      %v1819 = vrot.slane %v1805, %v1818
      %v1820 = vcombine.high %v1796, 0.0
      %v1821 = vcombine.high %v1803, 0.0
      %v1822 = vcombine.high %v1812, 0.0
      %v1823 = vcombine.high %v1819, 0.0
      %v1824 = vcombine.low %v747, %v937
      %v1825 = vcombine.high %v747, %v937
      %v1827 = vunpack.c.l.s4 1983009808
      %v1828 = vunpack.c.0.s8 %v1827
      %v1829 = vlaneseq
      %v1830 = vshrl.u32 %v1829, 7
      %v1831 = vsub.s32 %v1828, %v1830
      %v1832 = vrot.slane %v1824, %v1831
      %v1834 = vunpack.c.l.s4 1983009808
      %v1835 = vunpack.c.0.s8 %v1834
      %v1836 = vlaneseq
      %v1837 = vshrl.u32 %v1836, 7
      %v1838 = vsub.s32 %v1835, %v1837
      %v1839 = vrot.slane %v1825, %v1838
      %v1840 = vcombine.low %v889, %v985
      %v1841 = vcombine.high %v889, %v985
      %v1843 = vunpack.c.l.s4 1983009808
      %v1844 = vunpack.c.0.s8 %v1843
      %v1845 = vlaneseq
      %v1846 = vshrl.u32 %v1845, 7
      %v1847 = vsub.s32 %v1844, %v1846
      %v1848 = vrot.slane %v1840, %v1847
      %v1850 = vunpack.c.l.s4 1983009808
      %v1851 = vunpack.c.0.s8 %v1850
      %v1852 = vlaneseq
      %v1853 = vshrl.u32 %v1852, 7
      %v1854 = vsub.s32 %v1851, %v1853
      %v1855 = vrot.slane %v1841, %v1854
      %v1856 = vcombine.low %v1832, %v1848
      %v1857 = vcombine.high %v1832, %v1848
      %v1859 = vunpack.c.l.s4 1934713408
      %v1860 = vunpack.c.0.s8 %v1859
      %v1861 = vlaneseq
      %v1862 = vshrl.u32 %v1861, 7
      %v1863 = vsub.s32 %v1860, %v1862
      %v1864 = vrot.slane %v1856, %v1863
      %v1866 = vunpack.c.l.s4 1934713408
      %v1867 = vunpack.c.0.s8 %v1866
      %v1868 = vlaneseq
      %v1869 = vshrl.u32 %v1868, 7
      %v1870 = vsub.s32 %v1867, %v1869
      %v1871 = vrot.slane %v1857, %v1870
      %v1872 = vcombine.low %v1839, %v1855
      %v1873 = vcombine.high %v1839, %v1855
      %v1875 = vunpack.c.l.s4 1934713408
      %v1876 = vunpack.c.0.s8 %v1875
      %v1877 = vlaneseq
      %v1878 = vshrl.u32 %v1877, 7
      %v1879 = vsub.s32 %v1876, %v1878
      %v1880 = vrot.slane %v1872, %v1879
      %v1882 = vunpack.c.l.s4 1934713408
      %v1883 = vunpack.c.0.s8 %v1882
      %v1884 = vlaneseq
      %v1885 = vshrl.u32 %v1884, 7
      %v1886 = vsub.s32 %v1883, %v1885
      %v1887 = vrot.slane %v1873, %v1886
      %v1888 = vcombine.high %v1864, 0.0
      %v1889 = vcombine.high %v1871, 0.0
      %v1890 = vcombine.high %v1880, 0.0
      %v1891 = vcombine.high %v1887, 0.0
      %v1892 = vcombine.low %v750, %v939
      %v1893 = vcombine.high %v750, %v939
      %v1895 = vunpack.c.l.s4 1983009808
      %v1896 = vunpack.c.0.s8 %v1895
      %v1897 = vlaneseq
      %v1898 = vshrl.u32 %v1897, 7
      %v1899 = vsub.s32 %v1896, %v1898
      %v1900 = vrot.slane %v1892, %v1899
      %v1902 = vunpack.c.l.s4 1983009808
      %v1903 = vunpack.c.0.s8 %v1902
      %v1904 = vlaneseq
      %v1905 = vshrl.u32 %v1904, 7
      %v1906 = vsub.s32 %v1903, %v1905
      %v1907 = vrot.slane %v1893, %v1906
      %v1908 = vcombine.low %v891, %v987
      %v1909 = vcombine.high %v891, %v987
      %v1911 = vunpack.c.l.s4 1983009808
      %v1912 = vunpack.c.0.s8 %v1911
      %v1913 = vlaneseq
      %v1914 = vshrl.u32 %v1913, 7
      %v1915 = vsub.s32 %v1912, %v1914
      %v1916 = vrot.slane %v1908, %v1915
      %v1918 = vunpack.c.l.s4 1983009808
      %v1919 = vunpack.c.0.s8 %v1918
      %v1920 = vlaneseq
      %v1921 = vshrl.u32 %v1920, 7
      %v1922 = vsub.s32 %v1919, %v1921
      %v1923 = vrot.slane %v1909, %v1922
      %v1924 = vcombine.low %v1900, %v1916
      %v1925 = vcombine.high %v1900, %v1916
      %v1927 = vunpack.c.l.s4 1934713408
      %v1928 = vunpack.c.0.s8 %v1927
      %v1929 = vlaneseq
      %v1930 = vshrl.u32 %v1929, 7
      %v1931 = vsub.s32 %v1928, %v1930
      %v1932 = vrot.slane %v1924, %v1931
      %v1934 = vunpack.c.l.s4 1934713408
      %v1935 = vunpack.c.0.s8 %v1934
      %v1936 = vlaneseq
      %v1937 = vshrl.u32 %v1936, 7
      %v1938 = vsub.s32 %v1935, %v1937
      %v1939 = vrot.slane %v1925, %v1938
      %v1940 = vcombine.low %v1907, %v1923
      %v1941 = vcombine.high %v1907, %v1923
      %v1943 = vunpack.c.l.s4 1934713408
      %v1944 = vunpack.c.0.s8 %v1943
      %v1945 = vlaneseq
      %v1946 = vshrl.u32 %v1945, 7
      %v1947 = vsub.s32 %v1944, %v1946
      %v1948 = vrot.slane %v1940, %v1947
      %v1950 = vunpack.c.l.s4 1934713408
      %v1951 = vunpack.c.0.s8 %v1950
      %v1952 = vlaneseq
      %v1953 = vshrl.u32 %v1952, 7
      %v1954 = vsub.s32 %v1951, %v1953
      %v1955 = vrot.slane %v1941, %v1954
      %v1956 = vcombine.high %v1932, 0.0
      %v1957 = vcombine.high %v1939, 0.0
      %v1958 = vcombine.high %v1948, 0.0
      %v1959 = vcombine.high %v1955, 0.0
      %v1960 = vcombine.low %v755, %v941
      %v1961 = vcombine.high %v755, %v941
      %v1963 = vunpack.c.l.s4 1983009808
      %v1964 = vunpack.c.0.s8 %v1963
      %v1965 = vlaneseq
      %v1966 = vshrl.u32 %v1965, 7
      %v1967 = vsub.s32 %v1964, %v1966
      %v1968 = vrot.slane %v1960, %v1967
      %v1970 = vunpack.c.l.s4 1983009808
      %v1971 = vunpack.c.0.s8 %v1970
      %v1972 = vlaneseq
      %v1973 = vshrl.u32 %v1972, 7
      %v1974 = vsub.s32 %v1971, %v1973
      %v1975 = vrot.slane %v1961, %v1974
      %v1976 = vcombine.low %v893, %v989
      %v1977 = vcombine.high %v893, %v989
      %v1979 = vunpack.c.l.s4 1983009808
      %v1980 = vunpack.c.0.s8 %v1979
      %v1981 = vlaneseq
      %v1982 = vshrl.u32 %v1981, 7
      %v1983 = vsub.s32 %v1980, %v1982
      %v1984 = vrot.slane %v1976, %v1983
      %v1986 = vunpack.c.l.s4 1983009808
      %v1987 = vunpack.c.0.s8 %v1986
      %v1988 = vlaneseq
      %v1989 = vshrl.u32 %v1988, 7
      %v1990 = vsub.s32 %v1987, %v1989
      %v1991 = vrot.slane %v1977, %v1990
      %v1992 = vcombine.low %v1968, %v1984
      %v1993 = vcombine.high %v1968, %v1984
      %v1995 = vunpack.c.l.s4 1934713408
      %v1996 = vunpack.c.0.s8 %v1995
      %v1997 = vlaneseq
      %v1998 = vshrl.u32 %v1997, 7
      %v1999 = vsub.s32 %v1996, %v1998
      %v2000 = vrot.slane %v1992, %v1999
      %v2002 = vunpack.c.l.s4 1934713408
      %v2003 = vunpack.c.0.s8 %v2002
      %v2004 = vlaneseq
      %v2005 = vshrl.u32 %v2004, 7
      %v2006 = vsub.s32 %v2003, %v2005
      %v2007 = vrot.slane %v1993, %v2006
      %v2008 = vcombine.low %v1975, %v1991
      %v2009 = vcombine.high %v1975, %v1991
      %v2011 = vunpack.c.l.s4 1934713408
      %v2012 = vunpack.c.0.s8 %v2011
      %v2013 = vlaneseq
      %v2014 = vshrl.u32 %v2013, 7
      %v2015 = vsub.s32 %v2012, %v2014
      %v2016 = vrot.slane %v2008, %v2015
      %v2018 = vunpack.c.l.s4 1934713408
      %v2019 = vunpack.c.0.s8 %v2018
      %v2020 = vlaneseq
      %v2021 = vshrl.u32 %v2020, 7
      %v2022 = vsub.s32 %v2019, %v2021
      %v2023 = vrot.slane %v2009, %v2022
      %v2024 = vcombine.high %v2000, 0.0
      %v2025 = vcombine.high %v2007, 0.0
      %v2026 = vcombine.high %v2016, 0.0
      %v2027 = vcombine.high %v2023, 0.0
      %v2028 = vcombine.low %v758, %v943
      %v2029 = vcombine.high %v758, %v943
      %v2031 = vunpack.c.l.s4 1983009808
      %v2032 = vunpack.c.0.s8 %v2031
      %v2033 = vlaneseq
      %v2034 = vshrl.u32 %v2033, 7
      %v2035 = vsub.s32 %v2032, %v2034
      %v2036 = vrot.slane %v2028, %v2035
      %v2038 = vunpack.c.l.s4 1983009808
      %v2039 = vunpack.c.0.s8 %v2038
      %v2040 = vlaneseq
      %v2041 = vshrl.u32 %v2040, 7
      %v2042 = vsub.s32 %v2039, %v2041
      %v2043 = vrot.slane %v2029, %v2042
      %v2044 = vcombine.low %v895, %v991
      %v2045 = vcombine.high %v895, %v991
      %v2047 = vunpack.c.l.s4 1983009808
      %v2048 = vunpack.c.0.s8 %v2047
      %v2049 = vlaneseq
      %v2050 = vshrl.u32 %v2049, 7
      %v2051 = vsub.s32 %v2048, %v2050
      %v2052 = vrot.slane %v2044, %v2051
      %v2054 = vunpack.c.l.s4 1983009808
      %v2055 = vunpack.c.0.s8 %v2054
      %v2056 = vlaneseq
      %v2057 = vshrl.u32 %v2056, 7
      %v2058 = vsub.s32 %v2055, %v2057
      %v2059 = vrot.slane %v2045, %v2058
      %v2060 = vcombine.low %v2036, %v2052
      %v2061 = vcombine.high %v2036, %v2052
      %v2063 = vunpack.c.l.s4 1934713408
      %v2064 = vunpack.c.0.s8 %v2063
      %v2065 = vlaneseq
      %v2066 = vshrl.u32 %v2065, 7
      %v2067 = vsub.s32 %v2064, %v2066
      %v2068 = vrot.slane %v2060, %v2067
      %v2070 = vunpack.c.l.s4 1934713408
      %v2071 = vunpack.c.0.s8 %v2070
      %v2072 = vlaneseq
      %v2073 = vshrl.u32 %v2072, 7
      %v2074 = vsub.s32 %v2071, %v2073
      %v2075 = vrot.slane %v2061, %v2074
      %v2076 = vcombine.low %v2043, %v2059
      %v2077 = vcombine.high %v2043, %v2059
      %v2079 = vunpack.c.l.s4 1934713408
      %v2080 = vunpack.c.0.s8 %v2079
      %v2081 = vlaneseq
      %v2082 = vshrl.u32 %v2081, 7
      %v2083 = vsub.s32 %v2080, %v2082
      %v2084 = vrot.slane %v2076, %v2083
      %v2086 = vunpack.c.l.s4 1934713408
      %v2087 = vunpack.c.0.s8 %v2086
      %v2088 = vlaneseq
      %v2089 = vshrl.u32 %v2088, 7
      %v2090 = vsub.s32 %v2087, %v2089
      %v2091 = vrot.slane %v2077, %v2090
      %v2092 = vcombine.high %v2068, 0.0
      %v2093 = vcombine.high %v2075, 0.0
      %v2094 = vcombine.high %v2084, 0.0
      %v2095 = vcombine.high %v2091, 0.0
      %v2096 = vpack.c.bf16 %v1048, %v1048
      %v2097 = vpack.c.bf16 %v1072, %v1072
      %v2098 = vpack.c.bf16 %v1055, %v1055
      %v2099 = vpack.c.bf16 %v1073, %v1073
      %v2100 = vpack.c.bf16 %v1064, %v1064
      %v2101 = vpack.c.bf16 %v1074, %v1074
      %v2102 = vpack.c.bf16 %v1071, %v1071
      %v2103 = vpack.c.bf16 %v1075, %v1075
      %v2104 = vpack.c.bf16 %v1116, %v1116
      %v2105 = vpack.c.bf16 %v1140, %v1140
      %v2106 = vpack.c.bf16 %v1123, %v1123
      %v2107 = vpack.c.bf16 %v1141, %v1141
      %v2108 = vpack.c.bf16 %v1132, %v1132
      %v2109 = vpack.c.bf16 %v1142, %v1142
      %v2110 = vpack.c.bf16 %v1139, %v1139
      %v2111 = vpack.c.bf16 %v1143, %v1143
      %v2112 = vpack.c.bf16 %v1184, %v1184
      %v2113 = vpack.c.bf16 %v1208, %v1208
      %v2114 = vpack.c.bf16 %v1191, %v1191
      %v2115 = vpack.c.bf16 %v1209, %v1209
      %v2116 = vpack.c.bf16 %v1200, %v1200
      %v2117 = vpack.c.bf16 %v1210, %v1210
      %v2118 = vpack.c.bf16 %v1207, %v1207
      %v2119 = vpack.c.bf16 %v1211, %v1211
      %v2120 = vpack.c.bf16 %v1252, %v1252
      %v2121 = vpack.c.bf16 %v1276, %v1276
      %v2122 = vpack.c.bf16 %v1259, %v1259
      %v2123 = vpack.c.bf16 %v1277, %v1277
      %v2124 = vpack.c.bf16 %v1268, %v1268
      %v2125 = vpack.c.bf16 %v1278, %v1278
      %v2126 = vpack.c.bf16 %v1275, %v1275
      %v2127 = vpack.c.bf16 %v1279, %v1279
      %v2128 = vpack.c.bf16 %v1320, %v1320
      %v2129 = vpack.c.bf16 %v1344, %v1344
      %v2130 = vpack.c.bf16 %v1327, %v1327
      %v2131 = vpack.c.bf16 %v1345, %v1345
      %v2132 = vpack.c.bf16 %v1336, %v1336
      %v2133 = vpack.c.bf16 %v1346, %v1346
      %v2134 = vpack.c.bf16 %v1343, %v1343
      %v2135 = vpack.c.bf16 %v1347, %v1347
      %v2136 = vpack.c.bf16 %v1388, %v1388
      %v2137 = vpack.c.bf16 %v1412, %v1412
      %v2138 = vpack.c.bf16 %v1395, %v1395
      %v2139 = vpack.c.bf16 %v1413, %v1413
      %v2140 = vpack.c.bf16 %v1404, %v1404
      %v2141 = vpack.c.bf16 %v1414, %v1414
      %v2142 = vpack.c.bf16 %v1411, %v1411
      %v2143 = vpack.c.bf16 %v1415, %v1415
      %v2144 = vpack.c.bf16 %v1456, %v1456
      %v2145 = vpack.c.bf16 %v1480, %v1480
      %v2146 = vpack.c.bf16 %v1463, %v1463
      %v2147 = vpack.c.bf16 %v1481, %v1481
      %v2148 = vpack.c.bf16 %v1472, %v1472
      %v2149 = vpack.c.bf16 %v1482, %v1482
      %v2150 = vpack.c.bf16 %v1479, %v1479
      %v2151 = vpack.c.bf16 %v1483, %v1483
      %v2152 = vpack.c.bf16 %v1524, %v1524
      %v2153 = vpack.c.bf16 %v1548, %v1548
      %v2154 = vpack.c.bf16 %v1531, %v1531
      %v2155 = vpack.c.bf16 %v1549, %v1549
      %v2156 = vpack.c.bf16 %v1540, %v1540
      %v2157 = vpack.c.bf16 %v1550, %v1550
      %v2158 = vpack.c.bf16 %v1547, %v1547
      %v2159 = vpack.c.bf16 %v1551, %v1551
      %v2160 = vpack.c.bf16 %v1592, %v1592
      %v2161 = vpack.c.bf16 %v1616, %v1616
      %v2162 = vpack.c.bf16 %v1599, %v1599
      %v2163 = vpack.c.bf16 %v1617, %v1617
      %v2164 = vpack.c.bf16 %v1608, %v1608
      %v2165 = vpack.c.bf16 %v1618, %v1618
      %v2166 = vpack.c.bf16 %v1615, %v1615
      %v2167 = vpack.c.bf16 %v1619, %v1619
      %v2168 = vpack.c.bf16 %v1660, %v1660
      %v2169 = vpack.c.bf16 %v1684, %v1684
      %v2170 = vpack.c.bf16 %v1667, %v1667
      %v2171 = vpack.c.bf16 %v1685, %v1685
      %v2172 = vpack.c.bf16 %v1676, %v1676
      %v2173 = vpack.c.bf16 %v1686, %v1686
      %v2174 = vpack.c.bf16 %v1683, %v1683
      %v2175 = vpack.c.bf16 %v1687, %v1687
      %v2176 = vpack.c.bf16 %v1728, %v1728
      %v2177 = vpack.c.bf16 %v1752, %v1752
      %v2178 = vpack.c.bf16 %v1735, %v1735
      %v2179 = vpack.c.bf16 %v1753, %v1753
      %v2180 = vpack.c.bf16 %v1744, %v1744
      %v2181 = vpack.c.bf16 %v1754, %v1754
      %v2182 = vpack.c.bf16 %v1751, %v1751
      %v2183 = vpack.c.bf16 %v1755, %v1755
      %v2184 = vpack.c.bf16 %v1796, %v1796
      %v2185 = vpack.c.bf16 %v1820, %v1820
      %v2186 = vpack.c.bf16 %v1803, %v1803
      %v2187 = vpack.c.bf16 %v1821, %v1821
      %v2188 = vpack.c.bf16 %v1812, %v1812
      %v2189 = vpack.c.bf16 %v1822, %v1822
      %v2190 = vpack.c.bf16 %v1819, %v1819
      %v2191 = vpack.c.bf16 %v1823, %v1823
      %v2192 = vpack.c.bf16 %v1864, %v1864
      %v2193 = vpack.c.bf16 %v1888, %v1888
      %v2194 = vpack.c.bf16 %v1871, %v1871
      %v2195 = vpack.c.bf16 %v1889, %v1889
      %v2196 = vpack.c.bf16 %v1880, %v1880
      %v2197 = vpack.c.bf16 %v1890, %v1890
      %v2198 = vpack.c.bf16 %v1887, %v1887
      %v2199 = vpack.c.bf16 %v1891, %v1891
      %v2200 = vpack.c.bf16 %v1932, %v1932
      %v2201 = vpack.c.bf16 %v1956, %v1956
      %v2202 = vpack.c.bf16 %v1939, %v1939
      %v2203 = vpack.c.bf16 %v1957, %v1957
      %v2204 = vpack.c.bf16 %v1948, %v1948
      %v2205 = vpack.c.bf16 %v1958, %v1958
      %v2206 = vpack.c.bf16 %v1955, %v1955
      %v2207 = vpack.c.bf16 %v1959, %v1959
      %v2208 = vpack.c.bf16 %v2000, %v2000
      %v2209 = vpack.c.bf16 %v2024, %v2024
      %v2210 = vpack.c.bf16 %v2007, %v2007
      %v2211 = vpack.c.bf16 %v2025, %v2025
      %v2212 = vpack.c.bf16 %v2016, %v2016
      %v2213 = vpack.c.bf16 %v2026, %v2026
      %v2214 = vpack.c.bf16 %v2023, %v2023
      %v2215 = vpack.c.bf16 %v2027, %v2027
      %v2216 = vpack.c.bf16 %v2068, %v2068
      %v2217 = vpack.c.bf16 %v2092, %v2092
      %v2218 = vpack.c.bf16 %v2075, %v2075
      %v2219 = vpack.c.bf16 %v2093, %v2093
      %v2220 = vpack.c.bf16 %v2084, %v2084
      %v2221 = vpack.c.bf16 %v2094, %v2094
      %v2222 = vpack.c.bf16 %v2091, %v2091
      %v2223 = vpack.c.bf16 %v2095, %v2095
      %2224 = vrot.lane.b32.xlu0 %v699, 96
      %v2225 = vpop.permute.xlu0 %2224
      %2226 = vrot.lane.b32.xlu0 %v702, 96
      %v2227 = vpop.permute.xlu0 %2226
      %2228 = vrot.lane.b32.xlu0 %v707, 96
      %v2229 = vpop.permute.xlu0 %2228
      %2230 = vrot.lane.b32.xlu0 %v710, 96
      %v2231 = vpop.permute.xlu0 %2230
      %2232 = vrot.lane.b32.xlu0 %v715, 96
      %v2233 = vpop.permute.xlu0 %2232
      %2234 = vrot.lane.b32.xlu0 %v718, 96
      %v2235 = vpop.permute.xlu0 %2234
      %2236 = vrot.lane.b32.xlu0 %v723, 96
      %v2237 = vpop.permute.xlu0 %2236
      %2238 = vrot.lane.b32.xlu0 %v726, 96
      %v2239 = vpop.permute.xlu0 %2238
      %2240 = vrot.lane.b32.xlu0 %v731, 96
      %v2241 = vpop.permute.xlu0 %2240
      %2242 = vrot.lane.b32.xlu0 %v734, 96
      %v2243 = vpop.permute.xlu0 %2242
      %2244 = vrot.lane.b32.xlu0 %v739, 96
      %v2245 = vpop.permute.xlu0 %2244
      %2246 = vrot.lane.b32.xlu0 %v742, 96
      %v2247 = vpop.permute.xlu0 %2246
      %2248 = vrot.lane.b32.xlu0 %v747, 96
      %v2249 = vpop.permute.xlu0 %2248
      %2250 = vrot.lane.b32.xlu0 %v750, 96
      %v2251 = vpop.permute.xlu0 %2250
      %2252 = vrot.lane.b32.xlu0 %v755, 96
      %v2253 = vpop.permute.xlu0 %2252
      %2254 = vrot.lane.b32.xlu0 %v758, 96
      %v2255 = vpop.permute.xlu0 %2254
      %2256 = vrot.lane.b32.xlu0 %v865, 96
      %v2257 = vpop.permute.xlu0 %2256
      %2258 = vrot.lane.b32.xlu0 %v867, 96
      %v2259 = vpop.permute.xlu0 %2258
      %2260 = vrot.lane.b32.xlu0 %v869, 96
      %v2261 = vpop.permute.xlu0 %2260
      %2262 = vrot.lane.b32.xlu0 %v871, 96
      %v2263 = vpop.permute.xlu0 %2262
      %2264 = vrot.lane.b32.xlu0 %v873, 96
      %v2265 = vpop.permute.xlu0 %2264
      %2266 = vrot.lane.b32.xlu0 %v875, 96
      %v2267 = vpop.permute.xlu0 %2266
      %2268 = vrot.lane.b32.xlu0 %v877, 96
      %v2269 = vpop.permute.xlu0 %2268
      %2270 = vrot.lane.b32.xlu0 %v879, 96
      %v2271 = vpop.permute.xlu0 %2270
      %2272 = vrot.lane.b32.xlu0 %v881, 96
      %v2273 = vpop.permute.xlu0 %2272
      %2274 = vrot.lane.b32.xlu0 %v883, 96
      %v2275 = vpop.permute.xlu0 %2274
      %2276 = vrot.lane.b32.xlu0 %v885, 96
      %v2277 = vpop.permute.xlu0 %2276
      %2278 = vrot.lane.b32.xlu0 %v887, 96
      %v2279 = vpop.permute.xlu0 %2278
      %2280 = vrot.lane.b32.xlu0 %v889, 96
      %v2281 = vpop.permute.xlu0 %2280
      %2282 = vrot.lane.b32.xlu0 %v891, 96
      %v2283 = vpop.permute.xlu0 %2282
      %2284 = vrot.lane.b32.xlu0 %v893, 96
      %v2285 = vpop.permute.xlu0 %2284
      %2286 = vrot.lane.b32.xlu0 %v895, 96
      %v2287 = vpop.permute.xlu0 %2286
      %2288 = vrot.lane.b32.xlu0 %v913, 96
      %v2289 = vpop.permute.xlu0 %2288
      %2290 = vrot.lane.b32.xlu0 %v915, 96
      %v2291 = vpop.permute.xlu0 %2290
      %2292 = vrot.lane.b32.xlu0 %v917, 96
      %v2293 = vpop.permute.xlu0 %2292
      %2294 = vrot.lane.b32.xlu0 %v919, 96
      %v2295 = vpop.permute.xlu0 %2294
      %2296 = vrot.lane.b32.xlu0 %v921, 96
      %v2297 = vpop.permute.xlu0 %2296
      %2298 = vrot.lane.b32.xlu0 %v923, 96
      %v2299 = vpop.permute.xlu0 %2298
      %2300 = vrot.lane.b32.xlu0 %v925, 96
      %v2301 = vpop.permute.xlu0 %2300
      %2302 = vrot.lane.b32.xlu0 %v927, 96
      %v2303 = vpop.permute.xlu0 %2302
      %2304 = vrot.lane.b32.xlu0 %v929, 96
      %v2305 = vpop.permute.xlu0 %2304
      %2306 = vrot.lane.b32.xlu0 %v931, 96
      %v2307 = vpop.permute.xlu0 %2306
      %2308 = vrot.lane.b32.xlu0 %v933, 96
      %v2309 = vpop.permute.xlu0 %2308
      %2310 = vrot.lane.b32.xlu0 %v935, 96
      %v2311 = vpop.permute.xlu0 %2310
      %2312 = vrot.lane.b32.xlu0 %v937, 96
      %v2313 = vpop.permute.xlu0 %2312
      %2314 = vrot.lane.b32.xlu0 %v939, 96
      %v2315 = vpop.permute.xlu0 %2314
      %2316 = vrot.lane.b32.xlu0 %v941, 96
      %v2317 = vpop.permute.xlu0 %2316
      %2318 = vrot.lane.b32.xlu0 %v943, 96
      %v2319 = vpop.permute.xlu0 %2318
      %2320 = vrot.lane.b32.xlu0 %v961, 96
      %v2321 = vpop.permute.xlu0 %2320
      %2322 = vrot.lane.b32.xlu0 %v963, 96
      %v2323 = vpop.permute.xlu0 %2322
      %2324 = vrot.lane.b32.xlu0 %v965, 96
      %v2325 = vpop.permute.xlu0 %2324
      %2326 = vrot.lane.b32.xlu0 %v967, 96
      %v2327 = vpop.permute.xlu0 %2326
      %2328 = vrot.lane.b32.xlu0 %v969, 96
      %v2329 = vpop.permute.xlu0 %2328
      %2330 = vrot.lane.b32.xlu0 %v971, 96
      %v2331 = vpop.permute.xlu0 %2330
      %2332 = vrot.lane.b32.xlu0 %v973, 96
      %v2333 = vpop.permute.xlu0 %2332
      %2334 = vrot.lane.b32.xlu0 %v975, 96
      %v2335 = vpop.permute.xlu0 %2334
      %2336 = vrot.lane.b32.xlu0 %v977, 96
      %v2337 = vpop.permute.xlu0 %2336
      %2338 = vrot.lane.b32.xlu0 %v979, 96
      %v2339 = vpop.permute.xlu0 %2338
      %2340 = vrot.lane.b32.xlu0 %v981, 96
      %v2341 = vpop.permute.xlu0 %2340
      %2342 = vrot.lane.b32.xlu0 %v983, 96
      %v2343 = vpop.permute.xlu0 %2342
      %2344 = vrot.lane.b32.xlu0 %v985, 96
      %v2345 = vpop.permute.xlu0 %2344
      %2346 = vrot.lane.b32.xlu0 %v987, 96
      %v2347 = vpop.permute.xlu0 %2346
      %2348 = vrot.lane.b32.xlu0 %v989, 96
      %v2349 = vpop.permute.xlu0 %2348
      %2350 = vrot.lane.b32.xlu0 %v991, 96
      %v2351 = vpop.permute.xlu0 %2350
      %v2416 = vcombine.low %v2225, %v2289
      %v2417 = vcombine.high %v2225, %v2289
      %v2419 = vunpack.c.l.s4 1983009808
      %v2420 = vunpack.c.0.s8 %v2419
      %v2421 = vlaneseq
      %v2422 = vshrl.u32 %v2421, 7
      %v2423 = vsub.s32 %v2420, %v2422
      %v2424 = vrot.slane %v2416, %v2423
      %v2426 = vunpack.c.l.s4 1983009808
      %v2427 = vunpack.c.0.s8 %v2426
      %v2428 = vlaneseq
      %v2429 = vshrl.u32 %v2428, 7
      %v2430 = vsub.s32 %v2427, %v2429
      %v2431 = vrot.slane %v2417, %v2430
      %v2432 = vcombine.low %v2257, %v2321
      %v2433 = vcombine.high %v2257, %v2321
      %v2435 = vunpack.c.l.s4 1983009808
      %v2436 = vunpack.c.0.s8 %v2435
      %v2437 = vlaneseq
      %v2438 = vshrl.u32 %v2437, 7
      %v2439 = vsub.s32 %v2436, %v2438
      %v2440 = vrot.slane %v2432, %v2439
      %v2442 = vunpack.c.l.s4 1983009808
      %v2443 = vunpack.c.0.s8 %v2442
      %v2444 = vlaneseq
      %v2445 = vshrl.u32 %v2444, 7
      %v2446 = vsub.s32 %v2443, %v2445
      %v2447 = vrot.slane %v2433, %v2446
      %v2448 = vcombine.low %v2424, %v2440
      %v2449 = vcombine.high %v2424, %v2440
      %v2451 = vunpack.c.l.s4 1934713408
      %v2452 = vunpack.c.0.s8 %v2451
      %v2453 = vlaneseq
      %v2454 = vshrl.u32 %v2453, 7
      %v2455 = vsub.s32 %v2452, %v2454
      %v2456 = vrot.slane %v2448, %v2455
      %v2458 = vunpack.c.l.s4 1934713408
      %v2459 = vunpack.c.0.s8 %v2458
      %v2460 = vlaneseq
      %v2461 = vshrl.u32 %v2460, 7
      %v2462 = vsub.s32 %v2459, %v2461
      %v2463 = vrot.slane %v2449, %v2462
      %v2464 = vcombine.low %v2431, %v2447
      %v2465 = vcombine.high %v2431, %v2447
      %v2467 = vunpack.c.l.s4 1934713408
      %v2468 = vunpack.c.0.s8 %v2467
      %v2469 = vlaneseq
      %v2470 = vshrl.u32 %v2469, 7
      %v2471 = vsub.s32 %v2468, %v2470
      %v2472 = vrot.slane %v2464, %v2471
      %v2474 = vunpack.c.l.s4 1934713408
      %v2475 = vunpack.c.0.s8 %v2474
      %v2476 = vlaneseq
      %v2477 = vshrl.u32 %v2476, 7
      %v2478 = vsub.s32 %v2475, %v2477
      %v2479 = vrot.slane %v2465, %v2478
      %v2480 = vcombine.high %v2456, 0.0
      %v2481 = vcombine.high %v2463, 0.0
      %v2482 = vcombine.high %v2472, 0.0
      %v2483 = vcombine.high %v2479, 0.0
      %v2484 = vcombine.low %v2227, %v2291
      %v2485 = vcombine.high %v2227, %v2291
      %v2487 = vunpack.c.l.s4 1983009808
      %v2488 = vunpack.c.0.s8 %v2487
      %v2489 = vlaneseq
      %v2490 = vshrl.u32 %v2489, 7
      %v2491 = vsub.s32 %v2488, %v2490
      %v2492 = vrot.slane %v2484, %v2491
      %v2494 = vunpack.c.l.s4 1983009808
      %v2495 = vunpack.c.0.s8 %v2494
      %v2496 = vlaneseq
      %v2497 = vshrl.u32 %v2496, 7
      %v2498 = vsub.s32 %v2495, %v2497
      %v2499 = vrot.slane %v2485, %v2498
      %v2500 = vcombine.low %v2259, %v2323
      %v2501 = vcombine.high %v2259, %v2323
      %v2503 = vunpack.c.l.s4 1983009808
      %v2504 = vunpack.c.0.s8 %v2503
      %v2505 = vlaneseq
      %v2506 = vshrl.u32 %v2505, 7
      %v2507 = vsub.s32 %v2504, %v2506
      %v2508 = vrot.slane %v2500, %v2507
      %v2510 = vunpack.c.l.s4 1983009808
      %v2511 = vunpack.c.0.s8 %v2510
      %v2512 = vlaneseq
      %v2513 = vshrl.u32 %v2512, 7
      %v2514 = vsub.s32 %v2511, %v2513
      %v2515 = vrot.slane %v2501, %v2514
      %v2516 = vcombine.low %v2492, %v2508
      %v2517 = vcombine.high %v2492, %v2508
      %v2519 = vunpack.c.l.s4 1934713408
      %v2520 = vunpack.c.0.s8 %v2519
      %v2521 = vlaneseq
      %v2522 = vshrl.u32 %v2521, 7
      %v2523 = vsub.s32 %v2520, %v2522
      %v2524 = vrot.slane %v2516, %v2523
      %v2526 = vunpack.c.l.s4 1934713408
      %v2527 = vunpack.c.0.s8 %v2526
      %v2528 = vlaneseq
      %v2529 = vshrl.u32 %v2528, 7
      %v2530 = vsub.s32 %v2527, %v2529
      %v2531 = vrot.slane %v2517, %v2530
      %v2532 = vcombine.low %v2499, %v2515
      %v2533 = vcombine.high %v2499, %v2515
      %v2535 = vunpack.c.l.s4 1934713408
      %v2536 = vunpack.c.0.s8 %v2535
      %v2537 = vlaneseq
      %v2538 = vshrl.u32 %v2537, 7
      %v2539 = vsub.s32 %v2536, %v2538
      %v2540 = vrot.slane %v2532, %v2539
      %v2542 = vunpack.c.l.s4 1934713408
      %v2543 = vunpack.c.0.s8 %v2542
      %v2544 = vlaneseq
      %v2545 = vshrl.u32 %v2544, 7
      %v2546 = vsub.s32 %v2543, %v2545
      %v2547 = vrot.slane %v2533, %v2546
      %v2548 = vcombine.high %v2524, 0.0
      %v2549 = vcombine.high %v2531, 0.0
      %v2550 = vcombine.high %v2540, 0.0
      %v2551 = vcombine.high %v2547, 0.0
      %v2552 = vcombine.low %v2229, %v2293
      %v2553 = vcombine.high %v2229, %v2293
      %v2555 = vunpack.c.l.s4 1983009808
      %v2556 = vunpack.c.0.s8 %v2555
      %v2557 = vlaneseq
      %v2558 = vshrl.u32 %v2557, 7
      %v2559 = vsub.s32 %v2556, %v2558
      %v2560 = vrot.slane %v2552, %v2559
      %v2562 = vunpack.c.l.s4 1983009808
      %v2563 = vunpack.c.0.s8 %v2562
      %v2564 = vlaneseq
      %v2565 = vshrl.u32 %v2564, 7
      %v2566 = vsub.s32 %v2563, %v2565
      %v2567 = vrot.slane %v2553, %v2566
      %v2568 = vcombine.low %v2261, %v2325
      %v2569 = vcombine.high %v2261, %v2325
      %v2571 = vunpack.c.l.s4 1983009808
      %v2572 = vunpack.c.0.s8 %v2571
      %v2573 = vlaneseq
      %v2574 = vshrl.u32 %v2573, 7
      %v2575 = vsub.s32 %v2572, %v2574
      %v2576 = vrot.slane %v2568, %v2575
      %v2578 = vunpack.c.l.s4 1983009808
      %v2579 = vunpack.c.0.s8 %v2578
      %v2580 = vlaneseq
      %v2581 = vshrl.u32 %v2580, 7
      %v2582 = vsub.s32 %v2579, %v2581
      %v2583 = vrot.slane %v2569, %v2582
      %v2584 = vcombine.low %v2560, %v2576
      %v2585 = vcombine.high %v2560, %v2576
      %v2587 = vunpack.c.l.s4 1934713408
      %v2588 = vunpack.c.0.s8 %v2587
      %v2589 = vlaneseq
      %v2590 = vshrl.u32 %v2589, 7
      %v2591 = vsub.s32 %v2588, %v2590
      %v2592 = vrot.slane %v2584, %v2591
      %v2594 = vunpack.c.l.s4 1934713408
      %v2595 = vunpack.c.0.s8 %v2594
      %v2596 = vlaneseq
      %v2597 = vshrl.u32 %v2596, 7
      %v2598 = vsub.s32 %v2595, %v2597
      %v2599 = vrot.slane %v2585, %v2598
      %v2600 = vcombine.low %v2567, %v2583
      %v2601 = vcombine.high %v2567, %v2583
      %v2603 = vunpack.c.l.s4 1934713408
      %v2604 = vunpack.c.0.s8 %v2603
      %v2605 = vlaneseq
      %v2606 = vshrl.u32 %v2605, 7
      %v2607 = vsub.s32 %v2604, %v2606
      %v2608 = vrot.slane %v2600, %v2607
      %v2610 = vunpack.c.l.s4 1934713408
      %v2611 = vunpack.c.0.s8 %v2610
      %v2612 = vlaneseq
      %v2613 = vshrl.u32 %v2612, 7
      %v2614 = vsub.s32 %v2611, %v2613
      %v2615 = vrot.slane %v2601, %v2614
      %v2616 = vcombine.high %v2592, 0.0
      %v2617 = vcombine.high %v2599, 0.0
      %v2618 = vcombine.high %v2608, 0.0
      %v2619 = vcombine.high %v2615, 0.0
      %v2620 = vcombine.low %v2231, %v2295
      %v2621 = vcombine.high %v2231, %v2295
      %v2623 = vunpack.c.l.s4 1983009808
      %v2624 = vunpack.c.0.s8 %v2623
      %v2625 = vlaneseq
      %v2626 = vshrl.u32 %v2625, 7
      %v2627 = vsub.s32 %v2624, %v2626
      %v2628 = vrot.slane %v2620, %v2627
      %v2630 = vunpack.c.l.s4 1983009808
      %v2631 = vunpack.c.0.s8 %v2630
      %v2632 = vlaneseq
      %v2633 = vshrl.u32 %v2632, 7
      %v2634 = vsub.s32 %v2631, %v2633
      %v2635 = vrot.slane %v2621, %v2634
      %v2636 = vcombine.low %v2263, %v2327
      %v2637 = vcombine.high %v2263, %v2327
      %v2639 = vunpack.c.l.s4 1983009808
      %v2640 = vunpack.c.0.s8 %v2639
      %v2641 = vlaneseq
      %v2642 = vshrl.u32 %v2641, 7
      %v2643 = vsub.s32 %v2640, %v2642
      %v2644 = vrot.slane %v2636, %v2643
      %v2646 = vunpack.c.l.s4 1983009808
      %v2647 = vunpack.c.0.s8 %v2646
      %v2648 = vlaneseq
      %v2649 = vshrl.u32 %v2648, 7
      %v2650 = vsub.s32 %v2647, %v2649
      %v2651 = vrot.slane %v2637, %v2650
      %v2652 = vcombine.low %v2628, %v2644
      %v2653 = vcombine.high %v2628, %v2644
      %v2655 = vunpack.c.l.s4 1934713408
      %v2656 = vunpack.c.0.s8 %v2655
      %v2657 = vlaneseq
      %v2658 = vshrl.u32 %v2657, 7
      %v2659 = vsub.s32 %v2656, %v2658
      %v2660 = vrot.slane %v2652, %v2659
      %v2662 = vunpack.c.l.s4 1934713408
      %v2663 = vunpack.c.0.s8 %v2662
      %v2664 = vlaneseq
      %v2665 = vshrl.u32 %v2664, 7
      %v2666 = vsub.s32 %v2663, %v2665
      %v2667 = vrot.slane %v2653, %v2666
      %v2668 = vcombine.low %v2635, %v2651
      %v2669 = vcombine.high %v2635, %v2651
      %v2671 = vunpack.c.l.s4 1934713408
      %v2672 = vunpack.c.0.s8 %v2671
      %v2673 = vlaneseq
      %v2674 = vshrl.u32 %v2673, 7
      %v2675 = vsub.s32 %v2672, %v2674
      %v2676 = vrot.slane %v2668, %v2675
      %v2678 = vunpack.c.l.s4 1934713408
      %v2679 = vunpack.c.0.s8 %v2678
      %v2680 = vlaneseq
      %v2681 = vshrl.u32 %v2680, 7
      %v2682 = vsub.s32 %v2679, %v2681
      %v2683 = vrot.slane %v2669, %v2682
      %v2684 = vcombine.high %v2660, 0.0
      %v2685 = vcombine.high %v2667, 0.0
      %v2686 = vcombine.high %v2676, 0.0
      %v2687 = vcombine.high %v2683, 0.0
      %v2688 = vcombine.low %v2233, %v2297
      %v2689 = vcombine.high %v2233, %v2297
      %v2691 = vunpack.c.l.s4 1983009808
      %v2692 = vunpack.c.0.s8 %v2691
      %v2693 = vlaneseq
      %v2694 = vshrl.u32 %v2693, 7
      %v2695 = vsub.s32 %v2692, %v2694
      %v2696 = vrot.slane %v2688, %v2695
      %v2698 = vunpack.c.l.s4 1983009808
      %v2699 = vunpack.c.0.s8 %v2698
      %v2700 = vlaneseq
      %v2701 = vshrl.u32 %v2700, 7
      %v2702 = vsub.s32 %v2699, %v2701
      %v2703 = vrot.slane %v2689, %v2702
      %v2704 = vcombine.low %v2265, %v2329
      %v2705 = vcombine.high %v2265, %v2329
      %v2707 = vunpack.c.l.s4 1983009808
      %v2708 = vunpack.c.0.s8 %v2707
      %v2709 = vlaneseq
      %v2710 = vshrl.u32 %v2709, 7
      %v2711 = vsub.s32 %v2708, %v2710
      %v2712 = vrot.slane %v2704, %v2711
      %v2714 = vunpack.c.l.s4 1983009808
      %v2715 = vunpack.c.0.s8 %v2714
      %v2716 = vlaneseq
      %v2717 = vshrl.u32 %v2716, 7
      %v2718 = vsub.s32 %v2715, %v2717
      %v2719 = vrot.slane %v2705, %v2718
      %v2720 = vcombine.low %v2696, %v2712
      %v2721 = vcombine.high %v2696, %v2712
      %v2723 = vunpack.c.l.s4 1934713408
      %v2724 = vunpack.c.0.s8 %v2723
      %v2725 = vlaneseq
      %v2726 = vshrl.u32 %v2725, 7
      %v2727 = vsub.s32 %v2724, %v2726
      %v2728 = vrot.slane %v2720, %v2727
      %v2730 = vunpack.c.l.s4 1934713408
      %v2731 = vunpack.c.0.s8 %v2730
      %v2732 = vlaneseq
      %v2733 = vshrl.u32 %v2732, 7
      %v2734 = vsub.s32 %v2731, %v2733
      %v2735 = vrot.slane %v2721, %v2734
      %v2736 = vcombine.low %v2703, %v2719
      %v2737 = vcombine.high %v2703, %v2719
      %v2739 = vunpack.c.l.s4 1934713408
      %v2740 = vunpack.c.0.s8 %v2739
      %v2741 = vlaneseq
      %v2742 = vshrl.u32 %v2741, 7
      %v2743 = vsub.s32 %v2740, %v2742
      %v2744 = vrot.slane %v2736, %v2743
      %v2746 = vunpack.c.l.s4 1934713408
      %v2747 = vunpack.c.0.s8 %v2746
      %v2748 = vlaneseq
      %v2749 = vshrl.u32 %v2748, 7
      %v2750 = vsub.s32 %v2747, %v2749
      %v2751 = vrot.slane %v2737, %v2750
      %v2752 = vcombine.high %v2728, 0.0
      %v2753 = vcombine.high %v2735, 0.0
      %v2754 = vcombine.high %v2744, 0.0
      %v2755 = vcombine.high %v2751, 0.0
      %v2756 = vcombine.low %v2235, %v2299
      %v2757 = vcombine.high %v2235, %v2299
      %v2759 = vunpack.c.l.s4 1983009808
      %v2760 = vunpack.c.0.s8 %v2759
      %v2761 = vlaneseq
      %v2762 = vshrl.u32 %v2761, 7
      %v2763 = vsub.s32 %v2760, %v2762
      %v2764 = vrot.slane %v2756, %v2763
      %v2766 = vunpack.c.l.s4 1983009808
      %v2767 = vunpack.c.0.s8 %v2766
      %v2768 = vlaneseq
      %v2769 = vshrl.u32 %v2768, 7
      %v2770 = vsub.s32 %v2767, %v2769
      %v2771 = vrot.slane %v2757, %v2770
      %v2772 = vcombine.low %v2267, %v2331
      %v2773 = vcombine.high %v2267, %v2331
      %v2775 = vunpack.c.l.s4 1983009808
      %v2776 = vunpack.c.0.s8 %v2775
      %v2777 = vlaneseq
      %v2778 = vshrl.u32 %v2777, 7
      %v2779 = vsub.s32 %v2776, %v2778
      %v2780 = vrot.slane %v2772, %v2779
      %v2782 = vunpack.c.l.s4 1983009808
      %v2783 = vunpack.c.0.s8 %v2782
      %v2784 = vlaneseq
      %v2785 = vshrl.u32 %v2784, 7
      %v2786 = vsub.s32 %v2783, %v2785
      %v2787 = vrot.slane %v2773, %v2786
      %v2788 = vcombine.low %v2764, %v2780
      %v2789 = vcombine.high %v2764, %v2780
      %v2791 = vunpack.c.l.s4 1934713408
      %v2792 = vunpack.c.0.s8 %v2791
      %v2793 = vlaneseq
      %v2794 = vshrl.u32 %v2793, 7
      %v2795 = vsub.s32 %v2792, %v2794
      %v2796 = vrot.slane %v2788, %v2795
      %v2798 = vunpack.c.l.s4 1934713408
      %v2799 = vunpack.c.0.s8 %v2798
      %v2800 = vlaneseq
      %v2801 = vshrl.u32 %v2800, 7
      %v2802 = vsub.s32 %v2799, %v2801
      %v2803 = vrot.slane %v2789, %v2802
      %v2804 = vcombine.low %v2771, %v2787
      %v2805 = vcombine.high %v2771, %v2787
      %v2807 = vunpack.c.l.s4 1934713408
      %v2808 = vunpack.c.0.s8 %v2807
      %v2809 = vlaneseq
      %v2810 = vshrl.u32 %v2809, 7
      %v2811 = vsub.s32 %v2808, %v2810
      %v2812 = vrot.slane %v2804, %v2811
      %v2814 = vunpack.c.l.s4 1934713408
      %v2815 = vunpack.c.0.s8 %v2814
      %v2816 = vlaneseq
      %v2817 = vshrl.u32 %v2816, 7
      %v2818 = vsub.s32 %v2815, %v2817
      %v2819 = vrot.slane %v2805, %v2818
      %v2820 = vcombine.high %v2796, 0.0
      %v2821 = vcombine.high %v2803, 0.0
      %v2822 = vcombine.high %v2812, 0.0
      %v2823 = vcombine.high %v2819, 0.0
      %v2824 = vcombine.low %v2237, %v2301
      %v2825 = vcombine.high %v2237, %v2301
      %v2827 = vunpack.c.l.s4 1983009808
      %v2828 = vunpack.c.0.s8 %v2827
      %v2829 = vlaneseq
      %v2830 = vshrl.u32 %v2829, 7
      %v2831 = vsub.s32 %v2828, %v2830
      %v2832 = vrot.slane %v2824, %v2831
      %v2834 = vunpack.c.l.s4 1983009808
      %v2835 = vunpack.c.0.s8 %v2834
      %v2836 = vlaneseq
      %v2837 = vshrl.u32 %v2836, 7
      %v2838 = vsub.s32 %v2835, %v2837
      %v2839 = vrot.slane %v2825, %v2838
      %v2840 = vcombine.low %v2269, %v2333
      %v2841 = vcombine.high %v2269, %v2333
      %v2843 = vunpack.c.l.s4 1983009808
      %v2844 = vunpack.c.0.s8 %v2843
      %v2845 = vlaneseq
      %v2846 = vshrl.u32 %v2845, 7
      %v2847 = vsub.s32 %v2844, %v2846
      %v2848 = vrot.slane %v2840, %v2847
      %v2850 = vunpack.c.l.s4 1983009808
      %v2851 = vunpack.c.0.s8 %v2850
      %v2852 = vlaneseq
      %v2853 = vshrl.u32 %v2852, 7
      %v2854 = vsub.s32 %v2851, %v2853
      %v2855 = vrot.slane %v2841, %v2854
      %v2856 = vcombine.low %v2832, %v2848
      %v2857 = vcombine.high %v2832, %v2848
      %v2859 = vunpack.c.l.s4 1934713408
      %v2860 = vunpack.c.0.s8 %v2859
      %v2861 = vlaneseq
      %v2862 = vshrl.u32 %v2861, 7
      %v2863 = vsub.s32 %v2860, %v2862
      %v2864 = vrot.slane %v2856, %v2863
      %v2866 = vunpack.c.l.s4 1934713408
      %v2867 = vunpack.c.0.s8 %v2866
      %v2868 = vlaneseq
      %v2869 = vshrl.u32 %v2868, 7
      %v2870 = vsub.s32 %v2867, %v2869
      %v2871 = vrot.slane %v2857, %v2870
      %v2872 = vcombine.low %v2839, %v2855
      %v2873 = vcombine.high %v2839, %v2855
      %v2875 = vunpack.c.l.s4 1934713408
      %v2876 = vunpack.c.0.s8 %v2875
      %v2877 = vlaneseq
      %v2878 = vshrl.u32 %v2877, 7
      %v2879 = vsub.s32 %v2876, %v2878
      %v2880 = vrot.slane %v2872, %v2879
      %v2882 = vunpack.c.l.s4 1934713408
      %v2883 = vunpack.c.0.s8 %v2882
      %v2884 = vlaneseq
      %v2885 = vshrl.u32 %v2884, 7
      %v2886 = vsub.s32 %v2883, %v2885
      %v2887 = vrot.slane %v2873, %v2886
      %v2888 = vcombine.high %v2864, 0.0
      %v2889 = vcombine.high %v2871, 0.0
      %v2890 = vcombine.high %v2880, 0.0
      %v2891 = vcombine.high %v2887, 0.0
      %v2892 = vcombine.low %v2239, %v2303
      %v2893 = vcombine.high %v2239, %v2303
      %v2895 = vunpack.c.l.s4 1983009808
      %v2896 = vunpack.c.0.s8 %v2895
      %v2897 = vlaneseq
      %v2898 = vshrl.u32 %v2897, 7
      %v2899 = vsub.s32 %v2896, %v2898
      %v2900 = vrot.slane %v2892, %v2899
      %v2902 = vunpack.c.l.s4 1983009808
      %v2903 = vunpack.c.0.s8 %v2902
      %v2904 = vlaneseq
      %v2905 = vshrl.u32 %v2904, 7
      %v2906 = vsub.s32 %v2903, %v2905
      %v2907 = vrot.slane %v2893, %v2906
      %v2908 = vcombine.low %v2271, %v2335
      %v2909 = vcombine.high %v2271, %v2335
      %v2911 = vunpack.c.l.s4 1983009808
      %v2912 = vunpack.c.0.s8 %v2911
      %v2913 = vlaneseq
      %v2914 = vshrl.u32 %v2913, 7
      %v2915 = vsub.s32 %v2912, %v2914
      %v2916 = vrot.slane %v2908, %v2915
      %v2918 = vunpack.c.l.s4 1983009808
      %v2919 = vunpack.c.0.s8 %v2918
      %v2920 = vlaneseq
      %v2921 = vshrl.u32 %v2920, 7
      %v2922 = vsub.s32 %v2919, %v2921
      %v2923 = vrot.slane %v2909, %v2922
      %v2924 = vcombine.low %v2900, %v2916
      %v2925 = vcombine.high %v2900, %v2916
      %v2927 = vunpack.c.l.s4 1934713408
      %v2928 = vunpack.c.0.s8 %v2927
      %v2929 = vlaneseq
      %v2930 = vshrl.u32 %v2929, 7
      %v2931 = vsub.s32 %v2928, %v2930
      %v2932 = vrot.slane %v2924, %v2931
      %v2934 = vunpack.c.l.s4 1934713408
      %v2935 = vunpack.c.0.s8 %v2934
      %v2936 = vlaneseq
      %v2937 = vshrl.u32 %v2936, 7
      %v2938 = vsub.s32 %v2935, %v2937
      %v2939 = vrot.slane %v2925, %v2938
      %v2940 = vcombine.low %v2907, %v2923
      %v2941 = vcombine.high %v2907, %v2923
      %v2943 = vunpack.c.l.s4 1934713408
      %v2944 = vunpack.c.0.s8 %v2943
      %v2945 = vlaneseq
      %v2946 = vshrl.u32 %v2945, 7
      %v2947 = vsub.s32 %v2944, %v2946
      %v2948 = vrot.slane %v2940, %v2947
      %v2950 = vunpack.c.l.s4 1934713408
      %v2951 = vunpack.c.0.s8 %v2950
      %v2952 = vlaneseq
      %v2953 = vshrl.u32 %v2952, 7
      %v2954 = vsub.s32 %v2951, %v2953
      %v2955 = vrot.slane %v2941, %v2954
      %v2956 = vcombine.high %v2932, 0.0
      %v2957 = vcombine.high %v2939, 0.0
      %v2958 = vcombine.high %v2948, 0.0
      %v2959 = vcombine.high %v2955, 0.0
      %v2960 = vcombine.low %v2241, %v2305
      %v2961 = vcombine.high %v2241, %v2305
      %v2963 = vunpack.c.l.s4 1983009808
      %v2964 = vunpack.c.0.s8 %v2963
      %v2965 = vlaneseq
      %v2966 = vshrl.u32 %v2965, 7
      %v2967 = vsub.s32 %v2964, %v2966
      %v2968 = vrot.slane %v2960, %v2967
      %v2970 = vunpack.c.l.s4 1983009808
      %v2971 = vunpack.c.0.s8 %v2970
      %v2972 = vlaneseq
      %v2973 = vshrl.u32 %v2972, 7
      %v2974 = vsub.s32 %v2971, %v2973
      %v2975 = vrot.slane %v2961, %v2974
      %v2976 = vcombine.low %v2273, %v2337
      %v2977 = vcombine.high %v2273, %v2337
      %v2979 = vunpack.c.l.s4 1983009808
      %v2980 = vunpack.c.0.s8 %v2979
      %v2981 = vlaneseq
      %v2982 = vshrl.u32 %v2981, 7
      %v2983 = vsub.s32 %v2980, %v2982
      %v2984 = vrot.slane %v2976, %v2983
      %v2986 = vunpack.c.l.s4 1983009808
      %v2987 = vunpack.c.0.s8 %v2986
      %v2988 = vlaneseq
      %v2989 = vshrl.u32 %v2988, 7
      %v2990 = vsub.s32 %v2987, %v2989
      %v2991 = vrot.slane %v2977, %v2990
      %v2992 = vcombine.low %v2968, %v2984
      %v2993 = vcombine.high %v2968, %v2984
      %v2995 = vunpack.c.l.s4 1934713408
      %v2996 = vunpack.c.0.s8 %v2995
      %v2997 = vlaneseq
      %v2998 = vshrl.u32 %v2997, 7
      %v2999 = vsub.s32 %v2996, %v2998
      %v3000 = vrot.slane %v2992, %v2999
      %v3002 = vunpack.c.l.s4 1934713408
      %v3003 = vunpack.c.0.s8 %v3002
      %v3004 = vlaneseq
      %v3005 = vshrl.u32 %v3004, 7
      %v3006 = vsub.s32 %v3003, %v3005
      %v3007 = vrot.slane %v2993, %v3006
      %v3008 = vcombine.low %v2975, %v2991
      %v3009 = vcombine.high %v2975, %v2991
      %v3011 = vunpack.c.l.s4 1934713408
      %v3012 = vunpack.c.0.s8 %v3011
      %v3013 = vlaneseq
      %v3014 = vshrl.u32 %v3013, 7
      %v3015 = vsub.s32 %v3012, %v3014
      %v3016 = vrot.slane %v3008, %v3015
      %v3018 = vunpack.c.l.s4 1934713408
      %v3019 = vunpack.c.0.s8 %v3018
      %v3020 = vlaneseq
      %v3021 = vshrl.u32 %v3020, 7
      %v3022 = vsub.s32 %v3019, %v3021
      %v3023 = vrot.slane %v3009, %v3022
      %v3024 = vcombine.high %v3000, 0.0
      %v3025 = vcombine.high %v3007, 0.0
      %v3026 = vcombine.high %v3016, 0.0
      %v3027 = vcombine.high %v3023, 0.0
      %v3028 = vcombine.low %v2243, %v2307
      %v3029 = vcombine.high %v2243, %v2307
      %v3031 = vunpack.c.l.s4 1983009808
      %v3032 = vunpack.c.0.s8 %v3031
      %v3033 = vlaneseq
      %v3034 = vshrl.u32 %v3033, 7
      %v3035 = vsub.s32 %v3032, %v3034
      %v3036 = vrot.slane %v3028, %v3035
      %v3038 = vunpack.c.l.s4 1983009808
      %v3039 = vunpack.c.0.s8 %v3038
      %v3040 = vlaneseq
      %v3041 = vshrl.u32 %v3040, 7
      %v3042 = vsub.s32 %v3039, %v3041
      %v3043 = vrot.slane %v3029, %v3042
      %v3044 = vcombine.low %v2275, %v2339
      %v3045 = vcombine.high %v2275, %v2339
      %v3047 = vunpack.c.l.s4 1983009808
      %v3048 = vunpack.c.0.s8 %v3047
      %v3049 = vlaneseq
      %v3050 = vshrl.u32 %v3049, 7
      %v3051 = vsub.s32 %v3048, %v3050
      %v3052 = vrot.slane %v3044, %v3051
      %v3054 = vunpack.c.l.s4 1983009808
      %v3055 = vunpack.c.0.s8 %v3054
      %v3056 = vlaneseq
      %v3057 = vshrl.u32 %v3056, 7
      %v3058 = vsub.s32 %v3055, %v3057
      %v3059 = vrot.slane %v3045, %v3058
      %v3060 = vcombine.low %v3036, %v3052
      %v3061 = vcombine.high %v3036, %v3052
      %v3063 = vunpack.c.l.s4 1934713408
      %v3064 = vunpack.c.0.s8 %v3063
      %v3065 = vlaneseq
      %v3066 = vshrl.u32 %v3065, 7
      %v3067 = vsub.s32 %v3064, %v3066
      %v3068 = vrot.slane %v3060, %v3067
      %v3070 = vunpack.c.l.s4 1934713408
      %v3071 = vunpack.c.0.s8 %v3070
      %v3072 = vlaneseq
      %v3073 = vshrl.u32 %v3072, 7
      %v3074 = vsub.s32 %v3071, %v3073
      %v3075 = vrot.slane %v3061, %v3074
      %v3076 = vcombine.low %v3043, %v3059
      %v3077 = vcombine.high %v3043, %v3059
      %v3079 = vunpack.c.l.s4 1934713408
      %v3080 = vunpack.c.0.s8 %v3079
      %v3081 = vlaneseq
      %v3082 = vshrl.u32 %v3081, 7
      %v3083 = vsub.s32 %v3080, %v3082
      %v3084 = vrot.slane %v3076, %v3083
      %v3086 = vunpack.c.l.s4 1934713408
      %v3087 = vunpack.c.0.s8 %v3086
      %v3088 = vlaneseq
      %v3089 = vshrl.u32 %v3088, 7
      %v3090 = vsub.s32 %v3087, %v3089
      %v3091 = vrot.slane %v3077, %v3090
      %v3092 = vcombine.high %v3068, 0.0
      %v3093 = vcombine.high %v3075, 0.0
      %v3094 = vcombine.high %v3084, 0.0
      %v3095 = vcombine.high %v3091, 0.0
      %v3096 = vcombine.low %v2245, %v2309
      %v3097 = vcombine.high %v2245, %v2309
      %v3099 = vunpack.c.l.s4 1983009808
      %v3100 = vunpack.c.0.s8 %v3099
      %v3101 = vlaneseq
      %v3102 = vshrl.u32 %v3101, 7
      %v3103 = vsub.s32 %v3100, %v3102
      %v3104 = vrot.slane %v3096, %v3103
      %v3106 = vunpack.c.l.s4 1983009808
      %v3107 = vunpack.c.0.s8 %v3106
      %v3108 = vlaneseq
      %v3109 = vshrl.u32 %v3108, 7
      %v3110 = vsub.s32 %v3107, %v3109
      %v3111 = vrot.slane %v3097, %v3110
      %v3112 = vcombine.low %v2277, %v2341
      %v3113 = vcombine.high %v2277, %v2341
      %v3115 = vunpack.c.l.s4 1983009808
      %v3116 = vunpack.c.0.s8 %v3115
      %v3117 = vlaneseq
      %v3118 = vshrl.u32 %v3117, 7
      %v3119 = vsub.s32 %v3116, %v3118
      %v3120 = vrot.slane %v3112, %v3119
      %v3122 = vunpack.c.l.s4 1983009808
      %v3123 = vunpack.c.0.s8 %v3122
      %v3124 = vlaneseq
      %v3125 = vshrl.u32 %v3124, 7
      %v3126 = vsub.s32 %v3123, %v3125
      %v3127 = vrot.slane %v3113, %v3126
      %v3128 = vcombine.low %v3104, %v3120
      %v3129 = vcombine.high %v3104, %v3120
      %v3131 = vunpack.c.l.s4 1934713408
      %v3132 = vunpack.c.0.s8 %v3131
      %v3133 = vlaneseq
      %v3134 = vshrl.u32 %v3133, 7
      %v3135 = vsub.s32 %v3132, %v3134
      %v3136 = vrot.slane %v3128, %v3135
      %v3138 = vunpack.c.l.s4 1934713408
      %v3139 = vunpack.c.0.s8 %v3138
      %v3140 = vlaneseq
      %v3141 = vshrl.u32 %v3140, 7
      %v3142 = vsub.s32 %v3139, %v3141
      %v3143 = vrot.slane %v3129, %v3142
      %v3144 = vcombine.low %v3111, %v3127
      %v3145 = vcombine.high %v3111, %v3127
      %v3147 = vunpack.c.l.s4 1934713408
      %v3148 = vunpack.c.0.s8 %v3147
      %v3149 = vlaneseq
      %v3150 = vshrl.u32 %v3149, 7
      %v3151 = vsub.s32 %v3148, %v3150
      %v3152 = vrot.slane %v3144, %v3151
      %v3154 = vunpack.c.l.s4 1934713408
      %v3155 = vunpack.c.0.s8 %v3154
      %v3156 = vlaneseq
      %v3157 = vshrl.u32 %v3156, 7
      %v3158 = vsub.s32 %v3155, %v3157
      %v3159 = vrot.slane %v3145, %v3158
      %v3160 = vcombine.high %v3136, 0.0
      %v3161 = vcombine.high %v3143, 0.0
      %v3162 = vcombine.high %v3152, 0.0
      %v3163 = vcombine.high %v3159, 0.0
      %v3164 = vcombine.low %v2247, %v2311
      %v3165 = vcombine.high %v2247, %v2311
      %v3167 = vunpack.c.l.s4 1983009808
      %v3168 = vunpack.c.0.s8 %v3167
      %v3169 = vlaneseq
      %v3170 = vshrl.u32 %v3169, 7
      %v3171 = vsub.s32 %v3168, %v3170
      %v3172 = vrot.slane %v3164, %v3171
      %v3174 = vunpack.c.l.s4 1983009808
      %v3175 = vunpack.c.0.s8 %v3174
      %v3176 = vlaneseq
      %v3177 = vshrl.u32 %v3176, 7
      %v3178 = vsub.s32 %v3175, %v3177
      %v3179 = vrot.slane %v3165, %v3178
      %v3180 = vcombine.low %v2279, %v2343
      %v3181 = vcombine.high %v2279, %v2343
      %v3183 = vunpack.c.l.s4 1983009808
      %v3184 = vunpack.c.0.s8 %v3183
      %v3185 = vlaneseq
      %v3186 = vshrl.u32 %v3185, 7
      %v3187 = vsub.s32 %v3184, %v3186
      %v3188 = vrot.slane %v3180, %v3187
      %v3190 = vunpack.c.l.s4 1983009808
      %v3191 = vunpack.c.0.s8 %v3190
      %v3192 = vlaneseq
      %v3193 = vshrl.u32 %v3192, 7
      %v3194 = vsub.s32 %v3191, %v3193
      %v3195 = vrot.slane %v3181, %v3194
      %v3196 = vcombine.low %v3172, %v3188
      %v3197 = vcombine.high %v3172, %v3188
      %v3199 = vunpack.c.l.s4 1934713408
      %v3200 = vunpack.c.0.s8 %v3199
      %v3201 = vlaneseq
      %v3202 = vshrl.u32 %v3201, 7
      %v3203 = vsub.s32 %v3200, %v3202
      %v3204 = vrot.slane %v3196, %v3203
      %v3206 = vunpack.c.l.s4 1934713408
      %v3207 = vunpack.c.0.s8 %v3206
      %v3208 = vlaneseq
      %v3209 = vshrl.u32 %v3208, 7
      %v3210 = vsub.s32 %v3207, %v3209
      %v3211 = vrot.slane %v3197, %v3210
      %v3212 = vcombine.low %v3179, %v3195
      %v3213 = vcombine.high %v3179, %v3195
      %v3215 = vunpack.c.l.s4 1934713408
      %v3216 = vunpack.c.0.s8 %v3215
      %v3217 = vlaneseq
      %v3218 = vshrl.u32 %v3217, 7
      %v3219 = vsub.s32 %v3216, %v3218
      %v3220 = vrot.slane %v3212, %v3219
      %v3222 = vunpack.c.l.s4 1934713408
      %v3223 = vunpack.c.0.s8 %v3222
      %v3224 = vlaneseq
      %v3225 = vshrl.u32 %v3224, 7
      %v3226 = vsub.s32 %v3223, %v3225
      %v3227 = vrot.slane %v3213, %v3226
      %v3228 = vcombine.high %v3204, 0.0
      %v3229 = vcombine.high %v3211, 0.0
      %v3230 = vcombine.high %v3220, 0.0
      %v3231 = vcombine.high %v3227, 0.0
      %v3232 = vcombine.low %v2249, %v2313
      %v3233 = vcombine.high %v2249, %v2313
      %v3235 = vunpack.c.l.s4 1983009808
      %v3236 = vunpack.c.0.s8 %v3235
      %v3237 = vlaneseq
      %v3238 = vshrl.u32 %v3237, 7
      %v3239 = vsub.s32 %v3236, %v3238
      %v3240 = vrot.slane %v3232, %v3239
      %v3242 = vunpack.c.l.s4 1983009808
      %v3243 = vunpack.c.0.s8 %v3242
      %v3244 = vlaneseq
      %v3245 = vshrl.u32 %v3244, 7
      %v3246 = vsub.s32 %v3243, %v3245
      %v3247 = vrot.slane %v3233, %v3246
      %v3248 = vcombine.low %v2281, %v2345
      %v3249 = vcombine.high %v2281, %v2345
      %v3251 = vunpack.c.l.s4 1983009808
      %v3252 = vunpack.c.0.s8 %v3251
      %v3253 = vlaneseq
      %v3254 = vshrl.u32 %v3253, 7
      %v3255 = vsub.s32 %v3252, %v3254
      %v3256 = vrot.slane %v3248, %v3255
      %v3258 = vunpack.c.l.s4 1983009808
      %v3259 = vunpack.c.0.s8 %v3258
      %v3260 = vlaneseq
      %v3261 = vshrl.u32 %v3260, 7
      %v3262 = vsub.s32 %v3259, %v3261
      %v3263 = vrot.slane %v3249, %v3262
      %v3264 = vcombine.low %v3240, %v3256
      %v3265 = vcombine.high %v3240, %v3256
      %v3267 = vunpack.c.l.s4 1934713408
      %v3268 = vunpack.c.0.s8 %v3267
      %v3269 = vlaneseq
      %v3270 = vshrl.u32 %v3269, 7
      %v3271 = vsub.s32 %v3268, %v3270
      %v3272 = vrot.slane %v3264, %v3271
      %v3274 = vunpack.c.l.s4 1934713408
      %v3275 = vunpack.c.0.s8 %v3274
      %v3276 = vlaneseq
      %v3277 = vshrl.u32 %v3276, 7
      %v3278 = vsub.s32 %v3275, %v3277
      %v3279 = vrot.slane %v3265, %v3278
      %v3280 = vcombine.low %v3247, %v3263
      %v3281 = vcombine.high %v3247, %v3263
      %v3283 = vunpack.c.l.s4 1934713408
      %v3284 = vunpack.c.0.s8 %v3283
      %v3285 = vlaneseq
      %v3286 = vshrl.u32 %v3285, 7
      %v3287 = vsub.s32 %v3284, %v3286
      %v3288 = vrot.slane %v3280, %v3287
      %v3290 = vunpack.c.l.s4 1934713408
      %v3291 = vunpack.c.0.s8 %v3290
      %v3292 = vlaneseq
      %v3293 = vshrl.u32 %v3292, 7
      %v3294 = vsub.s32 %v3291, %v3293
      %v3295 = vrot.slane %v3281, %v3294
      %v3296 = vcombine.high %v3272, 0.0
      %v3297 = vcombine.high %v3279, 0.0
      %v3298 = vcombine.high %v3288, 0.0
      %v3299 = vcombine.high %v3295, 0.0
      %v3300 = vcombine.low %v2251, %v2315
      %v3301 = vcombine.high %v2251, %v2315
      %v3303 = vunpack.c.l.s4 1983009808
      %v3304 = vunpack.c.0.s8 %v3303
      %v3305 = vlaneseq
      %v3306 = vshrl.u32 %v3305, 7
      %v3307 = vsub.s32 %v3304, %v3306
      %v3308 = vrot.slane %v3300, %v3307
      %v3310 = vunpack.c.l.s4 1983009808
      %v3311 = vunpack.c.0.s8 %v3310
      %v3312 = vlaneseq
      %v3313 = vshrl.u32 %v3312, 7
      %v3314 = vsub.s32 %v3311, %v3313
      %v3315 = vrot.slane %v3301, %v3314
      %v3316 = vcombine.low %v2283, %v2347
      %v3317 = vcombine.high %v2283, %v2347
      %v3319 = vunpack.c.l.s4 1983009808
      %v3320 = vunpack.c.0.s8 %v3319
      %v3321 = vlaneseq
      %v3322 = vshrl.u32 %v3321, 7
      %v3323 = vsub.s32 %v3320, %v3322
      %v3324 = vrot.slane %v3316, %v3323
      %v3326 = vunpack.c.l.s4 1983009808
      %v3327 = vunpack.c.0.s8 %v3326
      %v3328 = vlaneseq
      %v3329 = vshrl.u32 %v3328, 7
      %v3330 = vsub.s32 %v3327, %v3329
      %v3331 = vrot.slane %v3317, %v3330
      %v3332 = vcombine.low %v3308, %v3324
      %v3333 = vcombine.high %v3308, %v3324
      %v3335 = vunpack.c.l.s4 1934713408
      %v3336 = vunpack.c.0.s8 %v3335
      %v3337 = vlaneseq
      %v3338 = vshrl.u32 %v3337, 7
      %v3339 = vsub.s32 %v3336, %v3338
      %v3340 = vrot.slane %v3332, %v3339
      %v3342 = vunpack.c.l.s4 1934713408
      %v3343 = vunpack.c.0.s8 %v3342
      %v3344 = vlaneseq
      %v3345 = vshrl.u32 %v3344, 7
      %v3346 = vsub.s32 %v3343, %v3345
      %v3347 = vrot.slane %v3333, %v3346
      %v3348 = vcombine.low %v3315, %v3331
      %v3349 = vcombine.high %v3315, %v3331
      %v3351 = vunpack.c.l.s4 1934713408
      %v3352 = vunpack.c.0.s8 %v3351
      %v3353 = vlaneseq
      %v3354 = vshrl.u32 %v3353, 7
      %v3355 = vsub.s32 %v3352, %v3354
      %v3356 = vrot.slane %v3348, %v3355
      %v3358 = vunpack.c.l.s4 1934713408
      %v3359 = vunpack.c.0.s8 %v3358
      %v3360 = vlaneseq
      %v3361 = vshrl.u32 %v3360, 7
      %v3362 = vsub.s32 %v3359, %v3361
      %v3363 = vrot.slane %v3349, %v3362
      %v3364 = vcombine.high %v3340, 0.0
      %v3365 = vcombine.high %v3347, 0.0
      %v3366 = vcombine.high %v3356, 0.0
      %v3367 = vcombine.high %v3363, 0.0
      %v3368 = vcombine.low %v2253, %v2317
      %v3369 = vcombine.high %v2253, %v2317
      %v3371 = vunpack.c.l.s4 1983009808
      %v3372 = vunpack.c.0.s8 %v3371
      %v3373 = vlaneseq
      %v3374 = vshrl.u32 %v3373, 7
      %v3375 = vsub.s32 %v3372, %v3374
      %v3376 = vrot.slane %v3368, %v3375
      %v3378 = vunpack.c.l.s4 1983009808
      %v3379 = vunpack.c.0.s8 %v3378
      %v3380 = vlaneseq
      %v3381 = vshrl.u32 %v3380, 7
      %v3382 = vsub.s32 %v3379, %v3381
      %v3383 = vrot.slane %v3369, %v3382
      %v3384 = vcombine.low %v2285, %v2349
      %v3385 = vcombine.high %v2285, %v2349
      %v3387 = vunpack.c.l.s4 1983009808
      %v3388 = vunpack.c.0.s8 %v3387
      %v3389 = vlaneseq
      %v3390 = vshrl.u32 %v3389, 7
      %v3391 = vsub.s32 %v3388, %v3390
      %v3392 = vrot.slane %v3384, %v3391
      %v3394 = vunpack.c.l.s4 1983009808
      %v3395 = vunpack.c.0.s8 %v3394
      %v3396 = vlaneseq
      %v3397 = vshrl.u32 %v3396, 7
      %v3398 = vsub.s32 %v3395, %v3397
      %v3399 = vrot.slane %v3385, %v3398
      %v3400 = vcombine.low %v3376, %v3392
      %v3401 = vcombine.high %v3376, %v3392
      %v3403 = vunpack.c.l.s4 1934713408
      %v3404 = vunpack.c.0.s8 %v3403
      %v3405 = vlaneseq
      %v3406 = vshrl.u32 %v3405, 7
      %v3407 = vsub.s32 %v3404, %v3406
      %v3408 = vrot.slane %v3400, %v3407
      %v3410 = vunpack.c.l.s4 1934713408
      %v3411 = vunpack.c.0.s8 %v3410
      %v3412 = vlaneseq
      %v3413 = vshrl.u32 %v3412, 7
      %v3414 = vsub.s32 %v3411, %v3413
      %v3415 = vrot.slane %v3401, %v3414
      %v3416 = vcombine.low %v3383, %v3399
      %v3417 = vcombine.high %v3383, %v3399
      %v3419 = vunpack.c.l.s4 1934713408
      %v3420 = vunpack.c.0.s8 %v3419
      %v3421 = vlaneseq
      %v3422 = vshrl.u32 %v3421, 7
      %v3423 = vsub.s32 %v3420, %v3422
      %v3424 = vrot.slane %v3416, %v3423
      %v3426 = vunpack.c.l.s4 1934713408
      %v3427 = vunpack.c.0.s8 %v3426
      %v3428 = vlaneseq
      %v3429 = vshrl.u32 %v3428, 7
      %v3430 = vsub.s32 %v3427, %v3429
      %v3431 = vrot.slane %v3417, %v3430
      %v3432 = vcombine.high %v3408, 0.0
      %v3433 = vcombine.high %v3415, 0.0
      %v3434 = vcombine.high %v3424, 0.0
      %v3435 = vcombine.high %v3431, 0.0
      %v3436 = vcombine.low %v2255, %v2319
      %v3437 = vcombine.high %v2255, %v2319
      %v3439 = vunpack.c.l.s4 1983009808
      %v3440 = vunpack.c.0.s8 %v3439
      %v3441 = vlaneseq
      %v3442 = vshrl.u32 %v3441, 7
      %v3443 = vsub.s32 %v3440, %v3442
      %v3444 = vrot.slane %v3436, %v3443
      %v3446 = vunpack.c.l.s4 1983009808
      %v3447 = vunpack.c.0.s8 %v3446
      %v3448 = vlaneseq
      %v3449 = vshrl.u32 %v3448, 7
      %v3450 = vsub.s32 %v3447, %v3449
      %v3451 = vrot.slane %v3437, %v3450
      %v3452 = vcombine.low %v2287, %v2351
      %v3453 = vcombine.high %v2287, %v2351
      %v3455 = vunpack.c.l.s4 1983009808
      %v3456 = vunpack.c.0.s8 %v3455
      %v3457 = vlaneseq
      %v3458 = vshrl.u32 %v3457, 7
      %v3459 = vsub.s32 %v3456, %v3458
      %v3460 = vrot.slane %v3452, %v3459
      %v3462 = vunpack.c.l.s4 1983009808
      %v3463 = vunpack.c.0.s8 %v3462
      %v3464 = vlaneseq
      %v3465 = vshrl.u32 %v3464, 7
      %v3466 = vsub.s32 %v3463, %v3465
      %v3467 = vrot.slane %v3453, %v3466
      %v3468 = vcombine.low %v3444, %v3460
      %v3469 = vcombine.high %v3444, %v3460
      %v3471 = vunpack.c.l.s4 1934713408
      %v3472 = vunpack.c.0.s8 %v3471
      %v3473 = vlaneseq
      %v3474 = vshrl.u32 %v3473, 7
      %v3475 = vsub.s32 %v3472, %v3474
      %v3476 = vrot.slane %v3468, %v3475
      %v3478 = vunpack.c.l.s4 1934713408
      %v3479 = vunpack.c.0.s8 %v3478
      %v3480 = vlaneseq
      %v3481 = vshrl.u32 %v3480, 7
      %v3482 = vsub.s32 %v3479, %v3481
      %v3483 = vrot.slane %v3469, %v3482
      %v3484 = vcombine.low %v3451, %v3467
      %v3485 = vcombine.high %v3451, %v3467
      %v3487 = vunpack.c.l.s4 1934713408
      %v3488 = vunpack.c.0.s8 %v3487
      %v3489 = vlaneseq
      %v3490 = vshrl.u32 %v3489, 7
      %v3491 = vsub.s32 %v3488, %v3490
      %v3492 = vrot.slane %v3484, %v3491
      %v3494 = vunpack.c.l.s4 1934713408
      %v3495 = vunpack.c.0.s8 %v3494
      %v3496 = vlaneseq
      %v3497 = vshrl.u32 %v3496, 7
      %v3498 = vsub.s32 %v3495, %v3497
      %v3499 = vrot.slane %v3485, %v3498
      %v3500 = vcombine.high %v3476, 0.0
      %v3501 = vcombine.high %v3483, 0.0
      %v3502 = vcombine.high %v3492, 0.0
      %v3503 = vcombine.high %v3499, 0.0
      %v3504 = vpack.c.bf16 %v2456, %v2456
      %v3505 = vpack.c.bf16 %v2480, %v2480
      %v3506 = vpack.c.bf16 %v2463, %v2463
      %v3507 = vpack.c.bf16 %v2481, %v2481
      %v3508 = vpack.c.bf16 %v2472, %v2472
      %v3509 = vpack.c.bf16 %v2482, %v2482
      %v3510 = vpack.c.bf16 %v2479, %v2479
      %v3511 = vpack.c.bf16 %v2483, %v2483
      %v3512 = vpack.c.bf16 %v2524, %v2524
      %v3513 = vpack.c.bf16 %v2548, %v2548
      %v3514 = vpack.c.bf16 %v2531, %v2531
      %v3515 = vpack.c.bf16 %v2549, %v2549
      %v3516 = vpack.c.bf16 %v2540, %v2540
      %v3517 = vpack.c.bf16 %v2550, %v2550
      %v3518 = vpack.c.bf16 %v2547, %v2547
      %v3519 = vpack.c.bf16 %v2551, %v2551
      %v3520 = vpack.c.bf16 %v2592, %v2592
      %v3521 = vpack.c.bf16 %v2616, %v2616
      %v3522 = vpack.c.bf16 %v2599, %v2599
      %v3523 = vpack.c.bf16 %v2617, %v2617
      %v3524 = vpack.c.bf16 %v2608, %v2608
      %v3525 = vpack.c.bf16 %v2618, %v2618
      %v3526 = vpack.c.bf16 %v2615, %v2615
      %v3527 = vpack.c.bf16 %v2619, %v2619
      %v3528 = vpack.c.bf16 %v2660, %v2660
      %v3529 = vpack.c.bf16 %v2684, %v2684
      %v3530 = vpack.c.bf16 %v2667, %v2667
      %v3531 = vpack.c.bf16 %v2685, %v2685
      %v3532 = vpack.c.bf16 %v2676, %v2676
      %v3533 = vpack.c.bf16 %v2686, %v2686
      %v3534 = vpack.c.bf16 %v2683, %v2683
      %v3535 = vpack.c.bf16 %v2687, %v2687
      %v3536 = vpack.c.bf16 %v2728, %v2728
      %v3537 = vpack.c.bf16 %v2752, %v2752
      %v3538 = vpack.c.bf16 %v2735, %v2735
      %v3539 = vpack.c.bf16 %v2753, %v2753
      %v3540 = vpack.c.bf16 %v2744, %v2744
      %v3541 = vpack.c.bf16 %v2754, %v2754
      %v3542 = vpack.c.bf16 %v2751, %v2751
      %v3543 = vpack.c.bf16 %v2755, %v2755
      %v3544 = vpack.c.bf16 %v2796, %v2796
      %v3545 = vpack.c.bf16 %v2820, %v2820
      %v3546 = vpack.c.bf16 %v2803, %v2803
      %v3547 = vpack.c.bf16 %v2821, %v2821
      %v3548 = vpack.c.bf16 %v2812, %v2812
      %v3549 = vpack.c.bf16 %v2822, %v2822
      %v3550 = vpack.c.bf16 %v2819, %v2819
      %v3551 = vpack.c.bf16 %v2823, %v2823
      %v3552 = vpack.c.bf16 %v2864, %v2864
      %v3553 = vpack.c.bf16 %v2888, %v2888
      %v3554 = vpack.c.bf16 %v2871, %v2871
      %v3555 = vpack.c.bf16 %v2889, %v2889
      %v3556 = vpack.c.bf16 %v2880, %v2880
      %v3557 = vpack.c.bf16 %v2890, %v2890
      %v3558 = vpack.c.bf16 %v2887, %v2887
      %v3559 = vpack.c.bf16 %v2891, %v2891
      %v3560 = vpack.c.bf16 %v2932, %v2932
      %v3561 = vpack.c.bf16 %v2956, %v2956
      %v3562 = vpack.c.bf16 %v2939, %v2939
      %v3563 = vpack.c.bf16 %v2957, %v2957
      %v3564 = vpack.c.bf16 %v2948, %v2948
      %v3565 = vpack.c.bf16 %v2958, %v2958
      %v3566 = vpack.c.bf16 %v2955, %v2955
      %v3567 = vpack.c.bf16 %v2959, %v2959
      %v3568 = vpack.c.bf16 %v3000, %v3000
      %v3569 = vpack.c.bf16 %v3024, %v3024
      %v3570 = vpack.c.bf16 %v3007, %v3007
      %v3571 = vpack.c.bf16 %v3025, %v3025
      %v3572 = vpack.c.bf16 %v3016, %v3016
      %v3573 = vpack.c.bf16 %v3026, %v3026
      %v3574 = vpack.c.bf16 %v3023, %v3023
      %v3575 = vpack.c.bf16 %v3027, %v3027
      %v3576 = vpack.c.bf16 %v3068, %v3068
      %v3577 = vpack.c.bf16 %v3092, %v3092
      %v3578 = vpack.c.bf16 %v3075, %v3075
      %v3579 = vpack.c.bf16 %v3093, %v3093
      %v3580 = vpack.c.bf16 %v3084, %v3084
      %v3581 = vpack.c.bf16 %v3094, %v3094
      %v3582 = vpack.c.bf16 %v3091, %v3091
      %v3583 = vpack.c.bf16 %v3095, %v3095
      %v3584 = vpack.c.bf16 %v3136, %v3136
      %v3585 = vpack.c.bf16 %v3160, %v3160
      %v3586 = vpack.c.bf16 %v3143, %v3143
      %v3587 = vpack.c.bf16 %v3161, %v3161
      %v3588 = vpack.c.bf16 %v3152, %v3152
      %v3589 = vpack.c.bf16 %v3162, %v3162
      %v3590 = vpack.c.bf16 %v3159, %v3159
      %v3591 = vpack.c.bf16 %v3163, %v3163
      %v3592 = vpack.c.bf16 %v3204, %v3204
      %v3593 = vpack.c.bf16 %v3228, %v3228
      %v3594 = vpack.c.bf16 %v3211, %v3211
      %v3595 = vpack.c.bf16 %v3229, %v3229
      %v3596 = vpack.c.bf16 %v3220, %v3220
      %v3597 = vpack.c.bf16 %v3230, %v3230
      %v3598 = vpack.c.bf16 %v3227, %v3227
      %v3599 = vpack.c.bf16 %v3231, %v3231
      %v3600 = vpack.c.bf16 %v3272, %v3272
      %v3601 = vpack.c.bf16 %v3296, %v3296
      %v3602 = vpack.c.bf16 %v3279, %v3279
      %v3603 = vpack.c.bf16 %v3297, %v3297
      %v3604 = vpack.c.bf16 %v3288, %v3288
      %v3605 = vpack.c.bf16 %v3298, %v3298
      %v3606 = vpack.c.bf16 %v3295, %v3295
      %v3607 = vpack.c.bf16 %v3299, %v3299
      %v3608 = vpack.c.bf16 %v3340, %v3340
      %v3609 = vpack.c.bf16 %v3364, %v3364
      %v3610 = vpack.c.bf16 %v3347, %v3347
      %v3611 = vpack.c.bf16 %v3365, %v3365
      %v3612 = vpack.c.bf16 %v3356, %v3356
      %v3613 = vpack.c.bf16 %v3366, %v3366
      %v3614 = vpack.c.bf16 %v3363, %v3363
      %v3615 = vpack.c.bf16 %v3367, %v3367
      %v3616 = vpack.c.bf16 %v3408, %v3408
      %v3617 = vpack.c.bf16 %v3432, %v3432
      %v3618 = vpack.c.bf16 %v3415, %v3415
      %v3619 = vpack.c.bf16 %v3433, %v3433
      %v3620 = vpack.c.bf16 %v3424, %v3424
      %v3621 = vpack.c.bf16 %v3434, %v3434
      %v3622 = vpack.c.bf16 %v3431, %v3431
      %v3623 = vpack.c.bf16 %v3435, %v3435
      %v3624 = vpack.c.bf16 %v3476, %v3476
      %v3625 = vpack.c.bf16 %v3500, %v3500
      %v3626 = vpack.c.bf16 %v3483, %v3483
      %v3627 = vpack.c.bf16 %v3501, %v3501
      %v3628 = vpack.c.bf16 %v3492, %v3492
      %v3629 = vpack.c.bf16 %v3502, %v3502
      %v3630 = vpack.c.bf16 %v3499, %v3499
      %v3631 = vpack.c.bf16 %v3503, %v3503
      %v3632 = vld [vmem:[%s490] sm:$0xff]
      %v3633 = vcombine.low %v840, %v844
      %v3635 = vunpack.c.l.s4 1983009808
      %v3636 = vunpack.c.0.s8 %v3635
      %v3637 = vlaneseq
      %v3638 = vshrl.u32 %v3637, 7
      %v3639 = vsub.s32 %v3636, %v3638
      %v3640 = vrot.slane %v3633, %v3639
      %v3641 = vcombine.low %v842, %v846
      %v3643 = vunpack.c.l.s4 1983009808
      %v3644 = vunpack.c.0.s8 %v3643
      %v3645 = vlaneseq
      %v3646 = vshrl.u32 %v3645, 7
      %v3647 = vsub.s32 %v3644, %v3646
      %v3648 = vrot.slane %v3641, %v3647
      %v3649 = vcombine.low %v3640, %v3648
      %v3651 = vunpack.c.l.s4 1934713408
      %v3652 = vunpack.c.0.s8 %v3651
      %v3653 = vlaneseq
      %v3654 = vshrl.u32 %v3653, 7
      %v3655 = vsub.s32 %v3652, %v3654
      %v3656 = vrot.slane %v3649, %v3655
      %v3657 = vcombine.high %v3656, 0
      %v3658 = vcombine.low %v841, %v845
      %v3660 = vunpack.c.l.s4 1983009808
      %v3661 = vunpack.c.0.s8 %v3660
      %v3662 = vlaneseq
      %v3663 = vshrl.u32 %v3662, 7
      %v3664 = vsub.s32 %v3661, %v3663
      %v3665 = vrot.slane %v3658, %v3664
      %v3666 = vcombine.low %v843, %v847
      %v3668 = vunpack.c.l.s4 1983009808
      %v3669 = vunpack.c.0.s8 %v3668
      %v3670 = vlaneseq
      %v3671 = vshrl.u32 %v3670, 7
      %v3672 = vsub.s32 %v3669, %v3671
      %v3673 = vrot.slane %v3666, %v3672
      %v3674 = vcombine.low %v3665, %v3673
      %v3676 = vunpack.c.l.s4 1934713408
      %v3677 = vunpack.c.0.s8 %v3676
      %v3678 = vlaneseq
      %v3679 = vshrl.u32 %v3678, 7
      %v3680 = vsub.s32 %v3677, %v3679
      %v3681 = vrot.slane %v3674, %v3680
      %v3682 = vcombine.high %v3681, 0
      %v3685 = vpack.i.b16 %v3681, %v3656
      %v3686 = vshrl.u32 %v3656, 16
      %v3687 = vshrl.u32 %v3681, 16
      %v3688 = vpack.i.b16 %v3687, %v3686
      %v3691 = vpack.i.b16 %v3682, %v3657
      %v3692 = vshrl.u32 %v3657, 16
      %v3693 = vshrl.u32 %v3682, 16
      %v3694 = vpack.i.b16 %v3693, %v3692
      %3695 = vxpose.xlu0.c.b16.start [1/8] %v2096, 128
      %3696 = vxpose.xlu0.c.b16.cont [2/8] 0, 128
      %3697 = vxpose.xlu0.c.b16.cont [3/8] 0, 128
      %3698 = vxpose.xlu0.c.b16.cont [4/8] 0, 128
      %3699 = vxpose.xlu0.c.b16.cont [5/8] 0, 128
      %3700 = vxpose.xlu0.c.b16.cont [6/8] 0, 128
      %3701 = vxpose.xlu0.c.b16.cont [7/8] 0, 128
      %3702 = vxpose.xlu0.c.b16.end [8/8] 0, 128
      %v3703 = vpop.trf.xlu0
      %v3704 = vpop.trf.xlu0
      %v3705 = vpop.trf.xlu0
      %v3706 = vpop.trf.xlu0
      %v3707 = vpop.trf.xlu0
      %v3708 = vpop.trf.xlu0
      %v3709 = vpop.trf.xlu0
      %v3710 = vpop.trf.xlu0
      %3711 = vxpose.xlu0.c.b16.start [1/8] %v2097, 128
      %3712 = vxpose.xlu0.c.b16.cont [2/8] 0, 128
      %3713 = vxpose.xlu0.c.b16.cont [3/8] 0, 128
      %3714 = vxpose.xlu0.c.b16.cont [4/8] 0, 128
      %3715 = vxpose.xlu0.c.b16.cont [5/8] 0, 128
      %3716 = vxpose.xlu0.c.b16.cont [6/8] 0, 128
      %3717 = vxpose.xlu0.c.b16.cont [7/8] 0, 128
      %3718 = vxpose.xlu0.c.b16.end [8/8] 0, 128
      %v3719 = vpop.trf.xlu0
      %v3720 = vpop.trf.xlu0
      %v3721 = vpop.trf.xlu0
      %v3722 = vpop.trf.xlu0
      %v3723 = vpop.trf.xlu0
      %v3724 = vpop.trf.xlu0
      %v3725 = vpop.trf.xlu0
      %v3726 = vpop.trf.xlu0
      %3727 = vxpose.xlu0.c.b16.start [1/8] %v2098, 128
      %3728 = vxpose.xlu0.c.b16.cont [2/8] 0, 128
      %3729 = vxpose.xlu0.c.b16.cont [3/8] 0, 128
      %3730 = vxpose.xlu0.c.b16.cont [4/8] 0, 128
      %3731 = vxpose.xlu0.c.b16.cont [5/8] 0, 128
      %3732 = vxpose.xlu0.c.b16.cont [6/8] 0, 128
      %3733 = vxpose.xlu0.c.b16.cont [7/8] 0, 128
      %3734 = vxpose.xlu0.c.b16.end [8/8] 0, 128
      %v3735 = vpop.trf.xlu0
      %v3736 = vpop.trf.xlu0
      %v3737 = vpop.trf.xlu0
      %v3738 = vpop.trf.xlu0
      %v3739 = vpop.trf.xlu0
      %v3740 = vpop.trf.xlu0
      %v3741 = vpop.trf.xlu0
      %v3742 = vpop.trf.xlu0
      %3743 = vxpose.xlu0.c.b16.start [1/8] %v2099, 128
      %3744 = vxpose.xlu0.c.b16.cont [2/8] 0, 128
      %3745 = vxpose.xlu0.c.b16.cont [3/8] 0, 128
      %3746 = vxpose.xlu0.c.b16.cont [4/8] 0, 128
      %3747 = vxpose.xlu0.c.b16.cont [5/8] 0, 128
      %3748 = vxpose.xlu0.c.b16.cont [6/8] 0, 128
      %3749 = vxpose.xlu0.c.b16.cont [7/8] 0, 128
      %3750 = vxpose.xlu0.c.b16.end [8/8] 0, 128
      %v3751 = vpop.trf.xlu0
      %v3752 = vpop.trf.xlu0
      %v3753 = vpop.trf.xlu0
      %v3754 = vpop.trf.xlu0
      %v3755 = vpop.trf.xlu0
      %v3756 = vpop.trf.xlu0
      %v3757 = vpop.trf.xlu0
      %v3758 = vpop.trf.xlu0
      %3759 = vxpose.xlu0.c.b16.start [1/8] %v2100, 128
      %3760 = vxpose.xlu0.c.b16.cont [2/8] 0, 128
      %3761 = vxpose.xlu0.c.b16.cont [3/8] 0, 128
      %3762 = vxpose.xlu0.c.b16.cont [4/8] 0, 128
      %3763 = vxpose.xlu0.c.b16.cont [5/8] 0, 128
      %3764 = vxpose.xlu0.c.b16.cont [6/8] 0, 128
      %3765 = vxpose.xlu0.c.b16.cont [7/8] 0, 128
      %3766 = vxpose.xlu0.c.b16.end [8/8] 0, 128
      %v3767 = vpop.trf.xlu0
      %v3768 = vpop.trf.xlu0
      %v3769 = vpop.trf.xlu0
      %v3770 = vpop.trf.xlu0
      %v3771 = vpop.trf.xlu0
      %v3772 = vpop.trf.xlu0
      %v3773 = vpop.trf.xlu0
      %v3774 = vpop.trf.xlu0
      %3775 = vxpose.xlu0.c.b16.start [1/8] %v2101, 128
      %3776 = vxpose.xlu0.c.b16.cont [2/8] 0, 128
      %3777 = vxpose.xlu0.c.b16.cont [3/8] 0, 128
      %3778 = vxpose.xlu0.c.b16.cont [4/8] 0, 128
      %3779 = vxpose.xlu0.c.b16.cont [5/8] 0, 128
      %3780 = vxpose.xlu0.c.b16.cont [6/8] 0, 128
      %3781 = vxpose.xlu0.c.b16.cont [7/8] 0, 128
      %3782 = vxpose.xlu0.c.b16.end [8/8] 0, 128
      %v3783 = vpop.trf.xlu0
      %v3784 = vpop.trf.xlu0
      %v3785 = vpop.trf.xlu0
      %v3786 = vpop.trf.xlu0
      %v3787 = vpop.trf.xlu0
      %v3788 = vpop.trf.xlu0
      %v3789 = vpop.trf.xlu0
      %v3790 = vpop.trf.xlu0
      %3791 = vxpose.xlu0.c.b16.start [1/8] %v2102, 128
      %3792 = vxpose.xlu0.c.b16.cont [2/8] 0, 128
      %3793 = vxpose.xlu0.c.b16.cont [3/8] 0, 128
      %3794 = vxpose.xlu0.c.b16.cont [4/8] 0, 128
      %3795 = vxpose.xlu0.c.b16.cont [5/8] 0, 128
      %3796 = vxpose.xlu0.c.b16.cont [6/8] 0, 128
      %3797 = vxpose.xlu0.c.b16.cont [7/8] 0, 128
      %3798 = vxpose.xlu0.c.b16.end [8/8] 0, 128
      %v3799 = vpop.trf.xlu0
      %v3800 = vpop.trf.xlu0
      %v3801 = vpop.trf.xlu0
      %v3802 = vpop.trf.xlu0
      %v3803 = vpop.trf.xlu0
      %v3804 = vpop.trf.xlu0
      %v3805 = vpop.trf.xlu0
      %v3806 = vpop.trf.xlu0
      %3807 = vxpose.xlu0.c.b16.start [1/8] %v2103, 128
      %3808 = vxpose.xlu0.c.b16.cont [2/8] 0, 128
      %3809 = vxpose.xlu0.c.b16.cont [3/8] 0, 128
      %3810 = vxpose.xlu0.c.b16.cont [4/8] 0, 128
      %3811 = vxpose.xlu0.c.b16.cont [5/8] 0, 128
      %3812 = vxpose.xlu0.c.b16.cont [6/8] 0, 128
      %3813 = vxpose.xlu0.c.b16.cont [7/8] 0, 128
      %3814 = vxpose.xlu0.c.b16.end [8/8] 0, 128
      %v3815 = vpop.trf.xlu0
      %v3816 = vpop.trf.xlu0
      %v3817 = vpop.trf.xlu0
      %v3818 = vpop.trf.xlu0
      %v3819 = vpop.trf.xlu0
      %v3820 = vpop.trf.xlu0
      %v3821 = vpop.trf.xlu0
      %v3822 = vpop.trf.xlu0
      %3823 = vxpose.xlu0.c.b16.start [1/8] %v2104, 128
      %3824 = vxpose.xlu0.c.b16.cont [2/8] 0, 128
      %3825 = vxpose.xlu0.c.b16.cont [3/8] 0, 128
      %3826 = vxpose.xlu0.c.b16.cont [4/8] 0, 128
      %3827 = vxpose.xlu0.c.b16.cont [5/8] 0, 128
      %3828 = vxpose.xlu0.c.b16.cont [6/8] 0, 128
      %3829 = vxpose.xlu0.c.b16.cont [7/8] 0, 128
      %3830 = vxpose.xlu0.c.b16.end [8/8] 0, 128
      %v3831 = vpop.trf.xlu0
      %v3832 = vpop.trf.xlu0
      %v3833 = vpop.trf.xlu0
      %v3834 = vpop.trf.xlu0
      %v3835 = vpop.trf.xlu0
      %v3836 = vpop.trf.xlu0
      %v3837 = vpop.trf.xlu0
      %v3838 = vpop.trf.xlu0
      %3839 = vxpose.xlu0.c.b16.start [1/8] %v2105, 128
      %3840 = vxpose.xlu0.c.b16.cont [2/8] 0, 128
      %3841 = vxpose.xlu0.c.b16.cont [3/8] 0, 128
      %3842 = vxpose.xlu0.c.b16.cont [4/8] 0, 128
      %3843 = vxpose.xlu0.c.b16.cont [5/8] 0, 128
      %3844 = vxpose.xlu0.c.b16.cont [6/8] 0, 128
      %3845 = vxpose.xlu0.c.b16.cont [7/8] 0, 128
      %3846 = vxpose.xlu0.c.b16.end [8/8] 0, 128
      %v3847 = vpop.trf.xlu0
      %v3848 = vpop.trf.xlu0
      %v3849 = vpop.trf.xlu0
      %v3850 = vpop.trf.xlu0
      %v3851 = vpop.trf.xlu0
      %v3852 = vpop.trf.xlu0
      %v3853 = vpop.trf.xlu0
      %v3854 = vpop.trf.xlu0
      %3855 = vxpose.xlu0.c.b16.start [1/8] %v2106, 128
      %3856 = vxpose.xlu0.c.b16.cont [2/8] 0, 128
      %3857 = vxpose.xlu0.c.b16.cont [3/8] 0, 128
      %3858 = vxpose.xlu0.c.b16.cont [4/8] 0, 128
      %3859 = vxpose.xlu0.c.b16.cont [5/8] 0, 128
      %3860 = vxpose.xlu0.c.b16.cont [6/8] 0, 128
      %3861 = vxpose.xlu0.c.b16.cont [7/8] 0, 128
      %3862 = vxpose.xlu0.c.b16.end [8/8] 0, 128
      %v3863 = vpop.trf.xlu0
      %v3864 = vpop.trf.xlu0
      %v3865 = vpop.trf.xlu0
      %v3866 = vpop.trf.xlu0
      %v3867 = vpop.trf.xlu0
      %v3868 = vpop.trf.xlu0
      %v3869 = vpop.trf.xlu0
      %v3870 = vpop.trf.xlu0
      %3871 = vxpose.xlu0.c.b16.start [1/8] %v2107, 128
      %3872 = vxpose.xlu0.c.b16.cont [2/8] 0, 128
      %3873 = vxpose.xlu0.c.b16.cont [3/8] 0, 128
      %3874 = vxpose.xlu0.c.b16.cont [4/8] 0, 128
      %3875 = vxpose.xlu0.c.b16.cont [5/8] 0, 128
      %3876 = vxpose.xlu0.c.b16.cont [6/8] 0, 128
      %3877 = vxpose.xlu0.c.b16.cont [7/8] 0, 128
      %3878 = vxpose.xlu0.c.b16.end [8/8] 0, 128
      %v3879 = vpop.trf.xlu0
      %v3880 = vpop.trf.xlu0
      %v3881 = vpop.trf.xlu0
      %v3882 = vpop.trf.xlu0
      %v3883 = vpop.trf.xlu0
      %v3884 = vpop.trf.xlu0
      %v3885 = vpop.trf.xlu0
      %v3886 = vpop.trf.xlu0
      %3887 = vxpose.xlu0.c.b16.start [1/8] %v2108, 128
      %3888 = vxpose.xlu0.c.b16.cont [2/8] 0, 128
      %3889 = vxpose.xlu0.c.b16.cont [3/8] 0, 128
      %3890 = vxpose.xlu0.c.b16.cont [4/8] 0, 128
      %3891 = vxpose.xlu0.c.b16.cont [5/8] 0, 128
      %3892 = vxpose.xlu0.c.b16.cont [6/8] 0, 128
      %3893 = vxpose.xlu0.c.b16.cont [7/8] 0, 128
      %3894 = vxpose.xlu0.c.b16.end [8/8] 0, 128
      %v3895 = vpop.trf.xlu0
      %v3896 = vpop.trf.xlu0
      %v3897 = vpop.trf.xlu0
      %v3898 = vpop.trf.xlu0
      %v3899 = vpop.trf.xlu0
      %v3900 = vpop.trf.xlu0
      %v3901 = vpop.trf.xlu0
      %v3902 = vpop.trf.xlu0
      %3903 = vxpose.xlu0.c.b16.start [1/8] %v2109, 128
      %3904 = vxpose.xlu0.c.b16.cont [2/8] 0, 128
      %3905 = vxpose.xlu0.c.b16.cont [3/8] 0, 128
      %3906 = vxpose.xlu0.c.b16.cont [4/8] 0, 128
      %3907 = vxpose.xlu0.c.b16.cont [5/8] 0, 128
      %3908 = vxpose.xlu0.c.b16.cont [6/8] 0, 128
      %3909 = vxpose.xlu0.c.b16.cont [7/8] 0, 128
      %3910 = vxpose.xlu0.c.b16.end [8/8] 0, 128
      %v3911 = vpop.trf.xlu0
      %v3912 = vpop.trf.xlu0
      %v3913 = vpop.trf.xlu0
      %v3914 = vpop.trf.xlu0
      %v3915 = vpop.trf.xlu0
      %v3916 = vpop.trf.xlu0
      %v3917 = vpop.trf.xlu0
      %v3918 = vpop.trf.xlu0
      %3919 = vxpose.xlu0.c.b16.start [1/8] %v2110, 128
      %3920 = vxpose.xlu0.c.b16.cont [2/8] 0, 128
      %3921 = vxpose.xlu0.c.b16.cont [3/8] 0, 128
      %3922 = vxpose.xlu0.c.b16.cont [4/8] 0, 128
      %3923 = vxpose.xlu0.c.b16.cont [5/8] 0, 128
      %3924 = vxpose.xlu0.c.b16.cont [6/8] 0, 128
      %3925 = vxpose.xlu0.c.b16.cont [7/8] 0, 128
      %3926 = vxpose.xlu0.c.b16.end [8/8] 0, 128
      %v3927 = vpop.trf.xlu0
      %v3928 = vpop.trf.xlu0
      %v3929 = vpop.trf.xlu0
      %v3930 = vpop.trf.xlu0
      %v3931 = vpop.trf.xlu0
      %v3932 = vpop.trf.xlu0
      %v3933 = vpop.trf.xlu0
      %v3934 = vpop.trf.xlu0
      %3935 = vxpose.xlu0.c.b16.start [1/8] %v2111, 128
      %3936 = vxpose.xlu0.c.b16.cont [2/8] 0, 128
      %3937 = vxpose.xlu0.c.b16.cont [3/8] 0, 128
      %3938 = vxpose.xlu0.c.b16.cont [4/8] 0, 128
      %3939 = vxpose.xlu0.c.b16.cont [5/8] 0, 128
      %3940 = vxpose.xlu0.c.b16.cont [6/8] 0, 128
      %3941 = vxpose.xlu0.c.b16.cont [7/8] 0, 128
      %3942 = vxpose.xlu0.c.b16.end [8/8] 0, 128
      %v3943 = vpop.trf.xlu0
      %v3944 = vpop.trf.xlu0
      %v3945 = vpop.trf.xlu0
      %v3946 = vpop.trf.xlu0
      %v3947 = vpop.trf.xlu0
      %v3948 = vpop.trf.xlu0
      %v3949 = vpop.trf.xlu0
      %v3950 = vpop.trf.xlu0
      %3951 = vxpose.xlu0.c.b16.start [1/8] %v2112, 128
      %3952 = vxpose.xlu0.c.b16.cont [2/8] 0, 128
      %3953 = vxpose.xlu0.c.b16.cont [3/8] 0, 128
      %3954 = vxpose.xlu0.c.b16.cont [4/8] 0, 128
      %3955 = vxpose.xlu0.c.b16.cont [5/8] 0, 128
      %3956 = vxpose.xlu0.c.b16.cont [6/8] 0, 128
      %3957 = vxpose.xlu0.c.b16.cont [7/8] 0, 128
      %3958 = vxpose.xlu0.c.b16.end [8/8] 0, 128
      %v3959 = vpop.trf.xlu0
      %v3960 = vpop.trf.xlu0
      %v3961 = vpop.trf.xlu0
      %v3962 = vpop.trf.xlu0
      %v3963 = vpop.trf.xlu0
      %v3964 = vpop.trf.xlu0
      %v3965 = vpop.trf.xlu0
      %v3966 = vpop.trf.xlu0
      %3967 = vxpose.xlu0.c.b16.start [1/8] %v2113, 128
      %3968 = vxpose.xlu0.c.b16.cont [2/8] 0, 128
      %3969 = vxpose.xlu0.c.b16.cont [3/8] 0, 128
      %3970 = vxpose.xlu0.c.b16.cont [4/8] 0, 128
      %3971 = vxpose.xlu0.c.b16.cont [5/8] 0, 128
      %3972 = vxpose.xlu0.c.b16.cont [6/8] 0, 128
      %3973 = vxpose.xlu0.c.b16.cont [7/8] 0, 128
      %3974 = vxpose.xlu0.c.b16.end [8/8] 0, 128
      %v3975 = vpop.trf.xlu0
      %v3976 = vpop.trf.xlu0
      %v3977 = vpop.trf.xlu0
      %v3978 = vpop.trf.xlu0
      %v3979 = vpop.trf.xlu0
      %v3980 = vpop.trf.xlu0
      %v3981 = vpop.trf.xlu0
      %v3982 = vpop.trf.xlu0
      %3983 = vxpose.xlu0.c.b16.start [1/8] %v2114, 128
      %3984 = vxpose.xlu0.c.b16.cont [2/8] 0, 128
      %3985 = vxpose.xlu0.c.b16.cont [3/8] 0, 128
      %3986 = vxpose.xlu0.c.b16.cont [4/8] 0, 128
      %3987 = vxpose.xlu0.c.b16.cont [5/8] 0, 128
      %3988 = vxpose.xlu0.c.b16.cont [6/8] 0, 128
      %3989 = vxpose.xlu0.c.b16.cont [7/8] 0, 128
      %3990 = vxpose.xlu0.c.b16.end [8/8] 0, 128
      %v3991 = vpop.trf.xlu0
      %v3992 = vpop.trf.xlu0
      %v3993 = vpop.trf.xlu0
      %v3994 = vpop.trf.xlu0
      %v3995 = vpop.trf.xlu0
      %v3996 = vpop.trf.xlu0
      %v3997 = vpop.trf.xlu0
      %v3998 = vpop.trf.xlu0
      %3999 = vxpose.xlu0.c.b16.start [1/8] %v2115, 128
      %4000 = vxpose.xlu0.c.b16.cont [2/8] 0, 128
      %4001 = vxpose.xlu0.c.b16.cont [3/8] 0, 128
      %4002 = vxpose.xlu0.c.b16.cont [4/8] 0, 128
      %4003 = vxpose.xlu0.c.b16.cont [5/8] 0, 128
      %4004 = vxpose.xlu0.c.b16.cont [6/8] 0, 128
      %4005 = vxpose.xlu0.c.b16.cont [7/8] 0, 128
      %4006 = vxpose.xlu0.c.b16.end [8/8] 0, 128
      %v4007 = vpop.trf.xlu0
      %v4008 = vpop.trf.xlu0
      %v4009 = vpop.trf.xlu0
      %v4010 = vpop.trf.xlu0
      %v4011 = vpop.trf.xlu0
      %v4012 = vpop.trf.xlu0
      %v4013 = vpop.trf.xlu0
      %v4014 = vpop.trf.xlu0
      %4015 = vxpose.xlu0.c.b16.start [1/8] %v2116, 128
      %4016 = vxpose.xlu0.c.b16.cont [2/8] 0, 128
      %4017 = vxpose.xlu0.c.b16.cont [3/8] 0, 128
      %4018 = vxpose.xlu0.c.b16.cont [4/8] 0, 128
      %4019 = vxpose.xlu0.c.b16.cont [5/8] 0, 128
      %4020 = vxpose.xlu0.c.b16.cont [6/8] 0, 128
      %4021 = vxpose.xlu0.c.b16.cont [7/8] 0, 128
      %4022 = vxpose.xlu0.c.b16.end [8/8] 0, 128
      %v4023 = vpop.trf.xlu0
      %v4024 = vpop.trf.xlu0
      %v4025 = vpop.trf.xlu0
      %v4026 = vpop.trf.xlu0
      %v4027 = vpop.trf.xlu0
      %v4028 = vpop.trf.xlu0
      %v4029 = vpop.trf.xlu0
      %v4030 = vpop.trf.xlu0
      %4031 = vxpose.xlu0.c.b16.start [1/8] %v2117, 128
      %4032 = vxpose.xlu0.c.b16.cont [2/8] 0, 128
      %4033 = vxpose.xlu0.c.b16.cont [3/8] 0, 128
      %4034 = vxpose.xlu0.c.b16.cont [4/8] 0, 128
      %4035 = vxpose.xlu0.c.b16.cont [5/8] 0, 128
      %4036 = vxpose.xlu0.c.b16.cont [6/8] 0, 128
      %4037 = vxpose.xlu0.c.b16.cont [7/8] 0, 128
      %4038 = vxpose.xlu0.c.b16.end [8/8] 0, 128
      %v4039 = vpop.trf.xlu0
      %v4040 = vpop.trf.xlu0
      %v4041 = vpop.trf.xlu0
      %v4042 = vpop.trf.xlu0
      %v4043 = vpop.trf.xlu0
      %v4044 = vpop.trf.xlu0
      %v4045 = vpop.trf.xlu0
      %v4046 = vpop.trf.xlu0
      %4047 = vxpose.xlu0.c.b16.start [1/8] %v2118, 128
      %4048 = vxpose.xlu0.c.b16.cont [2/8] 0, 128
      %4049 = vxpose.xlu0.c.b16.cont [3/8] 0, 128
      %4050 = vxpose.xlu0.c.b16.cont [4/8] 0, 128
      %4051 = vxpose.xlu0.c.b16.cont [5/8] 0, 128
      %4052 = vxpose.xlu0.c.b16.cont [6/8] 0, 128
      %4053 = vxpose.xlu0.c.b16.cont [7/8] 0, 128
      %4054 = vxpose.xlu0.c.b16.end [8/8] 0, 128
      %v4055 = vpop.trf.xlu0
      %v4056 = vpop.trf.xlu0
      %v4057 = vpop.trf.xlu0
      %v4058 = vpop.trf.xlu0
      %v4059 = vpop.trf.xlu0
      %v4060 = vpop.trf.xlu0
      %v4061 = vpop.trf.xlu0
      %v4062 = vpop.trf.xlu0
      %4063 = vxpose.xlu0.c.b16.start [1/8] %v2119, 128
      %4064 = vxpose.xlu0.c.b16.cont [2/8] 0, 128
      %4065 = vxpose.xlu0.c.b16.cont [3/8] 0, 128
      %4066 = vxpose.xlu0.c.b16.cont [4/8] 0, 128
      %4067 = vxpose.xlu0.c.b16.cont [5/8] 0, 128
      %4068 = vxpose.xlu0.c.b16.cont [6/8] 0, 128
      %4069 = vxpose.xlu0.c.b16.cont [7/8] 0, 128
      %4070 = vxpose.xlu0.c.b16.end [8/8] 0, 128
      %v4071 = vpop.trf.xlu0
      %v4072 = vpop.trf.xlu0
      %v4073 = vpop.trf.xlu0
      %v4074 = vpop.trf.xlu0
      %v4075 = vpop.trf.xlu0
      %v4076 = vpop.trf.xlu0
      %v4077 = vpop.trf.xlu0
      %v4078 = vpop.trf.xlu0
      %4079 = vxpose.xlu0.c.b16.start [1/8] %v2120, 128
      %4080 = vxpose.xlu0.c.b16.cont [2/8] 0, 128
      %4081 = vxpose.xlu0.c.b16.cont [3/8] 0, 128
      %4082 = vxpose.xlu0.c.b16.cont [4/8] 0, 128
      %4083 = vxpose.xlu0.c.b16.cont [5/8] 0, 128
      %4084 = vxpose.xlu0.c.b16.cont [6/8] 0, 128
      %4085 = vxpose.xlu0.c.b16.cont [7/8] 0, 128
      %4086 = vxpose.xlu0.c.b16.end [8/8] 0, 128
      %v4087 = vpop.trf.xlu0
      %v4088 = vpop.trf.xlu0
      %v4089 = vpop.trf.xlu0
      %v4090 = vpop.trf.xlu0
      %v4091 = vpop.trf.xlu0
      %v4092 = vpop.trf.xlu0
      %v4093 = vpop.trf.xlu0
      %v4094 = vpop.trf.xlu0
      %4095 = vxpose.xlu0.c.b16.start [1/8] %v2121, 128
      %4096 = vxpose.xlu0.c.b16.cont [2/8] 0, 128
      %4097 = vxpose.xlu0.c.b16.cont [3/8] 0, 128
      %4098 = vxpose.xlu0.c.b16.cont [4/8] 0, 128
      %4099 = vxpose.xlu0.c.b16.cont [5/8] 0, 128
      %4100 = vxpose.xlu0.c.b16.cont [6/8] 0, 128
      %4101 = vxpose.xlu0.c.b16.cont [7/8] 0, 128
      %4102 = vxpose.xlu0.c.b16.end [8/8] 0, 128
      %v4103 = vpop.trf.xlu0
      %v4104 = vpop.trf.xlu0
      %v4105 = vpop.trf.xlu0
      %v4106 = vpop.trf.xlu0
      %v4107 = vpop.trf.xlu0
      %v4108 = vpop.trf.xlu0
      %v4109 = vpop.trf.xlu0
      %v4110 = vpop.trf.xlu0
      %4111 = vxpose.xlu0.c.b16.start [1/8] %v2122, 128
      %4112 = vxpose.xlu0.c.b16.cont [2/8] 0, 128
      %4113 = vxpose.xlu0.c.b16.cont [3/8] 0, 128
      %4114 = vxpose.xlu0.c.b16.cont [4/8] 0, 128
      %4115 = vxpose.xlu0.c.b16.cont [5/8] 0, 128
      %4116 = vxpose.xlu0.c.b16.cont [6/8] 0, 128
      %4117 = vxpose.xlu0.c.b16.cont [7/8] 0, 128
      %4118 = vxpose.xlu0.c.b16.end [8/8] 0, 128
      %v4119 = vpop.trf.xlu0
      %v4120 = vpop.trf.xlu0
      %v4121 = vpop.trf.xlu0
      %v4122 = vpop.trf.xlu0
      %v4123 = vpop.trf.xlu0
      %v4124 = vpop.trf.xlu0
      %v4125 = vpop.trf.xlu0
      %v4126 = vpop.trf.xlu0
      %4127 = vxpose.xlu0.c.b16.start [1/8] %v2123, 128
      %4128 = vxpose.xlu0.c.b16.cont [2/8] 0, 128
      %4129 = vxpose.xlu0.c.b16.cont [3/8] 0, 128
      %4130 = vxpose.xlu0.c.b16.cont [4/8] 0, 128
      %4131 = vxpose.xlu0.c.b16.cont [5/8] 0, 128
      %4132 = vxpose.xlu0.c.b16.cont [6/8] 0, 128
      %4133 = vxpose.xlu0.c.b16.cont [7/8] 0, 128
      %4134 = vxpose.xlu0.c.b16.end [8/8] 0, 128
      %v4135 = vpop.trf.xlu0
      %v4136 = vpop.trf.xlu0
      %v4137 = vpop.trf.xlu0
      %v4138 = vpop.trf.xlu0
      %v4139 = vpop.trf.xlu0
      %v4140 = vpop.trf.xlu0
      %v4141 = vpop.trf.xlu0
      %v4142 = vpop.trf.xlu0
      %4143 = vxpose.xlu0.c.b16.start [1/8] %v2124, 128
      %4144 = vxpose.xlu0.c.b16.cont [2/8] 0, 128
      %4145 = vxpose.xlu0.c.b16.cont [3/8] 0, 128
      %4146 = vxpose.xlu0.c.b16.cont [4/8] 0, 128
      %4147 = vxpose.xlu0.c.b16.cont [5/8] 0, 128
      %4148 = vxpose.xlu0.c.b16.cont [6/8] 0, 128
      %4149 = vxpose.xlu0.c.b16.cont [7/8] 0, 128
      %4150 = vxpose.xlu0.c.b16.end [8/8] 0, 128
      %v4151 = vpop.trf.xlu0
      %v4152 = vpop.trf.xlu0
      %v4153 = vpop.trf.xlu0
      %v4154 = vpop.trf.xlu0
      %v4155 = vpop.trf.xlu0
      %v4156 = vpop.trf.xlu0
      %v4157 = vpop.trf.xlu0
      %v4158 = vpop.trf.xlu0
      %4159 = vxpose.xlu0.c.b16.start [1/8] %v2125, 128
      %4160 = vxpose.xlu0.c.b16.cont [2/8] 0, 128
      %4161 = vxpose.xlu0.c.b16.cont [3/8] 0, 128
      %4162 = vxpose.xlu0.c.b16.cont [4/8] 0, 128
      %4163 = vxpose.xlu0.c.b16.cont [5/8] 0, 128
      %4164 = vxpose.xlu0.c.b16.cont [6/8] 0, 128
      %4165 = vxpose.xlu0.c.b16.cont [7/8] 0, 128
      %4166 = vxpose.xlu0.c.b16.end [8/8] 0, 128
      %v4167 = vpop.trf.xlu0
      %v4168 = vpop.trf.xlu0
      %v4169 = vpop.trf.xlu0
      %v4170 = vpop.trf.xlu0
      %v4171 = vpop.trf.xlu0
      %v4172 = vpop.trf.xlu0
      %v4173 = vpop.trf.xlu0
      %v4174 = vpop.trf.xlu0
      %4175 = vxpose.xlu0.c.b16.start [1/8] %v2126, 128
      %4176 = vxpose.xlu0.c.b16.cont [2/8] 0, 128
      %4177 = vxpose.xlu0.c.b16.cont [3/8] 0, 128
      %4178 = vxpose.xlu0.c.b16.cont [4/8] 0, 128
      %4179 = vxpose.xlu0.c.b16.cont [5/8] 0, 128
      %4180 = vxpose.xlu0.c.b16.cont [6/8] 0, 128
      %4181 = vxpose.xlu0.c.b16.cont [7/8] 0, 128
      %4182 = vxpose.xlu0.c.b16.end [8/8] 0, 128
      %v4183 = vpop.trf.xlu0
      %v4184 = vpop.trf.xlu0
      %v4185 = vpop.trf.xlu0
      %v4186 = vpop.trf.xlu0
      %v4187 = vpop.trf.xlu0
      %v4188 = vpop.trf.xlu0
      %v4189 = vpop.trf.xlu0
      %v4190 = vpop.trf.xlu0
      %4191 = vxpose.xlu0.c.b16.start [1/8] %v2127, 128
      %4192 = vxpose.xlu0.c.b16.cont [2/8] 0, 128
      %4193 = vxpose.xlu0.c.b16.cont [3/8] 0, 128
      %4194 = vxpose.xlu0.c.b16.cont [4/8] 0, 128
      %4195 = vxpose.xlu0.c.b16.cont [5/8] 0, 128
      %4196 = vxpose.xlu0.c.b16.cont [6/8] 0, 128
      %4197 = vxpose.xlu0.c.b16.cont [7/8] 0, 128
      %4198 = vxpose.xlu0.c.b16.end [8/8] 0, 128
      %v4199 = vpop.trf.xlu0
      %v4200 = vpop.trf.xlu0
      %v4201 = vpop.trf.xlu0
      %v4202 = vpop.trf.xlu0
      %v4203 = vpop.trf.xlu0
      %v4204 = vpop.trf.xlu0
      %v4205 = vpop.trf.xlu0
      %v4206 = vpop.trf.xlu0
      %4207 = vxpose.xlu0.c.b16.start [1/8] %v2128, 128
      %4208 = vxpose.xlu0.c.b16.cont [2/8] 0, 128
      %4209 = vxpose.xlu0.c.b16.cont [3/8] 0, 128
      %4210 = vxpose.xlu0.c.b16.cont [4/8] 0, 128
      %4211 = vxpose.xlu0.c.b16.cont [5/8] 0, 128
      %4212 = vxpose.xlu0.c.b16.cont [6/8] 0, 128
      %4213 = vxpose.xlu0.c.b16.cont [7/8] 0, 128
      %4214 = vxpose.xlu0.c.b16.end [8/8] 0, 128
      %v4215 = vpop.trf.xlu0
      %v4216 = vpop.trf.xlu0
      %v4217 = vpop.trf.xlu0
      %v4218 = vpop.trf.xlu0
      %v4219 = vpop.trf.xlu0
      %v4220 = vpop.trf.xlu0
      %v4221 = vpop.trf.xlu0
      %v4222 = vpop.trf.xlu0
      %4223 = vxpose.xlu0.c.b16.start [1/8] %v2129, 128
      %4224 = vxpose.xlu0.c.b16.cont [2/8] 0, 128
      %4225 = vxpose.xlu0.c.b16.cont [3/8] 0, 128
      %4226 = vxpose.xlu0.c.b16.cont [4/8] 0, 128
      %4227 = vxpose.xlu0.c.b16.cont [5/8] 0, 128
      %4228 = vxpose.xlu0.c.b16.cont [6/8] 0, 128
      %4229 = vxpose.xlu0.c.b16.cont [7/8] 0, 128
      %4230 = vxpose.xlu0.c.b16.end [8/8] 0, 128
      %v4231 = vpop.trf.xlu0
      %v4232 = vpop.trf.xlu0
      %v4233 = vpop.trf.xlu0
      %v4234 = vpop.trf.xlu0
      %v4235 = vpop.trf.xlu0
      %v4236 = vpop.trf.xlu0
      %v4237 = vpop.trf.xlu0
      %v4238 = vpop.trf.xlu0
      %4239 = vxpose.xlu0.c.b16.start [1/8] %v2130, 128
      %4240 = vxpose.xlu0.c.b16.cont [2/8] 0, 128
      %4241 = vxpose.xlu0.c.b16.cont [3/8] 0, 128
      %4242 = vxpose.xlu0.c.b16.cont [4/8] 0, 128
      %4243 = vxpose.xlu0.c.b16.cont [5/8] 0, 128
      %4244 = vxpose.xlu0.c.b16.cont [6/8] 0, 128
      %4245 = vxpose.xlu0.c.b16.cont [7/8] 0, 128
      %4246 = vxpose.xlu0.c.b16.end [8/8] 0, 128
      %v4247 = vpop.trf.xlu0
      %v4248 = vpop.trf.xlu0
      %v4249 = vpop.trf.xlu0
      %v4250 = vpop.trf.xlu0
      %v4251 = vpop.trf.xlu0
      %v4252 = vpop.trf.xlu0
      %v4253 = vpop.trf.xlu0
      %v4254 = vpop.trf.xlu0
      %4255 = vxpose.xlu0.c.b16.start [1/8] %v2131, 128
      %4256 = vxpose.xlu0.c.b16.cont [2/8] 0, 128
      %4257 = vxpose.xlu0.c.b16.cont [3/8] 0, 128
      %4258 = vxpose.xlu0.c.b16.cont [4/8] 0, 128
      %4259 = vxpose.xlu0.c.b16.cont [5/8] 0, 128
      %4260 = vxpose.xlu0.c.b16.cont [6/8] 0, 128
      %4261 = vxpose.xlu0.c.b16.cont [7/8] 0, 128
      %4262 = vxpose.xlu0.c.b16.end [8/8] 0, 128
      %v4263 = vpop.trf.xlu0
      %v4264 = vpop.trf.xlu0
      %v4265 = vpop.trf.xlu0
      %v4266 = vpop.trf.xlu0
      %v4267 = vpop.trf.xlu0
      %v4268 = vpop.trf.xlu0
      %v4269 = vpop.trf.xlu0
      %v4270 = vpop.trf.xlu0
      %4271 = vxpose.xlu0.c.b16.start [1/8] %v2132, 128
      %4272 = vxpose.xlu0.c.b16.cont [2/8] 0, 128
      %4273 = vxpose.xlu0.c.b16.cont [3/8] 0, 128
      %4274 = vxpose.xlu0.c.b16.cont [4/8] 0, 128
      %4275 = vxpose.xlu0.c.b16.cont [5/8] 0, 128
      %4276 = vxpose.xlu0.c.b16.cont [6/8] 0, 128
      %4277 = vxpose.xlu0.c.b16.cont [7/8] 0, 128
      %4278 = vxpose.xlu0.c.b16.end [8/8] 0, 128
      %v4279 = vpop.trf.xlu0
      %v4280 = vpop.trf.xlu0
      %v4281 = vpop.trf.xlu0
      %v4282 = vpop.trf.xlu0
      %v4283 = vpop.trf.xlu0
      %v4284 = vpop.trf.xlu0
      %v4285 = vpop.trf.xlu0
      %v4286 = vpop.trf.xlu0
      %4287 = vxpose.xlu0.c.b16.start [1/8] %v2133, 128
      %4288 = vxpose.xlu0.c.b16.cont [2/8] 0, 128
      %4289 = vxpose.xlu0.c.b16.cont [3/8] 0, 128
      %4290 = vxpose.xlu0.c.b16.cont [4/8] 0, 128
      %4291 = vxpose.xlu0.c.b16.cont [5/8] 0, 128
      %4292 = vxpose.xlu0.c.b16.cont [6/8] 0, 128
      %4293 = vxpose.xlu0.c.b16.cont [7/8] 0, 128
      %4294 = vxpose.xlu0.c.b16.end [8/8] 0, 128
      %v4295 = vpop.trf.xlu0
      %v4296 = vpop.trf.xlu0
      %v4297 = vpop.trf.xlu0
      %v4298 = vpop.trf.xlu0
      %v4299 = vpop.trf.xlu0
      %v4300 = vpop.trf.xlu0
      %v4301 = vpop.trf.xlu0
      %v4302 = vpop.trf.xlu0
      %4303 = vxpose.xlu0.c.b16.start [1/8] %v2134, 128
      %4304 = vxpose.xlu0.c.b16.cont [2/8] 0, 128
      %4305 = vxpose.xlu0.c.b16.cont [3/8] 0, 128
      %4306 = vxpose.xlu0.c.b16.cont [4/8] 0, 128
      %4307 = vxpose.xlu0.c.b16.cont [5/8] 0, 128
      %4308 = vxpose.xlu0.c.b16.cont [6/8] 0, 128
      %4309 = vxpose.xlu0.c.b16.cont [7/8] 0, 128
      %4310 = vxpose.xlu0.c.b16.end [8/8] 0, 128
      %v4311 = vpop.trf.xlu0
      %v4312 = vpop.trf.xlu0
      %v4313 = vpop.trf.xlu0
      %v4314 = vpop.trf.xlu0
      %v4315 = vpop.trf.xlu0
      %v4316 = vpop.trf.xlu0
      %v4317 = vpop.trf.xlu0
      %v4318 = vpop.trf.xlu0
      %4319 = vxpose.xlu0.c.b16.start [1/8] %v2135, 128
      %4320 = vxpose.xlu0.c.b16.cont [2/8] 0, 128
      %4321 = vxpose.xlu0.c.b16.cont [3/8] 0, 128
      %4322 = vxpose.xlu0.c.b16.cont [4/8] 0, 128
      %4323 = vxpose.xlu0.c.b16.cont [5/8] 0, 128
      %4324 = vxpose.xlu0.c.b16.cont [6/8] 0, 128
      %4325 = vxpose.xlu0.c.b16.cont [7/8] 0, 128
      %4326 = vxpose.xlu0.c.b16.end [8/8] 0, 128
      %v4327 = vpop.trf.xlu0
      %v4328 = vpop.trf.xlu0
      %v4329 = vpop.trf.xlu0
      %v4330 = vpop.trf.xlu0
      %v4331 = vpop.trf.xlu0
      %v4332 = vpop.trf.xlu0
      %v4333 = vpop.trf.xlu0
      %v4334 = vpop.trf.xlu0
      %4335 = vxpose.xlu0.c.b16.start [1/8] %v2136, 128
      %4336 = vxpose.xlu0.c.b16.cont [2/8] 0, 128
      %4337 = vxpose.xlu0.c.b16.cont [3/8] 0, 128
      %4338 = vxpose.xlu0.c.b16.cont [4/8] 0, 128
      %4339 = vxpose.xlu0.c.b16.cont [5/8] 0, 128
      %4340 = vxpose.xlu0.c.b16.cont [6/8] 0, 128
      %4341 = vxpose.xlu0.c.b16.cont [7/8] 0, 128
      %4342 = vxpose.xlu0.c.b16.end [8/8] 0, 128
      %v4343 = vpop.trf.xlu0
      %v4344 = vpop.trf.xlu0
      %v4345 = vpop.trf.xlu0
      %v4346 = vpop.trf.xlu0
      %v4347 = vpop.trf.xlu0
      %v4348 = vpop.trf.xlu0
      %v4349 = vpop.trf.xlu0
      %v4350 = vpop.trf.xlu0
      %4351 = vxpose.xlu0.c.b16.start [1/8] %v2137, 128
      %4352 = vxpose.xlu0.c.b16.cont [2/8] 0, 128
      %4353 = vxpose.xlu0.c.b16.cont [3/8] 0, 128
      %4354 = vxpose.xlu0.c.b16.cont [4/8] 0, 128
      %4355 = vxpose.xlu0.c.b16.cont [5/8] 0, 128
      %4356 = vxpose.xlu0.c.b16.cont [6/8] 0, 128
      %4357 = vxpose.xlu0.c.b16.cont [7/8] 0, 128
      %4358 = vxpose.xlu0.c.b16.end [8/8] 0, 128
      %v4359 = vpop.trf.xlu0
      %v4360 = vpop.trf.xlu0
      %v4361 = vpop.trf.xlu0
      %v4362 = vpop.trf.xlu0
      %v4363 = vpop.trf.xlu0
      %v4364 = vpop.trf.xlu0
      %v4365 = vpop.trf.xlu0
      %v4366 = vpop.trf.xlu0
      %4367 = vxpose.xlu0.c.b16.start [1/8] %v2138, 128
      %4368 = vxpose.xlu0.c.b16.cont [2/8] 0, 128
      %4369 = vxpose.xlu0.c.b16.cont [3/8] 0, 128
      %4370 = vxpose.xlu0.c.b16.cont [4/8] 0, 128
      %4371 = vxpose.xlu0.c.b16.cont [5/8] 0, 128
      %4372 = vxpose.xlu0.c.b16.cont [6/8] 0, 128
      %4373 = vxpose.xlu0.c.b16.cont [7/8] 0, 128
      %4374 = vxpose.xlu0.c.b16.end [8/8] 0, 128
      %v4375 = vpop.trf.xlu0
      %v4376 = vpop.trf.xlu0
      %v4377 = vpop.trf.xlu0
      %v4378 = vpop.trf.xlu0
      %v4379 = vpop.trf.xlu0
      %v4380 = vpop.trf.xlu0
      %v4381 = vpop.trf.xlu0
      %v4382 = vpop.trf.xlu0
      %4383 = vxpose.xlu0.c.b16.start [1/8] %v2139, 128
      %4384 = vxpose.xlu0.c.b16.cont [2/8] 0, 128
      %4385 = vxpose.xlu0.c.b16.cont [3/8] 0, 128
      %4386 = vxpose.xlu0.c.b16.cont [4/8] 0, 128
      %4387 = vxpose.xlu0.c.b16.cont [5/8] 0, 128
      %4388 = vxpose.xlu0.c.b16.cont [6/8] 0, 128
      %4389 = vxpose.xlu0.c.b16.cont [7/8] 0, 128
      %4390 = vxpose.xlu0.c.b16.end [8/8] 0, 128
      %v4391 = vpop.trf.xlu0
      %v4392 = vpop.trf.xlu0
      %v4393 = vpop.trf.xlu0
      %v4394 = vpop.trf.xlu0
      %v4395 = vpop.trf.xlu0
      %v4396 = vpop.trf.xlu0
      %v4397 = vpop.trf.xlu0
      %v4398 = vpop.trf.xlu0
      %4399 = vxpose.xlu0.c.b16.start [1/8] %v2140, 128
      %4400 = vxpose.xlu0.c.b16.cont [2/8] 0, 128
      %4401 = vxpose.xlu0.c.b16.cont [3/8] 0, 128
      %4402 = vxpose.xlu0.c.b16.cont [4/8] 0, 128
      %4403 = vxpose.xlu0.c.b16.cont [5/8] 0, 128
      %4404 = vxpose.xlu0.c.b16.cont [6/8] 0, 128
      %4405 = vxpose.xlu0.c.b16.cont [7/8] 0, 128
      %4406 = vxpose.xlu0.c.b16.end [8/8] 0, 128
      %v4407 = vpop.trf.xlu0
      %v4408 = vpop.trf.xlu0
      %v4409 = vpop.trf.xlu0
      %v4410 = vpop.trf.xlu0
      %v4411 = vpop.trf.xlu0
      %v4412 = vpop.trf.xlu0
      %v4413 = vpop.trf.xlu0
      %v4414 = vpop.trf.xlu0
      %4415 = vxpose.xlu0.c.b16.start [1/8] %v2141, 128
      %4416 = vxpose.xlu0.c.b16.cont [2/8] 0, 128
      %4417 = vxpose.xlu0.c.b16.cont [3/8] 0, 128
      %4418 = vxpose.xlu0.c.b16.cont [4/8] 0, 128
      %4419 = vxpose.xlu0.c.b16.cont [5/8] 0, 128
      %4420 = vxpose.xlu0.c.b16.cont [6/8] 0, 128
      %4421 = vxpose.xlu0.c.b16.cont [7/8] 0, 128
      %4422 = vxpose.xlu0.c.b16.end [8/8] 0, 128
      %v4423 = vpop.trf.xlu0
      %v4424 = vpop.trf.xlu0
      %v4425 = vpop.trf.xlu0
      %v4426 = vpop.trf.xlu0
      %v4427 = vpop.trf.xlu0
      %v4428 = vpop.trf.xlu0
      %v4429 = vpop.trf.xlu0
      %v4430 = vpop.trf.xlu0
      %4431 = vxpose.xlu0.c.b16.start [1/8] %v2142, 128
      %4432 = vxpose.xlu0.c.b16.cont [2/8] 0, 128
      %4433 = vxpose.xlu0.c.b16.cont [3/8] 0, 128
      %4434 = vxpose.xlu0.c.b16.cont [4/8] 0, 128
      %4435 = vxpose.xlu0.c.b16.cont [5/8] 0, 128
      %4436 = vxpose.xlu0.c.b16.cont [6/8] 0, 128
      %4437 = vxpose.xlu0.c.b16.cont [7/8] 0, 128
      %4438 = vxpose.xlu0.c.b16.end [8/8] 0, 128
      %v4439 = vpop.trf.xlu0
      %v4440 = vpop.trf.xlu0
      %v4441 = vpop.trf.xlu0
      %v4442 = vpop.trf.xlu0
      %v4443 = vpop.trf.xlu0
      %v4444 = vpop.trf.xlu0
      %v4445 = vpop.trf.xlu0
      %v4446 = vpop.trf.xlu0
      %4447 = vxpose.xlu0.c.b16.start [1/8] %v2143, 128
      %4448 = vxpose.xlu0.c.b16.cont [2/8] 0, 128
      %4449 = vxpose.xlu0.c.b16.cont [3/8] 0, 128
      %4450 = vxpose.xlu0.c.b16.cont [4/8] 0, 128
      %4451 = vxpose.xlu0.c.b16.cont [5/8] 0, 128
      %4452 = vxpose.xlu0.c.b16.cont [6/8] 0, 128
      %4453 = vxpose.xlu0.c.b16.cont [7/8] 0, 128
      %4454 = vxpose.xlu0.c.b16.end [8/8] 0, 128
      %v4455 = vpop.trf.xlu0
      %v4456 = vpop.trf.xlu0
      %v4457 = vpop.trf.xlu0
      %v4458 = vpop.trf.xlu0
      %v4459 = vpop.trf.xlu0
      %v4460 = vpop.trf.xlu0
      %v4461 = vpop.trf.xlu0
      %v4462 = vpop.trf.xlu0
      %4463 = vxpose.xlu0.c.b16.start [1/8] %v2144, 128
      %4464 = vxpose.xlu0.c.b16.cont [2/8] 0, 128
      %4465 = vxpose.xlu0.c.b16.cont [3/8] 0, 128
      %4466 = vxpose.xlu0.c.b16.cont [4/8] 0, 128
      %4467 = vxpose.xlu0.c.b16.cont [5/8] 0, 128
      %4468 = vxpose.xlu0.c.b16.cont [6/8] 0, 128
      %4469 = vxpose.xlu0.c.b16.cont [7/8] 0, 128
      %4470 = vxpose.xlu0.c.b16.end [8/8] 0, 128
      %v4471 = vpop.trf.xlu0
      %v4472 = vpop.trf.xlu0
      %v4473 = vpop.trf.xlu0
      %v4474 = vpop.trf.xlu0
      %v4475 = vpop.trf.xlu0
      %v4476 = vpop.trf.xlu0
      %v4477 = vpop.trf.xlu0
      %v4478 = vpop.trf.xlu0
      %4479 = vxpose.xlu0.c.b16.start [1/8] %v2145, 128
      %4480 = vxpose.xlu0.c.b16.cont [2/8] 0, 128
      %4481 = vxpose.xlu0.c.b16.cont [3/8] 0, 128
      %4482 = vxpose.xlu0.c.b16.cont [4/8] 0, 128
      %4483 = vxpose.xlu0.c.b16.cont [5/8] 0, 128
      %4484 = vxpose.xlu0.c.b16.cont [6/8] 0, 128
      %4485 = vxpose.xlu0.c.b16.cont [7/8] 0, 128
      %4486 = vxpose.xlu0.c.b16.end [8/8] 0, 128
      %v4487 = vpop.trf.xlu0
      %v4488 = vpop.trf.xlu0
      %v4489 = vpop.trf.xlu0
      %v4490 = vpop.trf.xlu0
      %v4491 = vpop.trf.xlu0
      %v4492 = vpop.trf.xlu0
      %v4493 = vpop.trf.xlu0
      %v4494 = vpop.trf.xlu0
      %4495 = vxpose.xlu0.c.b16.start [1/8] %v2146, 128
      %4496 = vxpose.xlu0.c.b16.cont [2/8] 0, 128
      %4497 = vxpose.xlu0.c.b16.cont [3/8] 0, 128
      %4498 = vxpose.xlu0.c.b16.cont [4/8] 0, 128
      %4499 = vxpose.xlu0.c.b16.cont [5/8] 0, 128
      %4500 = vxpose.xlu0.c.b16.cont [6/8] 0, 128
      %4501 = vxpose.xlu0.c.b16.cont [7/8] 0, 128
      %4502 = vxpose.xlu0.c.b16.end [8/8] 0, 128
      %v4503 = vpop.trf.xlu0
      %v4504 = vpop.trf.xlu0
      %v4505 = vpop.trf.xlu0
      %v4506 = vpop.trf.xlu0
      %v4507 = vpop.trf.xlu0
      %v4508 = vpop.trf.xlu0
      %v4509 = vpop.trf.xlu0
      %v4510 = vpop.trf.xlu0
      %4511 = vxpose.xlu0.c.b16.start [1/8] %v2147, 128
      %4512 = vxpose.xlu0.c.b16.cont [2/8] 0, 128
      %4513 = vxpose.xlu0.c.b16.cont [3/8] 0, 128
      %4514 = vxpose.xlu0.c.b16.cont [4/8] 0, 128
      %4515 = vxpose.xlu0.c.b16.cont [5/8] 0, 128
      %4516 = vxpose.xlu0.c.b16.cont [6/8] 0, 128
      %4517 = vxpose.xlu0.c.b16.cont [7/8] 0, 128
      %4518 = vxpose.xlu0.c.b16.end [8/8] 0, 128
      %v4519 = vpop.trf.xlu0
      %v4520 = vpop.trf.xlu0
      %v4521 = vpop.trf.xlu0
      %v4522 = vpop.trf.xlu0
      %v4523 = vpop.trf.xlu0
      %v4524 = vpop.trf.xlu0
      %v4525 = vpop.trf.xlu0
      %v4526 = vpop.trf.xlu0
      %4527 = vxpose.xlu0.c.b16.start [1/8] %v2148, 128
      %4528 = vxpose.xlu0.c.b16.cont [2/8] 0, 128
      %4529 = vxpose.xlu0.c.b16.cont [3/8] 0, 128
      %4530 = vxpose.xlu0.c.b16.cont [4/8] 0, 128
      %4531 = vxpose.xlu0.c.b16.cont [5/8] 0, 128
      %4532 = vxpose.xlu0.c.b16.cont [6/8] 0, 128
      %4533 = vxpose.xlu0.c.b16.cont [7/8] 0, 128
      %4534 = vxpose.xlu0.c.b16.end [8/8] 0, 128
      %v4535 = vpop.trf.xlu0
      %v4536 = vpop.trf.xlu0
      %v4537 = vpop.trf.xlu0
      %v4538 = vpop.trf.xlu0
      %v4539 = vpop.trf.xlu0
      %v4540 = vpop.trf.xlu0
      %v4541 = vpop.trf.xlu0
      %v4542 = vpop.trf.xlu0
      %4543 = vxpose.xlu0.c.b16.start [1/8] %v2149, 128
      %4544 = vxpose.xlu0.c.b16.cont [2/8] 0, 128
      %4545 = vxpose.xlu0.c.b16.cont [3/8] 0, 128
      %4546 = vxpose.xlu0.c.b16.cont [4/8] 0, 128
      %4547 = vxpose.xlu0.c.b16.cont [5/8] 0, 128
      %4548 = vxpose.xlu0.c.b16.cont [6/8] 0, 128
      %4549 = vxpose.xlu0.c.b16.cont [7/8] 0, 128
      %4550 = vxpose.xlu0.c.b16.end [8/8] 0, 128
      %v4551 = vpop.trf.xlu0
      %v4552 = vpop.trf.xlu0
      %v4553 = vpop.trf.xlu0
      %v4554 = vpop.trf.xlu0
      %v4555 = vpop.trf.xlu0
      %v4556 = vpop.trf.xlu0
      %v4557 = vpop.trf.xlu0
      %v4558 = vpop.trf.xlu0
      %4559 = vxpose.xlu0.c.b16.start [1/8] %v2150, 128
      %4560 = vxpose.xlu0.c.b16.cont [2/8] 0, 128
      %4561 = vxpose.xlu0.c.b16.cont [3/8] 0, 128
      %4562 = vxpose.xlu0.c.b16.cont [4/8] 0, 128
      %4563 = vxpose.xlu0.c.b16.cont [5/8] 0, 128
      %4564 = vxpose.xlu0.c.b16.cont [6/8] 0, 128
      %4565 = vxpose.xlu0.c.b16.cont [7/8] 0, 128
      %4566 = vxpose.xlu0.c.b16.end [8/8] 0, 128
      %v4567 = vpop.trf.xlu0
      %v4568 = vpop.trf.xlu0
      %v4569 = vpop.trf.xlu0
      %v4570 = vpop.trf.xlu0
      %v4571 = vpop.trf.xlu0
      %v4572 = vpop.trf.xlu0
      %v4573 = vpop.trf.xlu0
      %v4574 = vpop.trf.xlu0
      %4575 = vxpose.xlu0.c.b16.start [1/8] %v2151, 128
      %4576 = vxpose.xlu0.c.b16.cont [2/8] 0, 128
      %4577 = vxpose.xlu0.c.b16.cont [3/8] 0, 128
      %4578 = vxpose.xlu0.c.b16.cont [4/8] 0, 128
      %4579 = vxpose.xlu0.c.b16.cont [5/8] 0, 128
      %4580 = vxpose.xlu0.c.b16.cont [6/8] 0, 128
      %4581 = vxpose.xlu0.c.b16.cont [7/8] 0, 128
      %4582 = vxpose.xlu0.c.b16.end [8/8] 0, 128
      %v4583 = vpop.trf.xlu0
      %v4584 = vpop.trf.xlu0
      %v4585 = vpop.trf.xlu0
      %v4586 = vpop.trf.xlu0
      %v4587 = vpop.trf.xlu0
      %v4588 = vpop.trf.xlu0
      %v4589 = vpop.trf.xlu0
      %v4590 = vpop.trf.xlu0
      %4591 = vxpose.xlu0.c.b16.start [1/8] %v2152, 128
      %4592 = vxpose.xlu0.c.b16.cont [2/8] 0, 128
      %4593 = vxpose.xlu0.c.b16.cont [3/8] 0, 128
      %4594 = vxpose.xlu0.c.b16.cont [4/8] 0, 128
      %4595 = vxpose.xlu0.c.b16.cont [5/8] 0, 128
      %4596 = vxpose.xlu0.c.b16.cont [6/8] 0, 128
      %4597 = vxpose.xlu0.c.b16.cont [7/8] 0, 128
      %4598 = vxpose.xlu0.c.b16.end [8/8] 0, 128
      %v4599 = vpop.trf.xlu0
      %v4600 = vpop.trf.xlu0
      %v4601 = vpop.trf.xlu0
      %v4602 = vpop.trf.xlu0
      %v4603 = vpop.trf.xlu0
      %v4604 = vpop.trf.xlu0
      %v4605 = vpop.trf.xlu0
      %v4606 = vpop.trf.xlu0
      %4607 = vxpose.xlu0.c.b16.start [1/8] %v2153, 128
      %4608 = vxpose.xlu0.c.b16.cont [2/8] 0, 128
      %4609 = vxpose.xlu0.c.b16.cont [3/8] 0, 128
      %4610 = vxpose.xlu0.c.b16.cont [4/8] 0, 128
      %4611 = vxpose.xlu0.c.b16.cont [5/8] 0, 128
      %4612 = vxpose.xlu0.c.b16.cont [6/8] 0, 128
      %4613 = vxpose.xlu0.c.b16.cont [7/8] 0, 128
      %4614 = vxpose.xlu0.c.b16.end [8/8] 0, 128
      %v4615 = vpop.trf.xlu0
      %v4616 = vpop.trf.xlu0
      %v4617 = vpop.trf.xlu0
      %v4618 = vpop.trf.xlu0
      %v4619 = vpop.trf.xlu0
      %v4620 = vpop.trf.xlu0
      %v4621 = vpop.trf.xlu0
      %v4622 = vpop.trf.xlu0
      %4623 = vxpose.xlu0.c.b16.start [1/8] %v2154, 128
      %4624 = vxpose.xlu0.c.b16.cont [2/8] 0, 128
      %4625 = vxpose.xlu0.c.b16.cont [3/8] 0, 128
      %4626 = vxpose.xlu0.c.b16.cont [4/8] 0, 128
      %4627 = vxpose.xlu0.c.b16.cont [5/8] 0, 128
      %4628 = vxpose.xlu0.c.b16.cont [6/8] 0, 128
      %4629 = vxpose.xlu0.c.b16.cont [7/8] 0, 128
      %4630 = vxpose.xlu0.c.b16.end [8/8] 0, 128
      %v4631 = vpop.trf.xlu0
      %v4632 = vpop.trf.xlu0
      %v4633 = vpop.trf.xlu0
      %v4634 = vpop.trf.xlu0
      %v4635 = vpop.trf.xlu0
      %v4636 = vpop.trf.xlu0
      %v4637 = vpop.trf.xlu0
      %v4638 = vpop.trf.xlu0
      %4639 = vxpose.xlu0.c.b16.start [1/8] %v2155, 128
      %4640 = vxpose.xlu0.c.b16.cont [2/8] 0, 128
      %4641 = vxpose.xlu0.c.b16.cont [3/8] 0, 128
      %4642 = vxpose.xlu0.c.b16.cont [4/8] 0, 128
      %4643 = vxpose.xlu0.c.b16.cont [5/8] 0, 128
      %4644 = vxpose.xlu0.c.b16.cont [6/8] 0, 128
      %4645 = vxpose.xlu0.c.b16.cont [7/8] 0, 128
      %4646 = vxpose.xlu0.c.b16.end [8/8] 0, 128
      %v4647 = vpop.trf.xlu0
      %v4648 = vpop.trf.xlu0
      %v4649 = vpop.trf.xlu0
      %v4650 = vpop.trf.xlu0
      %v4651 = vpop.trf.xlu0
      %v4652 = vpop.trf.xlu0
      %v4653 = vpop.trf.xlu0
      %v4654 = vpop.trf.xlu0
      %4655 = vxpose.xlu0.c.b16.start [1/8] %v2156, 128
      %4656 = vxpose.xlu0.c.b16.cont [2/8] 0, 128
      %4657 = vxpose.xlu0.c.b16.cont [3/8] 0, 128
      %4658 = vxpose.xlu0.c.b16.cont [4/8] 0, 128
      %4659 = vxpose.xlu0.c.b16.cont [5/8] 0, 128
      %4660 = vxpose.xlu0.c.b16.cont [6/8] 0, 128
      %4661 = vxpose.xlu0.c.b16.cont [7/8] 0, 128
      %4662 = vxpose.xlu0.c.b16.end [8/8] 0, 128
      %v4663 = vpop.trf.xlu0
      %v4664 = vpop.trf.xlu0
      %v4665 = vpop.trf.xlu0
      %v4666 = vpop.trf.xlu0
      %v4667 = vpop.trf.xlu0
      %v4668 = vpop.trf.xlu0
      %v4669 = vpop.trf.xlu0
      %v4670 = vpop.trf.xlu0
      %4671 = vxpose.xlu0.c.b16.start [1/8] %v2157, 128
      %4672 = vxpose.xlu0.c.b16.cont [2/8] 0, 128
      %4673 = vxpose.xlu0.c.b16.cont [3/8] 0, 128
      %4674 = vxpose.xlu0.c.b16.cont [4/8] 0, 128
      %4675 = vxpose.xlu0.c.b16.cont [5/8] 0, 128
      %4676 = vxpose.xlu0.c.b16.cont [6/8] 0, 128
      %4677 = vxpose.xlu0.c.b16.cont [7/8] 0, 128
      %4678 = vxpose.xlu0.c.b16.end [8/8] 0, 128
      %v4679 = vpop.trf.xlu0
      %v4680 = vpop.trf.xlu0
      %v4681 = vpop.trf.xlu0
      %v4682 = vpop.trf.xlu0
      %v4683 = vpop.trf.xlu0
      %v4684 = vpop.trf.xlu0
      %v4685 = vpop.trf.xlu0
      %v4686 = vpop.trf.xlu0
      %4687 = vxpose.xlu0.c.b16.start [1/8] %v2158, 128
      %4688 = vxpose.xlu0.c.b16.cont [2/8] 0, 128
      %4689 = vxpose.xlu0.c.b16.cont [3/8] 0, 128
      %4690 = vxpose.xlu0.c.b16.cont [4/8] 0, 128
      %4691 = vxpose.xlu0.c.b16.cont [5/8] 0, 128
      %4692 = vxpose.xlu0.c.b16.cont [6/8] 0, 128
      %4693 = vxpose.xlu0.c.b16.cont [7/8] 0, 128
      %4694 = vxpose.xlu0.c.b16.end [8/8] 0, 128
      %v4695 = vpop.trf.xlu0
      %v4696 = vpop.trf.xlu0
      %v4697 = vpop.trf.xlu0
      %v4698 = vpop.trf.xlu0
      %v4699 = vpop.trf.xlu0
      %v4700 = vpop.trf.xlu0
      %v4701 = vpop.trf.xlu0
      %v4702 = vpop.trf.xlu0
      %4703 = vxpose.xlu0.c.b16.start [1/8] %v2159, 128
      %4704 = vxpose.xlu0.c.b16.cont [2/8] 0, 128
      %4705 = vxpose.xlu0.c.b16.cont [3/8] 0, 128
      %4706 = vxpose.xlu0.c.b16.cont [4/8] 0, 128
      %4707 = vxpose.xlu0.c.b16.cont [5/8] 0, 128
      %4708 = vxpose.xlu0.c.b16.cont [6/8] 0, 128
      %4709 = vxpose.xlu0.c.b16.cont [7/8] 0, 128
      %4710 = vxpose.xlu0.c.b16.end [8/8] 0, 128
      %v4711 = vpop.trf.xlu0
      %v4712 = vpop.trf.xlu0
      %v4713 = vpop.trf.xlu0
      %v4714 = vpop.trf.xlu0
      %v4715 = vpop.trf.xlu0
      %v4716 = vpop.trf.xlu0
      %v4717 = vpop.trf.xlu0
      %v4718 = vpop.trf.xlu0
      %4719 = vxpose.xlu0.c.b16.start [1/8] %v2160, 128
      %4720 = vxpose.xlu0.c.b16.cont [2/8] 0, 128
      %4721 = vxpose.xlu0.c.b16.cont [3/8] 0, 128
      %4722 = vxpose.xlu0.c.b16.cont [4/8] 0, 128
      %4723 = vxpose.xlu0.c.b16.cont [5/8] 0, 128
      %4724 = vxpose.xlu0.c.b16.cont [6/8] 0, 128
      %4725 = vxpose.xlu0.c.b16.cont [7/8] 0, 128
      %4726 = vxpose.xlu0.c.b16.end [8/8] 0, 128
      %v4727 = vpop.trf.xlu0
      %v4728 = vpop.trf.xlu0
      %v4729 = vpop.trf.xlu0
      %v4730 = vpop.trf.xlu0
      %v4731 = vpop.trf.xlu0
      %v4732 = vpop.trf.xlu0
      %v4733 = vpop.trf.xlu0
      %v4734 = vpop.trf.xlu0
      %4735 = vxpose.xlu0.c.b16.start [1/8] %v2161, 128
      %4736 = vxpose.xlu0.c.b16.cont [2/8] 0, 128
      %4737 = vxpose.xlu0.c.b16.cont [3/8] 0, 128
      %4738 = vxpose.xlu0.c.b16.cont [4/8] 0, 128
      %4739 = vxpose.xlu0.c.b16.cont [5/8] 0, 128
      %4740 = vxpose.xlu0.c.b16.cont [6/8] 0, 128
      %4741 = vxpose.xlu0.c.b16.cont [7/8] 0, 128
      %4742 = vxpose.xlu0.c.b16.end [8/8] 0, 128
      %v4743 = vpop.trf.xlu0
      %v4744 = vpop.trf.xlu0
      %v4745 = vpop.trf.xlu0
      %v4746 = vpop.trf.xlu0
      %v4747 = vpop.trf.xlu0
      %v4748 = vpop.trf.xlu0
      %v4749 = vpop.trf.xlu0
      %v4750 = vpop.trf.xlu0
      %4751 = vxpose.xlu0.c.b16.start [1/8] %v2162, 128
      %4752 = vxpose.xlu0.c.b16.cont [2/8] 0, 128
      %4753 = vxpose.xlu0.c.b16.cont [3/8] 0, 128
      %4754 = vxpose.xlu0.c.b16.cont [4/8] 0, 128
      %4755 = vxpose.xlu0.c.b16.cont [5/8] 0, 128
      %4756 = vxpose.xlu0.c.b16.cont [6/8] 0, 128
      %4757 = vxpose.xlu0.c.b16.cont [7/8] 0, 128
      %4758 = vxpose.xlu0.c.b16.end [8/8] 0, 128
      %v4759 = vpop.trf.xlu0
      %v4760 = vpop.trf.xlu0
      %v4761 = vpop.trf.xlu0
      %v4762 = vpop.trf.xlu0
      %v4763 = vpop.trf.xlu0
      %v4764 = vpop.trf.xlu0
      %v4765 = vpop.trf.xlu0
      %v4766 = vpop.trf.xlu0
      %4767 = vxpose.xlu0.c.b16.start [1/8] %v2163, 128
      %4768 = vxpose.xlu0.c.b16.cont [2/8] 0, 128
      %4769 = vxpose.xlu0.c.b16.cont [3/8] 0, 128
      %4770 = vxpose.xlu0.c.b16.cont [4/8] 0, 128
      %4771 = vxpose.xlu0.c.b16.cont [5/8] 0, 128
      %4772 = vxpose.xlu0.c.b16.cont [6/8] 0, 128
      %4773 = vxpose.xlu0.c.b16.cont [7/8] 0, 128
      %4774 = vxpose.xlu0.c.b16.end [8/8] 0, 128
      %v4775 = vpop.trf.xlu0
      %v4776 = vpop.trf.xlu0
      %v4777 = vpop.trf.xlu0
      %v4778 = vpop.trf.xlu0
      %v4779 = vpop.trf.xlu0
      %v4780 = vpop.trf.xlu0
      %v4781 = vpop.trf.xlu0
      %v4782 = vpop.trf.xlu0
      %4783 = vxpose.xlu0.c.b16.start [1/8] %v2164, 128
      %4784 = vxpose.xlu0.c.b16.cont [2/8] 0, 128
      %4785 = vxpose.xlu0.c.b16.cont [3/8] 0, 128
      %4786 = vxpose.xlu0.c.b16.cont [4/8] 0, 128
      %4787 = vxpose.xlu0.c.b16.cont [5/8] 0, 128
      %4788 = vxpose.xlu0.c.b16.cont [6/8] 0, 128
      %4789 = vxpose.xlu0.c.b16.cont [7/8] 0, 128
      %4790 = vxpose.xlu0.c.b16.end [8/8] 0, 128
      %v4791 = vpop.trf.xlu0
      %v4792 = vpop.trf.xlu0
      %v4793 = vpop.trf.xlu0
      %v4794 = vpop.trf.xlu0
      %v4795 = vpop.trf.xlu0
      %v4796 = vpop.trf.xlu0
      %v4797 = vpop.trf.xlu0
      %v4798 = vpop.trf.xlu0
      %4799 = vxpose.xlu0.c.b16.start [1/8] %v2165, 128
      %4800 = vxpose.xlu0.c.b16.cont [2/8] 0, 128
      %4801 = vxpose.xlu0.c.b16.cont [3/8] 0, 128
      %4802 = vxpose.xlu0.c.b16.cont [4/8] 0, 128
      %4803 = vxpose.xlu0.c.b16.cont [5/8] 0, 128
      %4804 = vxpose.xlu0.c.b16.cont [6/8] 0, 128
      %4805 = vxpose.xlu0.c.b16.cont [7/8] 0, 128
      %4806 = vxpose.xlu0.c.b16.end [8/8] 0, 128
      %v4807 = vpop.trf.xlu0
      %v4808 = vpop.trf.xlu0
      %v4809 = vpop.trf.xlu0
      %v4810 = vpop.trf.xlu0
      %v4811 = vpop.trf.xlu0
      %v4812 = vpop.trf.xlu0
      %v4813 = vpop.trf.xlu0
      %v4814 = vpop.trf.xlu0
      %4815 = vxpose.xlu0.c.b16.start [1/8] %v2166, 128
      %4816 = vxpose.xlu0.c.b16.cont [2/8] 0, 128
      %4817 = vxpose.xlu0.c.b16.cont [3/8] 0, 128
      %4818 = vxpose.xlu0.c.b16.cont [4/8] 0, 128
      %4819 = vxpose.xlu0.c.b16.cont [5/8] 0, 128
      %4820 = vxpose.xlu0.c.b16.cont [6/8] 0, 128
      %4821 = vxpose.xlu0.c.b16.cont [7/8] 0, 128
      %4822 = vxpose.xlu0.c.b16.end [8/8] 0, 128
      %v4823 = vpop.trf.xlu0
      %v4824 = vpop.trf.xlu0
      %v4825 = vpop.trf.xlu0
      %v4826 = vpop.trf.xlu0
      %v4827 = vpop.trf.xlu0
      %v4828 = vpop.trf.xlu0
      %v4829 = vpop.trf.xlu0
      %v4830 = vpop.trf.xlu0
      %4831 = vxpose.xlu0.c.b16.start [1/8] %v2167, 128
      %4832 = vxpose.xlu0.c.b16.cont [2/8] 0, 128
      %4833 = vxpose.xlu0.c.b16.cont [3/8] 0, 128
      %4834 = vxpose.xlu0.c.b16.cont [4/8] 0, 128
      %4835 = vxpose.xlu0.c.b16.cont [5/8] 0, 128
      %4836 = vxpose.xlu0.c.b16.cont [6/8] 0, 128
      %4837 = vxpose.xlu0.c.b16.cont [7/8] 0, 128
      %4838 = vxpose.xlu0.c.b16.end [8/8] 0, 128
      %v4839 = vpop.trf.xlu0
      %v4840 = vpop.trf.xlu0
      %v4841 = vpop.trf.xlu0
      %v4842 = vpop.trf.xlu0
      %v4843 = vpop.trf.xlu0
      %v4844 = vpop.trf.xlu0
      %v4845 = vpop.trf.xlu0
      %v4846 = vpop.trf.xlu0
      %4847 = vxpose.xlu0.c.b16.start [1/8] %v2168, 128
      %4848 = vxpose.xlu0.c.b16.cont [2/8] 0, 128
      %4849 = vxpose.xlu0.c.b16.cont [3/8] 0, 128
      %4850 = vxpose.xlu0.c.b16.cont [4/8] 0, 128
      %4851 = vxpose.xlu0.c.b16.cont [5/8] 0, 128
      %4852 = vxpose.xlu0.c.b16.cont [6/8] 0, 128
      %4853 = vxpose.xlu0.c.b16.cont [7/8] 0, 128
      %4854 = vxpose.xlu0.c.b16.end [8/8] 0, 128
      %v4855 = vpop.trf.xlu0
      %v4856 = vpop.trf.xlu0
      %v4857 = vpop.trf.xlu0
      %v4858 = vpop.trf.xlu0
      %v4859 = vpop.trf.xlu0
      %v4860 = vpop.trf.xlu0
      %v4861 = vpop.trf.xlu0
      %v4862 = vpop.trf.xlu0
      %4863 = vxpose.xlu0.c.b16.start [1/8] %v2169, 128
      %4864 = vxpose.xlu0.c.b16.cont [2/8] 0, 128
      %4865 = vxpose.xlu0.c.b16.cont [3/8] 0, 128
      %4866 = vxpose.xlu0.c.b16.cont [4/8] 0, 128
      %4867 = vxpose.xlu0.c.b16.cont [5/8] 0, 128
      %4868 = vxpose.xlu0.c.b16.cont [6/8] 0, 128
      %4869 = vxpose.xlu0.c.b16.cont [7/8] 0, 128
      %4870 = vxpose.xlu0.c.b16.end [8/8] 0, 128
      %v4871 = vpop.trf.xlu0
      %v4872 = vpop.trf.xlu0
      %v4873 = vpop.trf.xlu0
      %v4874 = vpop.trf.xlu0
      %v4875 = vpop.trf.xlu0
      %v4876 = vpop.trf.xlu0
      %v4877 = vpop.trf.xlu0
      %v4878 = vpop.trf.xlu0
      %4879 = vxpose.xlu0.c.b16.start [1/8] %v2170, 128
      %4880 = vxpose.xlu0.c.b16.cont [2/8] 0, 128
      %4881 = vxpose.xlu0.c.b16.cont [3/8] 0, 128
      %4882 = vxpose.xlu0.c.b16.cont [4/8] 0, 128
      %4883 = vxpose.xlu0.c.b16.cont [5/8] 0, 128
      %4884 = vxpose.xlu0.c.b16.cont [6/8] 0, 128
      %4885 = vxpose.xlu0.c.b16.cont [7/8] 0, 128
      %4886 = vxpose.xlu0.c.b16.end [8/8] 0, 128
      %v4887 = vpop.trf.xlu0
      %v4888 = vpop.trf.xlu0
      %v4889 = vpop.trf.xlu0
      %v4890 = vpop.trf.xlu0
      %v4891 = vpop.trf.xlu0
      %v4892 = vpop.trf.xlu0
      %v4893 = vpop.trf.xlu0
      %v4894 = vpop.trf.xlu0
      %4895 = vxpose.xlu0.c.b16.start [1/8] %v2171, 128
      %4896 = vxpose.xlu0.c.b16.cont [2/8] 0, 128
      %4897 = vxpose.xlu0.c.b16.cont [3/8] 0, 128
      %4898 = vxpose.xlu0.c.b16.cont [4/8] 0, 128
      %4899 = vxpose.xlu0.c.b16.cont [5/8] 0, 128
      %4900 = vxpose.xlu0.c.b16.cont [6/8] 0, 128
      %4901 = vxpose.xlu0.c.b16.cont [7/8] 0, 128
      %4902 = vxpose.xlu0.c.b16.end [8/8] 0, 128
      %v4903 = vpop.trf.xlu0
      %v4904 = vpop.trf.xlu0
      %v4905 = vpop.trf.xlu0
      %v4906 = vpop.trf.xlu0
      %v4907 = vpop.trf.xlu0
      %v4908 = vpop.trf.xlu0
      %v4909 = vpop.trf.xlu0
      %v4910 = vpop.trf.xlu0
      %4911 = vxpose.xlu0.c.b16.start [1/8] %v2172, 128
      %4912 = vxpose.xlu0.c.b16.cont [2/8] 0, 128
      %4913 = vxpose.xlu0.c.b16.cont [3/8] 0, 128
      %4914 = vxpose.xlu0.c.b16.cont [4/8] 0, 128
      %4915 = vxpose.xlu0.c.b16.cont [5/8] 0, 128
      %4916 = vxpose.xlu0.c.b16.cont [6/8] 0, 128
      %4917 = vxpose.xlu0.c.b16.cont [7/8] 0, 128
      %4918 = vxpose.xlu0.c.b16.end [8/8] 0, 128
      %v4919 = vpop.trf.xlu0
      %v4920 = vpop.trf.xlu0
      %v4921 = vpop.trf.xlu0
      %v4922 = vpop.trf.xlu0
      %v4923 = vpop.trf.xlu0
      %v4924 = vpop.trf.xlu0
      %v4925 = vpop.trf.xlu0
      %v4926 = vpop.trf.xlu0
      %4927 = vxpose.xlu0.c.b16.start [1/8] %v2173, 128
      %4928 = vxpose.xlu0.c.b16.cont [2/8] 0, 128
      %4929 = vxpose.xlu0.c.b16.cont [3/8] 0, 128
      %4930 = vxpose.xlu0.c.b16.cont [4/8] 0, 128
      %4931 = vxpose.xlu0.c.b16.cont [5/8] 0, 128
      %4932 = vxpose.xlu0.c.b16.cont [6/8] 0, 128
      %4933 = vxpose.xlu0.c.b16.cont [7/8] 0, 128
      %4934 = vxpose.xlu0.c.b16.end [8/8] 0, 128
      %v4935 = vpop.trf.xlu0
      %v4936 = vpop.trf.xlu0
      %v4937 = vpop.trf.xlu0
      %v4938 = vpop.trf.xlu0
      %v4939 = vpop.trf.xlu0
      %v4940 = vpop.trf.xlu0
      %v4941 = vpop.trf.xlu0
      %v4942 = vpop.trf.xlu0
      %4943 = vxpose.xlu0.c.b16.start [1/8] %v2174, 128
      %4944 = vxpose.xlu0.c.b16.cont [2/8] 0, 128
      %4945 = vxpose.xlu0.c.b16.cont [3/8] 0, 128
      %4946 = vxpose.xlu0.c.b16.cont [4/8] 0, 128
      %4947 = vxpose.xlu0.c.b16.cont [5/8] 0, 128
      %4948 = vxpose.xlu0.c.b16.cont [6/8] 0, 128
      %4949 = vxpose.xlu0.c.b16.cont [7/8] 0, 128
      %4950 = vxpose.xlu0.c.b16.end [8/8] 0, 128
      %v4951 = vpop.trf.xlu0
      %v4952 = vpop.trf.xlu0
      %v4953 = vpop.trf.xlu0
      %v4954 = vpop.trf.xlu0
      %v4955 = vpop.trf.xlu0
      %v4956 = vpop.trf.xlu0
      %v4957 = vpop.trf.xlu0
      %v4958 = vpop.trf.xlu0
      %4959 = vxpose.xlu0.c.b16.start [1/8] %v2175, 128
      %4960 = vxpose.xlu0.c.b16.cont [2/8] 0, 128
      %4961 = vxpose.xlu0.c.b16.cont [3/8] 0, 128
      %4962 = vxpose.xlu0.c.b16.cont [4/8] 0, 128
      %4963 = vxpose.xlu0.c.b16.cont [5/8] 0, 128
      %4964 = vxpose.xlu0.c.b16.cont [6/8] 0, 128
      %4965 = vxpose.xlu0.c.b16.cont [7/8] 0, 128
      %4966 = vxpose.xlu0.c.b16.end [8/8] 0, 128
      %v4967 = vpop.trf.xlu0
      %v4968 = vpop.trf.xlu0
      %v4969 = vpop.trf.xlu0
      %v4970 = vpop.trf.xlu0
      %v4971 = vpop.trf.xlu0
      %v4972 = vpop.trf.xlu0
      %v4973 = vpop.trf.xlu0
      %v4974 = vpop.trf.xlu0
      %4975 = vxpose.xlu0.c.b16.start [1/8] %v2176, 128
      %4976 = vxpose.xlu0.c.b16.cont [2/8] 0, 128
      %4977 = vxpose.xlu0.c.b16.cont [3/8] 0, 128
      %4978 = vxpose.xlu0.c.b16.cont [4/8] 0, 128
      %4979 = vxpose.xlu0.c.b16.cont [5/8] 0, 128
      %4980 = vxpose.xlu0.c.b16.cont [6/8] 0, 128
      %4981 = vxpose.xlu0.c.b16.cont [7/8] 0, 128
      %4982 = vxpose.xlu0.c.b16.end [8/8] 0, 128
      %v4983 = vpop.trf.xlu0
      %v4984 = vpop.trf.xlu0
      %v4985 = vpop.trf.xlu0
      %v4986 = vpop.trf.xlu0
      %v4987 = vpop.trf.xlu0
      %v4988 = vpop.trf.xlu0
      %v4989 = vpop.trf.xlu0
      %v4990 = vpop.trf.xlu0
      %4991 = vxpose.xlu0.c.b16.start [1/8] %v2177, 128
      %4992 = vxpose.xlu0.c.b16.cont [2/8] 0, 128
      %4993 = vxpose.xlu0.c.b16.cont [3/8] 0, 128
      %4994 = vxpose.xlu0.c.b16.cont [4/8] 0, 128
      %4995 = vxpose.xlu0.c.b16.cont [5/8] 0, 128
      %4996 = vxpose.xlu0.c.b16.cont [6/8] 0, 128
      %4997 = vxpose.xlu0.c.b16.cont [7/8] 0, 128
      %4998 = vxpose.xlu0.c.b16.end [8/8] 0, 128
      %v4999 = vpop.trf.xlu0
      %v5000 = vpop.trf.xlu0
      %v5001 = vpop.trf.xlu0
      %v5002 = vpop.trf.xlu0
      %v5003 = vpop.trf.xlu0
      %v5004 = vpop.trf.xlu0
      %v5005 = vpop.trf.xlu0
      %v5006 = vpop.trf.xlu0
      %5007 = vxpose.xlu0.c.b16.start [1/8] %v2178, 128
      %5008 = vxpose.xlu0.c.b16.cont [2/8] 0, 128
      %5009 = vxpose.xlu0.c.b16.cont [3/8] 0, 128
      %5010 = vxpose.xlu0.c.b16.cont [4/8] 0, 128
      %5011 = vxpose.xlu0.c.b16.cont [5/8] 0, 128
      %5012 = vxpose.xlu0.c.b16.cont [6/8] 0, 128
      %5013 = vxpose.xlu0.c.b16.cont [7/8] 0, 128
      %5014 = vxpose.xlu0.c.b16.end [8/8] 0, 128
      %v5015 = vpop.trf.xlu0
      %v5016 = vpop.trf.xlu0
      %v5017 = vpop.trf.xlu0
      %v5018 = vpop.trf.xlu0
      %v5019 = vpop.trf.xlu0
      %v5020 = vpop.trf.xlu0
      %v5021 = vpop.trf.xlu0
      %v5022 = vpop.trf.xlu0
      %5023 = vxpose.xlu0.c.b16.start [1/8] %v2179, 128
      %5024 = vxpose.xlu0.c.b16.cont [2/8] 0, 128
      %5025 = vxpose.xlu0.c.b16.cont [3/8] 0, 128
      %5026 = vxpose.xlu0.c.b16.cont [4/8] 0, 128
      %5027 = vxpose.xlu0.c.b16.cont [5/8] 0, 128
      %5028 = vxpose.xlu0.c.b16.cont [6/8] 0, 128
      %5029 = vxpose.xlu0.c.b16.cont [7/8] 0, 128
      %5030 = vxpose.xlu0.c.b16.end [8/8] 0, 128
      %v5031 = vpop.trf.xlu0
      %v5032 = vpop.trf.xlu0
      %v5033 = vpop.trf.xlu0
      %v5034 = vpop.trf.xlu0
      %v5035 = vpop.trf.xlu0
      %v5036 = vpop.trf.xlu0
      %v5037 = vpop.trf.xlu0
      %v5038 = vpop.trf.xlu0
      %5039 = vxpose.xlu0.c.b16.start [1/8] %v2180, 128
      %5040 = vxpose.xlu0.c.b16.cont [2/8] 0, 128
      %5041 = vxpose.xlu0.c.b16.cont [3/8] 0, 128
      %5042 = vxpose.xlu0.c.b16.cont [4/8] 0, 128
      %5043 = vxpose.xlu0.c.b16.cont [5/8] 0, 128
      %5044 = vxpose.xlu0.c.b16.cont [6/8] 0, 128
      %5045 = vxpose.xlu0.c.b16.cont [7/8] 0, 128
      %5046 = vxpose.xlu0.c.b16.end [8/8] 0, 128
      %v5047 = vpop.trf.xlu0
      %v5048 = vpop.trf.xlu0
      %v5049 = vpop.trf.xlu0
      %v5050 = vpop.trf.xlu0
      %v5051 = vpop.trf.xlu0
      %v5052 = vpop.trf.xlu0
      %v5053 = vpop.trf.xlu0
      %v5054 = vpop.trf.xlu0
      %5055 = vxpose.xlu0.c.b16.start [1/8] %v2181, 128
      %5056 = vxpose.xlu0.c.b16.cont [2/8] 0, 128
      %5057 = vxpose.xlu0.c.b16.cont [3/8] 0, 128
      %5058 = vxpose.xlu0.c.b16.cont [4/8] 0, 128
      %5059 = vxpose.xlu0.c.b16.cont [5/8] 0, 128
      %5060 = vxpose.xlu0.c.b16.cont [6/8] 0, 128
      %5061 = vxpose.xlu0.c.b16.cont [7/8] 0, 128
      %5062 = vxpose.xlu0.c.b16.end [8/8] 0, 128
      %v5063 = vpop.trf.xlu0
      %v5064 = vpop.trf.xlu0
      %v5065 = vpop.trf.xlu0
      %v5066 = vpop.trf.xlu0
      %v5067 = vpop.trf.xlu0
      %v5068 = vpop.trf.xlu0
      %v5069 = vpop.trf.xlu0
      %v5070 = vpop.trf.xlu0
      %5071 = vxpose.xlu0.c.b16.start [1/8] %v2182, 128
      %5072 = vxpose.xlu0.c.b16.cont [2/8] 0, 128
      %5073 = vxpose.xlu0.c.b16.cont [3/8] 0, 128
      %5074 = vxpose.xlu0.c.b16.cont [4/8] 0, 128
      %5075 = vxpose.xlu0.c.b16.cont [5/8] 0, 128
      %5076 = vxpose.xlu0.c.b16.cont [6/8] 0, 128
      %5077 = vxpose.xlu0.c.b16.cont [7/8] 0, 128
      %5078 = vxpose.xlu0.c.b16.end [8/8] 0, 128
      %v5079 = vpop.trf.xlu0
      %v5080 = vpop.trf.xlu0
      %v5081 = vpop.trf.xlu0
      %v5082 = vpop.trf.xlu0
      %v5083 = vpop.trf.xlu0
      %v5084 = vpop.trf.xlu0
      %v5085 = vpop.trf.xlu0
      %v5086 = vpop.trf.xlu0
      %5087 = vxpose.xlu0.c.b16.start [1/8] %v2183, 128
      %5088 = vxpose.xlu0.c.b16.cont [2/8] 0, 128
      %5089 = vxpose.xlu0.c.b16.cont [3/8] 0, 128
      %5090 = vxpose.xlu0.c.b16.cont [4/8] 0, 128
      %5091 = vxpose.xlu0.c.b16.cont [5/8] 0, 128
      %5092 = vxpose.xlu0.c.b16.cont [6/8] 0, 128
      %5093 = vxpose.xlu0.c.b16.cont [7/8] 0, 128
      %5094 = vxpose.xlu0.c.b16.end [8/8] 0, 128
      %v5095 = vpop.trf.xlu0
      %v5096 = vpop.trf.xlu0
      %v5097 = vpop.trf.xlu0
      %v5098 = vpop.trf.xlu0
      %v5099 = vpop.trf.xlu0
      %v5100 = vpop.trf.xlu0
      %v5101 = vpop.trf.xlu0
      %v5102 = vpop.trf.xlu0
      %5103 = vxpose.xlu0.c.b16.start [1/8] %v2184, 128
      %5104 = vxpose.xlu0.c.b16.cont [2/8] 0, 128
      %5105 = vxpose.xlu0.c.b16.cont [3/8] 0, 128
      %5106 = vxpose.xlu0.c.b16.cont [4/8] 0, 128
      %5107 = vxpose.xlu0.c.b16.cont [5/8] 0, 128
      %5108 = vxpose.xlu0.c.b16.cont [6/8] 0, 128
      %5109 = vxpose.xlu0.c.b16.cont [7/8] 0, 128
      %5110 = vxpose.xlu0.c.b16.end [8/8] 0, 128
      %v5111 = vpop.trf.xlu0
      %v5112 = vpop.trf.xlu0
      %v5113 = vpop.trf.xlu0
      %v5114 = vpop.trf.xlu0
      %v5115 = vpop.trf.xlu0
      %v5116 = vpop.trf.xlu0
      %v5117 = vpop.trf.xlu0
      %v5118 = vpop.trf.xlu0
      %5119 = vxpose.xlu0.c.b16.start [1/8] %v2185, 128
      %5120 = vxpose.xlu0.c.b16.cont [2/8] 0, 128
      %5121 = vxpose.xlu0.c.b16.cont [3/8] 0, 128
      %5122 = vxpose.xlu0.c.b16.cont [4/8] 0, 128
      %5123 = vxpose.xlu0.c.b16.cont [5/8] 0, 128
      %5124 = vxpose.xlu0.c.b16.cont [6/8] 0, 128
      %5125 = vxpose.xlu0.c.b16.cont [7/8] 0, 128
      %5126 = vxpose.xlu0.c.b16.end [8/8] 0, 128
      %v5127 = vpop.trf.xlu0
      %v5128 = vpop.trf.xlu0
      %v5129 = vpop.trf.xlu0
      %v5130 = vpop.trf.xlu0
      %v5131 = vpop.trf.xlu0
      %v5132 = vpop.trf.xlu0
      %v5133 = vpop.trf.xlu0
      %v5134 = vpop.trf.xlu0
      %5135 = vxpose.xlu0.c.b16.start [1/8] %v2186, 128
      %5136 = vxpose.xlu0.c.b16.cont [2/8] 0, 128
      %5137 = vxpose.xlu0.c.b16.cont [3/8] 0, 128
      %5138 = vxpose.xlu0.c.b16.cont [4/8] 0, 128
      %5139 = vxpose.xlu0.c.b16.cont [5/8] 0, 128
      %5140 = vxpose.xlu0.c.b16.cont [6/8] 0, 128
      %5141 = vxpose.xlu0.c.b16.cont [7/8] 0, 128
      %5142 = vxpose.xlu0.c.b16.end [8/8] 0, 128
      %v5143 = vpop.trf.xlu0
      %v5144 = vpop.trf.xlu0
      %v5145 = vpop.trf.xlu0
      %v5146 = vpop.trf.xlu0
      %v5147 = vpop.trf.xlu0
      %v5148 = vpop.trf.xlu0
      %v5149 = vpop.trf.xlu0
      %v5150 = vpop.trf.xlu0
      %5151 = vxpose.xlu0.c.b16.start [1/8] %v2187, 128
      %5152 = vxpose.xlu0.c.b16.cont [2/8] 0, 128
      %5153 = vxpose.xlu0.c.b16.cont [3/8] 0, 128
      %5154 = vxpose.xlu0.c.b16.cont [4/8] 0, 128
      %5155 = vxpose.xlu0.c.b16.cont [5/8] 0, 128
      %5156 = vxpose.xlu0.c.b16.cont [6/8] 0, 128
      %5157 = vxpose.xlu0.c.b16.cont [7/8] 0, 128
      %5158 = vxpose.xlu0.c.b16.end [8/8] 0, 128
      %v5159 = vpop.trf.xlu0
      %v5160 = vpop.trf.xlu0
      %v5161 = vpop.trf.xlu0
      %v5162 = vpop.trf.xlu0
      %v5163 = vpop.trf.xlu0
      %v5164 = vpop.trf.xlu0
      %v5165 = vpop.trf.xlu0
      %v5166 = vpop.trf.xlu0
      %5167 = vxpose.xlu0.c.b16.start [1/8] %v2188, 128
      %5168 = vxpose.xlu0.c.b16.cont [2/8] 0, 128
      %5169 = vxpose.xlu0.c.b16.cont [3/8] 0, 128
      %5170 = vxpose.xlu0.c.b16.cont [4/8] 0, 128
      %5171 = vxpose.xlu0.c.b16.cont [5/8] 0, 128
      %5172 = vxpose.xlu0.c.b16.cont [6/8] 0, 128
      %5173 = vxpose.xlu0.c.b16.cont [7/8] 0, 128
      %5174 = vxpose.xlu0.c.b16.end [8/8] 0, 128
      %v5175 = vpop.trf.xlu0
      %v5176 = vpop.trf.xlu0
      %v5177 = vpop.trf.xlu0
      %v5178 = vpop.trf.xlu0
      %v5179 = vpop.trf.xlu0
      %v5180 = vpop.trf.xlu0
      %v5181 = vpop.trf.xlu0
      %v5182 = vpop.trf.xlu0
      %5183 = vxpose.xlu0.c.b16.start [1/8] %v2189, 128
      %5184 = vxpose.xlu0.c.b16.cont [2/8] 0, 128
      %5185 = vxpose.xlu0.c.b16.cont [3/8] 0, 128
      %5186 = vxpose.xlu0.c.b16.cont [4/8] 0, 128
      %5187 = vxpose.xlu0.c.b16.cont [5/8] 0, 128
      %5188 = vxpose.xlu0.c.b16.cont [6/8] 0, 128
      %5189 = vxpose.xlu0.c.b16.cont [7/8] 0, 128
      %5190 = vxpose.xlu0.c.b16.end [8/8] 0, 128
      %v5191 = vpop.trf.xlu0
      %v5192 = vpop.trf.xlu0
      %v5193 = vpop.trf.xlu0
      %v5194 = vpop.trf.xlu0
      %v5195 = vpop.trf.xlu0
      %v5196 = vpop.trf.xlu0
      %v5197 = vpop.trf.xlu0
      %v5198 = vpop.trf.xlu0
      %5199 = vxpose.xlu0.c.b16.start [1/8] %v2190, 128
      %5200 = vxpose.xlu0.c.b16.cont [2/8] 0, 128
      %5201 = vxpose.xlu0.c.b16.cont [3/8] 0, 128
      %5202 = vxpose.xlu0.c.b16.cont [4/8] 0, 128
      %5203 = vxpose.xlu0.c.b16.cont [5/8] 0, 128
      %5204 = vxpose.xlu0.c.b16.cont [6/8] 0, 128
      %5205 = vxpose.xlu0.c.b16.cont [7/8] 0, 128
      %5206 = vxpose.xlu0.c.b16.end [8/8] 0, 128
      %v5207 = vpop.trf.xlu0
      %v5208 = vpop.trf.xlu0
      %v5209 = vpop.trf.xlu0
      %v5210 = vpop.trf.xlu0
      %v5211 = vpop.trf.xlu0
      %v5212 = vpop.trf.xlu0
      %v5213 = vpop.trf.xlu0
      %v5214 = vpop.trf.xlu0
      %5215 = vxpose.xlu0.c.b16.start [1/8] %v2191, 128
      %5216 = vxpose.xlu0.c.b16.cont [2/8] 0, 128
      %5217 = vxpose.xlu0.c.b16.cont [3/8] 0, 128
      %5218 = vxpose.xlu0.c.b16.cont [4/8] 0, 128
      %5219 = vxpose.xlu0.c.b16.cont [5/8] 0, 128
      %5220 = vxpose.xlu0.c.b16.cont [6/8] 0, 128
      %5221 = vxpose.xlu0.c.b16.cont [7/8] 0, 128
      %5222 = vxpose.xlu0.c.b16.end [8/8] 0, 128
      %v5223 = vpop.trf.xlu0
      %v5224 = vpop.trf.xlu0
      %v5225 = vpop.trf.xlu0
      %v5226 = vpop.trf.xlu0
      %v5227 = vpop.trf.xlu0
      %v5228 = vpop.trf.xlu0
      %v5229 = vpop.trf.xlu0
      %v5230 = vpop.trf.xlu0
      %5231 = vxpose.xlu0.c.b16.start [1/8] %v2192, 128
      %5232 = vxpose.xlu0.c.b16.cont [2/8] 0, 128
      %5233 = vxpose.xlu0.c.b16.cont [3/8] 0, 128
      %5234 = vxpose.xlu0.c.b16.cont [4/8] 0, 128
      %5235 = vxpose.xlu0.c.b16.cont [5/8] 0, 128
      %5236 = vxpose.xlu0.c.b16.cont [6/8] 0, 128
      %5237 = vxpose.xlu0.c.b16.cont [7/8] 0, 128
      %5238 = vxpose.xlu0.c.b16.end [8/8] 0, 128
      %v5239 = vpop.trf.xlu0
      %v5240 = vpop.trf.xlu0
      %v5241 = vpop.trf.xlu0
      %v5242 = vpop.trf.xlu0
      %v5243 = vpop.trf.xlu0
      %v5244 = vpop.trf.xlu0
      %v5245 = vpop.trf.xlu0
      %v5246 = vpop.trf.xlu0
      %5247 = vxpose.xlu0.c.b16.start [1/8] %v2193, 128
      %5248 = vxpose.xlu0.c.b16.cont [2/8] 0, 128
      %5249 = vxpose.xlu0.c.b16.cont [3/8] 0, 128
      %5250 = vxpose.xlu0.c.b16.cont [4/8] 0, 128
      %5251 = vxpose.xlu0.c.b16.cont [5/8] 0, 128
      %5252 = vxpose.xlu0.c.b16.cont [6/8] 0, 128
      %5253 = vxpose.xlu0.c.b16.cont [7/8] 0, 128
      %5254 = vxpose.xlu0.c.b16.end [8/8] 0, 128
      %v5255 = vpop.trf.xlu0
      %v5256 = vpop.trf.xlu0
      %v5257 = vpop.trf.xlu0
      %v5258 = vpop.trf.xlu0
      %v5259 = vpop.trf.xlu0
      %v5260 = vpop.trf.xlu0
      %v5261 = vpop.trf.xlu0
      %v5262 = vpop.trf.xlu0
      %5263 = vxpose.xlu0.c.b16.start [1/8] %v2194, 128
      %5264 = vxpose.xlu0.c.b16.cont [2/8] 0, 128
      %5265 = vxpose.xlu0.c.b16.cont [3/8] 0, 128
      %5266 = vxpose.xlu0.c.b16.cont [4/8] 0, 128
      %5267 = vxpose.xlu0.c.b16.cont [5/8] 0, 128
      %5268 = vxpose.xlu0.c.b16.cont [6/8] 0, 128
      %5269 = vxpose.xlu0.c.b16.cont [7/8] 0, 128
      %5270 = vxpose.xlu0.c.b16.end [8/8] 0, 128
      %v5271 = vpop.trf.xlu0
      %v5272 = vpop.trf.xlu0
      %v5273 = vpop.trf.xlu0
      %v5274 = vpop.trf.xlu0
      %v5275 = vpop.trf.xlu0
      %v5276 = vpop.trf.xlu0
      %v5277 = vpop.trf.xlu0
      %v5278 = vpop.trf.xlu0
      %5279 = vxpose.xlu0.c.b16.start [1/8] %v2195, 128
      %5280 = vxpose.xlu0.c.b16.cont [2/8] 0, 128
      %5281 = vxpose.xlu0.c.b16.cont [3/8] 0, 128
      %5282 = vxpose.xlu0.c.b16.cont [4/8] 0, 128
      %5283 = vxpose.xlu0.c.b16.cont [5/8] 0, 128
      %5284 = vxpose.xlu0.c.b16.cont [6/8] 0, 128
      %5285 = vxpose.xlu0.c.b16.cont [7/8] 0, 128
      %5286 = vxpose.xlu0.c.b16.end [8/8] 0, 128
      %v5287 = vpop.trf.xlu0
      %v5288 = vpop.trf.xlu0
      %v5289 = vpop.trf.xlu0
      %v5290 = vpop.trf.xlu0
      %v5291 = vpop.trf.xlu0
      %v5292 = vpop.trf.xlu0
      %v5293 = vpop.trf.xlu0
      %v5294 = vpop.trf.xlu0
      %5295 = vxpose.xlu0.c.b16.start [1/8] %v2196, 128
      %5296 = vxpose.xlu0.c.b16.cont [2/8] 0, 128
      %5297 = vxpose.xlu0.c.b16.cont [3/8] 0, 128
      %5298 = vxpose.xlu0.c.b16.cont [4/8] 0, 128
      %5299 = vxpose.xlu0.c.b16.cont [5/8] 0, 128
      %5300 = vxpose.xlu0.c.b16.cont [6/8] 0, 128
      %5301 = vxpose.xlu0.c.b16.cont [7/8] 0, 128
      %5302 = vxpose.xlu0.c.b16.end [8/8] 0, 128
      %v5303 = vpop.trf.xlu0
      %v5304 = vpop.trf.xlu0
      %v5305 = vpop.trf.xlu0
      %v5306 = vpop.trf.xlu0
      %v5307 = vpop.trf.xlu0
      %v5308 = vpop.trf.xlu0
      %v5309 = vpop.trf.xlu0
      %v5310 = vpop.trf.xlu0
      %5311 = vxpose.xlu0.c.b16.start [1/8] %v2197, 128
      %5312 = vxpose.xlu0.c.b16.cont [2/8] 0, 128
      %5313 = vxpose.xlu0.c.b16.cont [3/8] 0, 128
      %5314 = vxpose.xlu0.c.b16.cont [4/8] 0, 128
      %5315 = vxpose.xlu0.c.b16.cont [5/8] 0, 128
      %5316 = vxpose.xlu0.c.b16.cont [6/8] 0, 128
      %5317 = vxpose.xlu0.c.b16.cont [7/8] 0, 128
      %5318 = vxpose.xlu0.c.b16.end [8/8] 0, 128
      %v5319 = vpop.trf.xlu0
      %v5320 = vpop.trf.xlu0
      %v5321 = vpop.trf.xlu0
      %v5322 = vpop.trf.xlu0
      %v5323 = vpop.trf.xlu0
      %v5324 = vpop.trf.xlu0
      %v5325 = vpop.trf.xlu0
      %v5326 = vpop.trf.xlu0
      %5327 = vxpose.xlu0.c.b16.start [1/8] %v2198, 128
      %5328 = vxpose.xlu0.c.b16.cont [2/8] 0, 128
      %5329 = vxpose.xlu0.c.b16.cont [3/8] 0, 128
      %5330 = vxpose.xlu0.c.b16.cont [4/8] 0, 128
      %5331 = vxpose.xlu0.c.b16.cont [5/8] 0, 128
      %5332 = vxpose.xlu0.c.b16.cont [6/8] 0, 128
      %5333 = vxpose.xlu0.c.b16.cont [7/8] 0, 128
      %5334 = vxpose.xlu0.c.b16.end [8/8] 0, 128
      %v5335 = vpop.trf.xlu0
      %v5336 = vpop.trf.xlu0
      %v5337 = vpop.trf.xlu0
      %v5338 = vpop.trf.xlu0
      %v5339 = vpop.trf.xlu0
      %v5340 = vpop.trf.xlu0
      %v5341 = vpop.trf.xlu0
      %v5342 = vpop.trf.xlu0
      %5343 = vxpose.xlu0.c.b16.start [1/8] %v2199, 128
      %5344 = vxpose.xlu0.c.b16.cont [2/8] 0, 128
      %5345 = vxpose.xlu0.c.b16.cont [3/8] 0, 128
      %5346 = vxpose.xlu0.c.b16.cont [4/8] 0, 128
      %5347 = vxpose.xlu0.c.b16.cont [5/8] 0, 128
      %5348 = vxpose.xlu0.c.b16.cont [6/8] 0, 128
      %5349 = vxpose.xlu0.c.b16.cont [7/8] 0, 128
      %5350 = vxpose.xlu0.c.b16.end [8/8] 0, 128
      %v5351 = vpop.trf.xlu0
      %v5352 = vpop.trf.xlu0
      %v5353 = vpop.trf.xlu0
      %v5354 = vpop.trf.xlu0
      %v5355 = vpop.trf.xlu0
      %v5356 = vpop.trf.xlu0
      %v5357 = vpop.trf.xlu0
      %v5358 = vpop.trf.xlu0
      %5359 = vxpose.xlu0.c.b16.start [1/8] %v2200, 128
      %5360 = vxpose.xlu0.c.b16.cont [2/8] 0, 128
      %5361 = vxpose.xlu0.c.b16.cont [3/8] 0, 128
      %5362 = vxpose.xlu0.c.b16.cont [4/8] 0, 128
      %5363 = vxpose.xlu0.c.b16.cont [5/8] 0, 128
      %5364 = vxpose.xlu0.c.b16.cont [6/8] 0, 128
      %5365 = vxpose.xlu0.c.b16.cont [7/8] 0, 128
      %5366 = vxpose.xlu0.c.b16.end [8/8] 0, 128
      %v5367 = vpop.trf.xlu0
      %v5368 = vpop.trf.xlu0
      %v5369 = vpop.trf.xlu0
      %v5370 = vpop.trf.xlu0
      %v5371 = vpop.trf.xlu0
      %v5372 = vpop.trf.xlu0
      %v5373 = vpop.trf.xlu0
      %v5374 = vpop.trf.xlu0
      %5375 = vxpose.xlu0.c.b16.start [1/8] %v2201, 128
      %5376 = vxpose.xlu0.c.b16.cont [2/8] 0, 128
      %5377 = vxpose.xlu0.c.b16.cont [3/8] 0, 128
      %5378 = vxpose.xlu0.c.b16.cont [4/8] 0, 128
      %5379 = vxpose.xlu0.c.b16.cont [5/8] 0, 128
      %5380 = vxpose.xlu0.c.b16.cont [6/8] 0, 128
      %5381 = vxpose.xlu0.c.b16.cont [7/8] 0, 128
      %5382 = vxpose.xlu0.c.b16.end [8/8] 0, 128
      %v5383 = vpop.trf.xlu0
      %v5384 = vpop.trf.xlu0
      %v5385 = vpop.trf.xlu0
      %v5386 = vpop.trf.xlu0
      %v5387 = vpop.trf.xlu0
      %v5388 = vpop.trf.xlu0
      %v5389 = vpop.trf.xlu0
      %v5390 = vpop.trf.xlu0
      %5391 = vxpose.xlu0.c.b16.start [1/8] %v2202, 128
      %5392 = vxpose.xlu0.c.b16.cont [2/8] 0, 128
      %5393 = vxpose.xlu0.c.b16.cont [3/8] 0, 128
      %5394 = vxpose.xlu0.c.b16.cont [4/8] 0, 128
      %5395 = vxpose.xlu0.c.b16.cont [5/8] 0, 128
      %5396 = vxpose.xlu0.c.b16.cont [6/8] 0, 128
      %5397 = vxpose.xlu0.c.b16.cont [7/8] 0, 128
      %5398 = vxpose.xlu0.c.b16.end [8/8] 0, 128
      %v5399 = vpop.trf.xlu0
      %v5400 = vpop.trf.xlu0
      %v5401 = vpop.trf.xlu0
      %v5402 = vpop.trf.xlu0
      %v5403 = vpop.trf.xlu0
      %v5404 = vpop.trf.xlu0
      %v5405 = vpop.trf.xlu0
      %v5406 = vpop.trf.xlu0
      %5407 = vxpose.xlu0.c.b16.start [1/8] %v2203, 128
      %5408 = vxpose.xlu0.c.b16.cont [2/8] 0, 128
      %5409 = vxpose.xlu0.c.b16.cont [3/8] 0, 128
      %5410 = vxpose.xlu0.c.b16.cont [4/8] 0, 128
      %5411 = vxpose.xlu0.c.b16.cont [5/8] 0, 128
      %5412 = vxpose.xlu0.c.b16.cont [6/8] 0, 128
      %5413 = vxpose.xlu0.c.b16.cont [7/8] 0, 128
      %5414 = vxpose.xlu0.c.b16.end [8/8] 0, 128
      %v5415 = vpop.trf.xlu0
      %v5416 = vpop.trf.xlu0
      %v5417 = vpop.trf.xlu0
      %v5418 = vpop.trf.xlu0
      %v5419 = vpop.trf.xlu0
      %v5420 = vpop.trf.xlu0
      %v5421 = vpop.trf.xlu0
      %v5422 = vpop.trf.xlu0
      %5423 = vxpose.xlu0.c.b16.start [1/8] %v2204, 128
      %5424 = vxpose.xlu0.c.b16.cont [2/8] 0, 128
      %5425 = vxpose.xlu0.c.b16.cont [3/8] 0, 128
      %5426 = vxpose.xlu0.c.b16.cont [4/8] 0, 128
      %5427 = vxpose.xlu0.c.b16.cont [5/8] 0, 128
      %5428 = vxpose.xlu0.c.b16.cont [6/8] 0, 128
      %5429 = vxpose.xlu0.c.b16.cont [7/8] 0, 128
      %5430 = vxpose.xlu0.c.b16.end [8/8] 0, 128
      %v5431 = vpop.trf.xlu0
      %v5432 = vpop.trf.xlu0
      %v5433 = vpop.trf.xlu0
      %v5434 = vpop.trf.xlu0
      %v5435 = vpop.trf.xlu0
      %v5436 = vpop.trf.xlu0
      %v5437 = vpop.trf.xlu0
      %v5438 = vpop.trf.xlu0
      %5439 = vxpose.xlu0.c.b16.start [1/8] %v2205, 128
      %5440 = vxpose.xlu0.c.b16.cont [2/8] 0, 128
      %5441 = vxpose.xlu0.c.b16.cont [3/8] 0, 128
      %5442 = vxpose.xlu0.c.b16.cont [4/8] 0, 128
      %5443 = vxpose.xlu0.c.b16.cont [5/8] 0, 128
      %5444 = vxpose.xlu0.c.b16.cont [6/8] 0, 128
      %5445 = vxpose.xlu0.c.b16.cont [7/8] 0, 128
      %5446 = vxpose.xlu0.c.b16.end [8/8] 0, 128
      %v5447 = vpop.trf.xlu0
      %v5448 = vpop.trf.xlu0
      %v5449 = vpop.trf.xlu0
      %v5450 = vpop.trf.xlu0
      %v5451 = vpop.trf.xlu0
      %v5452 = vpop.trf.xlu0
      %v5453 = vpop.trf.xlu0
      %v5454 = vpop.trf.xlu0
      %5455 = vxpose.xlu0.c.b16.start [1/8] %v2206, 128
      %5456 = vxpose.xlu0.c.b16.cont [2/8] 0, 128
      %5457 = vxpose.xlu0.c.b16.cont [3/8] 0, 128
      %5458 = vxpose.xlu0.c.b16.cont [4/8] 0, 128
      %5459 = vxpose.xlu0.c.b16.cont [5/8] 0, 128
      %5460 = vxpose.xlu0.c.b16.cont [6/8] 0, 128
      %5461 = vxpose.xlu0.c.b16.cont [7/8] 0, 128
      %5462 = vxpose.xlu0.c.b16.end [8/8] 0, 128
      %v5463 = vpop.trf.xlu0
      %v5464 = vpop.trf.xlu0
      %v5465 = vpop.trf.xlu0
      %v5466 = vpop.trf.xlu0
      %v5467 = vpop.trf.xlu0
      %v5468 = vpop.trf.xlu0
      %v5469 = vpop.trf.xlu0
      %v5470 = vpop.trf.xlu0
      %5471 = vxpose.xlu0.c.b16.start [1/8] %v2207, 128
      %5472 = vxpose.xlu0.c.b16.cont [2/8] 0, 128
      %5473 = vxpose.xlu0.c.b16.cont [3/8] 0, 128
      %5474 = vxpose.xlu0.c.b16.cont [4/8] 0, 128
      %5475 = vxpose.xlu0.c.b16.cont [5/8] 0, 128
      %5476 = vxpose.xlu0.c.b16.cont [6/8] 0, 128
      %5477 = vxpose.xlu0.c.b16.cont [7/8] 0, 128
      %5478 = vxpose.xlu0.c.b16.end [8/8] 0, 128
      %v5479 = vpop.trf.xlu0
      %v5480 = vpop.trf.xlu0
      %v5481 = vpop.trf.xlu0
      %v5482 = vpop.trf.xlu0
      %v5483 = vpop.trf.xlu0
      %v5484 = vpop.trf.xlu0
      %v5485 = vpop.trf.xlu0
      %v5486 = vpop.trf.xlu0
      %5487 = vxpose.xlu0.c.b16.start [1/8] %v2208, 128
      %5488 = vxpose.xlu0.c.b16.cont [2/8] 0, 128
      %5489 = vxpose.xlu0.c.b16.cont [3/8] 0, 128
      %5490 = vxpose.xlu0.c.b16.cont [4/8] 0, 128
      %5491 = vxpose.xlu0.c.b16.cont [5/8] 0, 128
      %5492 = vxpose.xlu0.c.b16.cont [6/8] 0, 128
      %5493 = vxpose.xlu0.c.b16.cont [7/8] 0, 128
      %5494 = vxpose.xlu0.c.b16.end [8/8] 0, 128
      %v5495 = vpop.trf.xlu0
      %v5496 = vpop.trf.xlu0
      %v5497 = vpop.trf.xlu0
      %v5498 = vpop.trf.xlu0
      %v5499 = vpop.trf.xlu0
      %v5500 = vpop.trf.xlu0
      %v5501 = vpop.trf.xlu0
      %v5502 = vpop.trf.xlu0
      %5503 = vxpose.xlu0.c.b16.start [1/8] %v2209, 128
      %5504 = vxpose.xlu0.c.b16.cont [2/8] 0, 128
      %5505 = vxpose.xlu0.c.b16.cont [3/8] 0, 128
      %5506 = vxpose.xlu0.c.b16.cont [4/8] 0, 128
      %5507 = vxpose.xlu0.c.b16.cont [5/8] 0, 128
      %5508 = vxpose.xlu0.c.b16.cont [6/8] 0, 128
      %5509 = vxpose.xlu0.c.b16.cont [7/8] 0, 128
      %5510 = vxpose.xlu0.c.b16.end [8/8] 0, 128
      %v5511 = vpop.trf.xlu0
      %v5512 = vpop.trf.xlu0
      %v5513 = vpop.trf.xlu0
      %v5514 = vpop.trf.xlu0
      %v5515 = vpop.trf.xlu0
      %v5516 = vpop.trf.xlu0
      %v5517 = vpop.trf.xlu0
      %v5518 = vpop.trf.xlu0
      %5519 = vxpose.xlu0.c.b16.start [1/8] %v2210, 128
      %5520 = vxpose.xlu0.c.b16.cont [2/8] 0, 128
      %5521 = vxpose.xlu0.c.b16.cont [3/8] 0, 128
      %5522 = vxpose.xlu0.c.b16.cont [4/8] 0, 128
      %5523 = vxpose.xlu0.c.b16.cont [5/8] 0, 128
      %5524 = vxpose.xlu0.c.b16.cont [6/8] 0, 128
      %5525 = vxpose.xlu0.c.b16.cont [7/8] 0, 128
      %5526 = vxpose.xlu0.c.b16.end [8/8] 0, 128
      %v5527 = vpop.trf.xlu0
      %v5528 = vpop.trf.xlu0
      %v5529 = vpop.trf.xlu0
      %v5530 = vpop.trf.xlu0
      %v5531 = vpop.trf.xlu0
      %v5532 = vpop.trf.xlu0
      %v5533 = vpop.trf.xlu0
      %v5534 = vpop.trf.xlu0
      %5535 = vxpose.xlu0.c.b16.start [1/8] %v2211, 128
      %5536 = vxpose.xlu0.c.b16.cont [2/8] 0, 128
      %5537 = vxpose.xlu0.c.b16.cont [3/8] 0, 128
      %5538 = vxpose.xlu0.c.b16.cont [4/8] 0, 128
      %5539 = vxpose.xlu0.c.b16.cont [5/8] 0, 128
      %5540 = vxpose.xlu0.c.b16.cont [6/8] 0, 128
      %5541 = vxpose.xlu0.c.b16.cont [7/8] 0, 128
      %5542 = vxpose.xlu0.c.b16.end [8/8] 0, 128
      %v5543 = vpop.trf.xlu0
      %v5544 = vpop.trf.xlu0
      %v5545 = vpop.trf.xlu0
      %v5546 = vpop.trf.xlu0
      %v5547 = vpop.trf.xlu0
      %v5548 = vpop.trf.xlu0
      %v5549 = vpop.trf.xlu0
      %v5550 = vpop.trf.xlu0
      %5551 = vxpose.xlu0.c.b16.start [1/8] %v2212, 128
      %5552 = vxpose.xlu0.c.b16.cont [2/8] 0, 128
      %5553 = vxpose.xlu0.c.b16.cont [3/8] 0, 128
      %5554 = vxpose.xlu0.c.b16.cont [4/8] 0, 128
      %5555 = vxpose.xlu0.c.b16.cont [5/8] 0, 128
      %5556 = vxpose.xlu0.c.b16.cont [6/8] 0, 128
      %5557 = vxpose.xlu0.c.b16.cont [7/8] 0, 128
      %5558 = vxpose.xlu0.c.b16.end [8/8] 0, 128
      %v5559 = vpop.trf.xlu0
      %v5560 = vpop.trf.xlu0
      %v5561 = vpop.trf.xlu0
      %v5562 = vpop.trf.xlu0
      %v5563 = vpop.trf.xlu0
      %v5564 = vpop.trf.xlu0
      %v5565 = vpop.trf.xlu0
      %v5566 = vpop.trf.xlu0
      %5567 = vxpose.xlu0.c.b16.start [1/8] %v2213, 128
      %5568 = vxpose.xlu0.c.b16.cont [2/8] 0, 128
      %5569 = vxpose.xlu0.c.b16.cont [3/8] 0, 128
      %5570 = vxpose.xlu0.c.b16.cont [4/8] 0, 128
      %5571 = vxpose.xlu0.c.b16.cont [5/8] 0, 128
      %5572 = vxpose.xlu0.c.b16.cont [6/8] 0, 128
      %5573 = vxpose.xlu0.c.b16.cont [7/8] 0, 128
      %5574 = vxpose.xlu0.c.b16.end [8/8] 0, 128
      %v5575 = vpop.trf.xlu0
      %v5576 = vpop.trf.xlu0
      %v5577 = vpop.trf.xlu0
      %v5578 = vpop.trf.xlu0
      %v5579 = vpop.trf.xlu0
      %v5580 = vpop.trf.xlu0
      %v5581 = vpop.trf.xlu0
      %v5582 = vpop.trf.xlu0
      %5583 = vxpose.xlu0.c.b16.start [1/8] %v2214, 128
      %5584 = vxpose.xlu0.c.b16.cont [2/8] 0, 128
      %5585 = vxpose.xlu0.c.b16.cont [3/8] 0, 128
      %5586 = vxpose.xlu0.c.b16.cont [4/8] 0, 128
      %5587 = vxpose.xlu0.c.b16.cont [5/8] 0, 128
      %5588 = vxpose.xlu0.c.b16.cont [6/8] 0, 128
      %5589 = vxpose.xlu0.c.b16.cont [7/8] 0, 128
      %5590 = vxpose.xlu0.c.b16.end [8/8] 0, 128
      %v5591 = vpop.trf.xlu0
      %v5592 = vpop.trf.xlu0
      %v5593 = vpop.trf.xlu0
      %v5594 = vpop.trf.xlu0
      %v5595 = vpop.trf.xlu0
      %v5596 = vpop.trf.xlu0
      %v5597 = vpop.trf.xlu0
      %v5598 = vpop.trf.xlu0
      %5599 = vxpose.xlu0.c.b16.start [1/8] %v2215, 128
      %5600 = vxpose.xlu0.c.b16.cont [2/8] 0, 128
      %5601 = vxpose.xlu0.c.b16.cont [3/8] 0, 128
      %5602 = vxpose.xlu0.c.b16.cont [4/8] 0, 128
      %5603 = vxpose.xlu0.c.b16.cont [5/8] 0, 128
      %5604 = vxpose.xlu0.c.b16.cont [6/8] 0, 128
      %5605 = vxpose.xlu0.c.b16.cont [7/8] 0, 128
      %5606 = vxpose.xlu0.c.b16.end [8/8] 0, 128
      %v5607 = vpop.trf.xlu0
      %v5608 = vpop.trf.xlu0
      %v5609 = vpop.trf.xlu0
      %v5610 = vpop.trf.xlu0
      %v5611 = vpop.trf.xlu0
      %v5612 = vpop.trf.xlu0
      %v5613 = vpop.trf.xlu0
      %v5614 = vpop.trf.xlu0
      %5615 = vxpose.xlu0.c.b16.start [1/8] %v2216, 128
      %5616 = vxpose.xlu0.c.b16.cont [2/8] 0, 128
      %5617 = vxpose.xlu0.c.b16.cont [3/8] 0, 128
      %5618 = vxpose.xlu0.c.b16.cont [4/8] 0, 128
      %5619 = vxpose.xlu0.c.b16.cont [5/8] 0, 128
      %5620 = vxpose.xlu0.c.b16.cont [6/8] 0, 128
      %5621 = vxpose.xlu0.c.b16.cont [7/8] 0, 128
      %5622 = vxpose.xlu0.c.b16.end [8/8] 0, 128
      %v5623 = vpop.trf.xlu0
      %v5624 = vpop.trf.xlu0
      %v5625 = vpop.trf.xlu0
      %v5626 = vpop.trf.xlu0
      %v5627 = vpop.trf.xlu0
      %v5628 = vpop.trf.xlu0
      %v5629 = vpop.trf.xlu0
      %v5630 = vpop.trf.xlu0
      %5631 = vxpose.xlu0.c.b16.start [1/8] %v2217, 128
      %5632 = vxpose.xlu0.c.b16.cont [2/8] 0, 128
      %5633 = vxpose.xlu0.c.b16.cont [3/8] 0, 128
      %5634 = vxpose.xlu0.c.b16.cont [4/8] 0, 128
      %5635 = vxpose.xlu0.c.b16.cont [5/8] 0, 128
      %5636 = vxpose.xlu0.c.b16.cont [6/8] 0, 128
      %5637 = vxpose.xlu0.c.b16.cont [7/8] 0, 128
      %5638 = vxpose.xlu0.c.b16.end [8/8] 0, 128
      %v5639 = vpop.trf.xlu0
      %v5640 = vpop.trf.xlu0
      %v5641 = vpop.trf.xlu0
      %v5642 = vpop.trf.xlu0
      %v5643 = vpop.trf.xlu0
      %v5644 = vpop.trf.xlu0
      %v5645 = vpop.trf.xlu0
      %v5646 = vpop.trf.xlu0
      %5647 = vxpose.xlu0.c.b16.start [1/8] %v2218, 128
      %5648 = vxpose.xlu0.c.b16.cont [2/8] 0, 128
      %5649 = vxpose.xlu0.c.b16.cont [3/8] 0, 128
      %5650 = vxpose.xlu0.c.b16.cont [4/8] 0, 128
      %5651 = vxpose.xlu0.c.b16.cont [5/8] 0, 128
      %5652 = vxpose.xlu0.c.b16.cont [6/8] 0, 128
      %5653 = vxpose.xlu0.c.b16.cont [7/8] 0, 128
      %5654 = vxpose.xlu0.c.b16.end [8/8] 0, 128
      %v5655 = vpop.trf.xlu0
      %v5656 = vpop.trf.xlu0
      %v5657 = vpop.trf.xlu0
      %v5658 = vpop.trf.xlu0
      %v5659 = vpop.trf.xlu0
      %v5660 = vpop.trf.xlu0
      %v5661 = vpop.trf.xlu0
      %v5662 = vpop.trf.xlu0
      %5663 = vxpose.xlu0.c.b16.start [1/8] %v2219, 128
      %5664 = vxpose.xlu0.c.b16.cont [2/8] 0, 128
      %5665 = vxpose.xlu0.c.b16.cont [3/8] 0, 128
      %5666 = vxpose.xlu0.c.b16.cont [4/8] 0, 128
      %5667 = vxpose.xlu0.c.b16.cont [5/8] 0, 128
      %5668 = vxpose.xlu0.c.b16.cont [6/8] 0, 128
      %5669 = vxpose.xlu0.c.b16.cont [7/8] 0, 128
      %5670 = vxpose.xlu0.c.b16.end [8/8] 0, 128
      %v5671 = vpop.trf.xlu0
      %v5672 = vpop.trf.xlu0
      %v5673 = vpop.trf.xlu0
      %v5674 = vpop.trf.xlu0
      %v5675 = vpop.trf.xlu0
      %v5676 = vpop.trf.xlu0
      %v5677 = vpop.trf.xlu0
      %v5678 = vpop.trf.xlu0
      %5679 = vxpose.xlu0.c.b16.start [1/8] %v2220, 128
      %5680 = vxpose.xlu0.c.b16.cont [2/8] 0, 128
      %5681 = vxpose.xlu0.c.b16.cont [3/8] 0, 128
      %5682 = vxpose.xlu0.c.b16.cont [4/8] 0, 128
      %5683 = vxpose.xlu0.c.b16.cont [5/8] 0, 128
      %5684 = vxpose.xlu0.c.b16.cont [6/8] 0, 128
      %5685 = vxpose.xlu0.c.b16.cont [7/8] 0, 128
      %5686 = vxpose.xlu0.c.b16.end [8/8] 0, 128
      %v5687 = vpop.trf.xlu0
      %v5688 = vpop.trf.xlu0
      %v5689 = vpop.trf.xlu0
      %v5690 = vpop.trf.xlu0
      %v5691 = vpop.trf.xlu0
      %v5692 = vpop.trf.xlu0
      %v5693 = vpop.trf.xlu0
      %v5694 = vpop.trf.xlu0
      %5695 = vxpose.xlu0.c.b16.start [1/8] %v2221, 128
      %5696 = vxpose.xlu0.c.b16.cont [2/8] 0, 128
      %5697 = vxpose.xlu0.c.b16.cont [3/8] 0, 128
      %5698 = vxpose.xlu0.c.b16.cont [4/8] 0, 128
      %5699 = vxpose.xlu0.c.b16.cont [5/8] 0, 128
      %5700 = vxpose.xlu0.c.b16.cont [6/8] 0, 128
      %5701 = vxpose.xlu0.c.b16.cont [7/8] 0, 128
      %5702 = vxpose.xlu0.c.b16.end [8/8] 0, 128
      %v5703 = vpop.trf.xlu0
      %v5704 = vpop.trf.xlu0
      %v5705 = vpop.trf.xlu0
      %v5706 = vpop.trf.xlu0
      %v5707 = vpop.trf.xlu0
      %v5708 = vpop.trf.xlu0
      %v5709 = vpop.trf.xlu0
      %v5710 = vpop.trf.xlu0
      %5711 = vxpose.xlu0.c.b16.start [1/8] %v2222, 128
      %5712 = vxpose.xlu0.c.b16.cont [2/8] 0, 128
      %5713 = vxpose.xlu0.c.b16.cont [3/8] 0, 128
      %5714 = vxpose.xlu0.c.b16.cont [4/8] 0, 128
      %5715 = vxpose.xlu0.c.b16.cont [5/8] 0, 128
      %5716 = vxpose.xlu0.c.b16.cont [6/8] 0, 128
      %5717 = vxpose.xlu0.c.b16.cont [7/8] 0, 128
      %5718 = vxpose.xlu0.c.b16.end [8/8] 0, 128
      %v5719 = vpop.trf.xlu0
      %v5720 = vpop.trf.xlu0
      %v5721 = vpop.trf.xlu0
      %v5722 = vpop.trf.xlu0
      %v5723 = vpop.trf.xlu0
      %v5724 = vpop.trf.xlu0
      %v5725 = vpop.trf.xlu0
      %v5726 = vpop.trf.xlu0
      %5727 = vxpose.xlu0.c.b16.start [1/8] %v2223, 128
      %5728 = vxpose.xlu0.c.b16.cont [2/8] 0, 128
      %5729 = vxpose.xlu0.c.b16.cont [3/8] 0, 128
      %5730 = vxpose.xlu0.c.b16.cont [4/8] 0, 128
      %5731 = vxpose.xlu0.c.b16.cont [5/8] 0, 128
      %5732 = vxpose.xlu0.c.b16.cont [6/8] 0, 128
      %5733 = vxpose.xlu0.c.b16.cont [7/8] 0, 128
      %5734 = vxpose.xlu0.c.b16.end [8/8] 0, 128
      %v5735 = vpop.trf.xlu0
      %v5736 = vpop.trf.xlu0
      %v5737 = vpop.trf.xlu0
      %v5738 = vpop.trf.xlu0
      %v5739 = vpop.trf.xlu0
      %v5740 = vpop.trf.xlu0
      %v5741 = vpop.trf.xlu0
      %v5742 = vpop.trf.xlu0
      %v5743 = vcombine.low %v3703, %v3767
      %v5745 = vunpack.c.l.s4 1983009808
      %v5746 = vunpack.c.0.s8 %v5745
      %v5747 = vlaneseq
      %v5748 = vshrl.u32 %v5747, 7
      %v5749 = vsub.s32 %v5746, %v5748
      %v5750 = vrot.slane %v5743, %v5749
      %v5751 = vcombine.low %v3735, %v3799
      %v5753 = vunpack.c.l.s4 1983009808
      %v5754 = vunpack.c.0.s8 %v5753
      %v5755 = vlaneseq
      %v5756 = vshrl.u32 %v5755, 7
      %v5757 = vsub.s32 %v5754, %v5756
      %v5758 = vrot.slane %v5751, %v5757
      %v5759 = vcombine.low %v3831, %v3895
      %v5761 = vunpack.c.l.s4 1983009808
      %v5762 = vunpack.c.0.s8 %v5761
      %v5763 = vlaneseq
      %v5764 = vshrl.u32 %v5763, 7
      %v5765 = vsub.s32 %v5762, %v5764
      %v5766 = vrot.slane %v5759, %v5765
      %v5767 = vcombine.low %v3863, %v3927
      %v5769 = vunpack.c.l.s4 1983009808
      %v5770 = vunpack.c.0.s8 %v5769
      %v5771 = vlaneseq
      %v5772 = vshrl.u32 %v5771, 7
      %v5773 = vsub.s32 %v5770, %v5772
      %v5774 = vrot.slane %v5767, %v5773
      %v5775 = vcombine.low %v5750, %v5758
      %v5776 = vcombine.high %v5750, %v5758
      %v5778 = vunpack.c.l.s4 1934713408
      %v5779 = vunpack.c.0.s8 %v5778
      %v5780 = vlaneseq
      %v5781 = vshrl.u32 %v5780, 7
      %v5782 = vsub.s32 %v5779, %v5781
      %v5783 = vrot.slane %v5775, %v5782
      %v5785 = vunpack.c.l.s4 1934713408
      %v5786 = vunpack.c.0.s8 %v5785
      %v5787 = vlaneseq
      %v5788 = vshrl.u32 %v5787, 7
      %v5789 = vsub.s32 %v5786, %v5788
      %v5790 = vrot.slane %v5776, %v5789
      %v5791 = vcombine.low %v5766, %v5774
      %v5792 = vcombine.high %v5766, %v5774
      %v5794 = vunpack.c.l.s4 1934713408
      %v5795 = vunpack.c.0.s8 %v5794
      %v5796 = vlaneseq
      %v5797 = vshrl.u32 %v5796, 7
      %v5798 = vsub.s32 %v5795, %v5797
      %v5799 = vrot.slane %v5791, %v5798
      %v5801 = vunpack.c.l.s4 1934713408
      %v5802 = vunpack.c.0.s8 %v5801
      %v5803 = vlaneseq
      %v5804 = vshrl.u32 %v5803, 7
      %v5805 = vsub.s32 %v5802, %v5804
      %v5806 = vrot.slane %v5792, %v5805
      %v5807 = vcombine.low %v5783, %v5799
      %v5808 = vcombine.high %v5783, %v5799
      %v5809 = vcombine.low %v5790, %v5806
      %v5810 = vcombine.high %v5790, %v5806
      %v5811 = vcombine.low %v3719, %v3783
      %v5813 = vunpack.c.l.s4 1983009808
      %v5814 = vunpack.c.0.s8 %v5813
      %v5815 = vlaneseq
      %v5816 = vshrl.u32 %v5815, 7
      %v5817 = vsub.s32 %v5814, %v5816
      %v5818 = vrot.slane %v5811, %v5817
      %v5819 = vcombine.low %v3751, %v3815
      %v5821 = vunpack.c.l.s4 1983009808
      %v5822 = vunpack.c.0.s8 %v5821
      %v5823 = vlaneseq
      %v5824 = vshrl.u32 %v5823, 7
      %v5825 = vsub.s32 %v5822, %v5824
      %v5826 = vrot.slane %v5819, %v5825
      %v5827 = vcombine.low %v3847, %v3911
      %v5829 = vunpack.c.l.s4 1983009808
      %v5830 = vunpack.c.0.s8 %v5829
      %v5831 = vlaneseq
      %v5832 = vshrl.u32 %v5831, 7
      %v5833 = vsub.s32 %v5830, %v5832
      %v5834 = vrot.slane %v5827, %v5833
      %v5835 = vcombine.low %v3879, %v3943
      %v5837 = vunpack.c.l.s4 1983009808
      %v5838 = vunpack.c.0.s8 %v5837
      %v5839 = vlaneseq
      %v5840 = vshrl.u32 %v5839, 7
      %v5841 = vsub.s32 %v5838, %v5840
      %v5842 = vrot.slane %v5835, %v5841
      %v5843 = vcombine.low %v5818, %v5826
      %v5844 = vcombine.high %v5818, %v5826
      %v5846 = vunpack.c.l.s4 1934713408
      %v5847 = vunpack.c.0.s8 %v5846
      %v5848 = vlaneseq
      %v5849 = vshrl.u32 %v5848, 7
      %v5850 = vsub.s32 %v5847, %v5849
      %v5851 = vrot.slane %v5843, %v5850
      %v5853 = vunpack.c.l.s4 1934713408
      %v5854 = vunpack.c.0.s8 %v5853
      %v5855 = vlaneseq
      %v5856 = vshrl.u32 %v5855, 7
      %v5857 = vsub.s32 %v5854, %v5856
      %v5858 = vrot.slane %v5844, %v5857
      %v5859 = vcombine.low %v5834, %v5842
      %v5860 = vcombine.high %v5834, %v5842
      %v5862 = vunpack.c.l.s4 1934713408
      %v5863 = vunpack.c.0.s8 %v5862
      %v5864 = vlaneseq
      %v5865 = vshrl.u32 %v5864, 7
      %v5866 = vsub.s32 %v5863, %v5865
      %v5867 = vrot.slane %v5859, %v5866
      %v5869 = vunpack.c.l.s4 1934713408
      %v5870 = vunpack.c.0.s8 %v5869
      %v5871 = vlaneseq
      %v5872 = vshrl.u32 %v5871, 7
      %v5873 = vsub.s32 %v5870, %v5872
      %v5874 = vrot.slane %v5860, %v5873
      %v5875 = vcombine.low %v5851, %v5867
      %v5876 = vcombine.high %v5851, %v5867
      %v5877 = vcombine.low %v5858, %v5874
      %v5878 = vcombine.high %v5858, %v5874
      %v5879 = vcombine.low %v3959, %v4023
      %v5881 = vunpack.c.l.s4 1983009808
      %v5882 = vunpack.c.0.s8 %v5881
      %v5883 = vlaneseq
      %v5884 = vshrl.u32 %v5883, 7
      %v5885 = vsub.s32 %v5882, %v5884
      %v5886 = vrot.slane %v5879, %v5885
      %v5887 = vcombine.low %v3991, %v4055
      %v5889 = vunpack.c.l.s4 1983009808
      %v5890 = vunpack.c.0.s8 %v5889
      %v5891 = vlaneseq
      %v5892 = vshrl.u32 %v5891, 7
      %v5893 = vsub.s32 %v5890, %v5892
      %v5894 = vrot.slane %v5887, %v5893
      %v5895 = vcombine.low %v4087, %v4151
      %v5897 = vunpack.c.l.s4 1983009808
      %v5898 = vunpack.c.0.s8 %v5897
      %v5899 = vlaneseq
      %v5900 = vshrl.u32 %v5899, 7
      %v5901 = vsub.s32 %v5898, %v5900
      %v5902 = vrot.slane %v5895, %v5901
      %v5903 = vcombine.low %v4119, %v4183
      %v5905 = vunpack.c.l.s4 1983009808
      %v5906 = vunpack.c.0.s8 %v5905
      %v5907 = vlaneseq
      %v5908 = vshrl.u32 %v5907, 7
      %v5909 = vsub.s32 %v5906, %v5908
      %v5910 = vrot.slane %v5903, %v5909
      %v5911 = vcombine.low %v5886, %v5894
      %v5912 = vcombine.high %v5886, %v5894
      %v5914 = vunpack.c.l.s4 1934713408
      %v5915 = vunpack.c.0.s8 %v5914
      %v5916 = vlaneseq
      %v5917 = vshrl.u32 %v5916, 7
      %v5918 = vsub.s32 %v5915, %v5917
      %v5919 = vrot.slane %v5911, %v5918
      %v5921 = vunpack.c.l.s4 1934713408
      %v5922 = vunpack.c.0.s8 %v5921
      %v5923 = vlaneseq
      %v5924 = vshrl.u32 %v5923, 7
      %v5925 = vsub.s32 %v5922, %v5924
      %v5926 = vrot.slane %v5912, %v5925
      %v5927 = vcombine.low %v5902, %v5910
      %v5928 = vcombine.high %v5902, %v5910
      %v5930 = vunpack.c.l.s4 1934713408
      %v5931 = vunpack.c.0.s8 %v5930
      %v5932 = vlaneseq
      %v5933 = vshrl.u32 %v5932, 7
      %v5934 = vsub.s32 %v5931, %v5933
      %v5935 = vrot.slane %v5927, %v5934
      %v5937 = vunpack.c.l.s4 1934713408
      %v5938 = vunpack.c.0.s8 %v5937
      %v5939 = vlaneseq
      %v5940 = vshrl.u32 %v5939, 7
      %v5941 = vsub.s32 %v5938, %v5940
      %v5942 = vrot.slane %v5928, %v5941
      %v5943 = vcombine.low %v5919, %v5935
      %v5944 = vcombine.high %v5919, %v5935
      %v5945 = vcombine.low %v5926, %v5942
      %v5946 = vcombine.high %v5926, %v5942
      %v5947 = vcombine.low %v3975, %v4039
      %v5949 = vunpack.c.l.s4 1983009808
      %v5950 = vunpack.c.0.s8 %v5949
      %v5951 = vlaneseq
      %v5952 = vshrl.u32 %v5951, 7
      %v5953 = vsub.s32 %v5950, %v5952
      %v5954 = vrot.slane %v5947, %v5953
      %v5955 = vcombine.low %v4007, %v4071
      %v5957 = vunpack.c.l.s4 1983009808
      %v5958 = vunpack.c.0.s8 %v5957
      %v5959 = vlaneseq
      %v5960 = vshrl.u32 %v5959, 7
      %v5961 = vsub.s32 %v5958, %v5960
      %v5962 = vrot.slane %v5955, %v5961
      %v5963 = vcombine.low %v4103, %v4167
      %v5965 = vunpack.c.l.s4 1983009808
      %v5966 = vunpack.c.0.s8 %v5965
      %v5967 = vlaneseq
      %v5968 = vshrl.u32 %v5967, 7
      %v5969 = vsub.s32 %v5966, %v5968
      %v5970 = vrot.slane %v5963, %v5969
      %v5971 = vcombine.low %v4135, %v4199
      %v5973 = vunpack.c.l.s4 1983009808
      %v5974 = vunpack.c.0.s8 %v5973
      %v5975 = vlaneseq
      %v5976 = vshrl.u32 %v5975, 7
      %v5977 = vsub.s32 %v5974, %v5976
      %v5978 = vrot.slane %v5971, %v5977
      %v5979 = vcombine.low %v5954, %v5962
      %v5980 = vcombine.high %v5954, %v5962
      %v5982 = vunpack.c.l.s4 1934713408
      %v5983 = vunpack.c.0.s8 %v5982
      %v5984 = vlaneseq
      %v5985 = vshrl.u32 %v5984, 7
      %v5986 = vsub.s32 %v5983, %v5985
      %v5987 = vrot.slane %v5979, %v5986
      %v5989 = vunpack.c.l.s4 1934713408
      %v5990 = vunpack.c.0.s8 %v5989
      %v5991 = vlaneseq
      %v5992 = vshrl.u32 %v5991, 7
      %v5993 = vsub.s32 %v5990, %v5992
      %v5994 = vrot.slane %v5980, %v5993
      %v5995 = vcombine.low %v5970, %v5978
      %v5996 = vcombine.high %v5970, %v5978
      %v5998 = vunpack.c.l.s4 1934713408
      %v5999 = vunpack.c.0.s8 %v5998
      %v6000 = vlaneseq
      %v6001 = vshrl.u32 %v6000, 7
      %v6002 = vsub.s32 %v5999, %v6001
      %v6003 = vrot.slane %v5995, %v6002
      %v6005 = vunpack.c.l.s4 1934713408
      %v6006 = vunpack.c.0.s8 %v6005
      %v6007 = vlaneseq
      %v6008 = vshrl.u32 %v6007, 7
      %v6009 = vsub.s32 %v6006, %v6008
      %v6010 = vrot.slane %v5996, %v6009
      %v6011 = vcombine.low %v5987, %v6003
      %v6012 = vcombine.high %v5987, %v6003
      %v6013 = vcombine.low %v5994, %v6010
      %v6014 = vcombine.high %v5994, %v6010
      %v6015 = vcombine.low %v4215, %v4279
      %v6017 = vunpack.c.l.s4 1983009808
      %v6018 = vunpack.c.0.s8 %v6017
      %v6019 = vlaneseq
      %v6020 = vshrl.u32 %v6019, 7
      %v6021 = vsub.s32 %v6018, %v6020
      %v6022 = vrot.slane %v6015, %v6021
      %v6023 = vcombine.low %v4247, %v4311
      %v6025 = vunpack.c.l.s4 1983009808
      %v6026 = vunpack.c.0.s8 %v6025
      %v6027 = vlaneseq
      %v6028 = vshrl.u32 %v6027, 7
      %v6029 = vsub.s32 %v6026, %v6028
      %v6030 = vrot.slane %v6023, %v6029
      %v6031 = vcombine.low %v4343, %v4407
      %v6033 = vunpack.c.l.s4 1983009808
      %v6034 = vunpack.c.0.s8 %v6033
      %v6035 = vlaneseq
      %v6036 = vshrl.u32 %v6035, 7
      %v6037 = vsub.s32 %v6034, %v6036
      %v6038 = vrot.slane %v6031, %v6037
      %v6039 = vcombine.low %v4375, %v4439
      %v6041 = vunpack.c.l.s4 1983009808
      %v6042 = vunpack.c.0.s8 %v6041
      %v6043 = vlaneseq
      %v6044 = vshrl.u32 %v6043, 7
      %v6045 = vsub.s32 %v6042, %v6044
      %v6046 = vrot.slane %v6039, %v6045
      %v6047 = vcombine.low %v6022, %v6030
      %v6048 = vcombine.high %v6022, %v6030
      %v6050 = vunpack.c.l.s4 1934713408
      %v6051 = vunpack.c.0.s8 %v6050
      %v6052 = vlaneseq
      %v6053 = vshrl.u32 %v6052, 7
      %v6054 = vsub.s32 %v6051, %v6053
      %v6055 = vrot.slane %v6047, %v6054
      %v6057 = vunpack.c.l.s4 1934713408
      %v6058 = vunpack.c.0.s8 %v6057
      %v6059 = vlaneseq
      %v6060 = vshrl.u32 %v6059, 7
      %v6061 = vsub.s32 %v6058, %v6060
      %v6062 = vrot.slane %v6048, %v6061
      %v6063 = vcombine.low %v6038, %v6046
      %v6064 = vcombine.high %v6038, %v6046
      %v6066 = vunpack.c.l.s4 1934713408
      %v6067 = vunpack.c.0.s8 %v6066
      %v6068 = vlaneseq
      %v6069 = vshrl.u32 %v6068, 7
      %v6070 = vsub.s32 %v6067, %v6069
      %v6071 = vrot.slane %v6063, %v6070
      %v6073 = vunpack.c.l.s4 1934713408
      %v6074 = vunpack.c.0.s8 %v6073
      %v6075 = vlaneseq
      %v6076 = vshrl.u32 %v6075, 7
      %v6077 = vsub.s32 %v6074, %v6076
      %v6078 = vrot.slane %v6064, %v6077
      %v6079 = vcombine.low %v6055, %v6071
      %v6080 = vcombine.high %v6055, %v6071
      %v6081 = vcombine.low %v6062, %v6078
      %v6082 = vcombine.high %v6062, %v6078
      %v6083 = vcombine.low %v4231, %v4295
      %v6085 = vunpack.c.l.s4 1983009808
      %v6086 = vunpack.c.0.s8 %v6085
      %v6087 = vlaneseq
      %v6088 = vshrl.u32 %v6087, 7
      %v6089 = vsub.s32 %v6086, %v6088
      %v6090 = vrot.slane %v6083, %v6089
      %v6091 = vcombine.low %v4263, %v4327
      %v6093 = vunpack.c.l.s4 1983009808
      %v6094 = vunpack.c.0.s8 %v6093
      %v6095 = vlaneseq
      %v6096 = vshrl.u32 %v6095, 7
      %v6097 = vsub.s32 %v6094, %v6096
      %v6098 = vrot.slane %v6091, %v6097
      %v6099 = vcombine.low %v4359, %v4423
      %v6101 = vunpack.c.l.s4 1983009808
      %v6102 = vunpack.c.0.s8 %v6101
      %v6103 = vlaneseq
      %v6104 = vshrl.u32 %v6103, 7
      %v6105 = vsub.s32 %v6102, %v6104
      %v6106 = vrot.slane %v6099, %v6105
      %v6107 = vcombine.low %v4391, %v4455
      %v6109 = vunpack.c.l.s4 1983009808
      %v6110 = vunpack.c.0.s8 %v6109
      %v6111 = vlaneseq
      %v6112 = vshrl.u32 %v6111, 7
      %v6113 = vsub.s32 %v6110, %v6112
      %v6114 = vrot.slane %v6107, %v6113
      %v6115 = vcombine.low %v6090, %v6098
      %v6116 = vcombine.high %v6090, %v6098
      %v6118 = vunpack.c.l.s4 1934713408
      %v6119 = vunpack.c.0.s8 %v6118
      %v6120 = vlaneseq
      %v6121 = vshrl.u32 %v6120, 7
      %v6122 = vsub.s32 %v6119, %v6121
      %v6123 = vrot.slane %v6115, %v6122
      %v6125 = vunpack.c.l.s4 1934713408
      %v6126 = vunpack.c.0.s8 %v6125
      %v6127 = vlaneseq
      %v6128 = vshrl.u32 %v6127, 7
      %v6129 = vsub.s32 %v6126, %v6128
      %v6130 = vrot.slane %v6116, %v6129
      %v6131 = vcombine.low %v6106, %v6114
      %v6132 = vcombine.high %v6106, %v6114
      %v6134 = vunpack.c.l.s4 1934713408
      %v6135 = vunpack.c.0.s8 %v6134
      %v6136 = vlaneseq
      %v6137 = vshrl.u32 %v6136, 7
      %v6138 = vsub.s32 %v6135, %v6137
      %v6139 = vrot.slane %v6131, %v6138
      %v6141 = vunpack.c.l.s4 1934713408
      %v6142 = vunpack.c.0.s8 %v6141
      %v6143 = vlaneseq
      %v6144 = vshrl.u32 %v6143, 7
      %v6145 = vsub.s32 %v6142, %v6144
      %v6146 = vrot.slane %v6132, %v6145
      %v6147 = vcombine.low %v6123, %v6139
      %v6148 = vcombine.high %v6123, %v6139
      %v6149 = vcombine.low %v6130, %v6146
      %v6150 = vcombine.high %v6130, %v6146
      %v6151 = vcombine.low %v4471, %v4535
      %v6153 = vunpack.c.l.s4 1983009808
      %v6154 = vunpack.c.0.s8 %v6153
      %v6155 = vlaneseq
      %v6156 = vshrl.u32 %v6155, 7
      %v6157 = vsub.s32 %v6154, %v6156
      %v6158 = vrot.slane %v6151, %v6157
      %v6159 = vcombine.low %v4503, %v4567
      %v6161 = vunpack.c.l.s4 1983009808
      %v6162 = vunpack.c.0.s8 %v6161
      %v6163 = vlaneseq
      %v6164 = vshrl.u32 %v6163, 7
      %v6165 = vsub.s32 %v6162, %v6164
      %v6166 = vrot.slane %v6159, %v6165
      %v6167 = vcombine.low %v4599, %v4663
      %v6169 = vunpack.c.l.s4 1983009808
      %v6170 = vunpack.c.0.s8 %v6169
      %v6171 = vlaneseq
      %v6172 = vshrl.u32 %v6171, 7
      %v6173 = vsub.s32 %v6170, %v6172
      %v6174 = vrot.slane %v6167, %v6173
      %v6175 = vcombine.low %v4631, %v4695
      %v6177 = vunpack.c.l.s4 1983009808
      %v6178 = vunpack.c.0.s8 %v6177
      %v6179 = vlaneseq
      %v6180 = vshrl.u32 %v6179, 7
      %v6181 = vsub.s32 %v6178, %v6180
      %v6182 = vrot.slane %v6175, %v6181
      %v6183 = vcombine.low %v6158, %v6166
      %v6184 = vcombine.high %v6158, %v6166
      %v6186 = vunpack.c.l.s4 1934713408
      %v6187 = vunpack.c.0.s8 %v6186
      %v6188 = vlaneseq
      %v6189 = vshrl.u32 %v6188, 7
      %v6190 = vsub.s32 %v6187, %v6189
      %v6191 = vrot.slane %v6183, %v6190
      %v6193 = vunpack.c.l.s4 1934713408
      %v6194 = vunpack.c.0.s8 %v6193
      %v6195 = vlaneseq
      %v6196 = vshrl.u32 %v6195, 7
      %v6197 = vsub.s32 %v6194, %v6196
      %v6198 = vrot.slane %v6184, %v6197
      %v6199 = vcombine.low %v6174, %v6182
      %v6200 = vcombine.high %v6174, %v6182
      %v6202 = vunpack.c.l.s4 1934713408
      %v6203 = vunpack.c.0.s8 %v6202
      %v6204 = vlaneseq
      %v6205 = vshrl.u32 %v6204, 7
      %v6206 = vsub.s32 %v6203, %v6205
      %v6207 = vrot.slane %v6199, %v6206
      %v6209 = vunpack.c.l.s4 1934713408
      %v6210 = vunpack.c.0.s8 %v6209
      %v6211 = vlaneseq
      %v6212 = vshrl.u32 %v6211, 7
      %v6213 = vsub.s32 %v6210, %v6212
      %v6214 = vrot.slane %v6200, %v6213
      %v6215 = vcombine.low %v6191, %v6207
      %v6216 = vcombine.high %v6191, %v6207
      %v6217 = vcombine.low %v6198, %v6214
      %v6218 = vcombine.high %v6198, %v6214
      %v6219 = vcombine.low %v4487, %v4551
      %v6221 = vunpack.c.l.s4 1983009808
      %v6222 = vunpack.c.0.s8 %v6221
      %v6223 = vlaneseq
      %v6224 = vshrl.u32 %v6223, 7
      %v6225 = vsub.s32 %v6222, %v6224
      %v6226 = vrot.slane %v6219, %v6225
      %v6227 = vcombine.low %v4519, %v4583
      %v6229 = vunpack.c.l.s4 1983009808
      %v6230 = vunpack.c.0.s8 %v6229
      %v6231 = vlaneseq
      %v6232 = vshrl.u32 %v6231, 7
      %v6233 = vsub.s32 %v6230, %v6232
      %v6234 = vrot.slane %v6227, %v6233
      %v6235 = vcombine.low %v4615, %v4679
      %v6237 = vunpack.c.l.s4 1983009808
      %v6238 = vunpack.c.0.s8 %v6237
      %v6239 = vlaneseq
      %v6240 = vshrl.u32 %v6239, 7
      %v6241 = vsub.s32 %v6238, %v6240
      %v6242 = vrot.slane %v6235, %v6241
      %v6243 = vcombine.low %v4647, %v4711
      %v6245 = vunpack.c.l.s4 1983009808
      %v6246 = vunpack.c.0.s8 %v6245
      %v6247 = vlaneseq
      %v6248 = vshrl.u32 %v6247, 7
      %v6249 = vsub.s32 %v6246, %v6248
      %v6250 = vrot.slane %v6243, %v6249
      %v6251 = vcombine.low %v6226, %v6234
      %v6252 = vcombine.high %v6226, %v6234
      %v6254 = vunpack.c.l.s4 1934713408
      %v6255 = vunpack.c.0.s8 %v6254
      %v6256 = vlaneseq
      %v6257 = vshrl.u32 %v6256, 7
      %v6258 = vsub.s32 %v6255, %v6257
      %v6259 = vrot.slane %v6251, %v6258
      %v6261 = vunpack.c.l.s4 1934713408
      %v6262 = vunpack.c.0.s8 %v6261
      %v6263 = vlaneseq
      %v6264 = vshrl.u32 %v6263, 7
      %v6265 = vsub.s32 %v6262, %v6264
      %v6266 = vrot.slane %v6252, %v6265
      %v6267 = vcombine.low %v6242, %v6250
      %v6268 = vcombine.high %v6242, %v6250
      %v6270 = vunpack.c.l.s4 1934713408
      %v6271 = vunpack.c.0.s8 %v6270
      %v6272 = vlaneseq
      %v6273 = vshrl.u32 %v6272, 7
      %v6274 = vsub.s32 %v6271, %v6273
      %v6275 = vrot.slane %v6267, %v6274
      %v6277 = vunpack.c.l.s4 1934713408
      %v6278 = vunpack.c.0.s8 %v6277
      %v6279 = vlaneseq
      %v6280 = vshrl.u32 %v6279, 7
      %v6281 = vsub.s32 %v6278, %v6280
      %v6282 = vrot.slane %v6268, %v6281
      %v6283 = vcombine.low %v6259, %v6275
      %v6284 = vcombine.high %v6259, %v6275
      %v6285 = vcombine.low %v6266, %v6282
      %v6286 = vcombine.high %v6266, %v6282
      %v6287 = vcombine.low %v4727, %v4791
      %v6289 = vunpack.c.l.s4 1983009808
      %v6290 = vunpack.c.0.s8 %v6289
      %v6291 = vlaneseq
      %v6292 = vshrl.u32 %v6291, 7
      %v6293 = vsub.s32 %v6290, %v6292
      %v6294 = vrot.slane %v6287, %v6293
      %v6295 = vcombine.low %v4759, %v4823
      %v6297 = vunpack.c.l.s4 1983009808
      %v6298 = vunpack.c.0.s8 %v6297
      %v6299 = vlaneseq
      %v6300 = vshrl.u32 %v6299, 7
      %v6301 = vsub.s32 %v6298, %v6300
      %v6302 = vrot.slane %v6295, %v6301
      %v6303 = vcombine.low %v4855, %v4919
      %v6305 = vunpack.c.l.s4 1983009808
      %v6306 = vunpack.c.0.s8 %v6305
      %v6307 = vlaneseq
      %v6308 = vshrl.u32 %v6307, 7
      %v6309 = vsub.s32 %v6306, %v6308
      %v6310 = vrot.slane %v6303, %v6309
      %v6311 = vcombine.low %v4887, %v4951
      %v6313 = vunpack.c.l.s4 1983009808
      %v6314 = vunpack.c.0.s8 %v6313
      %v6315 = vlaneseq
      %v6316 = vshrl.u32 %v6315, 7
      %v6317 = vsub.s32 %v6314, %v6316
      %v6318 = vrot.slane %v6311, %v6317
      %v6319 = vcombine.low %v6294, %v6302
      %v6320 = vcombine.high %v6294, %v6302
      %v6322 = vunpack.c.l.s4 1934713408
      %v6323 = vunpack.c.0.s8 %v6322
      %v6324 = vlaneseq
      %v6325 = vshrl.u32 %v6324, 7
      %v6326 = vsub.s32 %v6323, %v6325
      %v6327 = vrot.slane %v6319, %v6326
      %v6329 = vunpack.c.l.s4 1934713408
      %v6330 = vunpack.c.0.s8 %v6329
      %v6331 = vlaneseq
      %v6332 = vshrl.u32 %v6331, 7
      %v6333 = vsub.s32 %v6330, %v6332
      %v6334 = vrot.slane %v6320, %v6333
      %v6335 = vcombine.low %v6310, %v6318
      %v6336 = vcombine.high %v6310, %v6318
      %v6338 = vunpack.c.l.s4 1934713408
      %v6339 = vunpack.c.0.s8 %v6338
      %v6340 = vlaneseq
      %v6341 = vshrl.u32 %v6340, 7
      %v6342 = vsub.s32 %v6339, %v6341
      %v6343 = vrot.slane %v6335, %v6342
      %v6345 = vunpack.c.l.s4 1934713408
      %v6346 = vunpack.c.0.s8 %v6345
      %v6347 = vlaneseq
      %v6348 = vshrl.u32 %v6347, 7
      %v6349 = vsub.s32 %v6346, %v6348
      %v6350 = vrot.slane %v6336, %v6349
      %v6351 = vcombine.low %v6327, %v6343
      %v6352 = vcombine.high %v6327, %v6343
      %v6353 = vcombine.low %v6334, %v6350
      %v6354 = vcombine.high %v6334, %v6350
      %v6355 = vcombine.low %v4743, %v4807
      %v6357 = vunpack.c.l.s4 1983009808
      %v6358 = vunpack.c.0.s8 %v6357
      %v6359 = vlaneseq
      %v6360 = vshrl.u32 %v6359, 7
      %v6361 = vsub.s32 %v6358, %v6360
      %v6362 = vrot.slane %v6355, %v6361
      %v6363 = vcombine.low %v4775, %v4839
      %v6365 = vunpack.c.l.s4 1983009808
      %v6366 = vunpack.c.0.s8 %v6365
      %v6367 = vlaneseq
      %v6368 = vshrl.u32 %v6367, 7
      %v6369 = vsub.s32 %v6366, %v6368
      %v6370 = vrot.slane %v6363, %v6369
      %v6371 = vcombine.low %v4871, %v4935
      %v6373 = vunpack.c.l.s4 1983009808
      %v6374 = vunpack.c.0.s8 %v6373
      %v6375 = vlaneseq
      %v6376 = vshrl.u32 %v6375, 7
      %v6377 = vsub.s32 %v6374, %v6376
      %v6378 = vrot.slane %v6371, %v6377
      %v6379 = vcombine.low %v4903, %v4967
      %v6381 = vunpack.c.l.s4 1983009808
      %v6382 = vunpack.c.0.s8 %v6381
      %v6383 = vlaneseq
      %v6384 = vshrl.u32 %v6383, 7
      %v6385 = vsub.s32 %v6382, %v6384
      %v6386 = vrot.slane %v6379, %v6385
      %v6387 = vcombine.low %v6362, %v6370
      %v6388 = vcombine.high %v6362, %v6370
      %v6390 = vunpack.c.l.s4 1934713408
      %v6391 = vunpack.c.0.s8 %v6390
      %v6392 = vlaneseq
      %v6393 = vshrl.u32 %v6392, 7
      %v6394 = vsub.s32 %v6391, %v6393
      %v6395 = vrot.slane %v6387, %v6394
      %v6397 = vunpack.c.l.s4 1934713408
      %v6398 = vunpack.c.0.s8 %v6397
      %v6399 = vlaneseq
      %v6400 = vshrl.u32 %v6399, 7
      %v6401 = vsub.s32 %v6398, %v6400
      %v6402 = vrot.slane %v6388, %v6401
      %v6403 = vcombine.low %v6378, %v6386
      %v6404 = vcombine.high %v6378, %v6386
      %v6406 = vunpack.c.l.s4 1934713408
      %v6407 = vunpack.c.0.s8 %v6406
      %v6408 = vlaneseq
      %v6409 = vshrl.u32 %v6408, 7
      %v6410 = vsub.s32 %v6407, %v6409
      %v6411 = vrot.slane %v6403, %v6410
      %v6413 = vunpack.c.l.s4 1934713408
      %v6414 = vunpack.c.0.s8 %v6413
      %v6415 = vlaneseq
      %v6416 = vshrl.u32 %v6415, 7
      %v6417 = vsub.s32 %v6414, %v6416
      %v6418 = vrot.slane %v6404, %v6417
      %v6419 = vcombine.low %v6395, %v6411
      %v6420 = vcombine.high %v6395, %v6411
      %v6421 = vcombine.low %v6402, %v6418
      %v6422 = vcombine.high %v6402, %v6418
      %v6423 = vcombine.low %v4983, %v5047
      %v6425 = vunpack.c.l.s4 1983009808
      %v6426 = vunpack.c.0.s8 %v6425
      %v6427 = vlaneseq
      %v6428 = vshrl.u32 %v6427, 7
      %v6429 = vsub.s32 %v6426, %v6428
      %v6430 = vrot.slane %v6423, %v6429
      %v6431 = vcombine.low %v5015, %v5079
      %v6433 = vunpack.c.l.s4 1983009808
      %v6434 = vunpack.c.0.s8 %v6433
      %v6435 = vlaneseq
      %v6436 = vshrl.u32 %v6435, 7
      %v6437 = vsub.s32 %v6434, %v6436
      %v6438 = vrot.slane %v6431, %v6437
      %v6439 = vcombine.low %v5111, %v5175
      %v6441 = vunpack.c.l.s4 1983009808
      %v6442 = vunpack.c.0.s8 %v6441
      %v6443 = vlaneseq
      %v6444 = vshrl.u32 %v6443, 7
      %v6445 = vsub.s32 %v6442, %v6444
      %v6446 = vrot.slane %v6439, %v6445
      %v6447 = vcombine.low %v5143, %v5207
      %v6449 = vunpack.c.l.s4 1983009808
      %v6450 = vunpack.c.0.s8 %v6449
      %v6451 = vlaneseq
      %v6452 = vshrl.u32 %v6451, 7
      %v6453 = vsub.s32 %v6450, %v6452
      %v6454 = vrot.slane %v6447, %v6453
      %v6455 = vcombine.low %v6430, %v6438
      %v6456 = vcombine.high %v6430, %v6438
      %v6458 = vunpack.c.l.s4 1934713408
      %v6459 = vunpack.c.0.s8 %v6458
      %v6460 = vlaneseq
      %v6461 = vshrl.u32 %v6460, 7
      %v6462 = vsub.s32 %v6459, %v6461
      %v6463 = vrot.slane %v6455, %v6462
      %v6465 = vunpack.c.l.s4 1934713408
      %v6466 = vunpack.c.0.s8 %v6465
      %v6467 = vlaneseq
      %v6468 = vshrl.u32 %v6467, 7
      %v6469 = vsub.s32 %v6466, %v6468
      %v6470 = vrot.slane %v6456, %v6469
      %v6471 = vcombine.low %v6446, %v6454
      %v6472 = vcombine.high %v6446, %v6454
      %v6474 = vunpack.c.l.s4 1934713408
      %v6475 = vunpack.c.0.s8 %v6474
      %v6476 = vlaneseq
      %v6477 = vshrl.u32 %v6476, 7
      %v6478 = vsub.s32 %v6475, %v6477
      %v6479 = vrot.slane %v6471, %v6478
      %v6481 = vunpack.c.l.s4 1934713408
      %v6482 = vunpack.c.0.s8 %v6481
      %v6483 = vlaneseq
      %v6484 = vshrl.u32 %v6483, 7
      %v6485 = vsub.s32 %v6482, %v6484
      %v6486 = vrot.slane %v6472, %v6485
      %v6487 = vcombine.low %v6463, %v6479
      %v6488 = vcombine.high %v6463, %v6479
      %v6489 = vcombine.low %v6470, %v6486
      %v6490 = vcombine.high %v6470, %v6486
      %v6491 = vcombine.low %v4999, %v5063
      %v6493 = vunpack.c.l.s4 1983009808
      %v6494 = vunpack.c.0.s8 %v6493
      %v6495 = vlaneseq
      %v6496 = vshrl.u32 %v6495, 7
      %v6497 = vsub.s32 %v6494, %v6496
      %v6498 = vrot.slane %v6491, %v6497
      %v6499 = vcombine.low %v5031, %v5095
      %v6501 = vunpack.c.l.s4 1983009808
      %v6502 = vunpack.c.0.s8 %v6501
      %v6503 = vlaneseq
      %v6504 = vshrl.u32 %v6503, 7
      %v6505 = vsub.s32 %v6502, %v6504
      %v6506 = vrot.slane %v6499, %v6505
      %v6507 = vcombine.low %v5127, %v5191
      %v6509 = vunpack.c.l.s4 1983009808
      %v6510 = vunpack.c.0.s8 %v6509
      %v6511 = vlaneseq
      %v6512 = vshrl.u32 %v6511, 7
      %v6513 = vsub.s32 %v6510, %v6512
      %v6514 = vrot.slane %v6507, %v6513
      %v6515 = vcombine.low %v5159, %v5223
      %v6517 = vunpack.c.l.s4 1983009808
      %v6518 = vunpack.c.0.s8 %v6517
      %v6519 = vlaneseq
      %v6520 = vshrl.u32 %v6519, 7
      %v6521 = vsub.s32 %v6518, %v6520
      %v6522 = vrot.slane %v6515, %v6521
      %v6523 = vcombine.low %v6498, %v6506
      %v6524 = vcombine.high %v6498, %v6506
      %v6526 = vunpack.c.l.s4 1934713408
      %v6527 = vunpack.c.0.s8 %v6526
      %v6528 = vlaneseq
      %v6529 = vshrl.u32 %v6528, 7
      %v6530 = vsub.s32 %v6527, %v6529
      %v6531 = vrot.slane %v6523, %v6530
      %v6533 = vunpack.c.l.s4 1934713408
      %v6534 = vunpack.c.0.s8 %v6533
      %v6535 = vlaneseq
      %v6536 = vshrl.u32 %v6535, 7
      %v6537 = vsub.s32 %v6534, %v6536
      %v6538 = vrot.slane %v6524, %v6537
      %v6539 = vcombine.low %v6514, %v6522
      %v6540 = vcombine.high %v6514, %v6522
      %v6542 = vunpack.c.l.s4 1934713408
      %v6543 = vunpack.c.0.s8 %v6542
      %v6544 = vlaneseq
      %v6545 = vshrl.u32 %v6544, 7
      %v6546 = vsub.s32 %v6543, %v6545
      %v6547 = vrot.slane %v6539, %v6546
      %v6549 = vunpack.c.l.s4 1934713408
      %v6550 = vunpack.c.0.s8 %v6549
      %v6551 = vlaneseq
      %v6552 = vshrl.u32 %v6551, 7
      %v6553 = vsub.s32 %v6550, %v6552
      %v6554 = vrot.slane %v6540, %v6553
      %v6555 = vcombine.low %v6531, %v6547
      %v6556 = vcombine.high %v6531, %v6547
      %v6557 = vcombine.low %v6538, %v6554
      %v6558 = vcombine.high %v6538, %v6554
      %v6559 = vcombine.low %v5239, %v5303
      %v6561 = vunpack.c.l.s4 1983009808
      %v6562 = vunpack.c.0.s8 %v6561
      %v6563 = vlaneseq
      %v6564 = vshrl.u32 %v6563, 7
      %v6565 = vsub.s32 %v6562, %v6564
      %v6566 = vrot.slane %v6559, %v6565
      %v6567 = vcombine.low %v5271, %v5335
      %v6569 = vunpack.c.l.s4 1983009808
      %v6570 = vunpack.c.0.s8 %v6569
      %v6571 = vlaneseq
      %v6572 = vshrl.u32 %v6571, 7
      %v6573 = vsub.s32 %v6570, %v6572
      %v6574 = vrot.slane %v6567, %v6573
      %v6575 = vcombine.low %v5367, %v5431
      %v6577 = vunpack.c.l.s4 1983009808
      %v6578 = vunpack.c.0.s8 %v6577
      %v6579 = vlaneseq
      %v6580 = vshrl.u32 %v6579, 7
      %v6581 = vsub.s32 %v6578, %v6580
      %v6582 = vrot.slane %v6575, %v6581
      %v6583 = vcombine.low %v5399, %v5463
      %v6585 = vunpack.c.l.s4 1983009808
      %v6586 = vunpack.c.0.s8 %v6585
      %v6587 = vlaneseq
      %v6588 = vshrl.u32 %v6587, 7
      %v6589 = vsub.s32 %v6586, %v6588
      %v6590 = vrot.slane %v6583, %v6589
      %v6591 = vcombine.low %v6566, %v6574
      %v6592 = vcombine.high %v6566, %v6574
      %v6594 = vunpack.c.l.s4 1934713408
      %v6595 = vunpack.c.0.s8 %v6594
      %v6596 = vlaneseq
      %v6597 = vshrl.u32 %v6596, 7
      %v6598 = vsub.s32 %v6595, %v6597
      %v6599 = vrot.slane %v6591, %v6598
      %v6601 = vunpack.c.l.s4 1934713408
      %v6602 = vunpack.c.0.s8 %v6601
      %v6603 = vlaneseq
      %v6604 = vshrl.u32 %v6603, 7
      %v6605 = vsub.s32 %v6602, %v6604
      %v6606 = vrot.slane %v6592, %v6605
      %v6607 = vcombine.low %v6582, %v6590
      %v6608 = vcombine.high %v6582, %v6590
      %v6610 = vunpack.c.l.s4 1934713408
      %v6611 = vunpack.c.0.s8 %v6610
      %v6612 = vlaneseq
      %v6613 = vshrl.u32 %v6612, 7
      %v6614 = vsub.s32 %v6611, %v6613
      %v6615 = vrot.slane %v6607, %v6614
      %v6617 = vunpack.c.l.s4 1934713408
      %v6618 = vunpack.c.0.s8 %v6617
      %v6619 = vlaneseq
      %v6620 = vshrl.u32 %v6619, 7
      %v6621 = vsub.s32 %v6618, %v6620
      %v6622 = vrot.slane %v6608, %v6621
      %v6623 = vcombine.low %v6599, %v6615
      %v6624 = vcombine.high %v6599, %v6615
      %v6625 = vcombine.low %v6606, %v6622
      %v6626 = vcombine.high %v6606, %v6622
      %v6627 = vcombine.low %v5255, %v5319
      %v6629 = vunpack.c.l.s4 1983009808
      %v6630 = vunpack.c.0.s8 %v6629
      %v6631 = vlaneseq
      %v6632 = vshrl.u32 %v6631, 7
      %v6633 = vsub.s32 %v6630, %v6632
      %v6634 = vrot.slane %v6627, %v6633
      %v6635 = vcombine.low %v5287, %v5351
      %v6637 = vunpack.c.l.s4 1983009808
      %v6638 = vunpack.c.0.s8 %v6637
      %v6639 = vlaneseq
      %v6640 = vshrl.u32 %v6639, 7
      %v6641 = vsub.s32 %v6638, %v6640
      %v6642 = vrot.slane %v6635, %v6641
      %v6643 = vcombine.low %v5383, %v5447
      %v6645 = vunpack.c.l.s4 1983009808
      %v6646 = vunpack.c.0.s8 %v6645
      %v6647 = vlaneseq
      %v6648 = vshrl.u32 %v6647, 7
      %v6649 = vsub.s32 %v6646, %v6648
      %v6650 = vrot.slane %v6643, %v6649
      %v6651 = vcombine.low %v5415, %v5479
      %v6653 = vunpack.c.l.s4 1983009808
      %v6654 = vunpack.c.0.s8 %v6653
      %v6655 = vlaneseq
      %v6656 = vshrl.u32 %v6655, 7
      %v6657 = vsub.s32 %v6654, %v6656
      %v6658 = vrot.slane %v6651, %v6657
      %v6659 = vcombine.low %v6634, %v6642
      %v6660 = vcombine.high %v6634, %v6642
      %v6662 = vunpack.c.l.s4 1934713408
      %v6663 = vunpack.c.0.s8 %v6662
      %v6664 = vlaneseq
      %v6665 = vshrl.u32 %v6664, 7
      %v6666 = vsub.s32 %v6663, %v6665
      %v6667 = vrot.slane %v6659, %v6666
      %v6669 = vunpack.c.l.s4 1934713408
      %v6670 = vunpack.c.0.s8 %v6669
      %v6671 = vlaneseq
      %v6672 = vshrl.u32 %v6671, 7
      %v6673 = vsub.s32 %v6670, %v6672
      %v6674 = vrot.slane %v6660, %v6673
      %v6675 = vcombine.low %v6650, %v6658
      %v6676 = vcombine.high %v6650, %v6658
      %v6678 = vunpack.c.l.s4 1934713408
      %v6679 = vunpack.c.0.s8 %v6678
      %v6680 = vlaneseq
      %v6681 = vshrl.u32 %v6680, 7
      %v6682 = vsub.s32 %v6679, %v6681
      %v6683 = vrot.slane %v6675, %v6682
      %v6685 = vunpack.c.l.s4 1934713408
      %v6686 = vunpack.c.0.s8 %v6685
      %v6687 = vlaneseq
      %v6688 = vshrl.u32 %v6687, 7
      %v6689 = vsub.s32 %v6686, %v6688
      %v6690 = vrot.slane %v6676, %v6689
      %v6691 = vcombine.low %v6667, %v6683
      %v6692 = vcombine.high %v6667, %v6683
      %v6693 = vcombine.low %v6674, %v6690
      %v6694 = vcombine.high %v6674, %v6690
      %v6695 = vcombine.low %v5495, %v5559
      %v6697 = vunpack.c.l.s4 1983009808
      %v6698 = vunpack.c.0.s8 %v6697
      %v6699 = vlaneseq
      %v6700 = vshrl.u32 %v6699, 7
      %v6701 = vsub.s32 %v6698, %v6700
      %v6702 = vrot.slane %v6695, %v6701
      %v6703 = vcombine.low %v5527, %v5591
      %v6705 = vunpack.c.l.s4 1983009808
      %v6706 = vunpack.c.0.s8 %v6705
      %v6707 = vlaneseq
      %v6708 = vshrl.u32 %v6707, 7
      %v6709 = vsub.s32 %v6706, %v6708
      %v6710 = vrot.slane %v6703, %v6709
      %v6711 = vcombine.low %v5623, %v5687
      %v6713 = vunpack.c.l.s4 1983009808
      %v6714 = vunpack.c.0.s8 %v6713
      %v6715 = vlaneseq
      %v6716 = vshrl.u32 %v6715, 7
      %v6717 = vsub.s32 %v6714, %v6716
      %v6718 = vrot.slane %v6711, %v6717
      %v6719 = vcombine.low %v5655, %v5719
      %v6721 = vunpack.c.l.s4 1983009808
      %v6722 = vunpack.c.0.s8 %v6721
      %v6723 = vlaneseq
      %v6724 = vshrl.u32 %v6723, 7
      %v6725 = vsub.s32 %v6722, %v6724
      %v6726 = vrot.slane %v6719, %v6725
      %v6727 = vcombine.low %v6702, %v6710
      %v6728 = vcombine.high %v6702, %v6710
      %v6730 = vunpack.c.l.s4 1934713408
      %v6731 = vunpack.c.0.s8 %v6730
      %v6732 = vlaneseq
      %v6733 = vshrl.u32 %v6732, 7
      %v6734 = vsub.s32 %v6731, %v6733
      %v6735 = vrot.slane %v6727, %v6734
      %v6737 = vunpack.c.l.s4 1934713408
      %v6738 = vunpack.c.0.s8 %v6737
      %v6739 = vlaneseq
      %v6740 = vshrl.u32 %v6739, 7
      %v6741 = vsub.s32 %v6738, %v6740
      %v6742 = vrot.slane %v6728, %v6741
      %v6743 = vcombine.low %v6718, %v6726
      %v6744 = vcombine.high %v6718, %v6726
      %v6746 = vunpack.c.l.s4 1934713408
      %v6747 = vunpack.c.0.s8 %v6746
      %v6748 = vlaneseq
      %v6749 = vshrl.u32 %v6748, 7
      %v6750 = vsub.s32 %v6747, %v6749
      %v6751 = vrot.slane %v6743, %v6750
      %v6753 = vunpack.c.l.s4 1934713408
      %v6754 = vunpack.c.0.s8 %v6753
      %v6755 = vlaneseq
      %v6756 = vshrl.u32 %v6755, 7
      %v6757 = vsub.s32 %v6754, %v6756
      %v6758 = vrot.slane %v6744, %v6757
      %v6759 = vcombine.low %v6735, %v6751
      %v6760 = vcombine.high %v6735, %v6751
      %v6761 = vcombine.low %v6742, %v6758
      %v6762 = vcombine.high %v6742, %v6758
      %v6763 = vcombine.low %v5511, %v5575
      %v6765 = vunpack.c.l.s4 1983009808
      %v6766 = vunpack.c.0.s8 %v6765
      %v6767 = vlaneseq
      %v6768 = vshrl.u32 %v6767, 7
      %v6769 = vsub.s32 %v6766, %v6768
      %v6770 = vrot.slane %v6763, %v6769
      %v6771 = vcombine.low %v5543, %v5607
      %v6773 = vunpack.c.l.s4 1983009808
      %v6774 = vunpack.c.0.s8 %v6773
      %v6775 = vlaneseq
      %v6776 = vshrl.u32 %v6775, 7
      %v6777 = vsub.s32 %v6774, %v6776
      %v6778 = vrot.slane %v6771, %v6777
      %v6779 = vcombine.low %v5639, %v5703
      %v6781 = vunpack.c.l.s4 1983009808
      %v6782 = vunpack.c.0.s8 %v6781
      %v6783 = vlaneseq
      %v6784 = vshrl.u32 %v6783, 7
      %v6785 = vsub.s32 %v6782, %v6784
      %v6786 = vrot.slane %v6779, %v6785
      %v6787 = vcombine.low %v5671, %v5735
      %v6789 = vunpack.c.l.s4 1983009808
      %v6790 = vunpack.c.0.s8 %v6789
      %v6791 = vlaneseq
      %v6792 = vshrl.u32 %v6791, 7
      %v6793 = vsub.s32 %v6790, %v6792
      %v6794 = vrot.slane %v6787, %v6793
      %v6795 = vcombine.low %v6770, %v6778
      %v6796 = vcombine.high %v6770, %v6778
      %v6798 = vunpack.c.l.s4 1934713408
      %v6799 = vunpack.c.0.s8 %v6798
      %v6800 = vlaneseq
      %v6801 = vshrl.u32 %v6800, 7
      %v6802 = vsub.s32 %v6799, %v6801
      %v6803 = vrot.slane %v6795, %v6802
      %v6805 = vunpack.c.l.s4 1934713408
      %v6806 = vunpack.c.0.s8 %v6805
      %v6807 = vlaneseq
      %v6808 = vshrl.u32 %v6807, 7
      %v6809 = vsub.s32 %v6806, %v6808
      %v6810 = vrot.slane %v6796, %v6809
      %v6811 = vcombine.low %v6786, %v6794
      %v6812 = vcombine.high %v6786, %v6794
      %v6814 = vunpack.c.l.s4 1934713408
      %v6815 = vunpack.c.0.s8 %v6814
      %v6816 = vlaneseq
      %v6817 = vshrl.u32 %v6816, 7
      %v6818 = vsub.s32 %v6815, %v6817
      %v6819 = vrot.slane %v6811, %v6818
      %v6821 = vunpack.c.l.s4 1934713408
      %v6822 = vunpack.c.0.s8 %v6821
      %v6823 = vlaneseq
      %v6824 = vshrl.u32 %v6823, 7
      %v6825 = vsub.s32 %v6822, %v6824
      %v6826 = vrot.slane %v6812, %v6825
      %v6827 = vcombine.low %v6803, %v6819
      %v6828 = vcombine.high %v6803, %v6819
      %v6829 = vcombine.low %v6810, %v6826
      %v6830 = vcombine.high %v6810, %v6826
      %v6833 = vpack.i.b16 %v5875, %v5807
      %v6835 = vshrl.u32 %v5807, 16
      %v6836 = vshrl.u32 %v5875, 16
      %v6837 = vpack.i.b16 %v6836, %v6835
      %v6841 = vpack.i.b16 %v5876, %v5808
      %v6843 = vshrl.u32 %v5808, 16
      %v6844 = vshrl.u32 %v5876, 16
      %v6845 = vpack.i.b16 %v6844, %v6843
      %v6849 = vpack.i.b16 %v5877, %v5809
      %v6851 = vshrl.u32 %v5809, 16
      %v6852 = vshrl.u32 %v5877, 16
      %v6853 = vpack.i.b16 %v6852, %v6851
      %v6857 = vpack.i.b16 %v5878, %v5810
      %v6859 = vshrl.u32 %v5810, 16
      %v6860 = vshrl.u32 %v5878, 16
      %v6861 = vpack.i.b16 %v6860, %v6859
      %v6865 = vpack.i.b16 %v6011, %v5943
      %v6867 = vshrl.u32 %v5943, 16
      %v6868 = vshrl.u32 %v6011, 16
      %v6869 = vpack.i.b16 %v6868, %v6867
      %v6873 = vpack.i.b16 %v6012, %v5944
      %v6875 = vshrl.u32 %v5944, 16
      %v6876 = vshrl.u32 %v6012, 16
      %v6877 = vpack.i.b16 %v6876, %v6875
      %v6881 = vpack.i.b16 %v6013, %v5945
      %v6883 = vshrl.u32 %v5945, 16
      %v6884 = vshrl.u32 %v6013, 16
      %v6885 = vpack.i.b16 %v6884, %v6883
      %v6889 = vpack.i.b16 %v6014, %v5946
      %v6891 = vshrl.u32 %v5946, 16
      %v6892 = vshrl.u32 %v6014, 16
      %v6893 = vpack.i.b16 %v6892, %v6891
      %v6897 = vpack.i.b16 %v6147, %v6079
      %v6899 = vshrl.u32 %v6079, 16
      %v6900 = vshrl.u32 %v6147, 16
      %v6901 = vpack.i.b16 %v6900, %v6899
      %v6905 = vpack.i.b16 %v6148, %v6080
      %v6907 = vshrl.u32 %v6080, 16
      %v6908 = vshrl.u32 %v6148, 16
      %v6909 = vpack.i.b16 %v6908, %v6907
      %v6913 = vpack.i.b16 %v6149, %v6081
      %v6915 = vshrl.u32 %v6081, 16
      %v6916 = vshrl.u32 %v6149, 16
      %v6917 = vpack.i.b16 %v6916, %v6915
      %v6921 = vpack.i.b16 %v6150, %v6082
      %v6923 = vshrl.u32 %v6082, 16
      %v6924 = vshrl.u32 %v6150, 16
      %v6925 = vpack.i.b16 %v6924, %v6923
      %v6929 = vpack.i.b16 %v6283, %v6215
      %v6931 = vshrl.u32 %v6215, 16
      %v6932 = vshrl.u32 %v6283, 16
      %v6933 = vpack.i.b16 %v6932, %v6931
      %v6937 = vpack.i.b16 %v6284, %v6216
      %v6939 = vshrl.u32 %v6216, 16
      %v6940 = vshrl.u32 %v6284, 16
      %v6941 = vpack.i.b16 %v6940, %v6939
      %v6945 = vpack.i.b16 %v6285, %v6217
      %v6947 = vshrl.u32 %v6217, 16
      %v6948 = vshrl.u32 %v6285, 16
      %v6949 = vpack.i.b16 %v6948, %v6947
      %v6953 = vpack.i.b16 %v6286, %v6218
      %v6955 = vshrl.u32 %v6218, 16
      %v6956 = vshrl.u32 %v6286, 16
      %v6957 = vpack.i.b16 %v6956, %v6955
      %v6961 = vpack.i.b16 %v6419, %v6351
      %v6963 = vshrl.u32 %v6351, 16
      %v6964 = vshrl.u32 %v6419, 16
      %v6965 = vpack.i.b16 %v6964, %v6963
      %v6969 = vpack.i.b16 %v6420, %v6352
      %v6971 = vshrl.u32 %v6352, 16
      %v6972 = vshrl.u32 %v6420, 16
      %v6973 = vpack.i.b16 %v6972, %v6971
      %v6977 = vpack.i.b16 %v6421, %v6353
      %v6979 = vshrl.u32 %v6353, 16
      %v6980 = vshrl.u32 %v6421, 16
      %v6981 = vpack.i.b16 %v6980, %v6979
      %v6985 = vpack.i.b16 %v6422, %v6354
      %v6987 = vshrl.u32 %v6354, 16
      %v6988 = vshrl.u32 %v6422, 16
      %v6989 = vpack.i.b16 %v6988, %v6987
      %v6993 = vpack.i.b16 %v6555, %v6487
      %v6995 = vshrl.u32 %v6487, 16
      %v6996 = vshrl.u32 %v6555, 16
      %v6997 = vpack.i.b16 %v6996, %v6995
      %v7001 = vpack.i.b16 %v6556, %v6488
      %v7003 = vshrl.u32 %v6488, 16
      %v7004 = vshrl.u32 %v6556, 16
      %v7005 = vpack.i.b16 %v7004, %v7003
      %v7009 = vpack.i.b16 %v6557, %v6489
      %v7011 = vshrl.u32 %v6489, 16
      %v7012 = vshrl.u32 %v6557, 16
      %v7013 = vpack.i.b16 %v7012, %v7011
      %v7017 = vpack.i.b16 %v6558, %v6490
      %v7019 = vshrl.u32 %v6490, 16
      %v7020 = vshrl.u32 %v6558, 16
      %v7021 = vpack.i.b16 %v7020, %v7019
      %v7025 = vpack.i.b16 %v6691, %v6623
      %v7027 = vshrl.u32 %v6623, 16
      %v7028 = vshrl.u32 %v6691, 16
      %v7029 = vpack.i.b16 %v7028, %v7027
      %v7033 = vpack.i.b16 %v6692, %v6624
      %v7035 = vshrl.u32 %v6624, 16
      %v7036 = vshrl.u32 %v6692, 16
      %v7037 = vpack.i.b16 %v7036, %v7035
      %v7041 = vpack.i.b16 %v6693, %v6625
      %v7043 = vshrl.u32 %v6625, 16
      %v7044 = vshrl.u32 %v6693, 16
      %v7045 = vpack.i.b16 %v7044, %v7043
      %v7049 = vpack.i.b16 %v6694, %v6626
      %v7051 = vshrl.u32 %v6626, 16
      %v7052 = vshrl.u32 %v6694, 16
      %v7053 = vpack.i.b16 %v7052, %v7051
      %v7057 = vpack.i.b16 %v6827, %v6759
      %v7059 = vshrl.u32 %v6759, 16
      %v7060 = vshrl.u32 %v6827, 16
      %v7061 = vpack.i.b16 %v7060, %v7059
      %v7065 = vpack.i.b16 %v6828, %v6760
      %v7067 = vshrl.u32 %v6760, 16
      %v7068 = vshrl.u32 %v6828, 16
      %v7069 = vpack.i.b16 %v7068, %v7067
      %v7073 = vpack.i.b16 %v6829, %v6761
      %v7075 = vshrl.u32 %v6761, 16
      %v7076 = vshrl.u32 %v6829, 16
      %v7077 = vpack.i.b16 %v7076, %v7075
      %v7081 = vpack.i.b16 %v6830, %v6762
      %v7083 = vshrl.u32 %v6762, 16
      %v7084 = vshrl.u32 %v6830, 16
      %v7085 = vpack.i.b16 %v7084, %v7083
      %7087 = vxpose.xlu0.c.b16.start [1/8] %v6833, 128
      %7088 = vxpose.xlu0.c.b16.cont [2/8] %v6865, 128
      %7089 = vxpose.xlu0.c.b16.cont [3/8] %v6897, 128
      %7090 = vxpose.xlu0.c.b16.cont [4/8] %v6929, 128
      %7091 = vxpose.xlu0.c.b16.cont [5/8] %v6961, 128
      %7092 = vxpose.xlu0.c.b16.cont [6/8] %v6993, 128
      %7093 = vxpose.xlu0.c.b16.cont [7/8] %v7025, 128
      %7094 = vxpose.xlu0.c.b16.end [8/8] %v7057, 128
      %v7095 = vpop.trf.xlu0
      %v7096 = vpop.trf.xlu0
      %v7097 = vpop.trf.xlu0
      %v7098 = vpop.trf.xlu0
      %v7099 = vpop.trf.xlu0
      %v7100 = vpop.trf.xlu0
      %v7101 = vpop.trf.xlu0
      %v7102 = vpop.trf.xlu0
      %7103 = vxpose.xlu0.c.b16.start [1/8] %v6837, 128
      %7104 = vxpose.xlu0.c.b16.cont [2/8] %v6869, 128
      %7105 = vxpose.xlu0.c.b16.cont [3/8] %v6901, 128
      %7106 = vxpose.xlu0.c.b16.cont [4/8] %v6933, 128
      %7107 = vxpose.xlu0.c.b16.cont [5/8] %v6965, 128
      %7108 = vxpose.xlu0.c.b16.cont [6/8] %v6997, 128
      %7109 = vxpose.xlu0.c.b16.cont [7/8] %v7029, 128
      %7110 = vxpose.xlu0.c.b16.end [8/8] %v7061, 128
      %v7111 = vpop.trf.xlu0
      %v7112 = vpop.trf.xlu0
      %v7113 = vpop.trf.xlu0
      %v7114 = vpop.trf.xlu0
      %v7115 = vpop.trf.xlu0
      %v7116 = vpop.trf.xlu0
      %v7117 = vpop.trf.xlu0
      %v7118 = vpop.trf.xlu0
      %7119 = vxpose.xlu0.c.b16.start [1/8] %v6841, 128
      %7120 = vxpose.xlu0.c.b16.cont [2/8] %v6873, 128
      %7121 = vxpose.xlu0.c.b16.cont [3/8] %v6905, 128
      %7122 = vxpose.xlu0.c.b16.cont [4/8] %v6937, 128
      %7123 = vxpose.xlu0.c.b16.cont [5/8] %v6969, 128
      %7124 = vxpose.xlu0.c.b16.cont [6/8] %v7001, 128
      %7125 = vxpose.xlu0.c.b16.cont [7/8] %v7033, 128
      %7126 = vxpose.xlu0.c.b16.end [8/8] %v7065, 128
      %v7127 = vpop.trf.xlu0
      %v7128 = vpop.trf.xlu0
      %v7129 = vpop.trf.xlu0
      %v7130 = vpop.trf.xlu0
      %v7131 = vpop.trf.xlu0
      %v7132 = vpop.trf.xlu0
      %v7133 = vpop.trf.xlu0
      %v7134 = vpop.trf.xlu0
      %7135 = vxpose.xlu0.c.b16.start [1/8] %v6845, 128
      %7136 = vxpose.xlu0.c.b16.cont [2/8] %v6877, 128
      %7137 = vxpose.xlu0.c.b16.cont [3/8] %v6909, 128
      %7138 = vxpose.xlu0.c.b16.cont [4/8] %v6941, 128
      %7139 = vxpose.xlu0.c.b16.cont [5/8] %v6973, 128
      %7140 = vxpose.xlu0.c.b16.cont [6/8] %v7005, 128
      %7141 = vxpose.xlu0.c.b16.cont [7/8] %v7037, 128
      %7142 = vxpose.xlu0.c.b16.end [8/8] %v7069, 128
      %v7143 = vpop.trf.xlu0
      %v7144 = vpop.trf.xlu0
      %v7145 = vpop.trf.xlu0
      %v7146 = vpop.trf.xlu0
      %v7147 = vpop.trf.xlu0
      %v7148 = vpop.trf.xlu0
      %v7149 = vpop.trf.xlu0
      %v7150 = vpop.trf.xlu0
      %7151 = vxpose.xlu0.c.b16.start [1/8] %v6849, 128
      %7152 = vxpose.xlu0.c.b16.cont [2/8] %v6881, 128
      %7153 = vxpose.xlu0.c.b16.cont [3/8] %v6913, 128
      %7154 = vxpose.xlu0.c.b16.cont [4/8] %v6945, 128
      %7155 = vxpose.xlu0.c.b16.cont [5/8] %v6977, 128
      %7156 = vxpose.xlu0.c.b16.cont [6/8] %v7009, 128
      %7157 = vxpose.xlu0.c.b16.cont [7/8] %v7041, 128
      %7158 = vxpose.xlu0.c.b16.end [8/8] %v7073, 128
      %v7159 = vpop.trf.xlu0
      %v7160 = vpop.trf.xlu0
      %v7161 = vpop.trf.xlu0
      %v7162 = vpop.trf.xlu0
      %v7163 = vpop.trf.xlu0
      %v7164 = vpop.trf.xlu0
      %v7165 = vpop.trf.xlu0
      %v7166 = vpop.trf.xlu0
      %7167 = vxpose.xlu0.c.b16.start [1/8] %v6853, 128
      %7168 = vxpose.xlu0.c.b16.cont [2/8] %v6885, 128
      %7169 = vxpose.xlu0.c.b16.cont [3/8] %v6917, 128
      %7170 = vxpose.xlu0.c.b16.cont [4/8] %v6949, 128
      %7171 = vxpose.xlu0.c.b16.cont [5/8] %v6981, 128
      %7172 = vxpose.xlu0.c.b16.cont [6/8] %v7013, 128
      %7173 = vxpose.xlu0.c.b16.cont [7/8] %v7045, 128
      %7174 = vxpose.xlu0.c.b16.end [8/8] %v7077, 128
      %v7175 = vpop.trf.xlu0
      %v7176 = vpop.trf.xlu0
      %v7177 = vpop.trf.xlu0
      %v7178 = vpop.trf.xlu0
      %v7179 = vpop.trf.xlu0
      %v7180 = vpop.trf.xlu0
      %v7181 = vpop.trf.xlu0
      %v7182 = vpop.trf.xlu0
      %7183 = vxpose.xlu0.c.b16.start [1/8] %v6857, 128
      %7184 = vxpose.xlu0.c.b16.cont [2/8] %v6889, 128
      %7185 = vxpose.xlu0.c.b16.cont [3/8] %v6921, 128
      %7186 = vxpose.xlu0.c.b16.cont [4/8] %v6953, 128
      %7187 = vxpose.xlu0.c.b16.cont [5/8] %v6985, 128
      %7188 = vxpose.xlu0.c.b16.cont [6/8] %v7017, 128
      %7189 = vxpose.xlu0.c.b16.cont [7/8] %v7049, 128
      %7190 = vxpose.xlu0.c.b16.end [8/8] %v7081, 128
      %v7191 = vpop.trf.xlu0
      %v7192 = vpop.trf.xlu0
      %v7193 = vpop.trf.xlu0
      %v7194 = vpop.trf.xlu0
      %v7195 = vpop.trf.xlu0
      %v7196 = vpop.trf.xlu0
      %v7197 = vpop.trf.xlu0
      %v7198 = vpop.trf.xlu0
      %7199 = vxpose.xlu0.c.b16.start [1/8] %v6861, 128
      %7200 = vxpose.xlu0.c.b16.cont [2/8] %v6893, 128
      %7201 = vxpose.xlu0.c.b16.cont [3/8] %v6925, 128
      %7202 = vxpose.xlu0.c.b16.cont [4/8] %v6957, 128
      %7203 = vxpose.xlu0.c.b16.cont [5/8] %v6989, 128
      %7204 = vxpose.xlu0.c.b16.cont [6/8] %v7021, 128
      %7205 = vxpose.xlu0.c.b16.cont [7/8] %v7053, 128
      %7206 = vxpose.xlu0.c.b16.end [8/8] %v7085, 128
      %v7207 = vpop.trf.xlu0
      %v7208 = vpop.trf.xlu0
      %v7209 = vpop.trf.xlu0
      %v7210 = vpop.trf.xlu0
      %v7211 = vpop.trf.xlu0
      %v7212 = vpop.trf.xlu0
      %v7213 = vpop.trf.xlu0
      %v7214 = vpop.trf.xlu0
      %v7215 = vcombine.low %v7095, %v7159
      %v7217 = vunpack.c.l.s4 1983009808
      %v7218 = vunpack.c.0.s8 %v7217
      %v7219 = vlaneseq
      %v7220 = vshrl.u32 %v7219, 7
      %v7221 = vsub.s32 %v7218, %v7220
      %v7222 = vrot.slane %v7215, %v7221
      %v7223 = vcombine.low %v7127, %v7191
      %v7225 = vunpack.c.l.s4 1983009808
      %v7226 = vunpack.c.0.s8 %v7225
      %v7227 = vlaneseq
      %v7228 = vshrl.u32 %v7227, 7
      %v7229 = vsub.s32 %v7226, %v7228
      %v7230 = vrot.slane %v7223, %v7229
      %v7231 = vcombine.low %v7222, %v7230
      %v7233 = vunpack.c.l.s4 1934713408
      %v7234 = vunpack.c.0.s8 %v7233
      %v7235 = vlaneseq
      %v7236 = vshrl.u32 %v7235, 7
      %v7237 = vsub.s32 %v7234, %v7236
      %v7238 = vrot.slane %v7231, %v7237
      %v7239 = vcombine.high %v7238, 0
      %v7240 = vcombine.low %v7111, %v7175
      %v7242 = vunpack.c.l.s4 1983009808
      %v7243 = vunpack.c.0.s8 %v7242
      %v7244 = vlaneseq
      %v7245 = vshrl.u32 %v7244, 7
      %v7246 = vsub.s32 %v7243, %v7245
      %v7247 = vrot.slane %v7240, %v7246
      %v7248 = vcombine.low %v7143, %v7207
      %v7250 = vunpack.c.l.s4 1983009808
      %v7251 = vunpack.c.0.s8 %v7250
      %v7252 = vlaneseq
      %v7253 = vshrl.u32 %v7252, 7
      %v7254 = vsub.s32 %v7251, %v7253
      %v7255 = vrot.slane %v7248, %v7254
      %v7256 = vcombine.low %v7247, %v7255
      %v7258 = vunpack.c.l.s4 1934713408
      %v7259 = vunpack.c.0.s8 %v7258
      %v7260 = vlaneseq
      %v7261 = vshrl.u32 %v7260, 7
      %v7262 = vsub.s32 %v7259, %v7261
      %v7263 = vrot.slane %v7256, %v7262
      %v7264 = vcombine.high %v7263, 0
      %v7267 = vpack.i.b16 %v7263, %v7238
      %v7268 = vshrl.u32 %v7238, 16
      %v7269 = vshrl.u32 %v7263, 16
      %v7270 = vpack.i.b16 %v7269, %v7268
      %v7273 = vpack.i.b16 %v7264, %v7239
      %v7274 = vshrl.u32 %v7239, 16
      %v7275 = vshrl.u32 %v7264, 16
      %v7276 = vpack.i.b16 %v7275, %v7274
      %vm7277 = vcmask 64512
      %v7279 = vsel %vm7277, %v3685, 0
      %vm7281 = vcmask 1043456
      %v7283 = vsel %vm7281, %v7267, 0
      %7285 = vmatprep.subr.bf16.mxu0 0
      %7286 = vmatpush1.bf16.msra.mxu0 %v7283
      %7287 = vmatprep.subr.bf16.mxu0 0
      %7288 = vmatpush1.bf16.msra.mxu0 0
      %7289 = vmatprep.subr.bf16.mxu0 0
      %7290 = vmatpush1.bf16.msra.mxu0 0
      %7291 = vmatprep.subr.bf16.mxu0 0
      %7292 = vmatpush1.bf16.msra.mxu0 0
      %7293 = vmatprep.subr.bf16.mxu0 0
      %7294 = vmatpush1.bf16.msra.mxu0 0
      %7295 = vmatprep.subr.bf16.mxu0 0
      %7296 = vmatpush1.bf16.msra.mxu0 0
      %7297 = vmatprep.subr.bf16.mxu0 0
      %7298 = vmatpush1.bf16.msra.mxu0 0
      %7299 = vmatprep.subr.bf16.mxu0 0
      %7300 = vmatpush1.bf16.msra.mxu0 0
      %7301 = vmatprep.subr.bf16.mxu0 0
      %7302 = vmatpush1.bf16.msra.mxu0 0
      %7303 = vmatprep.subr.bf16.mxu0 0
      %7304 = vmatpush1.bf16.msra.mxu0 0
      %7305 = vmatprep.subr.bf16.mxu0 0
      %7306 = vmatpush1.bf16.msra.mxu0 0
      %7307 = vmatprep.subr.bf16.mxu0 0
      %7308 = vmatpush1.bf16.msra.mxu0 0
      %7309 = vmatprep.subr.bf16.mxu0 0
      %7310 = vmatpush1.bf16.msra.mxu0 0
      %7311 = vmatprep.subr.bf16.mxu0 0
      %7312 = vmatpush1.bf16.msra.mxu0 0
      %7313 = vmatprep.subr.bf16.mxu0 0
      %7314 = vmatpush1.bf16.msra.mxu0 0
      %7315 = vmatprep.subr.bf16.mxu0 0
      %7316 = vmatpush1.bf16.msra.mxu0 0
      %7317 = vmatprep.mubr.bf16.mxu0 0
      %7318 = vmatmul.mubr.bf16.gmra.mrb[0].mxu0 %v7279
      %v7319 = vpop.f32.mrb[0].mxu0
      %v7320 = vadd.f32 %v3632, %v7319
      %v7321 = vpop.f32.mrb[0].mxu0
      %v7322 = vpop.f32.mrb[0].mxu0
      %v7323 = vpop.f32.mrb[0].mxu0
      %7324 = vdwg.mxu0
      %v7326 = vsel %vm7277, %v3688, 0
      %v7329 = vsel %vm7281, %v7270, 0
      %7331 = vmatprep.subr.bf16.mxu0 0
      %7332 = vmatpush1.bf16.msra.mxu0 %v7329
      %7333 = vmatprep.subr.bf16.mxu0 0
      %7334 = vmatpush1.bf16.msra.mxu0 0
      %7335 = vmatprep.subr.bf16.mxu0 0
      %7336 = vmatpush1.bf16.msra.mxu0 0
      %7337 = vmatprep.subr.bf16.mxu0 0
      %7338 = vmatpush1.bf16.msra.mxu0 0
      %7339 = vmatprep.subr.bf16.mxu0 0
      %7340 = vmatpush1.bf16.msra.mxu0 0
      %7341 = vmatprep.subr.bf16.mxu0 0
      %7342 = vmatpush1.bf16.msra.mxu0 0
      %7343 = vmatprep.subr.bf16.mxu0 0
      %7344 = vmatpush1.bf16.msra.mxu0 0
      %7345 = vmatprep.subr.bf16.mxu0 0
      %7346 = vmatpush1.bf16.msra.mxu0 0
      %7347 = vmatprep.subr.bf16.mxu0 0
      %7348 = vmatpush1.bf16.msra.mxu0 0
      %7349 = vmatprep.subr.bf16.mxu0 0
      %7350 = vmatpush1.bf16.msra.mxu0 0
      %7351 = vmatprep.subr.bf16.mxu0 0
      %7352 = vmatpush1.bf16.msra.mxu0 0
      %7353 = vmatprep.subr.bf16.mxu0 0
      %7354 = vmatpush1.bf16.msra.mxu0 0
      %7355 = vmatprep.subr.bf16.mxu0 0
      %7356 = vmatpush1.bf16.msra.mxu0 0
      %7357 = vmatprep.subr.bf16.mxu0 0
      %7358 = vmatpush1.bf16.msra.mxu0 0
      %7359 = vmatprep.subr.bf16.mxu0 0
      %7360 = vmatpush1.bf16.msra.mxu0 0
      %7361 = vmatprep.subr.bf16.mxu0 0
      %7362 = vmatpush1.bf16.msra.mxu0 0
      %7363 = vmatprep.mubr.bf16.mxu0 0
      %7364 = vmatmul.mubr.bf16.gmra.mrb[0].mxu0 %v7326
      %v7365 = vpop.f32.mrb[0].mxu0
      %v7366 = vadd.f32 %v3632, %v7365
      %v7367 = vpop.f32.mrb[0].mxu0
      %v7368 = vpop.f32.mrb[0].mxu0
      %v7369 = vpop.f32.mrb[0].mxu0
      %7370 = vdwg.mxu0
      %v7372 = vsel %vm7277, %v3691, 0
      %v7375 = vsel %vm7281, %v7273, 0
      %7377 = vmatprep.subr.bf16.mxu0 0
      %7378 = vmatpush1.bf16.msra.mxu0 %v7375
      %7379 = vmatprep.subr.bf16.mxu0 0
      %7380 = vmatpush1.bf16.msra.mxu0 0
      %7381 = vmatprep.subr.bf16.mxu0 0
      %7382 = vmatpush1.bf16.msra.mxu0 0
      %7383 = vmatprep.subr.bf16.mxu0 0
      %7384 = vmatpush1.bf16.msra.mxu0 0
      %7385 = vmatprep.subr.bf16.mxu0 0
      %7386 = vmatpush1.bf16.msra.mxu0 0
      %7387 = vmatprep.subr.bf16.mxu0 0
      %7388 = vmatpush1.bf16.msra.mxu0 0
      %7389 = vmatprep.subr.bf16.mxu0 0
      %7390 = vmatpush1.bf16.msra.mxu0 0
      %7391 = vmatprep.subr.bf16.mxu0 0
      %7392 = vmatpush1.bf16.msra.mxu0 0
      %7393 = vmatprep.subr.bf16.mxu0 0
      %7394 = vmatpush1.bf16.msra.mxu0 0
      %7395 = vmatprep.subr.bf16.mxu0 0
      %7396 = vmatpush1.bf16.msra.mxu0 0
      %7397 = vmatprep.subr.bf16.mxu0 0
      %7398 = vmatpush1.bf16.msra.mxu0 0
      %7399 = vmatprep.subr.bf16.mxu0 0
      %7400 = vmatpush1.bf16.msra.mxu0 0
      %7401 = vmatprep.subr.bf16.mxu0 0
      %7402 = vmatpush1.bf16.msra.mxu0 0
      %7403 = vmatprep.subr.bf16.mxu0 0
      %7404 = vmatpush1.bf16.msra.mxu0 0
      %7405 = vmatprep.subr.bf16.mxu0 0
      %7406 = vmatpush1.bf16.msra.mxu0 0
      %7407 = vmatprep.subr.bf16.mxu0 0
      %7408 = vmatpush1.bf16.msra.mxu0 0
      %7409 = vmatprep.mubr.bf16.mxu0 0
      %7410 = vmatmul.mubr.bf16.gmra.mrb[0].mxu0 %v7372
      %v7411 = vpop.f32.mrb[0].mxu0
      %v7412 = vadd.f32 %v3632, %v7411
      %v7413 = vpop.f32.mrb[0].mxu0
      %v7414 = vpop.f32.mrb[0].mxu0
      %v7415 = vpop.f32.mrb[0].mxu0
      %7416 = vdwg.mxu0
      %v7418 = vsel %vm7277, %v3694, 0
      %v7421 = vsel %vm7281, %v7276, 0
      %7423 = vmatprep.subr.bf16.mxu0 0
      %7424 = vmatpush1.bf16.msra.mxu0 %v7421
      %7425 = vmatprep.subr.bf16.mxu0 0
      %7426 = vmatpush1.bf16.msra.mxu0 0
      %7427 = vmatprep.subr.bf16.mxu0 0
      %7428 = vmatpush1.bf16.msra.mxu0 0
      %7429 = vmatprep.subr.bf16.mxu0 0
      %7430 = vmatpush1.bf16.msra.mxu0 0
      %7431 = vmatprep.subr.bf16.mxu0 0
      %7432 = vmatpush1.bf16.msra.mxu0 0
      %7433 = vmatprep.subr.bf16.mxu0 0
      %7434 = vmatpush1.bf16.msra.mxu0 0
      %7435 = vmatprep.subr.bf16.mxu0 0
      %7436 = vmatpush1.bf16.msra.mxu0 0
      %7437 = vmatprep.subr.bf16.mxu0 0
      %7438 = vmatpush1.bf16.msra.mxu0 0
      %7439 = vmatprep.subr.bf16.mxu0 0
      %7440 = vmatpush1.bf16.msra.mxu0 0
      %7441 = vmatprep.subr.bf16.mxu0 0
      %7442 = vmatpush1.bf16.msra.mxu0 0
      %7443 = vmatprep.subr.bf16.mxu0 0
      %7444 = vmatpush1.bf16.msra.mxu0 0
      %7445 = vmatprep.subr.bf16.mxu0 0
      %7446 = vmatpush1.bf16.msra.mxu0 0
      %7447 = vmatprep.subr.bf16.mxu0 0
      %7448 = vmatpush1.bf16.msra.mxu0 0
      %7449 = vmatprep.subr.bf16.mxu0 0
      %7450 = vmatpush1.bf16.msra.mxu0 0
      %7451 = vmatprep.subr.bf16.mxu0 0
      %7452 = vmatpush1.bf16.msra.mxu0 0
      %7453 = vmatprep.subr.bf16.mxu0 0
      %7454 = vmatpush1.bf16.msra.mxu0 0
      %7455 = vmatprep.mubr.bf16.mxu0 0
      %7456 = vmatmul.mubr.bf16.gmra.mrb[0].mxu0 %v7418
      %v7457 = vpop.f32.mrb[0].mxu0
      %v7458 = vadd.f32 %v3632, %v7457
      %v7459 = vpop.f32.mrb[0].mxu0
      %v7460 = vpop.f32.mrb[0].mxu0
      %v7461 = vpop.f32.mrb[0].mxu0
      %7462 = vdwg.mxu0
      %v7463 = vld [vmem:[%s497] sm:$0x1]
      %v7465 = vlaneseq
      %v7466 = vshrl.u32 %v7465, 7
      %v7467 = vsub.s32 0, %v7466
      %v7468 = vrot.slane %v7463, %v7467
      %v7470 = vadd.f32 %v7320, %v7468
      %v7471 = vadd.f32 %v7366, %v7468
      %v7472 = vadd.f32 %v7412, %v7468
      %v7473 = vadd.f32 %v7458, %v7468
      %v7474 = vld [vmem:[#allocation3] sm:$0xff]
      %v7475 = vld [vmem:[#allocation3 + $0x8] sm:$0xff]
      %v7476 = vld [vmem:[#allocation3 + $0x10] sm:$0xff]
      %v7477 = vld [vmem:[#allocation3 + $0x18] sm:$0xff]
      %7478 = vmax.xlane.f32.xlu0 %v7470
      %v7479 = vpop.xlane.xlu0 %7478
      %7480 = vmax.xlane.f32.xlu0 %v7471
      %v7481 = vpop.xlane.xlu0 %7480
      %7482 = vmax.xlane.f32.xlu0 %v7472
      %v7483 = vpop.xlane.xlu0 %7482
      %7484 = vmax.xlane.f32.xlu0 %v7473
      %v7485 = vpop.xlane.xlu0 %7484
      %v7486 = vmax.f32 %v7474, %v7479
      %v7487 = vmax.f32 %v7475, %v7481
      %v7488 = vmax.f32 %v7476, %v7483
      %v7489 = vmax.f32 %v7477, %v7485
      %v7490 = vsub.f32 %v7474, %v7486
      %v7491 = vsub.f32 %v7475, %v7487
      %v7492 = vsub.f32 %v7476, %v7488
      %v7493 = vsub.f32 %v7477, %v7489
      %v7494 = vmul.f32 %v7490, 1.442695
      %v7495 = vpow.pop %v7494
      %v7496 = vmul.f32 %v7491, 1.442695
      %v7497 = vpow.pop %v7496
      %v7498 = vmul.f32 %v7492, 1.442695
      %v7499 = vpow.pop %v7498
      %v7500 = vmul.f32 %v7493, 1.442695
      %v7501 = vpow.pop %v7500
      %7503 = vset.pattern.permute.xlu0 0
      %7504 = vperm.xlu0 %7503, %v7486
      %v7505 = vpop.permute.xlu0 %7504
      %7508 = vset.pattern.permute.xlu0 0
      %7509 = vperm.xlu0 %7508, %v7487
      %v7510 = vpop.permute.xlu0 %7509
      %7513 = vset.pattern.permute.xlu0 0
      %7514 = vperm.xlu0 %7513, %v7488
      %v7515 = vpop.permute.xlu0 %7514
      %7518 = vset.pattern.permute.xlu0 0
      %7519 = vperm.xlu0 %7518, %v7489
      %v7520 = vpop.permute.xlu0 %7519
      %v7522 = vsub.f32 %v7470, %v7505
      %v7523 = vsub.f32 %v7471, %v7510
      %v7524 = vsub.f32 %v7472, %v7515
      %v7525 = vsub.f32 %v7473, %v7520
      %v7526 = vmul.f32 %v7522, 1.442695
      %v7527 = vpow.pop %v7526
      %v7528 = vmul.f32 %v7523, 1.442695
      %v7529 = vpow.pop %v7528
      %v7530 = vmul.f32 %v7524, 1.442695
      %v7531 = vpow.pop %v7530
      %v7532 = vmul.f32 %v7525, 1.442695
      %v7533 = vpow.pop %v7532
      %v7534 = vld [vmem:[#allocation4] sm:$0xff]
      %v7535 = vld [vmem:[#allocation4 + $0x8] sm:$0xff]
      %v7536 = vld [vmem:[#allocation4 + $0x10] sm:$0xff]
      %v7537 = vld [vmem:[#allocation4 + $0x18] sm:$0xff]
      %v7538 = vmul.f32 %v7495, %v7534
      %v7539 = vmul.f32 %v7497, %v7535
      %v7540 = vmul.f32 %v7499, %v7536
      %v7541 = vmul.f32 %v7501, %v7537
      %7542 = vadd.xlane.f32.xlu0 %v7527
      %v7543 = vpop.xlane.xlu0 %7542
      %7544 = vadd.xlane.f32.xlu0 %v7529
      %v7545 = vpop.xlane.xlu0 %7544
      %7546 = vadd.xlane.f32.xlu0 %v7531
      %v7547 = vpop.xlane.xlu0 %7546
      %7548 = vadd.xlane.f32.xlu0 %v7533
      %v7549 = vpop.xlane.xlu0 %7548
      %v7550 = vadd.f32 %v7538, %v7543
      %v7551 = vadd.f32 %v7539, %v7545
      %v7552 = vadd.f32 %v7540, %v7547
      %v7553 = vadd.f32 %v7541, %v7549
      %vm7554 = vcmask 7168
      %7555 = vst.msk [vmem:[#allocation4] sm:$0xff] %vm7554, %v7550
      %7556 = vst.msk [vmem:[#allocation4 + $0x8] sm:$0xff] %vm7554, %v7551
      %7557 = vst.msk [vmem:[#allocation4 + $0x10] sm:$0xff] %vm7554, %v7552
      %7558 = vst.msk [vmem:[#allocation4 + $0x18] sm:$0xff] %vm7554, %v7553
      %v7559 = vld [vmem:[#allocation5] sm:$0xff]
      %v7560 = vld [vmem:[#allocation5 + $0x8] sm:$0xff]
      %v7561 = vld [vmem:[#allocation5 + $0x10] sm:$0xff]
      %v7562 = vld [vmem:[#allocation5 + $0x18] sm:$0xff]
      %7564 = vset.pattern.permute.xlu0 0
      %7565 = vperm.xlu0 %7564, %v7495
      %v7566 = vpop.permute.xlu0 %7565
      %7569 = vset.pattern.permute.xlu0 0
      %7570 = vperm.xlu0 %7569, %v7497
      %v7571 = vpop.permute.xlu0 %7570
      %7574 = vset.pattern.permute.xlu0 0
      %7575 = vperm.xlu0 %7574, %v7499
      %v7576 = vpop.permute.xlu0 %7575
      %7579 = vset.pattern.permute.xlu0 0
      %7580 = vperm.xlu0 %7579, %v7501
      %v7581 = vpop.permute.xlu0 %7580
      %v7583 = vmul.f32 %v7566, %v7559
      %v7584 = vmul.f32 %v7571, %v7560
      %v7585 = vmul.f32 %v7576, %v7561
      %v7586 = vmul.f32 %v7581, %v7562
      %v7587 = vpack.c.bf16 %v7527, %v7527
      %v7588 = vpack.c.bf16 %v7529, %v7529
      %v7589 = vpack.c.bf16 %v7531, %v7531
      %v7590 = vpack.c.bf16 %v7533, %v7533
      %v7591 = vcombine.low %v3504, %v3508
      %v7593 = vunpack.c.l.s4 1983009808
      %v7594 = vunpack.c.0.s8 %v7593
      %v7595 = vlaneseq
      %v7596 = vshrl.u32 %v7595, 7
      %v7597 = vsub.s32 %v7594, %v7596
      %v7598 = vrot.slane %v7591, %v7597
      %v7599 = vcombine.low %v3506, %v3510
      %v7601 = vunpack.c.l.s4 1983009808
      %v7602 = vunpack.c.0.s8 %v7601
      %v7603 = vlaneseq
      %v7604 = vshrl.u32 %v7603, 7
      %v7605 = vsub.s32 %v7602, %v7604
      %v7606 = vrot.slane %v7599, %v7605
      %v7607 = vcombine.low %v3512, %v3516
      %v7609 = vunpack.c.l.s4 1983009808
      %v7610 = vunpack.c.0.s8 %v7609
      %v7611 = vlaneseq
      %v7612 = vshrl.u32 %v7611, 7
      %v7613 = vsub.s32 %v7610, %v7612
      %v7614 = vrot.slane %v7607, %v7613
      %v7615 = vcombine.low %v3514, %v3518
      %v7617 = vunpack.c.l.s4 1983009808
      %v7618 = vunpack.c.0.s8 %v7617
      %v7619 = vlaneseq
      %v7620 = vshrl.u32 %v7619, 7
      %v7621 = vsub.s32 %v7618, %v7620
      %v7622 = vrot.slane %v7615, %v7621
      %v7623 = vcombine.low %v7598, %v7606
      %v7625 = vunpack.c.l.s4 1934713408
      %v7626 = vunpack.c.0.s8 %v7625
      %v7627 = vlaneseq
      %v7628 = vshrl.u32 %v7627, 7
      %v7629 = vsub.s32 %v7626, %v7628
      %v7630 = vrot.slane %v7623, %v7629
      %v7631 = vcombine.low %v7614, %v7622
      %v7633 = vunpack.c.l.s4 1934713408
      %v7634 = vunpack.c.0.s8 %v7633
      %v7635 = vlaneseq
      %v7636 = vshrl.u32 %v7635, 7
      %v7637 = vsub.s32 %v7634, %v7636
      %v7638 = vrot.slane %v7631, %v7637
      %v7639 = vcombine.low %v7630, %v7638
      %v7640 = vcombine.high %v7630, %v7638
      %v7641 = vcombine.low %v3505, %v3509
      %v7643 = vunpack.c.l.s4 1983009808
      %v7644 = vunpack.c.0.s8 %v7643
      %v7645 = vlaneseq
      %v7646 = vshrl.u32 %v7645, 7
      %v7647 = vsub.s32 %v7644, %v7646
      %v7648 = vrot.slane %v7641, %v7647
      %v7649 = vcombine.low %v3507, %v3511
      %v7651 = vunpack.c.l.s4 1983009808
      %v7652 = vunpack.c.0.s8 %v7651
      %v7653 = vlaneseq
      %v7654 = vshrl.u32 %v7653, 7
      %v7655 = vsub.s32 %v7652, %v7654
      %v7656 = vrot.slane %v7649, %v7655
      %v7657 = vcombine.low %v3513, %v3517
      %v7659 = vunpack.c.l.s4 1983009808
      %v7660 = vunpack.c.0.s8 %v7659
      %v7661 = vlaneseq
      %v7662 = vshrl.u32 %v7661, 7
      %v7663 = vsub.s32 %v7660, %v7662
      %v7664 = vrot.slane %v7657, %v7663
      %v7665 = vcombine.low %v3515, %v3519
      %v7667 = vunpack.c.l.s4 1983009808
      %v7668 = vunpack.c.0.s8 %v7667
      %v7669 = vlaneseq
      %v7670 = vshrl.u32 %v7669, 7
      %v7671 = vsub.s32 %v7668, %v7670
      %v7672 = vrot.slane %v7665, %v7671
      %v7673 = vcombine.low %v7648, %v7656
      %v7675 = vunpack.c.l.s4 1934713408
      %v7676 = vunpack.c.0.s8 %v7675
      %v7677 = vlaneseq
      %v7678 = vshrl.u32 %v7677, 7
      %v7679 = vsub.s32 %v7676, %v7678
      %v7680 = vrot.slane %v7673, %v7679
      %v7681 = vcombine.low %v7664, %v7672
      %v7683 = vunpack.c.l.s4 1934713408
      %v7684 = vunpack.c.0.s8 %v7683
      %v7685 = vlaneseq
      %v7686 = vshrl.u32 %v7685, 7
      %v7687 = vsub.s32 %v7684, %v7686
      %v7688 = vrot.slane %v7681, %v7687
      %v7689 = vcombine.low %v7680, %v7688
      %v7690 = vcombine.high %v7680, %v7688
      %v7691 = vcombine.low %v3520, %v3524
      %v7693 = vunpack.c.l.s4 1983009808
      %v7694 = vunpack.c.0.s8 %v7693
      %v7695 = vlaneseq
      %v7696 = vshrl.u32 %v7695, 7
      %v7697 = vsub.s32 %v7694, %v7696
      %v7698 = vrot.slane %v7691, %v7697
      %v7699 = vcombine.low %v3522, %v3526
      %v7701 = vunpack.c.l.s4 1983009808
      %v7702 = vunpack.c.0.s8 %v7701
      %v7703 = vlaneseq
      %v7704 = vshrl.u32 %v7703, 7
      %v7705 = vsub.s32 %v7702, %v7704
      %v7706 = vrot.slane %v7699, %v7705
      %v7707 = vcombine.low %v3528, %v3532
      %v7709 = vunpack.c.l.s4 1983009808
      %v7710 = vunpack.c.0.s8 %v7709
      %v7711 = vlaneseq
      %v7712 = vshrl.u32 %v7711, 7
      %v7713 = vsub.s32 %v7710, %v7712
      %v7714 = vrot.slane %v7707, %v7713
      %v7715 = vcombine.low %v3530, %v3534
      %v7717 = vunpack.c.l.s4 1983009808
      %v7718 = vunpack.c.0.s8 %v7717
      %v7719 = vlaneseq
      %v7720 = vshrl.u32 %v7719, 7
      %v7721 = vsub.s32 %v7718, %v7720
      %v7722 = vrot.slane %v7715, %v7721
      %v7723 = vcombine.low %v7698, %v7706
      %v7725 = vunpack.c.l.s4 1934713408
      %v7726 = vunpack.c.0.s8 %v7725
      %v7727 = vlaneseq
      %v7728 = vshrl.u32 %v7727, 7
      %v7729 = vsub.s32 %v7726, %v7728
      %v7730 = vrot.slane %v7723, %v7729
      %v7731 = vcombine.low %v7714, %v7722
      %v7733 = vunpack.c.l.s4 1934713408
      %v7734 = vunpack.c.0.s8 %v7733
      %v7735 = vlaneseq
      %v7736 = vshrl.u32 %v7735, 7
      %v7737 = vsub.s32 %v7734, %v7736
      %v7738 = vrot.slane %v7731, %v7737
      %v7739 = vcombine.low %v7730, %v7738
      %v7740 = vcombine.high %v7730, %v7738
      %v7741 = vcombine.low %v3521, %v3525
      %v7743 = vunpack.c.l.s4 1983009808
      %v7744 = vunpack.c.0.s8 %v7743
      %v7745 = vlaneseq
      %v7746 = vshrl.u32 %v7745, 7
      %v7747 = vsub.s32 %v7744, %v7746
      %v7748 = vrot.slane %v7741, %v7747
      %v7749 = vcombine.low %v3523, %v3527
      %v7751 = vunpack.c.l.s4 1983009808
      %v7752 = vunpack.c.0.s8 %v7751
      %v7753 = vlaneseq
      %v7754 = vshrl.u32 %v7753, 7
      %v7755 = vsub.s32 %v7752, %v7754
      %v7756 = vrot.slane %v7749, %v7755
      %v7757 = vcombine.low %v3529, %v3533
      %v7759 = vunpack.c.l.s4 1983009808
      %v7760 = vunpack.c.0.s8 %v7759
      %v7761 = vlaneseq
      %v7762 = vshrl.u32 %v7761, 7
      %v7763 = vsub.s32 %v7760, %v7762
      %v7764 = vrot.slane %v7757, %v7763
      %v7765 = vcombine.low %v3531, %v3535
      %v7767 = vunpack.c.l.s4 1983009808
      %v7768 = vunpack.c.0.s8 %v7767
      %v7769 = vlaneseq
      %v7770 = vshrl.u32 %v7769, 7
      %v7771 = vsub.s32 %v7768, %v7770
      %v7772 = vrot.slane %v7765, %v7771
      %v7773 = vcombine.low %v7748, %v7756
      %v7775 = vunpack.c.l.s4 1934713408
      %v7776 = vunpack.c.0.s8 %v7775
      %v7777 = vlaneseq
      %v7778 = vshrl.u32 %v7777, 7
      %v7779 = vsub.s32 %v7776, %v7778
      %v7780 = vrot.slane %v7773, %v7779
      %v7781 = vcombine.low %v7764, %v7772
      %v7783 = vunpack.c.l.s4 1934713408
      %v7784 = vunpack.c.0.s8 %v7783
      %v7785 = vlaneseq
      %v7786 = vshrl.u32 %v7785, 7
      %v7787 = vsub.s32 %v7784, %v7786
      %v7788 = vrot.slane %v7781, %v7787
      %v7789 = vcombine.low %v7780, %v7788
      %v7790 = vcombine.high %v7780, %v7788
      %v7791 = vcombine.low %v3536, %v3540
      %v7793 = vunpack.c.l.s4 1983009808
      %v7794 = vunpack.c.0.s8 %v7793
      %v7795 = vlaneseq
      %v7796 = vshrl.u32 %v7795, 7
      %v7797 = vsub.s32 %v7794, %v7796
      %v7798 = vrot.slane %v7791, %v7797
      %v7799 = vcombine.low %v3538, %v3542
      %v7801 = vunpack.c.l.s4 1983009808
      %v7802 = vunpack.c.0.s8 %v7801
      %v7803 = vlaneseq
      %v7804 = vshrl.u32 %v7803, 7
      %v7805 = vsub.s32 %v7802, %v7804
      %v7806 = vrot.slane %v7799, %v7805
      %v7807 = vcombine.low %v3544, %v3548
      %v7809 = vunpack.c.l.s4 1983009808
      %v7810 = vunpack.c.0.s8 %v7809
      %v7811 = vlaneseq
      %v7812 = vshrl.u32 %v7811, 7
      %v7813 = vsub.s32 %v7810, %v7812
      %v7814 = vrot.slane %v7807, %v7813
      %v7815 = vcombine.low %v3546, %v3550
      %v7817 = vunpack.c.l.s4 1983009808
      %v7818 = vunpack.c.0.s8 %v7817
      %v7819 = vlaneseq
      %v7820 = vshrl.u32 %v7819, 7
      %v7821 = vsub.s32 %v7818, %v7820
      %v7822 = vrot.slane %v7815, %v7821
      %v7823 = vcombine.low %v7798, %v7806
      %v7825 = vunpack.c.l.s4 1934713408
      %v7826 = vunpack.c.0.s8 %v7825
      %v7827 = vlaneseq
      %v7828 = vshrl.u32 %v7827, 7
      %v7829 = vsub.s32 %v7826, %v7828
      %v7830 = vrot.slane %v7823, %v7829
      %v7831 = vcombine.low %v7814, %v7822
      %v7833 = vunpack.c.l.s4 1934713408
      %v7834 = vunpack.c.0.s8 %v7833
      %v7835 = vlaneseq
      %v7836 = vshrl.u32 %v7835, 7
      %v7837 = vsub.s32 %v7834, %v7836
      %v7838 = vrot.slane %v7831, %v7837
      %v7839 = vcombine.low %v7830, %v7838
      %v7840 = vcombine.high %v7830, %v7838
      %v7841 = vcombine.low %v3537, %v3541
      %v7843 = vunpack.c.l.s4 1983009808
      %v7844 = vunpack.c.0.s8 %v7843
      %v7845 = vlaneseq
      %v7846 = vshrl.u32 %v7845, 7
      %v7847 = vsub.s32 %v7844, %v7846
      %v7848 = vrot.slane %v7841, %v7847
      %v7849 = vcombine.low %v3539, %v3543
      %v7851 = vunpack.c.l.s4 1983009808
      %v7852 = vunpack.c.0.s8 %v7851
      %v7853 = vlaneseq
      %v7854 = vshrl.u32 %v7853, 7
      %v7855 = vsub.s32 %v7852, %v7854
      %v7856 = vrot.slane %v7849, %v7855
      %v7857 = vcombine.low %v3545, %v3549
      %v7859 = vunpack.c.l.s4 1983009808
      %v7860 = vunpack.c.0.s8 %v7859
      %v7861 = vlaneseq
      %v7862 = vshrl.u32 %v7861, 7
      %v7863 = vsub.s32 %v7860, %v7862
      %v7864 = vrot.slane %v7857, %v7863
      %v7865 = vcombine.low %v3547, %v3551
      %v7867 = vunpack.c.l.s4 1983009808
      %v7868 = vunpack.c.0.s8 %v7867
      %v7869 = vlaneseq
      %v7870 = vshrl.u32 %v7869, 7
      %v7871 = vsub.s32 %v7868, %v7870
      %v7872 = vrot.slane %v7865, %v7871
      %v7873 = vcombine.low %v7848, %v7856
      %v7875 = vunpack.c.l.s4 1934713408
      %v7876 = vunpack.c.0.s8 %v7875
      %v7877 = vlaneseq
      %v7878 = vshrl.u32 %v7877, 7
      %v7879 = vsub.s32 %v7876, %v7878
      %v7880 = vrot.slane %v7873, %v7879
      %v7881 = vcombine.low %v7864, %v7872
      %v7883 = vunpack.c.l.s4 1934713408
      %v7884 = vunpack.c.0.s8 %v7883
      %v7885 = vlaneseq
      %v7886 = vshrl.u32 %v7885, 7
      %v7887 = vsub.s32 %v7884, %v7886
      %v7888 = vrot.slane %v7881, %v7887
      %v7889 = vcombine.low %v7880, %v7888
      %v7890 = vcombine.high %v7880, %v7888
      %v7891 = vcombine.low %v3552, %v3556
      %v7893 = vunpack.c.l.s4 1983009808
      %v7894 = vunpack.c.0.s8 %v7893
      %v7895 = vlaneseq
      %v7896 = vshrl.u32 %v7895, 7
      %v7897 = vsub.s32 %v7894, %v7896
      %v7898 = vrot.slane %v7891, %v7897
      %v7899 = vcombine.low %v3554, %v3558
      %v7901 = vunpack.c.l.s4 1983009808
      %v7902 = vunpack.c.0.s8 %v7901
      %v7903 = vlaneseq
      %v7904 = vshrl.u32 %v7903, 7
      %v7905 = vsub.s32 %v7902, %v7904
      %v7906 = vrot.slane %v7899, %v7905
      %v7907 = vcombine.low %v3560, %v3564
      %v7909 = vunpack.c.l.s4 1983009808
      %v7910 = vunpack.c.0.s8 %v7909
      %v7911 = vlaneseq
      %v7912 = vshrl.u32 %v7911, 7
      %v7913 = vsub.s32 %v7910, %v7912
      %v7914 = vrot.slane %v7907, %v7913
      %v7915 = vcombine.low %v3562, %v3566
      %v7917 = vunpack.c.l.s4 1983009808
      %v7918 = vunpack.c.0.s8 %v7917
      %v7919 = vlaneseq
      %v7920 = vshrl.u32 %v7919, 7
      %v7921 = vsub.s32 %v7918, %v7920
      %v7922 = vrot.slane %v7915, %v7921
      %v7923 = vcombine.low %v7898, %v7906
      %v7925 = vunpack.c.l.s4 1934713408
      %v7926 = vunpack.c.0.s8 %v7925
      %v7927 = vlaneseq
      %v7928 = vshrl.u32 %v7927, 7
      %v7929 = vsub.s32 %v7926, %v7928
      %v7930 = vrot.slane %v7923, %v7929
      %v7931 = vcombine.low %v7914, %v7922
      %v7933 = vunpack.c.l.s4 1934713408
      %v7934 = vunpack.c.0.s8 %v7933
      %v7935 = vlaneseq
      %v7936 = vshrl.u32 %v7935, 7
      %v7937 = vsub.s32 %v7934, %v7936
      %v7938 = vrot.slane %v7931, %v7937
      %v7939 = vcombine.low %v7930, %v7938
      %v7940 = vcombine.high %v7930, %v7938
      %v7941 = vcombine.low %v3553, %v3557
      %v7943 = vunpack.c.l.s4 1983009808
      %v7944 = vunpack.c.0.s8 %v7943
      %v7945 = vlaneseq
      %v7946 = vshrl.u32 %v7945, 7
      %v7947 = vsub.s32 %v7944, %v7946
      %v7948 = vrot.slane %v7941, %v7947
      %v7949 = vcombine.low %v3555, %v3559
      %v7951 = vunpack.c.l.s4 1983009808
      %v7952 = vunpack.c.0.s8 %v7951
      %v7953 = vlaneseq
      %v7954 = vshrl.u32 %v7953, 7
      %v7955 = vsub.s32 %v7952, %v7954
      %v7956 = vrot.slane %v7949, %v7955
      %v7957 = vcombine.low %v3561, %v3565
      %v7959 = vunpack.c.l.s4 1983009808
      %v7960 = vunpack.c.0.s8 %v7959
      %v7961 = vlaneseq
      %v7962 = vshrl.u32 %v7961, 7
      %v7963 = vsub.s32 %v7960, %v7962
      %v7964 = vrot.slane %v7957, %v7963
      %v7965 = vcombine.low %v3563, %v3567
      %v7967 = vunpack.c.l.s4 1983009808
      %v7968 = vunpack.c.0.s8 %v7967
      %v7969 = vlaneseq
      %v7970 = vshrl.u32 %v7969, 7
      %v7971 = vsub.s32 %v7968, %v7970
      %v7972 = vrot.slane %v7965, %v7971
      %v7973 = vcombine.low %v7948, %v7956
      %v7975 = vunpack.c.l.s4 1934713408
      %v7976 = vunpack.c.0.s8 %v7975
      %v7977 = vlaneseq
      %v7978 = vshrl.u32 %v7977, 7
      %v7979 = vsub.s32 %v7976, %v7978
      %v7980 = vrot.slane %v7973, %v7979
      %v7981 = vcombine.low %v7964, %v7972
      %v7983 = vunpack.c.l.s4 1934713408
      %v7984 = vunpack.c.0.s8 %v7983
      %v7985 = vlaneseq
      %v7986 = vshrl.u32 %v7985, 7
      %v7987 = vsub.s32 %v7984, %v7986
      %v7988 = vrot.slane %v7981, %v7987
      %v7989 = vcombine.low %v7980, %v7988
      %v7990 = vcombine.high %v7980, %v7988
      %v7991 = vcombine.low %v3568, %v3572
      %v7993 = vunpack.c.l.s4 1983009808
      %v7994 = vunpack.c.0.s8 %v7993
      %v7995 = vlaneseq
      %v7996 = vshrl.u32 %v7995, 7
      %v7997 = vsub.s32 %v7994, %v7996
      %v7998 = vrot.slane %v7991, %v7997
      %v7999 = vcombine.low %v3570, %v3574
      %v8001 = vunpack.c.l.s4 1983009808
      %v8002 = vunpack.c.0.s8 %v8001
      %v8003 = vlaneseq
      %v8004 = vshrl.u32 %v8003, 7
      %v8005 = vsub.s32 %v8002, %v8004
      %v8006 = vrot.slane %v7999, %v8005
      %v8007 = vcombine.low %v3576, %v3580
      %v8009 = vunpack.c.l.s4 1983009808
      %v8010 = vunpack.c.0.s8 %v8009
      %v8011 = vlaneseq
      %v8012 = vshrl.u32 %v8011, 7
      %v8013 = vsub.s32 %v8010, %v8012
      %v8014 = vrot.slane %v8007, %v8013
      %v8015 = vcombine.low %v3578, %v3582
      %v8017 = vunpack.c.l.s4 1983009808
      %v8018 = vunpack.c.0.s8 %v8017
      %v8019 = vlaneseq
      %v8020 = vshrl.u32 %v8019, 7
      %v8021 = vsub.s32 %v8018, %v8020
      %v8022 = vrot.slane %v8015, %v8021
      %v8023 = vcombine.low %v7998, %v8006
      %v8025 = vunpack.c.l.s4 1934713408
      %v8026 = vunpack.c.0.s8 %v8025
      %v8027 = vlaneseq
      %v8028 = vshrl.u32 %v8027, 7
      %v8029 = vsub.s32 %v8026, %v8028
      %v8030 = vrot.slane %v8023, %v8029
      %v8031 = vcombine.low %v8014, %v8022
      %v8033 = vunpack.c.l.s4 1934713408
      %v8034 = vunpack.c.0.s8 %v8033
      %v8035 = vlaneseq
      %v8036 = vshrl.u32 %v8035, 7
      %v8037 = vsub.s32 %v8034, %v8036
      %v8038 = vrot.slane %v8031, %v8037
      %v8039 = vcombine.low %v8030, %v8038
      %v8040 = vcombine.high %v8030, %v8038
      %v8041 = vcombine.low %v3569, %v3573
      %v8043 = vunpack.c.l.s4 1983009808
      %v8044 = vunpack.c.0.s8 %v8043
      %v8045 = vlaneseq
      %v8046 = vshrl.u32 %v8045, 7
      %v8047 = vsub.s32 %v8044, %v8046
      %v8048 = vrot.slane %v8041, %v8047
      %v8049 = vcombine.low %v3571, %v3575
      %v8051 = vunpack.c.l.s4 1983009808
      %v8052 = vunpack.c.0.s8 %v8051
      %v8053 = vlaneseq
      %v8054 = vshrl.u32 %v8053, 7
      %v8055 = vsub.s32 %v8052, %v8054
      %v8056 = vrot.slane %v8049, %v8055
      %v8057 = vcombine.low %v3577, %v3581
      %v8059 = vunpack.c.l.s4 1983009808
      %v8060 = vunpack.c.0.s8 %v8059
      %v8061 = vlaneseq
      %v8062 = vshrl.u32 %v8061, 7
      %v8063 = vsub.s32 %v8060, %v8062
      %v8064 = vrot.slane %v8057, %v8063
      %v8065 = vcombine.low %v3579, %v3583
      %v8067 = vunpack.c.l.s4 1983009808
      %v8068 = vunpack.c.0.s8 %v8067
      %v8069 = vlaneseq
      %v8070 = vshrl.u32 %v8069, 7
      %v8071 = vsub.s32 %v8068, %v8070
      %v8072 = vrot.slane %v8065, %v8071
      %v8073 = vcombine.low %v8048, %v8056
      %v8075 = vunpack.c.l.s4 1934713408
      %v8076 = vunpack.c.0.s8 %v8075
      %v8077 = vlaneseq
      %v8078 = vshrl.u32 %v8077, 7
      %v8079 = vsub.s32 %v8076, %v8078
      %v8080 = vrot.slane %v8073, %v8079
      %v8081 = vcombine.low %v8064, %v8072
      %v8083 = vunpack.c.l.s4 1934713408
      %v8084 = vunpack.c.0.s8 %v8083
      %v8085 = vlaneseq
      %v8086 = vshrl.u32 %v8085, 7
      %v8087 = vsub.s32 %v8084, %v8086
      %v8088 = vrot.slane %v8081, %v8087
      %v8089 = vcombine.low %v8080, %v8088
      %v8090 = vcombine.high %v8080, %v8088
      %v8091 = vcombine.low %v3584, %v3588
      %v8093 = vunpack.c.l.s4 1983009808
      %v8094 = vunpack.c.0.s8 %v8093
      %v8095 = vlaneseq
      %v8096 = vshrl.u32 %v8095, 7
      %v8097 = vsub.s32 %v8094, %v8096
      %v8098 = vrot.slane %v8091, %v8097
      %v8099 = vcombine.low %v3586, %v3590
      %v8101 = vunpack.c.l.s4 1983009808
      %v8102 = vunpack.c.0.s8 %v8101
      %v8103 = vlaneseq
      %v8104 = vshrl.u32 %v8103, 7
      %v8105 = vsub.s32 %v8102, %v8104
      %v8106 = vrot.slane %v8099, %v8105
      %v8107 = vcombine.low %v3592, %v3596
      %v8109 = vunpack.c.l.s4 1983009808
      %v8110 = vunpack.c.0.s8 %v8109
      %v8111 = vlaneseq
      %v8112 = vshrl.u32 %v8111, 7
      %v8113 = vsub.s32 %v8110, %v8112
      %v8114 = vrot.slane %v8107, %v8113
      %v8115 = vcombine.low %v3594, %v3598
      %v8117 = vunpack.c.l.s4 1983009808
      %v8118 = vunpack.c.0.s8 %v8117
      %v8119 = vlaneseq
      %v8120 = vshrl.u32 %v8119, 7
      %v8121 = vsub.s32 %v8118, %v8120
      %v8122 = vrot.slane %v8115, %v8121
      %v8123 = vcombine.low %v8098, %v8106
      %v8125 = vunpack.c.l.s4 1934713408
      %v8126 = vunpack.c.0.s8 %v8125
      %v8127 = vlaneseq
      %v8128 = vshrl.u32 %v8127, 7
      %v8129 = vsub.s32 %v8126, %v8128
      %v8130 = vrot.slane %v8123, %v8129
      %v8131 = vcombine.low %v8114, %v8122
      %v8133 = vunpack.c.l.s4 1934713408
      %v8134 = vunpack.c.0.s8 %v8133
      %v8135 = vlaneseq
      %v8136 = vshrl.u32 %v8135, 7
      %v8137 = vsub.s32 %v8134, %v8136
      %v8138 = vrot.slane %v8131, %v8137
      %v8139 = vcombine.low %v8130, %v8138
      %v8140 = vcombine.high %v8130, %v8138
      %v8141 = vcombine.low %v3585, %v3589
      %v8143 = vunpack.c.l.s4 1983009808
      %v8144 = vunpack.c.0.s8 %v8143
      %v8145 = vlaneseq
      %v8146 = vshrl.u32 %v8145, 7
      %v8147 = vsub.s32 %v8144, %v8146
      %v8148 = vrot.slane %v8141, %v8147
      %v8149 = vcombine.low %v3587, %v3591
      %v8151 = vunpack.c.l.s4 1983009808
      %v8152 = vunpack.c.0.s8 %v8151
      %v8153 = vlaneseq
      %v8154 = vshrl.u32 %v8153, 7
      %v8155 = vsub.s32 %v8152, %v8154
      %v8156 = vrot.slane %v8149, %v8155
      %v8157 = vcombine.low %v3593, %v3597
      %v8159 = vunpack.c.l.s4 1983009808
      %v8160 = vunpack.c.0.s8 %v8159
      %v8161 = vlaneseq
      %v8162 = vshrl.u32 %v8161, 7
      %v8163 = vsub.s32 %v8160, %v8162
      %v8164 = vrot.slane %v8157, %v8163
      %v8165 = vcombine.low %v3595, %v3599
      %v8167 = vunpack.c.l.s4 1983009808
      %v8168 = vunpack.c.0.s8 %v8167
      %v8169 = vlaneseq
      %v8170 = vshrl.u32 %v8169, 7
      %v8171 = vsub.s32 %v8168, %v8170
      %v8172 = vrot.slane %v8165, %v8171
      %v8173 = vcombine.low %v8148, %v8156
      %v8175 = vunpack.c.l.s4 1934713408
      %v8176 = vunpack.c.0.s8 %v8175
      %v8177 = vlaneseq
      %v8178 = vshrl.u32 %v8177, 7
      %v8179 = vsub.s32 %v8176, %v8178
      %v8180 = vrot.slane %v8173, %v8179
      %v8181 = vcombine.low %v8164, %v8172
      %v8183 = vunpack.c.l.s4 1934713408
      %v8184 = vunpack.c.0.s8 %v8183
      %v8185 = vlaneseq
      %v8186 = vshrl.u32 %v8185, 7
      %v8187 = vsub.s32 %v8184, %v8186
      %v8188 = vrot.slane %v8181, %v8187
      %v8189 = vcombine.low %v8180, %v8188
      %v8190 = vcombine.high %v8180, %v8188
      %v8191 = vcombine.low %v3600, %v3604
      %v8193 = vunpack.c.l.s4 1983009808
      %v8194 = vunpack.c.0.s8 %v8193
      %v8195 = vlaneseq
      %v8196 = vshrl.u32 %v8195, 7
      %v8197 = vsub.s32 %v8194, %v8196
      %v8198 = vrot.slane %v8191, %v8197
      %v8199 = vcombine.low %v3602, %v3606
      %v8201 = vunpack.c.l.s4 1983009808
      %v8202 = vunpack.c.0.s8 %v8201
      %v8203 = vlaneseq
      %v8204 = vshrl.u32 %v8203, 7
      %v8205 = vsub.s32 %v8202, %v8204
      %v8206 = vrot.slane %v8199, %v8205
      %v8207 = vcombine.low %v3608, %v3612
      %v8209 = vunpack.c.l.s4 1983009808
      %v8210 = vunpack.c.0.s8 %v8209
      %v8211 = vlaneseq
      %v8212 = vshrl.u32 %v8211, 7
      %v8213 = vsub.s32 %v8210, %v8212
      %v8214 = vrot.slane %v8207, %v8213
      %v8215 = vcombine.low %v3610, %v3614
      %v8217 = vunpack.c.l.s4 1983009808
      %v8218 = vunpack.c.0.s8 %v8217
      %v8219 = vlaneseq
      %v8220 = vshrl.u32 %v8219, 7
      %v8221 = vsub.s32 %v8218, %v8220
      %v8222 = vrot.slane %v8215, %v8221
      %v8223 = vcombine.low %v8198, %v8206
      %v8225 = vunpack.c.l.s4 1934713408
      %v8226 = vunpack.c.0.s8 %v8225
      %v8227 = vlaneseq
      %v8228 = vshrl.u32 %v8227, 7
      %v8229 = vsub.s32 %v8226, %v8228
      %v8230 = vrot.slane %v8223, %v8229
      %v8231 = vcombine.low %v8214, %v8222
      %v8233 = vunpack.c.l.s4 1934713408
      %v8234 = vunpack.c.0.s8 %v8233
      %v8235 = vlaneseq
      %v8236 = vshrl.u32 %v8235, 7
      %v8237 = vsub.s32 %v8234, %v8236
      %v8238 = vrot.slane %v8231, %v8237
      %v8239 = vcombine.low %v8230, %v8238
      %v8240 = vcombine.high %v8230, %v8238
      %v8241 = vcombine.low %v3601, %v3605
      %v8243 = vunpack.c.l.s4 1983009808
      %v8244 = vunpack.c.0.s8 %v8243
      %v8245 = vlaneseq
      %v8246 = vshrl.u32 %v8245, 7
      %v8247 = vsub.s32 %v8244, %v8246
      %v8248 = vrot.slane %v8241, %v8247
      %v8249 = vcombine.low %v3603, %v3607
      %v8251 = vunpack.c.l.s4 1983009808
      %v8252 = vunpack.c.0.s8 %v8251
      %v8253 = vlaneseq
      %v8254 = vshrl.u32 %v8253, 7
      %v8255 = vsub.s32 %v8252, %v8254
      %v8256 = vrot.slane %v8249, %v8255
      %v8257 = vcombine.low %v3609, %v3613
      %v8259 = vunpack.c.l.s4 1983009808
      %v8260 = vunpack.c.0.s8 %v8259
      %v8261 = vlaneseq
      %v8262 = vshrl.u32 %v8261, 7
      %v8263 = vsub.s32 %v8260, %v8262
      %v8264 = vrot.slane %v8257, %v8263
      %v8265 = vcombine.low %v3611, %v3615
      %v8267 = vunpack.c.l.s4 1983009808
      %v8268 = vunpack.c.0.s8 %v8267
      %v8269 = vlaneseq
      %v8270 = vshrl.u32 %v8269, 7
      %v8271 = vsub.s32 %v8268, %v8270
      %v8272 = vrot.slane %v8265, %v8271
      %v8273 = vcombine.low %v8248, %v8256
      %v8275 = vunpack.c.l.s4 1934713408
      %v8276 = vunpack.c.0.s8 %v8275
      %v8277 = vlaneseq
      %v8278 = vshrl.u32 %v8277, 7
      %v8279 = vsub.s32 %v8276, %v8278
      %v8280 = vrot.slane %v8273, %v8279
      %v8281 = vcombine.low %v8264, %v8272
      %v8283 = vunpack.c.l.s4 1934713408
      %v8284 = vunpack.c.0.s8 %v8283
      %v8285 = vlaneseq
      %v8286 = vshrl.u32 %v8285, 7
      %v8287 = vsub.s32 %v8284, %v8286
      %v8288 = vrot.slane %v8281, %v8287
      %v8289 = vcombine.low %v8280, %v8288
      %v8290 = vcombine.high %v8280, %v8288
      %v8291 = vcombine.low %v3616, %v3620
      %v8293 = vunpack.c.l.s4 1983009808
      %v8294 = vunpack.c.0.s8 %v8293
      %v8295 = vlaneseq
      %v8296 = vshrl.u32 %v8295, 7
      %v8297 = vsub.s32 %v8294, %v8296
      %v8298 = vrot.slane %v8291, %v8297
      %v8299 = vcombine.low %v3618, %v3622
      %v8301 = vunpack.c.l.s4 1983009808
      %v8302 = vunpack.c.0.s8 %v8301
      %v8303 = vlaneseq
      %v8304 = vshrl.u32 %v8303, 7
      %v8305 = vsub.s32 %v8302, %v8304
      %v8306 = vrot.slane %v8299, %v8305
      %v8307 = vcombine.low %v3624, %v3628
      %v8309 = vunpack.c.l.s4 1983009808
      %v8310 = vunpack.c.0.s8 %v8309
      %v8311 = vlaneseq
      %v8312 = vshrl.u32 %v8311, 7
      %v8313 = vsub.s32 %v8310, %v8312
      %v8314 = vrot.slane %v8307, %v8313
      %v8315 = vcombine.low %v3626, %v3630
      %v8317 = vunpack.c.l.s4 1983009808
      %v8318 = vunpack.c.0.s8 %v8317
      %v8319 = vlaneseq
      %v8320 = vshrl.u32 %v8319, 7
      %v8321 = vsub.s32 %v8318, %v8320
      %v8322 = vrot.slane %v8315, %v8321
      %v8323 = vcombine.low %v8298, %v8306
      %v8325 = vunpack.c.l.s4 1934713408
      %v8326 = vunpack.c.0.s8 %v8325
      %v8327 = vlaneseq
      %v8328 = vshrl.u32 %v8327, 7
      %v8329 = vsub.s32 %v8326, %v8328
      %v8330 = vrot.slane %v8323, %v8329
      %v8331 = vcombine.low %v8314, %v8322
      %v8333 = vunpack.c.l.s4 1934713408
      %v8334 = vunpack.c.0.s8 %v8333
      %v8335 = vlaneseq
      %v8336 = vshrl.u32 %v8335, 7
      %v8337 = vsub.s32 %v8334, %v8336
      %v8338 = vrot.slane %v8331, %v8337
      %v8339 = vcombine.low %v8330, %v8338
      %v8340 = vcombine.high %v8330, %v8338
      %v8341 = vcombine.low %v3617, %v3621
      %v8343 = vunpack.c.l.s4 1983009808
      %v8344 = vunpack.c.0.s8 %v8343
      %v8345 = vlaneseq
      %v8346 = vshrl.u32 %v8345, 7
      %v8347 = vsub.s32 %v8344, %v8346
      %v8348 = vrot.slane %v8341, %v8347
      %v8349 = vcombine.low %v3619, %v3623
      %v8351 = vunpack.c.l.s4 1983009808
      %v8352 = vunpack.c.0.s8 %v8351
      %v8353 = vlaneseq
      %v8354 = vshrl.u32 %v8353, 7
      %v8355 = vsub.s32 %v8352, %v8354
      %v8356 = vrot.slane %v8349, %v8355
      %v8357 = vcombine.low %v3625, %v3629
      %v8359 = vunpack.c.l.s4 1983009808
      %v8360 = vunpack.c.0.s8 %v8359
      %v8361 = vlaneseq
      %v8362 = vshrl.u32 %v8361, 7
      %v8363 = vsub.s32 %v8360, %v8362
      %v8364 = vrot.slane %v8357, %v8363
      %v8365 = vcombine.low %v3627, %v3631
      %v8367 = vunpack.c.l.s4 1983009808
      %v8368 = vunpack.c.0.s8 %v8367
      %v8369 = vlaneseq
      %v8370 = vshrl.u32 %v8369, 7
      %v8371 = vsub.s32 %v8368, %v8370
      %v8372 = vrot.slane %v8365, %v8371
      %v8373 = vcombine.low %v8348, %v8356
      %v8375 = vunpack.c.l.s4 1934713408
      %v8376 = vunpack.c.0.s8 %v8375
      %v8377 = vlaneseq
      %v8378 = vshrl.u32 %v8377, 7
      %v8379 = vsub.s32 %v8376, %v8378
      %v8380 = vrot.slane %v8373, %v8379
      %v8381 = vcombine.low %v8364, %v8372
      %v8383 = vunpack.c.l.s4 1934713408
      %v8384 = vunpack.c.0.s8 %v8383
      %v8385 = vlaneseq
      %v8386 = vshrl.u32 %v8385, 7
      %v8387 = vsub.s32 %v8384, %v8386
      %v8388 = vrot.slane %v8381, %v8387
      %v8389 = vcombine.low %v8380, %v8388
      %v8390 = vcombine.high %v8380, %v8388
      %v8393 = vpack.i.b16 %v7689, %v7639
      %v8395 = vshrl.u32 %v7639, 16
      %v8396 = vshrl.u32 %v7689, 16
      %v8397 = vpack.i.b16 %v8396, %v8395
      %v8401 = vpack.i.b16 %v7690, %v7640
      %v8403 = vshrl.u32 %v7640, 16
      %v8404 = vshrl.u32 %v7690, 16
      %v8405 = vpack.i.b16 %v8404, %v8403
      %v8409 = vpack.i.b16 %v7789, %v7739
      %v8411 = vshrl.u32 %v7739, 16
      %v8412 = vshrl.u32 %v7789, 16
      %v8413 = vpack.i.b16 %v8412, %v8411
      %v8417 = vpack.i.b16 %v7790, %v7740
      %v8419 = vshrl.u32 %v7740, 16
      %v8420 = vshrl.u32 %v7790, 16
      %v8421 = vpack.i.b16 %v8420, %v8419
      %v8425 = vpack.i.b16 %v7889, %v7839
      %v8427 = vshrl.u32 %v7839, 16
      %v8428 = vshrl.u32 %v7889, 16
      %v8429 = vpack.i.b16 %v8428, %v8427
      %v8433 = vpack.i.b16 %v7890, %v7840
      %v8435 = vshrl.u32 %v7840, 16
      %v8436 = vshrl.u32 %v7890, 16
      %v8437 = vpack.i.b16 %v8436, %v8435
      %v8441 = vpack.i.b16 %v7989, %v7939
      %v8443 = vshrl.u32 %v7939, 16
      %v8444 = vshrl.u32 %v7989, 16
      %v8445 = vpack.i.b16 %v8444, %v8443
      %v8449 = vpack.i.b16 %v7990, %v7940
      %v8451 = vshrl.u32 %v7940, 16
      %v8452 = vshrl.u32 %v7990, 16
      %v8453 = vpack.i.b16 %v8452, %v8451
      %v8457 = vpack.i.b16 %v8089, %v8039
      %v8459 = vshrl.u32 %v8039, 16
      %v8460 = vshrl.u32 %v8089, 16
      %v8461 = vpack.i.b16 %v8460, %v8459
      %v8465 = vpack.i.b16 %v8090, %v8040
      %v8467 = vshrl.u32 %v8040, 16
      %v8468 = vshrl.u32 %v8090, 16
      %v8469 = vpack.i.b16 %v8468, %v8467
      %v8473 = vpack.i.b16 %v8189, %v8139
      %v8475 = vshrl.u32 %v8139, 16
      %v8476 = vshrl.u32 %v8189, 16
      %v8477 = vpack.i.b16 %v8476, %v8475
      %v8481 = vpack.i.b16 %v8190, %v8140
      %v8483 = vshrl.u32 %v8140, 16
      %v8484 = vshrl.u32 %v8190, 16
      %v8485 = vpack.i.b16 %v8484, %v8483
      %v8489 = vpack.i.b16 %v8289, %v8239
      %v8491 = vshrl.u32 %v8239, 16
      %v8492 = vshrl.u32 %v8289, 16
      %v8493 = vpack.i.b16 %v8492, %v8491
      %v8497 = vpack.i.b16 %v8290, %v8240
      %v8499 = vshrl.u32 %v8240, 16
      %v8500 = vshrl.u32 %v8290, 16
      %v8501 = vpack.i.b16 %v8500, %v8499
      %v8505 = vpack.i.b16 %v8389, %v8339
      %v8507 = vshrl.u32 %v8339, 16
      %v8508 = vshrl.u32 %v8389, 16
      %v8509 = vpack.i.b16 %v8508, %v8507
      %v8513 = vpack.i.b16 %v8390, %v8340
      %v8515 = vshrl.u32 %v8340, 16
      %v8516 = vshrl.u32 %v8390, 16
      %v8517 = vpack.i.b16 %v8516, %v8515
      %8519 = vmatprep.subr.bf16.mxu0 0
      %8520 = vmatpush1.bf16.msra.mxu0 %v8393
      %8521 = vmatprep.subr.bf16.mxu0 0
      %8522 = vmatpush1.bf16.msra.mxu0 %v8409
      %8523 = vmatprep.subr.bf16.mxu0 0
      %8524 = vmatpush1.bf16.msra.mxu0 %v8425
      %8525 = vmatprep.subr.bf16.mxu0 0
      %8526 = vmatpush1.bf16.msra.mxu0 %v8441
      %8527 = vmatprep.subr.bf16.mxu0 0
      %8528 = vmatpush1.bf16.msra.mxu0 %v8457
      %8529 = vmatprep.subr.bf16.mxu0 0
      %8530 = vmatpush1.bf16.msra.mxu0 %v8473
      %8531 = vmatprep.subr.bf16.mxu0 0
      %8532 = vmatpush1.bf16.msra.mxu0 %v8489
      %8533 = vmatprep.subr.bf16.mxu0 0
      %8534 = vmatpush1.bf16.msra.mxu0 %v8505
      %8535 = vmatprep.subr.bf16.mxu0 0
      %8536 = vmatpush1.bf16.msra.mxu0 0
      %8537 = vmatprep.subr.bf16.mxu0 0
      %8538 = vmatpush1.bf16.msra.mxu0 0
      %8539 = vmatprep.subr.bf16.mxu0 0
      %8540 = vmatpush1.bf16.msra.mxu0 0
      %8541 = vmatprep.subr.bf16.mxu0 0
      %8542 = vmatpush1.bf16.msra.mxu0 0
      %8543 = vmatprep.subr.bf16.mxu0 0
      %8544 = vmatpush1.bf16.msra.mxu0 0
      %8545 = vmatprep.subr.bf16.mxu0 0
      %8546 = vmatpush1.bf16.msra.mxu0 0
      %8547 = vmatprep.subr.bf16.mxu0 0
      %8548 = vmatpush1.bf16.msra.mxu0 0
      %8549 = vmatprep.subr.bf16.mxu0 0
      %8550 = vmatpush1.bf16.msra.mxu0 0
      %8551 = vmatprep.mubr.bf16.mxu0 0
      %8552 = vmatmul.mubr.bf16.gmra.mrb[0].mxu0 %v7587
      %v8553 = vpop.f32.mrb[0].mxu0
      %v8554 = vadd.f32 0.0, %v8553
      %v8555 = vpop.f32.mrb[0].mxu0
      %v8556 = vpop.f32.mrb[0].mxu0
      %v8557 = vpop.f32.mrb[0].mxu0
      %8558 = vdwg.mxu0
      %8559 = vmatprep.subr.bf16.mxu0 0
      %8560 = vmatpush1.bf16.msra.mxu0 %v8397
      %8561 = vmatprep.subr.bf16.mxu0 0
      %8562 = vmatpush1.bf16.msra.mxu0 %v8413
      %8563 = vmatprep.subr.bf16.mxu0 0
      %8564 = vmatpush1.bf16.msra.mxu0 %v8429
      %8565 = vmatprep.subr.bf16.mxu0 0
      %8566 = vmatpush1.bf16.msra.mxu0 %v8445
      %8567 = vmatprep.subr.bf16.mxu0 0
      %8568 = vmatpush1.bf16.msra.mxu0 %v8461
      %8569 = vmatprep.subr.bf16.mxu0 0
      %8570 = vmatpush1.bf16.msra.mxu0 %v8477
      %8571 = vmatprep.subr.bf16.mxu0 0
      %8572 = vmatpush1.bf16.msra.mxu0 %v8493
      %8573 = vmatprep.subr.bf16.mxu0 0
      %8574 = vmatpush1.bf16.msra.mxu0 %v8509
      %8575 = vmatprep.subr.bf16.mxu0 0
      %8576 = vmatpush1.bf16.msra.mxu0 0
      %8577 = vmatprep.subr.bf16.mxu0 0
      %8578 = vmatpush1.bf16.msra.mxu0 0
      %8579 = vmatprep.subr.bf16.mxu0 0
      %8580 = vmatpush1.bf16.msra.mxu0 0
      %8581 = vmatprep.subr.bf16.mxu0 0
      %8582 = vmatpush1.bf16.msra.mxu0 0
      %8583 = vmatprep.subr.bf16.mxu0 0
      %8584 = vmatpush1.bf16.msra.mxu0 0
      %8585 = vmatprep.subr.bf16.mxu0 0
      %8586 = vmatpush1.bf16.msra.mxu0 0
      %8587 = vmatprep.subr.bf16.mxu0 0
      %8588 = vmatpush1.bf16.msra.mxu0 0
      %8589 = vmatprep.subr.bf16.mxu0 0
      %8590 = vmatpush1.bf16.msra.mxu0 0
      %8591 = vmatprep.mubr.bf16.mxu0 0
      %8592 = vmatmul.mubr.bf16.gmra.mrb[0].mxu0 %v7588
      %v8593 = vpop.f32.mrb[0].mxu0
      %v8594 = vadd.f32 0.0, %v8593
      %v8595 = vpop.f32.mrb[0].mxu0
      %v8596 = vpop.f32.mrb[0].mxu0
      %v8597 = vpop.f32.mrb[0].mxu0
      %8598 = vdwg.mxu0
      %8599 = vmatprep.subr.bf16.mxu0 0
      %8600 = vmatpush1.bf16.msra.mxu0 %v8401
      %8601 = vmatprep.subr.bf16.mxu0 0
      %8602 = vmatpush1.bf16.msra.mxu0 %v8417
      %8603 = vmatprep.subr.bf16.mxu0 0
      %8604 = vmatpush1.bf16.msra.mxu0 %v8433
      %8605 = vmatprep.subr.bf16.mxu0 0
      %8606 = vmatpush1.bf16.msra.mxu0 %v8449
      %8607 = vmatprep.subr.bf16.mxu0 0
      %8608 = vmatpush1.bf16.msra.mxu0 %v8465
      %8609 = vmatprep.subr.bf16.mxu0 0
      %8610 = vmatpush1.bf16.msra.mxu0 %v8481
      %8611 = vmatprep.subr.bf16.mxu0 0
      %8612 = vmatpush1.bf16.msra.mxu0 %v8497
      %8613 = vmatprep.subr.bf16.mxu0 0
      %8614 = vmatpush1.bf16.msra.mxu0 %v8513
      %8615 = vmatprep.subr.bf16.mxu0 0
      %8616 = vmatpush1.bf16.msra.mxu0 0
      %8617 = vmatprep.subr.bf16.mxu0 0
      %8618 = vmatpush1.bf16.msra.mxu0 0
      %8619 = vmatprep.subr.bf16.mxu0 0
      %8620 = vmatpush1.bf16.msra.mxu0 0
      %8621 = vmatprep.subr.bf16.mxu0 0
      %8622 = vmatpush1.bf16.msra.mxu0 0
      %8623 = vmatprep.subr.bf16.mxu0 0
      %8624 = vmatpush1.bf16.msra.mxu0 0
      %8625 = vmatprep.subr.bf16.mxu0 0
      %8626 = vmatpush1.bf16.msra.mxu0 0
      %8627 = vmatprep.subr.bf16.mxu0 0
      %8628 = vmatpush1.bf16.msra.mxu0 0
      %8629 = vmatprep.subr.bf16.mxu0 0
      %8630 = vmatpush1.bf16.msra.mxu0 0
      %8631 = vmatprep.mubr.bf16.mxu0 0
      %8632 = vmatmul.mubr.bf16.gmra.mrb[0].mxu0 %v7589
      %v8633 = vpop.f32.mrb[0].mxu0
      %v8634 = vadd.f32 0.0, %v8633
      %v8635 = vpop.f32.mrb[0].mxu0
      %v8636 = vpop.f32.mrb[0].mxu0
      %v8637 = vpop.f32.mrb[0].mxu0
      %8638 = vdwg.mxu0
      %8639 = vmatprep.subr.bf16.mxu0 0
      %8640 = vmatpush1.bf16.msra.mxu0 %v8405
      %8641 = vmatprep.subr.bf16.mxu0 0
      %8642 = vmatpush1.bf16.msra.mxu0 %v8421
      %8643 = vmatprep.subr.bf16.mxu0 0
      %8644 = vmatpush1.bf16.msra.mxu0 %v8437
      %8645 = vmatprep.subr.bf16.mxu0 0
      %8646 = vmatpush1.bf16.msra.mxu0 %v8453
      %8647 = vmatprep.subr.bf16.mxu0 0
      %8648 = vmatpush1.bf16.msra.mxu0 %v8469
      %8649 = vmatprep.subr.bf16.mxu0 0
      %8650 = vmatpush1.bf16.msra.mxu0 %v8485
      %8651 = vmatprep.subr.bf16.mxu0 0
      %8652 = vmatpush1.bf16.msra.mxu0 %v8501
      %8653 = vmatprep.subr.bf16.mxu0 0
      %8654 = vmatpush1.bf16.msra.mxu0 %v8517
      %8655 = vmatprep.subr.bf16.mxu0 0
      %8656 = vmatpush1.bf16.msra.mxu0 0
      %8657 = vmatprep.subr.bf16.mxu0 0
      %8658 = vmatpush1.bf16.msra.mxu0 0
      %8659 = vmatprep.subr.bf16.mxu0 0
      %8660 = vmatpush1.bf16.msra.mxu0 0
      %8661 = vmatprep.subr.bf16.mxu0 0
      %8662 = vmatpush1.bf16.msra.mxu0 0
      %8663 = vmatprep.subr.bf16.mxu0 0
      %8664 = vmatpush1.bf16.msra.mxu0 0
      %8665 = vmatprep.subr.bf16.mxu0 0
      %8666 = vmatpush1.bf16.msra.mxu0 0
      %8667 = vmatprep.subr.bf16.mxu0 0
      %8668 = vmatpush1.bf16.msra.mxu0 0
      %8669 = vmatprep.subr.bf16.mxu0 0
      %8670 = vmatpush1.bf16.msra.mxu0 0
      %8671 = vmatprep.mubr.bf16.mxu0 0
      %8672 = vmatmul.mubr.bf16.gmra.mrb[0].mxu0 %v7590
      %v8673 = vpop.f32.mrb[0].mxu0
      %v8674 = vadd.f32 0.0, %v8673
      %v8675 = vpop.f32.mrb[0].mxu0
      %v8676 = vpop.f32.mrb[0].mxu0
      %v8677 = vpop.f32.mrb[0].mxu0
      %8678 = vdwg.mxu0
      %v8679 = vadd.f32 %v7583, %v8554
      %v8680 = vadd.f32 %v7584, %v8594
      %v8681 = vadd.f32 %v7585, %v8634
      %v8682 = vadd.f32 %v7586, %v8674
      %8683 = vst.msk [vmem:[#allocation5] sm:$0xff] %vm7277, %v8679
      %8684 = vst.msk [vmem:[#allocation5 + $0x8] sm:$0xff] %vm7277, %v8680
      %8685 = vst.msk [vmem:[#allocation5 + $0x10] sm:$0xff] %vm7277, %v8681
      %8686 = vst.msk [vmem:[#allocation5 + $0x18] sm:$0xff] %vm7277, %v8682
      %8687 = vst.msk [vmem:[#allocation3] sm:$0xff] %vm7554, %v7486
      %8688 = vst.msk [vmem:[#allocation3 + $0x8] sm:$0xff] %vm7554, %v7487
      %8689 = vst.msk [vmem:[#allocation3 + $0x10] sm:$0xff] %vm7554, %v7488
      %8690 = vst.msk [vmem:[#allocation3 + $0x18] sm:$0xff] %vm7554, %v7489
      %p8691 = scmp.eq.s32.totalorder %s28, 1
      // Predicated region
      $region73: #{decoder_layer_forward.4} parent=67 // pred_check
        %p8692 = pneg %p8691
      $region74: #{decoder_layer_forward.4} parent=67 // pred_check_branch
        %8694 = sbr.rel (%p8692) target = $region76
      $region75: #{decoder_layer_forward.4} parent=67 // pred_region
        %v8695 = vld [vmem:[#allocation5] sm:$0xff]
        %v8696 = vld [vmem:[#allocation5 + $0x8] sm:$0xff]
        %v8697 = vld [vmem:[#allocation5 + $0x10] sm:$0xff]
        %v8698 = vld [vmem:[#allocation5 + $0x18] sm:$0xff]
        %v8699 = vld [vmem:[#allocation4] sm:$0xff]
        %v8700 = vld [vmem:[#allocation4 + $0x8] sm:$0xff]
        %v8701 = vld [vmem:[#allocation4 + $0x10] sm:$0xff]
        %v8702 = vld [vmem:[#allocation4 + $0x18] sm:$0xff]
        %v8703 = vrcp.pop %v8699
        %v8704 = vrcp.pop %v8700
        %v8705 = vrcp.pop %v8701
        %v8706 = vrcp.pop %v8702
        %8708 = vset.pattern.permute.xlu0 0
        %8709 = vperm.xlu0 %8708, %v8703
        %v8710 = vpop.permute.xlu0 %8709
        %8713 = vset.pattern.permute.xlu0 0
        %8714 = vperm.xlu0 %8713, %v8704
        %v8715 = vpop.permute.xlu0 %8714
        %8718 = vset.pattern.permute.xlu0 0
        %8719 = vperm.xlu0 %8718, %v8705
        %v8720 = vpop.permute.xlu0 %8719
        %8723 = vset.pattern.permute.xlu0 0
        %8724 = vperm.xlu0 %8723, %v8706
        %v8725 = vpop.permute.xlu0 %8724
        %v8727 = vmul.f32 %v8695, %v8710
        %v8728 = vmul.f32 %v8696, %v8715
        %v8729 = vmul.f32 %v8697, %v8720
        %v8730 = vmul.f32 %v8698, %v8725
        %v8731 = vcombine.low %v8727, %v8729
        %v8732 = vcombine.high %v8727, %v8729
        %v8734 = vunpack.c.l.s4 1983009808
        %v8735 = vunpack.c.0.s8 %v8734
        %v8736 = vlaneseq
        %v8737 = vshrl.u32 %v8736, 7
        %v8738 = vsub.s32 %v8735, %v8737
        %v8739 = vrot.slane %v8731, %v8738
        %v8741 = vunpack.c.l.s4 1983009808
        %v8742 = vunpack.c.0.s8 %v8741
        %v8743 = vlaneseq
        %v8744 = vshrl.u32 %v8743, 7
        %v8745 = vsub.s32 %v8742, %v8744
        %v8746 = vrot.slane %v8732, %v8745
        %v8747 = vcombine.low %v8728, %v8730
        %v8748 = vcombine.high %v8728, %v8730
        %v8750 = vunpack.c.l.s4 1983009808
        %v8751 = vunpack.c.0.s8 %v8750
        %v8752 = vlaneseq
        %v8753 = vshrl.u32 %v8752, 7
        %v8754 = vsub.s32 %v8751, %v8753
        %v8755 = vrot.slane %v8747, %v8754
        %v8757 = vunpack.c.l.s4 1983009808
        %v8758 = vunpack.c.0.s8 %v8757
        %v8759 = vlaneseq
        %v8760 = vshrl.u32 %v8759, 7
        %v8761 = vsub.s32 %v8758, %v8760
        %v8762 = vrot.slane %v8748, %v8761
        %v8763 = vcombine.low %v8739, %v8755
        %v8764 = vcombine.high %v8739, %v8755
        %v8766 = vunpack.c.l.s4 1934713408
        %v8767 = vunpack.c.0.s8 %v8766
        %v8768 = vlaneseq
        %v8769 = vshrl.u32 %v8768, 7
        %v8770 = vsub.s32 %v8767, %v8769
        %v8771 = vrot.slane %v8763, %v8770
        %v8773 = vunpack.c.l.s4 1934713408
        %v8774 = vunpack.c.0.s8 %v8773
        %v8775 = vlaneseq
        %v8776 = vshrl.u32 %v8775, 7
        %v8777 = vsub.s32 %v8774, %v8776
        %v8778 = vrot.slane %v8764, %v8777
        %v8779 = vcombine.low %v8746, %v8762
        %v8780 = vcombine.high %v8746, %v8762
        %v8782 = vunpack.c.l.s4 1934713408
        %v8783 = vunpack.c.0.s8 %v8782
        %v8784 = vlaneseq
        %v8785 = vshrl.u32 %v8784, 7
        %v8786 = vsub.s32 %v8783, %v8785
        %v8787 = vrot.slane %v8779, %v8786
        %v8789 = vunpack.c.l.s4 1934713408
        %v8790 = vunpack.c.0.s8 %v8789
        %v8791 = vlaneseq
        %v8792 = vshrl.u32 %v8791, 7
        %v8793 = vsub.s32 %v8790, %v8792
        %v8794 = vrot.slane %v8780, %v8793
        %v8795 = vcombine.high %v8771, 0.0
        %v8796 = vcombine.high %v8778, 0.0
        %v8797 = vcombine.high %v8787, 0.0
        %v8798 = vcombine.high %v8794, 0.0
        %v8799 = vcombine.low %v8771, %v8778
        %v8801 = vunpack.c.l.s4 1983009808
        %v8802 = vunpack.c.0.s8 %v8801
        %v8803 = vlaneseq
        %v8804 = vshrl.u32 %v8803, 7
        %v8805 = vsub.s32 %v8802, %v8804
        %v8806 = vrot.slane %v8799, %v8805
        %v8807 = vcombine.low %v8795, %v8796
        %v8809 = vunpack.c.l.s4 1983009808
        %v8810 = vunpack.c.0.s8 %v8809
        %v8811 = vlaneseq
        %v8812 = vshrl.u32 %v8811, 7
        %v8813 = vsub.s32 %v8810, %v8812
        %v8814 = vrot.slane %v8807, %v8813
        %v8815 = vcombine.low %v8787, %v8794
        %v8817 = vunpack.c.l.s4 1983009808
        %v8818 = vunpack.c.0.s8 %v8817
        %v8819 = vlaneseq
        %v8820 = vshrl.u32 %v8819, 7
        %v8821 = vsub.s32 %v8818, %v8820
        %v8822 = vrot.slane %v8815, %v8821
        %v8823 = vcombine.low %v8797, %v8798
        %v8825 = vunpack.c.l.s4 1983009808
        %v8826 = vunpack.c.0.s8 %v8825
        %v8827 = vlaneseq
        %v8828 = vshrl.u32 %v8827, 7
        %v8829 = vsub.s32 %v8826, %v8828
        %v8830 = vrot.slane %v8823, %v8829
        %v8831 = vcombine.low %v8806, %v8814
        %v8832 = vcombine.high %v8806, %v8814
        %v8834 = vunpack.c.l.s4 1934713408
        %v8835 = vunpack.c.0.s8 %v8834
        %v8836 = vlaneseq
        %v8837 = vshrl.u32 %v8836, 7
        %v8838 = vsub.s32 %v8835, %v8837
        %v8839 = vrot.slane %v8831, %v8838
        %v8841 = vunpack.c.l.s4 1934713408
        %v8842 = vunpack.c.0.s8 %v8841
        %v8843 = vlaneseq
        %v8844 = vshrl.u32 %v8843, 7
        %v8845 = vsub.s32 %v8842, %v8844
        %v8846 = vrot.slane %v8832, %v8845
        %v8847 = vcombine.low %v8822, %v8830
        %v8848 = vcombine.high %v8822, %v8830
        %v8850 = vunpack.c.l.s4 1934713408
        %v8851 = vunpack.c.0.s8 %v8850
        %v8852 = vlaneseq
        %v8853 = vshrl.u32 %v8852, 7
        %v8854 = vsub.s32 %v8851, %v8853
        %v8855 = vrot.slane %v8847, %v8854
        %v8857 = vunpack.c.l.s4 1934713408
        %v8858 = vunpack.c.0.s8 %v8857
        %v8859 = vlaneseq
        %v8860 = vshrl.u32 %v8859, 7
        %v8861 = vsub.s32 %v8858, %v8860
        %v8862 = vrot.slane %v8848, %v8861
        %v8863 = vcombine.low %v8839, %v8855
        %v8864 = vcombine.high %v8839, %v8855
        %v8865 = vcombine.low %v8846, %v8862
        %v8866 = vcombine.high %v8846, %v8862
        %8868 = vrot.lane.b32.xlu0 %v8864, 8
        %v8869 = vpop.permute.xlu0 %8868
        %8872 = vrot.lane.b32.xlu0 %v8865, 16
        %v8873 = vpop.permute.xlu0 %8872
        %8876 = vrot.lane.b32.xlu0 %v8866, 24
        %v8877 = vpop.permute.xlu0 %8876
        %v8879 = vsel %vm7277, %v8863, %v8869
        %vm8880 = vcmask 130048
        %v8881 = vsel %vm8880, %v8879, %v8873
        %vm8882 = vcmask 195584
        %v8883 = vsel %vm8882, %v8881, %v8877
        %v8884 = vpack.c.bf16 %v8883, %v8883
        %v8885 = vld [vmem:[%s6] sm:$0xf]
        %v8886 = vld [vmem:[%s6 + $0x4] sm:$0xf]
        %v8887 = vld [vmem:[%s6 + $0x8] sm:$0xf]
        %v8888 = vld [vmem:[%s6 + $0xc] sm:$0xf]
        %v8889 = vld [vmem:[%s7] sm:$0x1]
        %v8891 = vlaneseq
        %v8892 = vshrl.u32 %v8891, 7
        %v8893 = vsub.s32 0, %v8892
        %v8894 = vrot.slane %v8889, %v8893
        %v8900 = vunpack.c.l.b16 %v8885
        %v8901 = vunpack.c.l.b16 %v8886
        %v8902 = vunpack.c.l.b16 %v8887
        %v8903 = vunpack.c.l.b16 %v8888
        %v8904 = vpack.c.b16 %v8901, %v8900
        %v8905 = vpack.c.b16 %v8903, %v8902
        %v8909 = vsel %vm639, %v8884, 0
        %8911 = vmatprep.subr.bf16.mxu0 0
        %8912 = vmatpush1.bf16.msra.mxu0 %v8904
        %8913 = vmatprep.subr.bf16.mxu0 0
        %8914 = vmatpush1.bf16.msra.mxu0 %v8905
        %8915 = vmatprep.subr.bf16.mxu0 0
        %8916 = vmatpush1.bf16.msra.mxu0 0
        %8917 = vmatprep.subr.bf16.mxu0 0
        %8918 = vmatpush1.bf16.msra.mxu0 0
        %8919 = vmatprep.subr.bf16.mxu0 0
        %8920 = vmatpush1.bf16.msra.mxu0 0
        %8921 = vmatprep.subr.bf16.mxu0 0
        %8922 = vmatpush1.bf16.msra.mxu0 0
        %8923 = vmatprep.subr.bf16.mxu0 0
        %8924 = vmatpush1.bf16.msra.mxu0 0
        %8925 = vmatprep.subr.bf16.mxu0 0
        %8926 = vmatpush1.bf16.msra.mxu0 0
        %8927 = vmatprep.subr.bf16.mxu0 0
        %8928 = vmatpush1.bf16.msra.mxu0 0
        %8929 = vmatprep.subr.bf16.mxu0 0
        %8930 = vmatpush1.bf16.msra.mxu0 0
        %8931 = vmatprep.subr.bf16.mxu0 0
        %8932 = vmatpush1.bf16.msra.mxu0 0
        %8933 = vmatprep.subr.bf16.mxu0 0
        %8934 = vmatpush1.bf16.msra.mxu0 0
        %8935 = vmatprep.subr.bf16.mxu0 0
        %8936 = vmatpush1.bf16.msra.mxu0 0
        %8937 = vmatprep.subr.bf16.mxu0 0
        %8938 = vmatpush1.bf16.msra.mxu0 0
        %8939 = vmatprep.subr.bf16.mxu0 0
        %8940 = vmatpush1.bf16.msra.mxu0 0
        %8941 = vmatprep.subr.bf16.mxu0 0
        %8942 = vmatpush1.bf16.msra.mxu0 0
        %8943 = vmatprep.mubr.bf16.mxu0 0
        %8944 = vmatmul.mubr.bf16.gmra.mrb[0].mxu0 %v8909
        %v8945 = vpop.f32.mrb[0].mxu0
        %v8946 = vadd.f32 %v8894, %v8945
        %v8947 = vpop.f32.mrb[0].mxu0
        %v8948 = vpop.f32.mrb[0].mxu0
        %v8949 = vpop.f32.mrb[0].mxu0
        %8950 = vdwg.mxu0
        %v8951 = vld [vmem:[%s476] sm:$0xff]
        %v8952 = vadd.f32 %v8951, %v8946
        %v8953 = vsel %vm639, %v8952, 0.0
        %8954 = vadd.xlane.f32.xlu0 %v8953
        %v8955 = vpop.xlane.xlu0 %8954
        %v8956 = vrcp.pop 32.0
        %v8957 = vmul.f32 %v8955, %v8956
        %v8958 = vsub.f32 %v8952, %v8957
        %v8959 = vmul.f32 %v8958, %v8958
        %v8960 = vsel %vm639, %v8959, 0.0
        %8961 = vadd.xlane.f32.xlu0 %v8960
        %v8962 = vpop.xlane.xlu0 %8961
        %v8963 = vmul.f32 %v8962, %v8956
        %v8964 = vadd.f32 %v8963, 1e-05
        %v8965 = vrsqrt.pop %v8964
        %v8966 = vmul.f32 %v8958, %v8965
        %v8967 = vld [vmem:[%s10] sm:$0x1]
        %v8969 = vlaneseq
        %v8970 = vshrl.u32 %v8969, 7
        %v8971 = vsub.s32 0, %v8970
        %v8972 = vrot.slane %v8967, %v8971
        %v8974 = vmul.f32 %v8966, %v8972
        %v8975 = vld [vmem:[%s11] sm:$0x1]
        %v8977 = vlaneseq
        %v8978 = vshrl.u32 %v8977, 7
        %v8979 = vsub.s32 0, %v8978
        %v8980 = vrot.slane %v8975, %v8979
        %v8982 = vadd.f32 %v8974, %v8980
        %8983 = vst.msk [vmem:[%s501] sm:$0xff] %vm639, %v8982
      $region76: #{decoder_layer_forward.4} parent=67 // pred_fallthru
        _
      %p8984 = scmp.lt.s32.totalorder %s27, 1
      %s8985 = scalar_select %p8984, %s27, 1
      %s8986 = smul.addr %s8985, 8
      %s8987 = scalar_lea.vmem %s12, %s8986
      // Predicated region
      $region77: #{decoder_layer_forward.4} parent=67 // pred_check
        %p8988 = pneg %p329
      $region78: #{decoder_layer_forward.4} parent=67 // pred_check_branch
        %8990 = sbr.rel (%p8988) target = $region80
      $region79: #{decoder_layer_forward.4} parent=67 // pred_region
        _
      $region80: #{decoder_layer_forward.4} parent=67 // pred_fallthru
        _
    $region68: #{decoder_layer_forward.4} parent=5 // pred_fallthru
      _
    %p8991 = scmp.le.s32.totalorder 2, %s18
    // Predicated region
    $region81: #{decoder_layer_forward.4} parent=5 // pred_check
      %p8992 = pneg %p8991
    $region82: #{decoder_layer_forward.4} parent=5 // pred_check_branch
      %8994 = sbr.rel (%p8992) target = $region84
    $region83: #{decoder_layer_forward.4} parent=5 // pred_region
      %s8995 = ssub.s32 %s18, 2
      // Predicated region
      $region85: #{decoder_layer_forward.4} parent=83 // pred_check
        %p8996 = pneg %p335
      $region86: #{decoder_layer_forward.4} parent=83 // pred_check_branch
        %8998 = sbr.rel (%p8996) target = $region88
      $region87: #{decoder_layer_forward.4} parent=83 // pred_region
        %p8999 = scmp.lt.s32.totalorder %s29, 1
        %s9000 = scalar_select %p8999, %s29, 1
        %s9001 = smul.addr %s9000, 8
        %s9002 = scalar_lea.vmem %s12, %s9001
      $region88: #{decoder_layer_forward.4} parent=83 // pred_fallthru
        _
    $region84: #{decoder_layer_forward.4} parent=5 // pred_fallthru
      _
  $region6: #{decoder_layer_forward.4} parent=0 // loop_footer
    %s22 = sadd.s32 1, %s18
  $region7: #{decoder_layer_forward.4} parent=0 // loop_footer_branch
    %17 = sbr.rel target = $region3
  $region8: #{decoder_layer_forward.4} parent=0 // loop_exit
    _

</llo_original>
